<compile_context>
chip_gen: v7x
topology: tpu7x:2x2x1
jax: 0.10.0
libtpu: 0.0.40
codegen_flags: <defaults>
</compile_context>

<pallas_src>
import functools
import math

import jax
import jax.numpy as jnp
import numpy as np
from jax import lax
from jax.experimental import pallas as pl
from jax.experimental.pallas import tpu as pltpu

# total output stride 16 (conv1+maxpool -> 4, layer2 -> 2, layer3 -> 2, layer4 -> 1)
STAGE_STRIDES = (4, 2, 2, 1)
STAGE_CHANNELS = ((3, 256), (256, 512), (512, 1024), (1024, 2048))

CHUNK = 512  # tile width over the 2048-dim of w4 / gc2 / classifier


# ----------------------------------------------------------------------------
# Fused Pallas kernel: whole forward pass, gridded over 2048-dim weight chunks.
# ----------------------------------------------------------------------------
def _net_kernel(x_ref, w1_ref, w2_ref, w3_ref, w4_ref,
                nodes_ref, s_ref, gc1_ref, gc2_ref, cls_ref,
                logits_ref, x1_ref,
                h3_sc, g1_sc,
                *, batch, hw):
    bf16 = jnp.bfloat16
    f32 = jnp.float32
    k = pl.program_id(0)

    def mm(a, b):
        # bf16 MXU inputs, f32 accumulation.
        return jnp.dot(a.astype(bf16), b.astype(bf16), preferred_element_type=f32)

    relu = lambda v: jnp.maximum(v, 0.0)
    leaky = lambda v: jnp.where(v > 0, v, 0.2 * v)   # nn.LeakyReLU(0.2)

    # ---- one-time prologue (chunk 0): backbone up to 1024ch, GCN layer 1 ------
    @pl.when(k == 0)
    def _():
        h = relu(mm(x_ref[...], w1_ref[...]))        # (B*hw, 256)
        h = relu(mm(h, w2_ref[...]))                 # (B*hw, 512)
        h = relu(mm(h, w3_ref[...]))                 # (B*hw, 1024)
        h3_sc[...] = h.astype(bf16)

        g = mm(nodes_ref[...], gc1_ref[...])         # support1 (N, 1024)
        g = leaky(mm(s_ref[...], g))                 # gc1 + LeakyReLU
        g1_sc[...] = g.astype(bf16)

        logits_ref[...] = jnp.zeros_like(logits_ref)
        x1_ref[...] = jnp.zeros_like(x1_ref)

    # ---- per-chunk work on a 512-wide slice of the 2048 feature dim -----------
    h4 = relu(mm(h3_sc[...], w4_ref[...]))           # (B*hw, CHUNK) f32

    # gap2d fused: per-batch mean over the hw rows (sublane reduction, no pool matmul)
    xf = jnp.concatenate(
        [jnp.mean(h4[b * hw:(b + 1) * hw, :], axis=0, keepdims=True)
         for b in range(batch)], axis=0)             # (B, CHUNK) f32

    # GCN layer 2 on the same chunk: leaky(S @ (g1 @ gc2[:, chunk]))
    g2 = leaky(mm(s_ref[...], mm(g1_sc[...], gc2_ref[...])))   # (N, CHUNK) f32

    xf_b = xf.astype(bf16)
    contract_last = (((1,), (1,)), ((), ()))         # a @ b.T without materializing b.T
    # x1 += xf_chunk @ g_chunk^T
    x1_ref[...] += lax.dot_general(xf_b, g2.astype(bf16), contract_last,
                                   preferred_element_type=f32)
    # logits += xf_chunk @ cls_chunk^T   (cls kept lane-dense (n_classes, 2048))
    logits_ref[...] += lax.dot_general(xf_b, cls_ref[...], contract_last,
                                       preferred_element_type=f32)


# ----------------------------------------------------------------------------
# Parameters (deterministic, in-script).  Weights are stored bf16 once here so
# the jitted forward pass does no per-call casts/transposes.
# ----------------------------------------------------------------------------
def init_params(key, n_classes=20, in_channel=300, num_nodes=20):
    keys = jax.random.split(key, 8)
    bf16 = jnp.bfloat16

    backbone_w = []
    for i, (cin, cout) in enumerate(STAGE_CHANNELS):
        w = jax.random.normal(keys[i], (cin, cout), jnp.float32) / np.sqrt(cin)
        backbone_w.append(w.astype(bf16))

    # GraphConvolution.reset_parameters: uniform(-1/sqrt(out), 1/sqrt(out))
    stdv1 = 1.0 / math.sqrt(1024)
    gc1_w = jax.random.uniform(keys[4], (in_channel, 1024), jnp.float32,
                               -stdv1, stdv1).astype(bf16)
    stdv2 = 1.0 / math.sqrt(2048)
    gc2_w = jax.random.uniform(keys[5], (1024, 2048), jnp.float32,
                               -stdv2, stdv2).astype(bf16)

    # classifier = nn.Conv2d(2048, n_classes, 1, bias=False) -> natural (n_classes, 2048)
    cls_w = (jax.random.normal(keys[6], (n_classes, 2048), jnp.float32)
             / np.sqrt(2048)).astype(bf16)

    # TODO(synk): the real adjacency comes from ./data/voc/CM_kg_57_info.json +
    # normalize_adjacency; a deterministic symmetric-normalized adjacency is
    # synthesized here instead of loading the file.
    A = jax.random.uniform(keys[7], (num_nodes, num_nodes), jnp.float32)
    A = 0.5 * (A + A.T) + jnp.eye(num_nodes, dtype=jnp.float32)
    d_inv_sqrt = 1.0 / jnp.sqrt(jnp.sum(A, axis=1))
    S = (A * d_inv_sqrt[:, None] * d_inv_sqrt[None, :]).astype(bf16)

    return {"backbone_w": backbone_w, "gc1_w": gc1_w, "gc2_w": gc2_w,
            "cls_w": cls_w, "S": S}


# ----------------------------------------------------------------------------
# Forward pass (mirrors Net.forward)
# ----------------------------------------------------------------------------
def net_forward(params, x, inp):
    # TODO(synk): the ResNet50 stages come from an external module
    # (net/resnet50.py, pretrained) that is not provided; each stage is stood
    # in by a strided 1x1 projection + ReLU reproducing the stage's stride and
    # output channel count (256/512/1024/2048).
    B = x.shape[0]
    total_stride = int(np.prod(STAGE_STRIDES))

    # The stand-in stages are per-pixel (1x1) projections, so subsampling
    # commutes with matmul+ReLU: collapse all stage strides onto the input.
    xs = x[:, :, ::total_stride, ::total_stride]               # (B, 3, Ho, Wo)
    _, cin, ho, wo = xs.shape
    hw = ho * wo
    x_rows = jnp.transpose(xs, (0, 2, 3, 1)).reshape(B * hw, cin)  # (B*hw, 3) f32

    w1, w2, w3, w4 = params["backbone_w"]
    nodes = inp[0]                                             # (num_nodes, in_channel) f32
    n_classes = params["cls_w"].shape[0]
    num_nodes = params["S"].shape[0]
    n_out = w4.shape[1]                                        # 2048
    n_chunks = n_out // CHUNK

    def full(shape):
        return pl.BlockSpec(shape, lambda k: (0, 0))

    def chunked(rows):
        return pl.BlockSpec((rows, CHUNK), lambda k: (0, k))

    grid_spec = pltpu.PrefetchScalarGridSpec(
        num_scalar_prefetch=0,
        grid=(n_chunks,),
        in_specs=[
            full((B * hw, cin)),                   # x_rows
            full(w1.shape),                        # w1  (3, 256)
            full(w2.shape),                        # w2  (256, 512)
            full(w3.shape),                        # w3  (512, 1024)
            chunked(w4.shape[0]),                  # w4  (1024, CHUNK), pipelined
            full(nodes.shape),                     # nodes (N, 300)
            full(params["S"].shape),               # S (N, N)
            full(params["gc1_w"].shape),           # gc1 (300, 1024)
            chunked(params["gc2_w"].shape[0]),     # gc2 (1024, CHUNK), pipelined
            chunked(n_classes),                    # cls (n_classes, CHUNK), pipelined
        ],
        out_specs=(full((B, n_classes)), full((B, num_nodes))),
        scratch_shapes=[
            pltpu.VMEM((B * hw, w4.shape[0]), jnp.bfloat16),             # h3
            pltpu.VMEM((num_nodes, params["gc1_w"].shape[1]), jnp.bfloat16),  # g1
        ],
    )

    kernel = functools.partial(_net_kernel, batch=B, hw=hw)
    logits, x1 = pl.pallas_call(
        kernel,
        out_shape=(jax.ShapeDtypeStruct((B, n_classes), jnp.float32),
                   jax.ShapeDtypeStruct((B, num_nodes), jnp.float32)),
        grid_spec=grid_spec,
        compiler_params=pltpu.CompilerParams(
            # chunk axis is a reduction for both heads -> "arbitrary"
            dimension_semantics=("arbitrary",),
            vmem_limit_bytes=24 << 20),
    )(x_rows, w1, w2, w3, w4, nodes, params["S"],
      params["gc1_w"], params["gc2_w"], params["cls_w"])
    return logits, x1


def net_forward_ref(params, x, inp):
    """Pure-JAX f32 reference (same math, per-stage strides, no Pallas)."""
    f32 = jnp.float32
    mm = lambda a, b: jnp.dot(a, b, precision=jax.lax.Precision.HIGHEST)
    leaky = lambda v: jnp.where(v > 0, v, 0.2 * v)
    feat = x
    for w, stride in zip(params["backbone_w"], STAGE_STRIDES):
        feat = feat[:, :, ::stride, ::stride]
        B, C, H, W = feat.shape
        flat = jnp.transpose(feat, (0, 2, 3, 1)).reshape(B * H * W, C)
        out = jnp.maximum(mm(flat, w.astype(f32)), 0.0)
        feat = jnp.transpose(out.reshape(B, H, W, w.shape[1]), (0, 3, 1, 2))
    xf = jnp.mean(feat, axis=(2, 3))
    nodes = inp[0]
    S = params["S"].astype(f32)
    g = leaky(mm(S, mm(nodes, params["gc1_w"].astype(f32))))
    g = leaky(mm(S, mm(g, params["gc2_w"].astype(f32))))
    return mm(xf, params["cls_w"].astype(f32).T), mm(xf, g.T)


if __name__ == "__main__":
    key = jax.random.PRNGKey(0)
    k_params, k_x, k_inp = jax.random.split(key, 3)

    B, H, W = 2, 32, 32
    n_classes, in_channel, num_nodes = 20, 300, 20

    params = init_params(k_params, n_classes, in_channel, num_nodes)
    x = jax.random.normal(k_x, (B, 3, H, W), jnp.float32)
    inp = jax.random.normal(k_inp, (1, num_nodes, in_channel), jnp.float32)

    fwd = jax.jit(net_forward)
    logits, x1 = fwd(params, x, inp)
    jax.block_until_ready((logits, x1))

    assert logits.shape == (B, n_classes) and x1.shape == (B, num_nodes)
    ref_logits, ref_x1 = net_forward_ref(params, x, inp)
    np.testing.assert_allclose(np.asarray(logits), np.asarray(ref_logits),
                               rtol=5e-2, atol=5e-2)
    np.testing.assert_allclose(np.asarray(x1), np.asarray(ref_x1),
                               rtol=5e-2, atol=5e-2)
    print("KERNEL_OK")
</pallas_src>

<mosaic_0001>
module attributes {stable_mosaic.version = 11 : i64} {
  func.func @_net_kernel(%arg0: i32, %arg1: memref<8x3xf32, #tpu.memory_space<vmem>>, %arg2: memref<3x256xbf16, #tpu.memory_space<vmem>>, %arg3: memref<256x512xbf16, #tpu.memory_space<vmem>>, %arg4: memref<512x1024xbf16, #tpu.memory_space<vmem>>, %arg5: memref<1024x512xbf16, #tpu.memory_space<vmem>>, %arg6: memref<20x300xf32, #tpu.memory_space<vmem>>, %arg7: memref<20x20xbf16, #tpu.memory_space<vmem>>, %arg8: memref<300x1024xbf16, #tpu.memory_space<vmem>>, %arg9: memref<1024x512xbf16, #tpu.memory_space<vmem>>, %arg10: memref<20x512xbf16, #tpu.memory_space<vmem>>, %arg11: memref<2x20xf32, #tpu.memory_space<vmem>>, %arg12: memref<2x20xf32, #tpu.memory_space<vmem>>, %arg13: memref<8x1024xbf16, #tpu.memory_space<vmem>>, %arg14: memref<20x1024xbf16, #tpu.memory_space<vmem>>) attributes {dimension_semantics = [#tpu.dimension_semantics<arbitrary>], iteration_bounds = array<i64: 4>, scalar_prefetch = 0 : i64, scratch_operands = 2 : i64, tpu.core_type = #tpu.core_type<tc>, window_params = [{pipeline_mode = #tpu.pipeline_mode<synchronous>, transform_indices = @transform_0, window_bounds = array<i64: 8, 3>}, {pipeline_mode = #tpu.pipeline_mode<synchronous>, transform_indices = @transform_1, window_bounds = array<i64: 3, 256>}, {pipeline_mode = #tpu.pipeline_mode<synchronous>, transform_indices = @transform_2, window_bounds = array<i64: 256, 512>}, {pipeline_mode = #tpu.pipeline_mode<synchronous>, transform_indices = @transform_3, window_bounds = array<i64: 512, 1024>}, {transform_indices = @transform_4, window_bounds = array<i64: 1024, 512>}, {pipeline_mode = #tpu.pipeline_mode<synchronous>, transform_indices = @transform_5, window_bounds = array<i64: 20, 300>}, {pipeline_mode = #tpu.pipeline_mode<synchronous>, transform_indices = @transform_6, window_bounds = array<i64: 20, 20>}, {pipeline_mode = #tpu.pipeline_mode<synchronous>, transform_indices = @transform_7, window_bounds = array<i64: 300, 1024>}, {transform_indices = @transform_8, window_bounds = array<i64: 1024, 512>}, {transform_indices = @transform_9, window_bounds = array<i64: 20, 512>}, {pipeline_mode = #tpu.pipeline_mode<synchronous>, transform_indices = @transform_10, window_bounds = array<i64: 2, 20>}, {pipeline_mode = #tpu.pipeline_mode<synchronous>, transform_indices = @transform_11, window_bounds = array<i64: 2, 20>}]} {
    %c0_i32 = arith.constant 0 : i32
    %0 = arith.cmpi eq, %arg0, %c0_i32 : i32
    %1 = arith.extui %0 : i1 to i32
    %c0_i32_0 = arith.constant 0 : i32
    %2 = arith.cmpi ne, %1, %c0_i32_0 : i32
    scf.if %2 {
      %c0_31 = arith.constant 0 : index
      %c0_32 = arith.constant 0 : index
      %41 = vector.load %arg1[%c0_31, %c0_32] : memref<8x3xf32, #tpu.memory_space<vmem>>, vector<8x3xf32>
      %c0_33 = arith.constant 0 : index
      %c0_34 = arith.constant 0 : index
      %42 = vector.load %arg2[%c0_33, %c0_34] : memref<3x256xbf16, #tpu.memory_space<vmem>>, vector<3x256xbf16>
      %43 = arith.truncf %41 : vector<8x3xf32> to vector<8x3xbf16>
      %cst_35 = arith.constant dense<0.000000e+00> : vector<8x256xf32>
      %44 = tpu.matmul %43, %42, %cst_35 {dimension_numbers = #tpu.dot_dimension_numbers<[1], [0], [0], [1], [0, 0, 1, 1], [], []>} : vector<8x3xbf16>, vector<3x256xbf16>, vector<8x256xf32> -> vector<8x256xf32>
      %cst_36 = arith.constant 0.000000e+00 : f32
      %45 = vector.broadcast %cst_36 : f32 to vector<8x256xf32>
      %46 = arith.maximumf %44, %45 : vector<8x256xf32>
      %c0_37 = arith.constant 0 : index
      %c0_38 = arith.constant 0 : index
      %47 = vector.load %arg3[%c0_37, %c0_38] : memref<256x512xbf16, #tpu.memory_space<vmem>>, vector<256x512xbf16>
      %48 = arith.truncf %46 : vector<8x256xf32> to vector<8x256xbf16>
      %cst_39 = arith.constant dense<0.000000e+00> : vector<8x512xf32>
      %49 = tpu.matmul %48, %47, %cst_39 {dimension_numbers = #tpu.dot_dimension_numbers<[1], [0], [0], [1], [0, 0, 1, 1], [], []>} : vector<8x256xbf16>, vector<256x512xbf16>, vector<8x512xf32> -> vector<8x512xf32>
      %cst_40 = arith.constant 0.000000e+00 : f32
      %50 = vector.broadcast %cst_40 : f32 to vector<8x512xf32>
      %51 = arith.maximumf %49, %50 : vector<8x512xf32>
      %c0_41 = arith.constant 0 : index
      %c0_42 = arith.constant 0 : index
      %52 = vector.load %arg4[%c0_41, %c0_42] : memref<512x1024xbf16, #tpu.memory_space<vmem>>, vector<512x1024xbf16>
      %53 = arith.truncf %51 : vector<8x512xf32> to vector<8x512xbf16>
      %cst_43 = arith.constant dense<0.000000e+00> : vector<8x1024xf32>
      %54 = tpu.matmul %53, %52, %cst_43 {dimension_numbers = #tpu.dot_dimension_numbers<[1], [0], [0], [1], [0, 0, 1, 1], [], []>} : vector<8x512xbf16>, vector<512x1024xbf16>, vector<8x1024xf32> -> vector<8x1024xf32>
      %cst_44 = arith.constant 0.000000e+00 : f32
      %55 = vector.broadcast %cst_44 : f32 to vector<8x1024xf32>
      %56 = arith.maximumf %54, %55 : vector<8x1024xf32>
      %57 = arith.truncf %56 : vector<8x1024xf32> to vector<8x1024xbf16>
      %c0_45 = arith.constant 0 : index
      %c0_46 = arith.constant 0 : index
      %58 = vector.load %arg13[%c0_45, %c0_46] : memref<8x1024xbf16, #tpu.memory_space<vmem>>, vector<8x1024xbf16>
      tpu.vector_store %arg13[%c0_45, %c0_46], %57 {strides = array<i32>} : memref<8x1024xbf16, #tpu.memory_space<vmem>>, vector<8x1024xbf16>,
      %c0_47 = arith.constant 0 : index
      %c0_48 = arith.constant 0 : index
      %59 = vector.load %arg6[%c0_47, %c0_48] : memref<20x300xf32, #tpu.memory_space<vmem>>, vector<20x300xf32>
      %c0_49 = arith.constant 0 : index
      %c0_50 = arith.constant 0 : index
      %60 = vector.load %arg8[%c0_49, %c0_50] : memref<300x1024xbf16, #tpu.memory_space<vmem>>, vector<300x1024xbf16>
      %61 = arith.truncf %59 : vector<20x300xf32> to vector<20x300xbf16>
      %cst_51 = arith.constant dense<0.000000e+00> : vector<20x1024xf32>
      %62 = tpu.matmul %61, %60, %cst_51 {dimension_numbers = #tpu.dot_dimension_numbers<[1], [0], [0], [1], [0, 0, 1, 1], [], []>} : vector<20x300xbf16>, vector<300x1024xbf16>, vector<20x1024xf32> -> vector<20x1024xf32>
      %c0_52 = arith.constant 0 : index
      %c0_53 = arith.constant 0 : index
      %63 = vector.load %arg7[%c0_52, %c0_53] : memref<20x20xbf16, #tpu.memory_space<vmem>>, vector<20x20xbf16>
      %64 = arith.truncf %62 : vector<20x1024xf32> to vector<20x1024xbf16>
      %cst_54 = arith.constant dense<0.000000e+00> : vector<20x1024xf32>
      %65 = tpu.matmul %63, %64, %cst_54 {dimension_numbers = #tpu.dot_dimension_numbers<[1], [0], [0], [1], [0, 0, 1, 1], [], []>} : vector<20x20xbf16>, vector<20x1024xbf16>, vector<20x1024xf32> -> vector<20x1024xf32>
      %cst_55 = arith.constant 0.000000e+00 : f32
      %66 = vector.broadcast %cst_55 : f32 to vector<20x1024xf32>
      %67 = arith.cmpf ogt, %65, %66 : vector<20x1024xf32>
      %cst_56 = arith.constant 2.000000e-01 : f32
      %68 = vector.broadcast %cst_56 : f32 to vector<20x1024xf32>
      %69 = arith.mulf %68, %65 : vector<20x1024xf32>
      %70 = arith.select %67, %65, %69 : vector<20x1024xi1>, vector<20x1024xf32>
      %71 = arith.truncf %70 : vector<20x1024xf32> to vector<20x1024xbf16>
      %c0_57 = arith.constant 0 : index
      %c0_58 = arith.constant 0 : index
      %72 = vector.load %arg14[%c0_57, %c0_58] : memref<20x1024xbf16, #tpu.memory_space<vmem>>, vector<20x1024xbf16>
      tpu.vector_store %arg14[%c0_57, %c0_58], %71 {strides = array<i32>} : memref<20x1024xbf16, #tpu.memory_space<vmem>>, vector<20x1024xbf16>,
      %cst_59 = arith.constant 0.000000e+00 : f32
      %73 = vector.broadcast %cst_59 : f32 to vector<2x20xf32>
      %c0_60 = arith.constant 0 : index
      %c0_61 = arith.constant 0 : index
      %74 = vector.load %arg11[%c0_60, %c0_61] : memref<2x20xf32, #tpu.memory_space<vmem>>, vector<2x20xf32>
      tpu.vector_store %arg11[%c0_60, %c0_61], %73 {strides = array<i32>} : memref<2x20xf32, #tpu.memory_space<vmem>>, vector<2x20xf32>,
      %cst_62 = arith.constant 0.000000e+00 : f32
      %75 = vector.broadcast %cst_62 : f32 to vector<2x20xf32>
      %c0_63 = arith.constant 0 : index
      %c0_64 = arith.constant 0 : index
      %76 = vector.load %arg12[%c0_63, %c0_64] : memref<2x20xf32, #tpu.memory_space<vmem>>, vector<2x20xf32>
      tpu.vector_store %arg12[%c0_63, %c0_64], %75 {strides = array<i32>} : memref<2x20xf32, #tpu.memory_space<vmem>>, vector<2x20xf32>,
    } else {
    }
    %c0 = arith.constant 0 : index
    %c0_1 = arith.constant 0 : index
    %3 = vector.load %arg13[%c0, %c0_1] : memref<8x1024xbf16, #tpu.memory_space<vmem>>, vector<8x1024xbf16>
    %c0_2 = arith.constant 0 : index
    %c0_3 = arith.constant 0 : index
    %4 = vector.load %arg5[%c0_2, %c0_3] : memref<1024x512xbf16, #tpu.memory_space<vmem>>, vector<1024x512xbf16>
    %cst = arith.constant dense<0.000000e+00> : vector<8x512xf32>
    %5 = tpu.matmul %3, %4, %cst {dimension_numbers = #tpu.dot_dimension_numbers<[1], [0], [0], [1], [0, 0, 1, 1], [], []>} : vector<8x1024xbf16>, vector<1024x512xbf16>, vector<8x512xf32> -> vector<8x512xf32>
    %cst_4 = arith.constant 0.000000e+00 : f32
    %6 = vector.broadcast %cst_4 : f32 to vector<8x512xf32>
    %7 = arith.maximumf %5, %6 : vector<8x512xf32>
    %8 = vector.extract_strided_slice %7 {offsets = [0, 0], sizes = [4, 512], strides = [1, 1]} : vector<8x512xf32> to vector<4x512xf32>
    %cst_5 = arith.constant dense<0.000000e+00> : vector<512xf32>
    %9 = vector.multi_reduction <add>, %8, %cst_5 [0] : vector<4x512xf32> to vector<512xf32>
    %10 = vector.shape_cast %9 : vector<512xf32> to vector<1x512xf32>
    %cst_6 = arith.constant 4.000000e+00 : f32
    %11 = vector.broadcast %cst_6 : f32 to vector<1x512xf32>
    %12 = arith.divf %10, %11 : vector<1x512xf32>
    %13 = vector.extract_strided_slice %7 {offsets = [4, 0], sizes = [4, 512], strides = [1, 1]} : vector<8x512xf32> to vector<4x512xf32>
    %cst_7 = arith.constant dense<0.000000e+00> : vector<512xf32>
    %14 = vector.multi_reduction <add>, %13, %cst_7 [0] : vector<4x512xf32> to vector<512xf32>
    %15 = vector.shape_cast %14 : vector<512xf32> to vector<1x512xf32>
    %cst_8 = arith.constant 4.000000e+00 : f32
    %16 = vector.broadcast %cst_8 : f32 to vector<1x512xf32>
    %17 = arith.divf %15, %16 : vector<1x512xf32>
    %18 = tpu.concatenate %12, %17 in 0 : vector<1x512xf32>, vector<1x512xf32> -> vector<2x512xf32>
    %c0_9 = arith.constant 0 : index
    %c0_10 = arith.constant 0 : index
    %19 = vector.load %arg7[%c0_9, %c0_10] : memref<20x20xbf16, #tpu.memory_space<vmem>>, vector<20x20xbf16>
    %c0_11 = arith.constant 0 : index
    %c0_12 = arith.constant 0 : index
    %20 = vector.load %arg14[%c0_11, %c0_12] : memref<20x1024xbf16, #tpu.memory_space<vmem>>, vector<20x1024xbf16>
    %c0_13 = arith.constant 0 : index
    %c0_14 = arith.constant 0 : index
    %21 = vector.load %arg9[%c0_13, %c0_14] : memref<1024x512xbf16, #tpu.memory_space<vmem>>, vector<1024x512xbf16>
    %cst_15 = arith.constant dense<0.000000e+00> : vector<20x512xf32>
    %22 = tpu.matmul %20, %21, %cst_15 {dimension_numbers = #tpu.dot_dimension_numbers<[1], [0], [0], [1], [0, 0, 1, 1], [], []>} : vector<20x1024xbf16>, vector<1024x512xbf16>, vector<20x512xf32> -> vector<20x512xf32>
    %23 = arith.truncf %22 : vector<20x512xf32> to vector<20x512xbf16>
    %cst_16 = arith.constant dense<0.000000e+00> : vector<20x512xf32>
    %24 = tpu.matmul %19, %23, %cst_16 {dimension_numbers = #tpu.dot_dimension_numbers<[1], [0], [0], [1], [0, 0, 1, 1], [], []>} : vector<20x20xbf16>, vector<20x512xbf16>, vector<20x512xf32> -> vector<20x512xf32>
    %cst_17 = arith.constant 0.000000e+00 : f32
    %25 = vector.broadcast %cst_17 : f32 to vector<20x512xf32>
    %26 = arith.cmpf ogt, %24, %25 : vector<20x512xf32>
    %cst_18 = arith.constant 2.000000e-01 : f32
    %27 = vector.broadcast %cst_18 : f32 to vector<20x512xf32>
    %28 = arith.mulf %27, %24 : vector<20x512xf32>
    %29 = arith.select %26, %24, %28 : vector<20x512xi1>, vector<20x512xf32>
    %30 = arith.truncf %18 : vector<2x512xf32> to vector<2x512xbf16>
    %c0_19 = arith.constant 0 : index
    %c0_20 = arith.constant 0 : index
    %31 = vector.load %arg12[%c0_19, %c0_20] : memref<2x20xf32, #tpu.memory_space<vmem>>, vector<2x20xf32>
    %32 = arith.truncf %29 : vector<20x512xf32> to vector<20x512xbf16>
    %cst_21 = arith.constant dense<0.000000e+00> : vector<2x20xf32>
    %33 = tpu.matmul %30, %32, %cst_21 {dimension_numbers = #tpu.dot_dimension_numbers<[1], [1], [0], [0], [0, 0, 1, 0], [], []>} : vector<2x512xbf16>, vector<20x512xbf16>, vector<2x20xf32> -> vector<2x20xf32>
    %34 = arith.addf %31, %33 : vector<2x20xf32>
    %c0_22 = arith.constant 0 : index
    %c0_23 = arith.constant 0 : index
    %35 = vector.load %arg12[%c0_22, %c0_23] : memref<2x20xf32, #tpu.memory_space<vmem>>, vector<2x20xf32>
    tpu.vector_store %arg12[%c0_22, %c0_23], %34 {strides = array<i32>} : memref<2x20xf32, #tpu.memory_space<vmem>>, vector<2x20xf32>,
    %c0_24 = arith.constant 0 : index
    %c0_25 = arith.constant 0 : index
    %36 = vector.load %arg11[%c0_24, %c0_25] : memref<2x20xf32, #tpu.memory_space<vmem>>, vector<2x20xf32>
    %c0_26 = arith.constant 0 : index
    %c0_27 = arith.constant 0 : index
    %37 = vector.load %arg10[%c0_26, %c0_27] : memref<20x512xbf16, #tpu.memory_space<vmem>>, vector<20x512xbf16>
    %cst_28 = arith.constant dense<0.000000e+00> : vector<2x20xf32>
    %38 = tpu.matmul %30, %37, %cst_28 {dimension_numbers = #tpu.dot_dimension_numbers<[1], [1], [0], [0], [0, 0, 1, 0], [], []>} : vector<2x512xbf16>, vector<20x512xbf16>, vector<2x20xf32> -> vector<2x20xf32>
    %39 = arith.addf %36, %38 : vector<2x20xf32>
    %c0_29 = arith.constant 0 : index
    %c0_30 = arith.constant 0 : index
    %40 = vector.load %arg11[%c0_29, %c0_30] : memref<2x20xf32, #tpu.memory_space<vmem>>, vector<2x20xf32>
    tpu.vector_store %arg11[%c0_29, %c0_30], %39 {strides = array<i32>} : memref<2x20xf32, #tpu.memory_space<vmem>>, vector<2x20xf32>,
    return
  }
  func.func @transform_0(%arg0: i32) -> (i32, i32) {
    %c0_i32 = arith.constant 0 : i32
    %c0_i32_0 = arith.constant 0 : i32
    %c0_i32_1 = arith.constant 0 : i32
    return %c0_i32, %c0_i32_0 : i32, i32
  }
  func.func @transform_1(%arg0: i32) -> (i32, i32) {
    %c0_i32 = arith.constant 0 : i32
    %c0_i32_0 = arith.constant 0 : i32
    %c0_i32_1 = arith.constant 0 : i32
    return %c0_i32, %c0_i32_0 : i32, i32
  }
  func.func @transform_2(%arg0: i32) -> (i32, i32) {
    %c0_i32 = arith.constant 0 : i32
    %c0_i32_0 = arith.constant 0 : i32
    %c0_i32_1 = arith.constant 0 : i32
    return %c0_i32, %c0_i32_0 : i32, i32
  }
  func.func @transform_3(%arg0: i32) -> (i32, i32) {
    %c0_i32 = arith.constant 0 : i32
    %c0_i32_0 = arith.constant 0 : i32
    %c0_i32_1 = arith.constant 0 : i32
    return %c0_i32, %c0_i32_0 : i32, i32
  }
  func.func @transform_4(%arg0: i32) -> (i32, i32) {
    %c0_i32 = arith.constant 0 : i32
    %c0_i32_0 = arith.constant 0 : i32
    return %c0_i32, %arg0 : i32, i32
  }
  func.func @transform_5(%arg0: i32) -> (i32, i32) {
    %c0_i32 = arith.constant 0 : i32
    %c0_i32_0 = arith.constant 0 : i32
    %c0_i32_1 = arith.constant 0 : i32
    return %c0_i32, %c0_i32_0 : i32, i32
  }
  func.func @transform_6(%arg0: i32) -> (i32, i32) {
    %c0_i32 = arith.constant 0 : i32
    %c0_i32_0 = arith.constant 0 : i32
    %c0_i32_1 = arith.constant 0 : i32
    return %c0_i32, %c0_i32_0 : i32, i32
  }
  func.func @transform_7(%arg0: i32) -> (i32, i32) {
    %c0_i32 = arith.constant 0 : i32
    %c0_i32_0 = arith.constant 0 : i32
    %c0_i32_1 = arith.constant 0 : i32
    return %c0_i32, %c0_i32_0 : i32, i32
  }
  func.func @transform_8(%arg0: i32) -> (i32, i32) {
    %c0_i32 = arith.constant 0 : i32
    %c0_i32_0 = arith.constant 0 : i32
    return %c0_i32, %arg0 : i32, i32
  }
  func.func @transform_9(%arg0: i32) -> (i32, i32) {
    %c0_i32 = arith.constant 0 : i32
    %c0_i32_0 = arith.constant 0 : i32
    return %c0_i32, %arg0 : i32, i32
  }
  func.func @transform_10(%arg0: i32) -> (i32, i32) {
    %c0_i32 = arith.constant 0 : i32
    %c0_i32_0 = arith.constant 0 : i32
    %c0_i32_1 = arith.constant 0 : i32
    return %c0_i32, %c0_i32_0 : i32, i32
  }
  func.func @transform_11(%arg0: i32) -> (i32, i32) {
    %c0_i32 = arith.constant 0 : i32
    %c0_i32_0 = arith.constant 0 : i32
    %c0_i32_1 = arith.constant 0 : i32
    return %c0_i32, %c0_i32_0 : i32, i32
  }
}

</mosaic_0001>

<llo_original>
// kernel: net_forward.1
$region0: #{net_forward.1}
  #allocation0 [shape = 'u32[]', space=smem, size = 0x4, offset = 0x4, fixed_abs, tag = 'smem constant byte address 0x4 - core index']
  #allocation1 [shape = 'u32[144,128]{1,0:T(1,128)}', space=vmem, size = 0x12000, scoped, tag = 'internal scratch']
  #allocation2 [shape = 'bf16[8,1024]{1,0:T(8,128)(2,1)}', space=vmem, size = 0x4000, scoped, tag = 'scratch operand']
  #allocation3 [shape = 'bf16[20,1024]{1,0:T(8,128)(2,1)}', space=vmem, size = 0xc000, scoped, tag = 'scratch operand']
  %s0 = inlined_call_operand.vmem [shape: f32[8,3], index: 0, kind: input, shape index: {}]
  %s1 = inlined_call_operand.hbm [shape: bf16[3,256], index: 1, kind: input, shape index: {}]
  %s2 = inlined_call_operand.hbm [shape: bf16[256,512], index: 2, kind: input, shape index: {}]
  %s3 = inlined_call_operand.hbm [shape: bf16[512,1024], index: 3, kind: input, shape index: {}]
  %s4 = inlined_call_operand.hbm [shape: bf16[1024,2048], index: 4, kind: input, shape index: {}]
  %s5 = inlined_call_operand.vmem [shape: f32[20,300], index: 5, kind: input, shape index: {}]
  %s6 = inlined_call_operand.hbm [shape: bf16[20,20], index: 6, kind: input, shape index: {}]
  %s7 = inlined_call_operand.hbm [shape: bf16[300,1024], index: 7, kind: input, shape index: {}]
  %s8 = inlined_call_operand.hbm [shape: bf16[1024,2048], index: 8, kind: input, shape index: {}]
  %s9 = inlined_call_operand.hbm [shape: bf16[20,2048], index: 9, kind: input, shape index: {}]
  %s10 = inlined_call_operand.hbm [shape: f32[2,20], index: 10, kind: output, shape index: {0}]
  %s11 = inlined_call_operand.hbm [shape: f32[2,20], index: 11, kind: output, shape index: {1}]
  %12 = xla_tuple %s10, %s11
  %s13 = sld [smem:[#allocation0]]
  $region117: #{net_forward.1} parent=0
    _
  %s15 = ssub.s32 1, %s13
  %s16 = scalar_select 0, %s15, %s13
  $region1: #{net_forward.1} parent=0
    #allocation4 [shape = 'u8[2048]{0}', space=vmem, size = 0x800, scoped, tag = 'input window, operand 1, single buffered']
    #allocation5 [shape = 's32[2]{0}', space=sflag, size = 0x8, scoped, tag = 'scoped memory for net_forward.1']
    #allocation6 [shape = 's32[2]{0}', space=sflag, size = 0x8, scoped, tag = 'scoped memory for net_forward.1']
    #allocation7 [shape = 'u8[262144]{0}', space=vmem, size = 0x40000, scoped, tag = 'input window, operand 2, single buffered']
    #allocation8 [shape = 's32[1]{0}', space=sflag, size = 0x4, scoped, tag = 'scoped memory for net_forward.1']
    #allocation9 [shape = 'u8[1048576]{0}', space=vmem, size = 0x100000, scoped, tag = 'input window, operand 3, single buffered']
    #allocation10 [shape = 'u8[2097152]{0}', space=vmem, size = 0x200000, scoped, tag = 'input window, operand 4']
    #allocation11 [shape = 's32[2]{0}', space=sflag, size = 0x8, scoped, tag = 'scoped memory for net_forward.1']
    #allocation12 [shape = 'u8[6144]{0}', space=vmem, size = 0x1800, scoped, tag = 'input window, operand 6, single buffered']
    #allocation13 [shape = 'u8[622592]{0}', space=vmem, size = 0x98000, scoped, tag = 'input window, operand 7, single buffered']
    #allocation14 [shape = 's32[1]{0}', space=sflag, size = 0x4, scoped, tag = 'scoped memory for net_forward.1']
    #allocation15 [shape = 'u8[2097152]{0}', space=vmem, size = 0x200000, scoped, tag = 'input window, operand 8']
    #allocation16 [shape = 'u8[49152]{0}', space=vmem, size = 0xc000, scoped, tag = 'input window, operand 9']
    #allocation17 [shape = 'u8[1024]{0}', space=vmem, size = 0x400, scoped, tag = 'output window, operand 0, single buffered']
    #allocation18 [shape = 'u8[1024]{0}', space=vmem, size = 0x400, scoped, tag = 'output window, operand 1, single buffered']
    #allocation19 [shape = 's32[1]{0}', space=sflag, size = 0x4, scoped, tag = 'scoped memory for net_forward.1']
    %17 = vsyncpa [#allocation5], 0
    %18 = vsyncpa [#allocation8], 0
    %19 = vsyncpa [#allocation11], 0
    %s20 = scalar_lea.sflag [#allocation11], 1
    %21 = vsyncpa %s20, 0
    %22 = vsyncpa [#allocation14], 0
    %23 = vsyncpa [#allocation6], 0
    %24 = vsyncpa [#allocation19], 0
    loop: start=0, step=1, limit=6
    $region2: #{net_forward.1} parent=1 // loop_pre_header
      _
    $region3: #{net_forward.1} parent=1 // loop_header
      %s26 = sphi 0, %s30
      %p27 = scmp.ge.s32.totalorder %s26, 6
      %s34 = sphi 0, %s34
      %s36 = sphi 0, %s34
      %s37 = sphi 0, %s36
      %s51 = sphi 0, %s37
      %s55 = sphi 0, %s55
      %s57 = sphi 0, %s55
      %s58 = sphi 0, %s57
      %s72 = sphi 0, %s58
      %s76 = sphi 0, %s76
      %s78 = sphi 0, %s76
      %s79 = sphi 0, %s78
      %s93 = sphi 0, %s79
      %s97 = sphi 0, %s97
      %s99 = sphi 0, %s97
      %s100 = sphi 0, %s99
      %s114 = sphi 0, %s100
      %s120 = sphi 0, %s122
      %s123 = sphi 0, %s120
      %s124 = sphi 0, %s123
      %s140 = sphi 0, %s124
      %s144 = sphi 0, %s144
      %s146 = sphi 0, %s144
      %s147 = sphi 0, %s146
      %s161 = sphi 0, %s147
      %s165 = sphi 0, %s165
      %s167 = sphi 0, %s165
      %s168 = sphi 0, %s167
      %s182 = sphi 0, %s168
      %s186 = sphi 0, %s186
      %s188 = sphi 0, %s186
      %s189 = sphi 0, %s188
      %s203 = sphi 0, %s189
      %s209 = sphi 0, %s211
      %s212 = sphi 0, %s209
      %s213 = sphi 0, %s212
      %s229 = sphi 0, %s213
      %s235 = sphi 0, %s237
      %s238 = sphi 0, %s235
      %s239 = sphi 0, %s238
      %s255 = sphi 0, %s239
      %s259 = sphi 0, %s259
      %s261 = sphi 0, %s259
      %s262 = sphi 0, %s261
      %s276 = sphi 0, %s262
      %s280 = sphi 0, %s280
      %s282 = sphi 0, %s280
      %s283 = sphi 0, %s282
      %s297 = sphi 0, %s283
    $region4: #{net_forward.1} parent=1 // loop_header_branch
      %29 = sbr.rel (%p27) target = $region8
    $region5: #{net_forward.1} parent=1 // loop_body
      %s31 = ssub.s32 %s26, 1
      %s32 = ssub.s32 %s26, 2
      %s33 = sadd.s32 %s26, 1
      %s35 = sadd.s32 %s34, 1
      %p38 = scmp.eq.s32.totalorder %s26, 3
      %p39 = scmp.ne.s32.totalorder %s34, %s36
      %p40 = scmp.eq.s32.totalorder %s26, 0
      %p41 = por %p39, %p40
      %p42 = scmp.ne.s32.totalorder %s34, %s36
      %p43 = scmp.eq.s32.totalorder %s31, 3
      %p44 = por %p42, %p43
      %p45 = scmp.ne.s32.totalorder %s36, %s37
      %p46 = scmp.eq.s32.totalorder %s31, 0
      %p47 = por %p45, %p46
      %p48 = scmp.ne.s32.totalorder %s36, %s37
      %p49 = scmp.eq.s32.totalorder %s32, 3
      %p50 = por %p48, %p49
      %p52 = scmp.ne.s32.totalorder %s37, %s51
      %p53 = scmp.eq.s32.totalorder %s32, 0
      %p54 = por %p52, %p53
      %s56 = sadd.s32 %s55, 1
      %p59 = scmp.eq.s32.totalorder %s26, 3
      %p60 = scmp.ne.s32.totalorder %s55, %s57
      %p61 = scmp.eq.s32.totalorder %s26, 0
      %p62 = por %p60, %p61
      %p63 = scmp.ne.s32.totalorder %s55, %s57
      %p64 = scmp.eq.s32.totalorder %s31, 3
      %p65 = por %p63, %p64
      %p66 = scmp.ne.s32.totalorder %s57, %s58
      %p67 = scmp.eq.s32.totalorder %s31, 0
      %p68 = por %p66, %p67
      %p69 = scmp.ne.s32.totalorder %s57, %s58
      %p70 = scmp.eq.s32.totalorder %s32, 3
      %p71 = por %p69, %p70
      %p73 = scmp.ne.s32.totalorder %s58, %s72
      %p74 = scmp.eq.s32.totalorder %s32, 0
      %p75 = por %p73, %p74
      %s77 = sadd.s32 %s76, 1
      %p80 = scmp.eq.s32.totalorder %s26, 3
      %p81 = scmp.ne.s32.totalorder %s76, %s78
      %p82 = scmp.eq.s32.totalorder %s26, 0
      %p83 = por %p81, %p82
      %p84 = scmp.ne.s32.totalorder %s76, %s78
      %p85 = scmp.eq.s32.totalorder %s31, 3
      %p86 = por %p84, %p85
      %p87 = scmp.ne.s32.totalorder %s78, %s79
      %p88 = scmp.eq.s32.totalorder %s31, 0
      %p89 = por %p87, %p88
      %p90 = scmp.ne.s32.totalorder %s78, %s79
      %p91 = scmp.eq.s32.totalorder %s32, 3
      %p92 = por %p90, %p91
      %p94 = scmp.ne.s32.totalorder %s79, %s93
      %p95 = scmp.eq.s32.totalorder %s32, 0
      %p96 = por %p94, %p95
      %s98 = sadd.s32 %s97, 1
      %p101 = scmp.eq.s32.totalorder %s26, 3
      %p102 = scmp.ne.s32.totalorder %s97, %s99
      %p103 = scmp.eq.s32.totalorder %s26, 0
      %p104 = por %p102, %p103
      %p105 = scmp.ne.s32.totalorder %s97, %s99
      %p106 = scmp.eq.s32.totalorder %s31, 3
      %p107 = por %p105, %p106
      %p108 = scmp.ne.s32.totalorder %s99, %s100
      %p109 = scmp.eq.s32.totalorder %s31, 0
      %p110 = por %p108, %p109
      %p111 = scmp.ne.s32.totalorder %s99, %s100
      %p112 = scmp.eq.s32.totalorder %s32, 3
      %p113 = por %p111, %p112
      %p115 = scmp.ne.s32.totalorder %s100, %s114
      %p116 = scmp.eq.s32.totalorder %s32, 0
      %p117 = por %p115, %p116
      %s118 = ssub.s32 %s26, %s33
      %p119 = scmp.eq.s32.totalorder %s118, 0
      %s121 = sadd.s32 %s120, 1
      %s122 = scalar_select %p119, %s120, %s121
      %p125 = pneg %p119
      %p126 = scmp.eq.s32.totalorder %s26, 3
      %p127 = por %p125, %p126
      %p128 = scmp.ne.s32.totalorder %s120, %s123
      %p129 = scmp.eq.s32.totalorder %s26, 0
      %p130 = por %p128, %p129
      %p131 = scmp.ne.s32.totalorder %s120, %s123
      %p132 = scmp.eq.s32.totalorder %s31, 3
      %p133 = por %p131, %p132
      %p134 = scmp.ne.s32.totalorder %s123, %s124
      %p135 = scmp.eq.s32.totalorder %s31, 0
      %p136 = por %p134, %p135
      %p137 = scmp.ne.s32.totalorder %s123, %s124
      %p138 = scmp.eq.s32.totalorder %s32, 3
      %p139 = por %p137, %p138
      %p141 = scmp.ne.s32.totalorder %s124, %s140
      %p142 = scmp.eq.s32.totalorder %s32, 0
      %p143 = por %p141, %p142
      %s145 = sadd.s32 %s144, 1
      %p148 = scmp.eq.s32.totalorder %s26, 3
      %p149 = scmp.ne.s32.totalorder %s144, %s146
      %p150 = scmp.eq.s32.totalorder %s26, 0
      %p151 = por %p149, %p150
      %p152 = scmp.ne.s32.totalorder %s144, %s146
      %p153 = scmp.eq.s32.totalorder %s31, 3
      %p154 = por %p152, %p153
      %p155 = scmp.ne.s32.totalorder %s146, %s147
      %p156 = scmp.eq.s32.totalorder %s31, 0
      %p157 = por %p155, %p156
      %p158 = scmp.ne.s32.totalorder %s146, %s147
      %p159 = scmp.eq.s32.totalorder %s32, 3
      %p160 = por %p158, %p159
      %p162 = scmp.ne.s32.totalorder %s147, %s161
      %p163 = scmp.eq.s32.totalorder %s32, 0
      %p164 = por %p162, %p163
      %s166 = sadd.s32 %s165, 1
      %p169 = scmp.eq.s32.totalorder %s26, 3
      %p170 = scmp.ne.s32.totalorder %s165, %s167
      %p171 = scmp.eq.s32.totalorder %s26, 0
      %p172 = por %p170, %p171
      %p173 = scmp.ne.s32.totalorder %s165, %s167
      %p174 = scmp.eq.s32.totalorder %s31, 3
      %p175 = por %p173, %p174
      %p176 = scmp.ne.s32.totalorder %s167, %s168
      %p177 = scmp.eq.s32.totalorder %s31, 0
      %p178 = por %p176, %p177
      %p179 = scmp.ne.s32.totalorder %s167, %s168
      %p180 = scmp.eq.s32.totalorder %s32, 3
      %p181 = por %p179, %p180
      %p183 = scmp.ne.s32.totalorder %s168, %s182
      %p184 = scmp.eq.s32.totalorder %s32, 0
      %p185 = por %p183, %p184
      %s187 = sadd.s32 %s186, 1
      %p190 = scmp.eq.s32.totalorder %s26, 3
      %p191 = scmp.ne.s32.totalorder %s186, %s188
      %p192 = scmp.eq.s32.totalorder %s26, 0
      %p193 = por %p191, %p192
      %p194 = scmp.ne.s32.totalorder %s186, %s188
      %p195 = scmp.eq.s32.totalorder %s31, 3
      %p196 = por %p194, %p195
      %p197 = scmp.ne.s32.totalorder %s188, %s189
      %p198 = scmp.eq.s32.totalorder %s31, 0
      %p199 = por %p197, %p198
      %p200 = scmp.ne.s32.totalorder %s188, %s189
      %p201 = scmp.eq.s32.totalorder %s32, 3
      %p202 = por %p200, %p201
      %p204 = scmp.ne.s32.totalorder %s189, %s203
      %p205 = scmp.eq.s32.totalorder %s32, 0
      %p206 = por %p204, %p205
      %s207 = ssub.s32 %s26, %s33
      %p208 = scmp.eq.s32.totalorder %s207, 0
      %s210 = sadd.s32 %s209, 1
      %s211 = scalar_select %p208, %s209, %s210
      %p214 = pneg %p208
      %p215 = scmp.eq.s32.totalorder %s26, 3
      %p216 = por %p214, %p215
      %p217 = scmp.ne.s32.totalorder %s209, %s212
      %p218 = scmp.eq.s32.totalorder %s26, 0
      %p219 = por %p217, %p218
      %p220 = scmp.ne.s32.totalorder %s209, %s212
      %p221 = scmp.eq.s32.totalorder %s31, 3
      %p222 = por %p220, %p221
      %p223 = scmp.ne.s32.totalorder %s212, %s213
      %p224 = scmp.eq.s32.totalorder %s31, 0
      %p225 = por %p223, %p224
      %p226 = scmp.ne.s32.totalorder %s212, %s213
      %p227 = scmp.eq.s32.totalorder %s32, 3
      %p228 = por %p226, %p227
      %p230 = scmp.ne.s32.totalorder %s213, %s229
      %p231 = scmp.eq.s32.totalorder %s32, 0
      %p232 = por %p230, %p231
      %s233 = ssub.s32 %s26, %s33
      %p234 = scmp.eq.s32.totalorder %s233, 0
      %s236 = sadd.s32 %s235, 1
      %s237 = scalar_select %p234, %s235, %s236
      %p240 = pneg %p234
      %p241 = scmp.eq.s32.totalorder %s26, 3
      %p242 = por %p240, %p241
      %p243 = scmp.ne.s32.totalorder %s235, %s238
      %p244 = scmp.eq.s32.totalorder %s26, 0
      %p245 = por %p243, %p244
      %p246 = scmp.ne.s32.totalorder %s235, %s238
      %p247 = scmp.eq.s32.totalorder %s31, 3
      %p248 = por %p246, %p247
      %p249 = scmp.ne.s32.totalorder %s238, %s239
      %p250 = scmp.eq.s32.totalorder %s31, 0
      %p251 = por %p249, %p250
      %p252 = scmp.ne.s32.totalorder %s238, %s239
      %p253 = scmp.eq.s32.totalorder %s32, 3
      %p254 = por %p252, %p253
      %p256 = scmp.ne.s32.totalorder %s239, %s255
      %p257 = scmp.eq.s32.totalorder %s32, 0
      %p258 = por %p256, %p257
      %s260 = sadd.s32 %s259, 1
      %p263 = scmp.eq.s32.totalorder %s26, 3
      %p264 = scmp.ne.s32.totalorder %s259, %s261
      %p265 = scmp.eq.s32.totalorder %s26, 0
      %p266 = por %p264, %p265
      %p267 = scmp.ne.s32.totalorder %s259, %s261
      %p268 = scmp.eq.s32.totalorder %s31, 3
      %p269 = por %p267, %p268
      %p270 = scmp.ne.s32.totalorder %s261, %s262
      %p271 = scmp.eq.s32.totalorder %s31, 0
      %p272 = por %p270, %p271
      %p273 = scmp.ne.s32.totalorder %s261, %s262
      %p274 = scmp.eq.s32.totalorder %s32, 3
      %p275 = por %p273, %p274
      %p277 = scmp.ne.s32.totalorder %s262, %s276
      %p278 = scmp.eq.s32.totalorder %s32, 0
      %p279 = por %p277, %p278
      %s281 = sadd.s32 %s280, 1
      %p284 = scmp.eq.s32.totalorder %s26, 3
      %p285 = scmp.ne.s32.totalorder %s280, %s282
      %p286 = scmp.eq.s32.totalorder %s26, 0
      %p287 = por %p285, %p286
      %p288 = scmp.ne.s32.totalorder %s280, %s282
      %p289 = scmp.eq.s32.totalorder %s31, 3
      %p290 = por %p288, %p289
      %p291 = scmp.ne.s32.totalorder %s282, %s283
      %p292 = scmp.eq.s32.totalorder %s31, 0
      %p293 = por %p291, %p292
      %p294 = scmp.ne.s32.totalorder %s282, %s283
      %p295 = scmp.eq.s32.totalorder %s32, 3
      %p296 = por %p294, %p295
      %p298 = scmp.ne.s32.totalorder %s283, %s297
      %p299 = scmp.eq.s32.totalorder %s32, 0
      %p300 = por %p298, %p299
      %p301 = scmp.le.s32.totalorder 1, %s26
      %p302 = scmp.lt.s32.totalorder %s26, 5
      %p303 = pnand %p301, %p302
      %p304 = pneg %p303
      // Predicated region
      $region9: #{net_forward.1} parent=5 // pred_check
        _
      $region10: #{net_forward.1} parent=5 // pred_check_branch
        %306 = sbr.rel (%p303) target = $region12
      $region11: #{net_forward.1} parent=5 // pred_region
        %s307 = ssub.s32 %s26, 1
        // Predicated region
        $region13: #{net_forward.1} parent=11 // pred_check
          %p308 = pneg %p47
        $region14: #{net_forward.1} parent=11 // pred_check_branch
          %310 = sbr.rel (%p308) target = $region16
        $region15: #{net_forward.1} parent=11 // pred_region
          _
        $region16: #{net_forward.1} parent=11 // pred_fallthru
          _
        // Predicated region
        $region17: #{net_forward.1} parent=11 // pred_check
          %p311 = pneg %p68
        $region18: #{net_forward.1} parent=11 // pred_check_branch
          %313 = sbr.rel (%p311) target = $region20
        $region19: #{net_forward.1} parent=11 // pred_region
          %s315 = ssub.s32 64, 64
          %316 = vsyncadd [#allocation5], %s315
          %s318 = sshll.u32 [#allocation4], 4
          %s319 = int_to_ptr.vmem [resolvable:$true] %s318
          %321 = dma.hbm_to_vmem [thread:$0]  %s1, 64, %s319, [#allocation5]
        $region20: #{net_forward.1} parent=11 // pred_fallthru
          _
        // Predicated region
        $region21: #{net_forward.1} parent=11 // pred_check
          %p322 = pneg %p89
        $region22: #{net_forward.1} parent=11 // pred_check_branch
          %324 = sbr.rel (%p322) target = $region24
        $region23: #{net_forward.1} parent=11 // pred_region
          %s326 = ssub.s32 8192, 8192
          %327 = vsyncadd [#allocation8], %s326
          %s328 = sshll.u32 [#allocation7], 4
          %s329 = int_to_ptr.vmem [resolvable:$true] %s328
          %334 = dma.hbm_to_vmem [thread:$0]  %s2, 8192, %s329, [#allocation8], 256, 256, 16
        $region24: #{net_forward.1} parent=11 // pred_fallthru
          _
        // Predicated region
        $region25: #{net_forward.1} parent=11 // pred_check
          %p335 = pneg %p110
        $region26: #{net_forward.1} parent=11 // pred_check_branch
          %337 = sbr.rel (%p335) target = $region28
        $region27: #{net_forward.1} parent=11 // pred_region
          %s339 = ssub.s32 32768, 32768
          %340 = vsyncadd [#allocation8], %s339
          %s341 = sshll.u32 [#allocation9], 4
          %s342 = int_to_ptr.vmem [resolvable:$true] %s341
          %347 = dma.hbm_to_vmem [thread:$0]  %s3, 32768, %s342, [#allocation8], 512, 512, 32
        $region28: #{net_forward.1} parent=11 // pred_fallthru
          _
        // Predicated region
        $region29: #{net_forward.1} parent=11 // pred_check
          %p348 = pneg %p157
        $region30: #{net_forward.1} parent=11 // pred_check_branch
          %350 = sbr.rel (%p348) target = $region32
        $region31: #{net_forward.1} parent=11 // pred_region
          _
        $region32: #{net_forward.1} parent=11 // pred_fallthru
          _
        // Predicated region
        $region33: #{net_forward.1} parent=11 // pred_check
          %p351 = pneg %p178
        $region34: #{net_forward.1} parent=11 // pred_check_branch
          %353 = sbr.rel (%p351) target = $region36
        $region35: #{net_forward.1} parent=11 // pred_region
          %s355 = ssub.s32 192, 192
          %356 = vsyncadd [#allocation11], %s355
          %s357 = sshll.u32 [#allocation12], 4
          %s358 = int_to_ptr.vmem [resolvable:$true] %s357
          %363 = dma.hbm_to_vmem [thread:$0]  %s6, 192, %s358, [#allocation11], 64, 64, 4
        $region36: #{net_forward.1} parent=11 // pred_fallthru
          _
        // Predicated region
        $region37: #{net_forward.1} parent=11 // pred_check
          %p364 = pneg %p199
        $region38: #{net_forward.1} parent=11 // pred_check_branch
          %366 = sbr.rel (%p364) target = $region40
        $region39: #{net_forward.1} parent=11 // pred_region
          %s368 = ssub.s32 19456, 19456
          %369 = vsyncadd [#allocation14], %s368
          %s370 = sshll.u32 [#allocation13], 4
          %s371 = int_to_ptr.vmem [resolvable:$true] %s370
          %376 = dma.hbm_to_vmem [thread:$0]  %s7, 19456, %s371, [#allocation14], 512, 512, 32
        $region40: #{net_forward.1} parent=11 // pred_fallthru
          _
      $region12: #{net_forward.1} parent=5 // pred_fallthru
        _
      %p377 = scmp.lt.s32.totalorder %s26, 4
      // Predicated region
      $region41: #{net_forward.1} parent=5 // pred_check
        %p378 = pneg %p377
      $region42: #{net_forward.1} parent=5 // pred_check_branch
        %380 = sbr.rel (%p378) target = $region44
      $region43: #{net_forward.1} parent=5 // pred_region
        // Predicated region
        $region45: #{net_forward.1} parent=43 // pred_check
          %p381 = pneg %p130
        $region46: #{net_forward.1} parent=43 // pred_check_branch
          %383 = sbr.rel (%p381) target = $region48
        $region47: #{net_forward.1} parent=43 // pred_region
          %s384 = sand.u32 %s26, 1
          %s385 = scalar_lea.sflag [#allocation11], %s384
          %s386 = sand.u32 %s120, 1
          %s387 = smul.addr %s386, 2048
          %s388 = scalar_lea.vmem [#allocation10], %s387
          %s389 = smul.u32 4, %s26
          %s391 = ssub.s32 32768, 32768
          %392 = vsyncadd %s385, %s391
          %s393 = smul.addr %s389, 64
          %s394 = scalar_lea.hbm %s4, %s393
          %s395 = sshll.u32 %s388, 4
          %s396 = int_to_ptr.vmem [resolvable:$true] %s395
          %401 = dma.hbm_to_vmem [thread:$0]  %s394, 32768, %s396, %s385, 1024, 256, 16
        $region48: #{net_forward.1} parent=43 // pred_fallthru
          _
        // Predicated region
        $region49: #{net_forward.1} parent=43 // pred_check
          %p402 = pneg %p219
        $region50: #{net_forward.1} parent=43 // pred_check_branch
          %404 = sbr.rel (%p402) target = $region52
        $region51: #{net_forward.1} parent=43 // pred_region
          %s405 = sand.u32 %s26, 1
          %s406 = scalar_lea.sflag [#allocation5], %s405
          %s407 = sand.u32 %s209, 1
          %s408 = smul.addr %s407, 2048
          %s409 = scalar_lea.vmem [#allocation15], %s408
          %s410 = smul.u32 4, %s26
          %s412 = ssub.s32 32768, 32768
          %413 = vsyncadd %s406, %s412
          %s414 = smul.addr %s410, 64
          %s415 = scalar_lea.hbm %s8, %s414
          %s416 = sshll.u32 %s409, 4
          %s417 = int_to_ptr.vmem [resolvable:$true] %s416
          %422 = dma.hbm_to_vmem [thread:$0]  %s415, 32768, %s417, %s406, 1024, 256, 16
        $region52: #{net_forward.1} parent=43 // pred_fallthru
          _
        // Predicated region
        $region53: #{net_forward.1} parent=43 // pred_check
          %p423 = pneg %p245
        $region54: #{net_forward.1} parent=43 // pred_check_branch
          %425 = sbr.rel (%p423) target = $region56
        $region55: #{net_forward.1} parent=43 // pred_region
          %s426 = sand.u32 %s26, 1
          %s427 = scalar_lea.sflag [#allocation11], %s426
          %s428 = sand.u32 %s235, 1
          %s429 = smul.addr %s428, 48
          %s430 = scalar_lea.vmem [#allocation16], %s429
          %s431 = smul.u32 4, %s26
          %s433 = ssub.s32 768, 768
          %434 = vsyncadd %s427, %s433
          %s435 = smul.addr %s431, 64
          %s436 = scalar_lea.hbm %s9, %s435
          %s437 = sshll.u32 %s430, 4
          %s438 = int_to_ptr.vmem [resolvable:$true] %s437
          %443 = dma.hbm_to_vmem [thread:$0]  %s436, 768, %s438, %s427, 1024, 256, 16
        $region56: #{net_forward.1} parent=43 // pred_fallthru
          _
      $region44: #{net_forward.1} parent=5 // pred_fallthru
        _
      %p444 = scmp.le.s32.totalorder 1, %s26
      %p445 = scmp.lt.s32.totalorder %s26, 5
      %p446 = pnand %p444, %p445
      %p447 = pneg %p446
      // Predicated region
      $region57: #{net_forward.1} parent=5 // pred_check
        _
      $region58: #{net_forward.1} parent=5 // pred_check_branch
        %449 = sbr.rel (%p446) target = $region60
      $region59: #{net_forward.1} parent=5 // pred_region
        %s450 = ssub.s32 %s26, 1
        // Predicated region
        $region61: #{net_forward.1} parent=59 // pred_check
          %p451 = pneg %p68
        $region62: #{net_forward.1} parent=59 // pred_check_branch
          %453 = sbr.rel (%p451) target = $region64
        $region63: #{net_forward.1} parent=59 // pred_region
          %454 = dma.done [#allocation5], 64
        $region64: #{net_forward.1} parent=59 // pred_fallthru
          _
        // Predicated region
        $region65: #{net_forward.1} parent=59 // pred_check
          %p455 = pneg %p89
        $region66: #{net_forward.1} parent=59 // pred_check_branch
          %457 = sbr.rel (%p455) target = $region68
        $region67: #{net_forward.1} parent=59 // pred_region
          %458 = dma.done [#allocation8], 8192
        $region68: #{net_forward.1} parent=59 // pred_fallthru
          _
        // Predicated region
        $region69: #{net_forward.1} parent=59 // pred_check
          %p459 = pneg %p110
        $region70: #{net_forward.1} parent=59 // pred_check_branch
          %461 = sbr.rel (%p459) target = $region72
        $region71: #{net_forward.1} parent=59 // pred_region
          %462 = dma.done [#allocation8], 32768
        $region72: #{net_forward.1} parent=59 // pred_fallthru
          _
        %s463 = sand.u32 %s31, 1
        %s464 = scalar_lea.sflag [#allocation11], %s463
        %s465 = sand.u32 %s123, 1
        %s466 = smul.addr %s465, 2048
        %s467 = scalar_lea.vmem [#allocation10], %s466
        // Predicated region
        $region73: #{net_forward.1} parent=59 // pred_check
          %p468 = pneg %p136
        $region74: #{net_forward.1} parent=59 // pred_check_branch
          %470 = sbr.rel (%p468) target = $region76
        $region75: #{net_forward.1} parent=59 // pred_region
          %471 = dma.done %s464, 32768
        $region76: #{net_forward.1} parent=59 // pred_fallthru
          _
        // Predicated region
        $region77: #{net_forward.1} parent=59 // pred_check
          %p472 = pneg %p178
        $region78: #{net_forward.1} parent=59 // pred_check_branch
          %474 = sbr.rel (%p472) target = $region80
        $region79: #{net_forward.1} parent=59 // pred_region
          %475 = dma.done [#allocation11], 192
        $region80: #{net_forward.1} parent=59 // pred_fallthru
          _
        // Predicated region
        $region81: #{net_forward.1} parent=59 // pred_check
          %p476 = pneg %p199
        $region82: #{net_forward.1} parent=59 // pred_check_branch
          %478 = sbr.rel (%p476) target = $region84
        $region83: #{net_forward.1} parent=59 // pred_region
          %479 = dma.done [#allocation14], 19456
        $region84: #{net_forward.1} parent=59 // pred_fallthru
          _
        %s480 = sand.u32 %s31, 1
        %s481 = scalar_lea.sflag [#allocation5], %s480
        %s482 = sand.u32 %s212, 1
        %s483 = smul.addr %s482, 2048
        %s484 = scalar_lea.vmem [#allocation15], %s483
        // Predicated region
        $region85: #{net_forward.1} parent=59 // pred_check
          %p485 = pneg %p225
        $region86: #{net_forward.1} parent=59 // pred_check_branch
          %487 = sbr.rel (%p485) target = $region88
        $region87: #{net_forward.1} parent=59 // pred_region
          %488 = dma.done %s481, 32768
        $region88: #{net_forward.1} parent=59 // pred_fallthru
          _
        %s489 = sand.u32 %s31, 1
        %s490 = scalar_lea.sflag [#allocation11], %s489
        %s491 = sand.u32 %s238, 1
        %s492 = smul.addr %s491, 48
        %s493 = scalar_lea.vmem [#allocation16], %s492
        // Predicated region
        $region89: #{net_forward.1} parent=59 // pred_check
          %p494 = pneg %p251
        $region90: #{net_forward.1} parent=59 // pred_check_branch
          %496 = sbr.rel (%p494) target = $region92
        $region91: #{net_forward.1} parent=59 // pred_region
          %497 = dma.done %s490, 768
        $region92: #{net_forward.1} parent=59 // pred_fallthru
          _
        %p498 = pneg %p47
        %p499 = pneg %p44
        %p500 = pneg %p68
        %p501 = pneg %p65
        %p502 = pneg %p89
        %p503 = pneg %p86
        %p504 = pneg %p110
        %p505 = pneg %p107
        %s506 = sand.u32 %s31, 1
        %s507 = scalar_lea.sflag [#allocation11], %s506
        %s508 = sand.u32 %s123, 1
        %s509 = smul.addr %s508, 2048
        %s510 = scalar_lea.vmem [#allocation10], %s509
        %p511 = pneg %p136
        %p512 = pneg %p133
        %p513 = pneg %p157
        %p514 = pneg %p154
        %p515 = pneg %p178
        %p516 = pneg %p175
        %p517 = pneg %p199
        %p518 = pneg %p196
        %s519 = sand.u32 %s31, 1
        %s520 = scalar_lea.sflag [#allocation5], %s519
        %s521 = sand.u32 %s212, 1
        %s522 = smul.addr %s521, 2048
        %s523 = scalar_lea.vmem [#allocation15], %s522
        %p524 = pneg %p225
        %p525 = pneg %p222
        %s526 = sand.u32 %s31, 1
        %s527 = scalar_lea.sflag [#allocation11], %s526
        %s528 = sand.u32 %s238, 1
        %s529 = smul.addr %s528, 48
        %s530 = scalar_lea.vmem [#allocation16], %s529
        %p531 = pneg %p251
        %p532 = pneg %p248
        %p533 = pneg %p272
        %p534 = pneg %p269
        %p535 = pneg %p293
        %p536 = pneg %p290
        %s537 = smul.u32 4, %s31
        %s538 = smul.u32 4, %s31
        %s539 = smul.u32 4, %s31
        %p541 = scmp.eq.s32.totalorder %s31, 0
        // Predicated region
        $region93: #{net_forward.1} parent=59 // pred_check
          %p542 = pneg %p541
        $region94: #{net_forward.1} parent=59 // pred_check_branch
          %544 = sbr.rel (%p542) target = $region96
        $region95: #{net_forward.1} parent=59 // pred_region
          %v545 = vld [vmem:[%s0] sm:$0xff]
          %v546 = vld [vmem:[#allocation4] sm:$0xf]
          %v547 = vpack.c.bf16 %v545, %v545
          %v550 = vunpack.c.l.s4 1983009808
          %v551 = vunpack.c.0.s8 %v550
          %v552 = vlaneseq
          %v553 = vshrl.u32 %v552, 7
          %v554 = vsub.s32 %v551, %v553
          %v555 = vrot.slane %v546, %v554
          %v556 = vcombine.high %v555, %v555
          %vm557 = vcmask 23552
          %v559 = vsel %vm557, %v547, 0
          %vm561 = vcmask 1040384
          %vm562 = vcmask 1041408
          %v563 = vsel %vm561, 4294967295, 65535
          %v564 = vsel %vm562, %v563, 0
          %v566 = vand.u32 %v555, %v564
          %v569 = vand.u32 %v556, %v564
          %571 = vmatprep.subr.bf16.mxu0 %v569
          %572 = vmatpush1.bf16.msra.mxu0 %v566
          %573 = vmatprep.subr.bf16.mxu0 0
          %574 = vmatpush1.bf16.msra.mxu0 0
          %575 = vmatprep.subr.bf16.mxu0 0
          %576 = vmatpush1.bf16.msra.mxu0 0
          %577 = vmatprep.subr.bf16.mxu0 0
          %578 = vmatpush1.bf16.msra.mxu0 0
          %579 = vmatprep.subr.bf16.mxu0 0
          %580 = vmatpush1.bf16.msra.mxu0 0
          %581 = vmatprep.subr.bf16.mxu0 0
          %582 = vmatpush1.bf16.msra.mxu0 0
          %583 = vmatprep.subr.bf16.mxu0 0
          %584 = vmatpush1.bf16.msra.mxu0 0
          %585 = vmatprep.subr.bf16.mxu0 0
          %586 = vmatpush1.bf16.msra.mxu0 0
          %587 = vmatprep.subr.bf16.mxu0 0
          %588 = vmatpush1.bf16.msra.mxu0 0
          %589 = vmatprep.subr.bf16.mxu0 0
          %590 = vmatpush1.bf16.msra.mxu0 0
          %591 = vmatprep.subr.bf16.mxu0 0
          %592 = vmatpush1.bf16.msra.mxu0 0
          %593 = vmatprep.subr.bf16.mxu0 0
          %594 = vmatpush1.bf16.msra.mxu0 0
          %595 = vmatprep.subr.bf16.mxu0 0
          %596 = vmatpush1.bf16.msra.mxu0 0
          %597 = vmatprep.subr.bf16.mxu0 0
          %598 = vmatpush1.bf16.msra.mxu0 0
          %599 = vmatprep.subr.bf16.mxu0 0
          %600 = vmatpush1.bf16.msra.mxu0 0
          %601 = vmatprep.subr.bf16.mxu0 0
          %602 = vmatpush1.bf16.msra.mxu0 0
          %603 = vmatprep.mubr.bf16.mxu0 0
          %604 = vmatmul.mubr.bf16.gmra.mrb[0].mxu0 %v559
          %v605 = vpop.f32.mrb[0].mxu0
          %v606 = vadd.f32 0.0, %v605
          %v607 = vpop.f32.mrb[0].mxu0
          %v608 = vadd.f32 0.0, %v607
          %v609 = vpop.f32.mrb[0].mxu0
          %v610 = vpop.f32.mrb[0].mxu0
          %611 = vdwg.mxu0
          %v612 = vmax.f32 %v606, 0.0
          %v613 = vmax.f32 %v608, 0.0
          %v614 = vld [vmem:[#allocation7] sm:$0xff]
          %v615 = vld [vmem:[#allocation7 + $0x8] sm:$0xff]
          %v616 = vld [vmem:[#allocation7 + $0x10] sm:$0xff]
          %v617 = vld [vmem:[#allocation7 + $0x18] sm:$0xff]
          %v618 = vld [vmem:[#allocation7 + $0x20] sm:$0xff]
          %v619 = vld [vmem:[#allocation7 + $0x28] sm:$0xff]
          %v620 = vld [vmem:[#allocation7 + $0x30] sm:$0xff]
          %v621 = vld [vmem:[#allocation7 + $0x38] sm:$0xff]
          %v622 = vld [vmem:[#allocation7 + $0x40] sm:$0xff]
          %v623 = vld [vmem:[#allocation7 + $0x48] sm:$0xff]
          %v624 = vld [vmem:[#allocation7 + $0x50] sm:$0xff]
          %v625 = vld [vmem:[#allocation7 + $0x58] sm:$0xff]
          %v626 = vld [vmem:[#allocation7 + $0x60] sm:$0xff]
          %v627 = vld [vmem:[#allocation7 + $0x68] sm:$0xff]
          %v628 = vld [vmem:[#allocation7 + $0x70] sm:$0xff]
          %v629 = vld [vmem:[#allocation7 + $0x78] sm:$0xff]
          %v630 = vld [vmem:[#allocation7 + $0x80] sm:$0xff]
          %v631 = vld [vmem:[#allocation7 + $0x88] sm:$0xff]
          %v632 = vld [vmem:[#allocation7 + $0x90] sm:$0xff]
          %v633 = vld [vmem:[#allocation7 + $0x98] sm:$0xff]
          %v634 = vld [vmem:[#allocation7 + $0xa0] sm:$0xff]
          %v635 = vld [vmem:[#allocation7 + $0xa8] sm:$0xff]
          %v636 = vld [vmem:[#allocation7 + $0xb0] sm:$0xff]
          %v637 = vld [vmem:[#allocation7 + $0xb8] sm:$0xff]
          %v638 = vld [vmem:[#allocation7 + $0xc0] sm:$0xff]
          %v639 = vld [vmem:[#allocation7 + $0xc8] sm:$0xff]
          %v640 = vld [vmem:[#allocation7 + $0xd0] sm:$0xff]
          %v641 = vld [vmem:[#allocation7 + $0xd8] sm:$0xff]
          %v642 = vld [vmem:[#allocation7 + $0xe0] sm:$0xff]
          %v643 = vld [vmem:[#allocation7 + $0xe8] sm:$0xff]
          %v644 = vld [vmem:[#allocation7 + $0xf0] sm:$0xff]
          %v645 = vld [vmem:[#allocation7 + $0xf8] sm:$0xff]
          %v646 = vld [vmem:[#allocation7 + $0x100] sm:$0xff]
          %v647 = vld [vmem:[#allocation7 + $0x108] sm:$0xff]
          %v648 = vld [vmem:[#allocation7 + $0x110] sm:$0xff]
          %v649 = vld [vmem:[#allocation7 + $0x118] sm:$0xff]
          %v650 = vld [vmem:[#allocation7 + $0x120] sm:$0xff]
          %v651 = vld [vmem:[#allocation7 + $0x128] sm:$0xff]
          %v652 = vld [vmem:[#allocation7 + $0x130] sm:$0xff]
          %v653 = vld [vmem:[#allocation7 + $0x138] sm:$0xff]
          %v654 = vld [vmem:[#allocation7 + $0x140] sm:$0xff]
          %v655 = vld [vmem:[#allocation7 + $0x148] sm:$0xff]
          %v656 = vld [vmem:[#allocation7 + $0x150] sm:$0xff]
          %v657 = vld [vmem:[#allocation7 + $0x158] sm:$0xff]
          %v658 = vld [vmem:[#allocation7 + $0x160] sm:$0xff]
          %v659 = vld [vmem:[#allocation7 + $0x168] sm:$0xff]
          %v660 = vld [vmem:[#allocation7 + $0x170] sm:$0xff]
          %v661 = vld [vmem:[#allocation7 + $0x178] sm:$0xff]
          %v662 = vld [vmem:[#allocation7 + $0x180] sm:$0xff]
          %v663 = vld [vmem:[#allocation7 + $0x188] sm:$0xff]
          %v664 = vld [vmem:[#allocation7 + $0x190] sm:$0xff]
          %v665 = vld [vmem:[#allocation7 + $0x198] sm:$0xff]
          %v666 = vld [vmem:[#allocation7 + $0x1a0] sm:$0xff]
          %v667 = vld [vmem:[#allocation7 + $0x1a8] sm:$0xff]
          %v668 = vld [vmem:[#allocation7 + $0x1b0] sm:$0xff]
          %v669 = vld [vmem:[#allocation7 + $0x1b8] sm:$0xff]
          %v670 = vld [vmem:[#allocation7 + $0x1c0] sm:$0xff]
          %v671 = vld [vmem:[#allocation7 + $0x1c8] sm:$0xff]
          %v672 = vld [vmem:[#allocation7 + $0x1d0] sm:$0xff]
          %v673 = vld [vmem:[#allocation7 + $0x1d8] sm:$0xff]
          %v674 = vld [vmem:[#allocation7 + $0x1e0] sm:$0xff]
          %v675 = vld [vmem:[#allocation7 + $0x1e8] sm:$0xff]
          %v676 = vld [vmem:[#allocation7 + $0x1f0] sm:$0xff]
          %v677 = vld [vmem:[#allocation7 + $0x1f8] sm:$0xff]
          %v678 = vpack.c.bf16 %v612, %v612
          %v679 = vpack.c.bf16 %v613, %v613
          %v744 = vunpack.c.l.b16 %v614
          %v745 = vunpack.c.h.b16 %v614
          %v746 = vunpack.c.l.b16 %v615
          %v747 = vunpack.c.h.b16 %v615
          %v748 = vunpack.c.l.b16 %v616
          %v749 = vunpack.c.h.b16 %v616
          %v750 = vunpack.c.l.b16 %v617
          %v751 = vunpack.c.h.b16 %v617
          %v752 = vunpack.c.l.b16 %v618
          %v753 = vunpack.c.h.b16 %v618
          %v754 = vunpack.c.l.b16 %v619
          %v755 = vunpack.c.h.b16 %v619
          %v756 = vunpack.c.l.b16 %v620
          %v757 = vunpack.c.h.b16 %v620
          %v758 = vunpack.c.l.b16 %v621
          %v759 = vunpack.c.h.b16 %v621
          %v760 = vunpack.c.l.b16 %v622
          %v761 = vunpack.c.h.b16 %v622
          %v762 = vunpack.c.l.b16 %v623
          %v763 = vunpack.c.h.b16 %v623
          %v764 = vunpack.c.l.b16 %v624
          %v765 = vunpack.c.h.b16 %v624
          %v766 = vunpack.c.l.b16 %v625
          %v767 = vunpack.c.h.b16 %v625
          %v768 = vunpack.c.l.b16 %v626
          %v769 = vunpack.c.h.b16 %v626
          %v770 = vunpack.c.l.b16 %v627
          %v771 = vunpack.c.h.b16 %v627
          %v772 = vunpack.c.l.b16 %v628
          %v773 = vunpack.c.h.b16 %v628
          %v774 = vunpack.c.l.b16 %v629
          %v775 = vunpack.c.h.b16 %v629
          %v776 = vunpack.c.l.b16 %v630
          %v777 = vunpack.c.h.b16 %v630
          %v778 = vunpack.c.l.b16 %v631
          %v779 = vunpack.c.h.b16 %v631
          %v780 = vunpack.c.l.b16 %v632
          %v781 = vunpack.c.h.b16 %v632
          %v782 = vunpack.c.l.b16 %v633
          %v783 = vunpack.c.h.b16 %v633
          %v784 = vunpack.c.l.b16 %v634
          %v785 = vunpack.c.h.b16 %v634
          %v786 = vunpack.c.l.b16 %v635
          %v787 = vunpack.c.h.b16 %v635
          %v788 = vunpack.c.l.b16 %v636
          %v789 = vunpack.c.h.b16 %v636
          %v790 = vunpack.c.l.b16 %v637
          %v791 = vunpack.c.h.b16 %v637
          %v792 = vunpack.c.l.b16 %v638
          %v793 = vunpack.c.h.b16 %v638
          %v794 = vunpack.c.l.b16 %v639
          %v795 = vunpack.c.h.b16 %v639
          %v796 = vunpack.c.l.b16 %v640
          %v797 = vunpack.c.h.b16 %v640
          %v798 = vunpack.c.l.b16 %v641
          %v799 = vunpack.c.h.b16 %v641
          %v800 = vunpack.c.l.b16 %v642
          %v801 = vunpack.c.h.b16 %v642
          %v802 = vunpack.c.l.b16 %v643
          %v803 = vunpack.c.h.b16 %v643
          %v804 = vunpack.c.l.b16 %v644
          %v805 = vunpack.c.h.b16 %v644
          %v806 = vunpack.c.l.b16 %v645
          %v807 = vunpack.c.h.b16 %v645
          %v808 = vunpack.c.l.b16 %v646
          %v809 = vunpack.c.h.b16 %v646
          %v810 = vunpack.c.l.b16 %v647
          %v811 = vunpack.c.h.b16 %v647
          %v812 = vunpack.c.l.b16 %v648
          %v813 = vunpack.c.h.b16 %v648
          %v814 = vunpack.c.l.b16 %v649
          %v815 = vunpack.c.h.b16 %v649
          %v816 = vunpack.c.l.b16 %v650
          %v817 = vunpack.c.h.b16 %v650
          %v818 = vunpack.c.l.b16 %v651
          %v819 = vunpack.c.h.b16 %v651
          %v820 = vunpack.c.l.b16 %v652
          %v821 = vunpack.c.h.b16 %v652
          %v822 = vunpack.c.l.b16 %v653
          %v823 = vunpack.c.h.b16 %v653
          %v824 = vunpack.c.l.b16 %v654
          %v825 = vunpack.c.h.b16 %v654
          %v826 = vunpack.c.l.b16 %v655
          %v827 = vunpack.c.h.b16 %v655
          %v828 = vunpack.c.l.b16 %v656
          %v829 = vunpack.c.h.b16 %v656
          %v830 = vunpack.c.l.b16 %v657
          %v831 = vunpack.c.h.b16 %v657
          %v832 = vunpack.c.l.b16 %v658
          %v833 = vunpack.c.h.b16 %v658
          %v834 = vunpack.c.l.b16 %v659
          %v835 = vunpack.c.h.b16 %v659
          %v836 = vunpack.c.l.b16 %v660
          %v837 = vunpack.c.h.b16 %v660
          %v838 = vunpack.c.l.b16 %v661
          %v839 = vunpack.c.h.b16 %v661
          %v840 = vunpack.c.l.b16 %v662
          %v841 = vunpack.c.h.b16 %v662
          %v842 = vunpack.c.l.b16 %v663
          %v843 = vunpack.c.h.b16 %v663
          %v844 = vunpack.c.l.b16 %v664
          %v845 = vunpack.c.h.b16 %v664
          %v846 = vunpack.c.l.b16 %v665
          %v847 = vunpack.c.h.b16 %v665
          %v848 = vunpack.c.l.b16 %v666
          %v849 = vunpack.c.h.b16 %v666
          %v850 = vunpack.c.l.b16 %v667
          %v851 = vunpack.c.h.b16 %v667
          %v852 = vunpack.c.l.b16 %v668
          %v853 = vunpack.c.h.b16 %v668
          %v854 = vunpack.c.l.b16 %v669
          %v855 = vunpack.c.h.b16 %v669
          %v856 = vunpack.c.l.b16 %v670
          %v857 = vunpack.c.h.b16 %v670
          %v858 = vunpack.c.l.b16 %v671
          %v859 = vunpack.c.h.b16 %v671
          %v860 = vunpack.c.l.b16 %v672
          %v861 = vunpack.c.h.b16 %v672
          %v862 = vunpack.c.l.b16 %v673
          %v863 = vunpack.c.h.b16 %v673
          %v864 = vunpack.c.l.b16 %v674
          %v865 = vunpack.c.h.b16 %v674
          %v866 = vunpack.c.l.b16 %v675
          %v867 = vunpack.c.h.b16 %v675
          %v868 = vunpack.c.l.b16 %v676
          %v869 = vunpack.c.h.b16 %v676
          %v870 = vunpack.c.l.b16 %v677
          %v871 = vunpack.c.h.b16 %v677
          %v872 = vpack.c.b16 %v748, %v744
          %v873 = vpack.c.b16 %v749, %v745
          %v874 = vpack.c.b16 %v750, %v746
          %v875 = vpack.c.b16 %v751, %v747
          %v876 = vpack.c.b16 %v756, %v752
          %v877 = vpack.c.b16 %v757, %v753
          %v878 = vpack.c.b16 %v758, %v754
          %v879 = vpack.c.b16 %v759, %v755
          %v880 = vpack.c.b16 %v764, %v760
          %v881 = vpack.c.b16 %v765, %v761
          %v882 = vpack.c.b16 %v766, %v762
          %v883 = vpack.c.b16 %v767, %v763
          %v884 = vpack.c.b16 %v772, %v768
          %v885 = vpack.c.b16 %v773, %v769
          %v886 = vpack.c.b16 %v774, %v770
          %v887 = vpack.c.b16 %v775, %v771
          %v888 = vpack.c.b16 %v780, %v776
          %v889 = vpack.c.b16 %v781, %v777
          %v890 = vpack.c.b16 %v782, %v778
          %v891 = vpack.c.b16 %v783, %v779
          %v892 = vpack.c.b16 %v788, %v784
          %v893 = vpack.c.b16 %v789, %v785
          %v894 = vpack.c.b16 %v790, %v786
          %v895 = vpack.c.b16 %v791, %v787
          %v896 = vpack.c.b16 %v796, %v792
          %v897 = vpack.c.b16 %v797, %v793
          %v898 = vpack.c.b16 %v798, %v794
          %v899 = vpack.c.b16 %v799, %v795
          %v900 = vpack.c.b16 %v804, %v800
          %v901 = vpack.c.b16 %v805, %v801
          %v902 = vpack.c.b16 %v806, %v802
          %v903 = vpack.c.b16 %v807, %v803
          %v904 = vpack.c.b16 %v812, %v808
          %v905 = vpack.c.b16 %v813, %v809
          %v906 = vpack.c.b16 %v814, %v810
          %v907 = vpack.c.b16 %v815, %v811
          %v908 = vpack.c.b16 %v820, %v816
          %v909 = vpack.c.b16 %v821, %v817
          %v910 = vpack.c.b16 %v822, %v818
          %v911 = vpack.c.b16 %v823, %v819
          %v912 = vpack.c.b16 %v828, %v824
          %v913 = vpack.c.b16 %v829, %v825
          %v914 = vpack.c.b16 %v830, %v826
          %v915 = vpack.c.b16 %v831, %v827
          %v916 = vpack.c.b16 %v836, %v832
          %v917 = vpack.c.b16 %v837, %v833
          %v918 = vpack.c.b16 %v838, %v834
          %v919 = vpack.c.b16 %v839, %v835
          %v920 = vpack.c.b16 %v844, %v840
          %v921 = vpack.c.b16 %v845, %v841
          %v922 = vpack.c.b16 %v846, %v842
          %v923 = vpack.c.b16 %v847, %v843
          %v924 = vpack.c.b16 %v852, %v848
          %v925 = vpack.c.b16 %v853, %v849
          %v926 = vpack.c.b16 %v854, %v850
          %v927 = vpack.c.b16 %v855, %v851
          %v928 = vpack.c.b16 %v860, %v856
          %v929 = vpack.c.b16 %v861, %v857
          %v930 = vpack.c.b16 %v862, %v858
          %v931 = vpack.c.b16 %v863, %v859
          %v932 = vpack.c.b16 %v868, %v864
          %v933 = vpack.c.b16 %v869, %v865
          %v934 = vpack.c.b16 %v870, %v866
          %v935 = vpack.c.b16 %v871, %v867
          %1000 = vmatprep.subr.bf16.mxu0 %v873
          %1001 = vmatpush1.bf16.msra.mxu0 %v872
          %1002 = vmatprep.subr.bf16.mxu0 %v877
          %1003 = vmatpush1.bf16.msra.mxu0 %v876
          %1004 = vmatprep.subr.bf16.mxu0 %v881
          %1005 = vmatpush1.bf16.msra.mxu0 %v880
          %1006 = vmatprep.subr.bf16.mxu0 %v885
          %1007 = vmatpush1.bf16.msra.mxu0 %v884
          %1008 = vmatprep.subr.bf16.mxu0 %v889
          %1009 = vmatpush1.bf16.msra.mxu0 %v888
          %1010 = vmatprep.subr.bf16.mxu0 %v893
          %1011 = vmatpush1.bf16.msra.mxu0 %v892
          %1012 = vmatprep.subr.bf16.mxu0 %v897
          %1013 = vmatpush1.bf16.msra.mxu0 %v896
          %1014 = vmatprep.subr.bf16.mxu0 %v901
          %1015 = vmatpush1.bf16.msra.mxu0 %v900
          %1016 = vmatprep.subr.bf16.mxu0 %v905
          %1017 = vmatpush1.bf16.msra.mxu0 %v904
          %1018 = vmatprep.subr.bf16.mxu0 %v909
          %1019 = vmatpush1.bf16.msra.mxu0 %v908
          %1020 = vmatprep.subr.bf16.mxu0 %v913
          %1021 = vmatpush1.bf16.msra.mxu0 %v912
          %1022 = vmatprep.subr.bf16.mxu0 %v917
          %1023 = vmatpush1.bf16.msra.mxu0 %v916
          %1024 = vmatprep.subr.bf16.mxu0 %v921
          %1025 = vmatpush1.bf16.msra.mxu0 %v920
          %1026 = vmatprep.subr.bf16.mxu0 %v925
          %1027 = vmatpush1.bf16.msra.mxu0 %v924
          %1028 = vmatprep.subr.bf16.mxu0 %v929
          %1029 = vmatpush1.bf16.msra.mxu0 %v928
          %1030 = vmatprep.subr.bf16.mxu0 %v933
          %1031 = vmatpush1.bf16.msra.mxu0 %v932
          %1032 = vmatprep.mubr.bf16.mxu0 %v679
          %1033 = vmatmul.mubr.bf16.gmra.mrb[0].mxu0 %v678
          %v1034 = vpop.f32.mrb[0].mxu0
          %v1035 = vadd.f32 0.0, %v1034
          %v1036 = vpop.f32.mrb[0].mxu0
          %v1037 = vadd.f32 0.0, %v1036
          %v1038 = vpop.f32.mrb[0].mxu0
          %v1039 = vpop.f32.mrb[0].mxu0
          %1040 = vdwg.mxu0
          %1041 = vmatprep.subr.bf16.mxu0 %v875
          %1042 = vmatpush1.bf16.msra.mxu0 %v874
          %1043 = vmatprep.subr.bf16.mxu0 %v879
          %1044 = vmatpush1.bf16.msra.mxu0 %v878
          %1045 = vmatprep.subr.bf16.mxu0 %v883
          %1046 = vmatpush1.bf16.msra.mxu0 %v882
          %1047 = vmatprep.subr.bf16.mxu0 %v887
          %1048 = vmatpush1.bf16.msra.mxu0 %v886
          %1049 = vmatprep.subr.bf16.mxu0 %v891
          %1050 = vmatpush1.bf16.msra.mxu0 %v890
          %1051 = vmatprep.subr.bf16.mxu0 %v895
          %1052 = vmatpush1.bf16.msra.mxu0 %v894
          %1053 = vmatprep.subr.bf16.mxu0 %v899
          %1054 = vmatpush1.bf16.msra.mxu0 %v898
          %1055 = vmatprep.subr.bf16.mxu0 %v903
          %1056 = vmatpush1.bf16.msra.mxu0 %v902
          %1057 = vmatprep.subr.bf16.mxu0 %v907
          %1058 = vmatpush1.bf16.msra.mxu0 %v906
          %1059 = vmatprep.subr.bf16.mxu0 %v911
          %1060 = vmatpush1.bf16.msra.mxu0 %v910
          %1061 = vmatprep.subr.bf16.mxu0 %v915
          %1062 = vmatpush1.bf16.msra.mxu0 %v914
          %1063 = vmatprep.subr.bf16.mxu0 %v919
          %1064 = vmatpush1.bf16.msra.mxu0 %v918
          %1065 = vmatprep.subr.bf16.mxu0 %v923
          %1066 = vmatpush1.bf16.msra.mxu0 %v922
          %1067 = vmatprep.subr.bf16.mxu0 %v927
          %1068 = vmatpush1.bf16.msra.mxu0 %v926
          %1069 = vmatprep.subr.bf16.mxu0 %v931
          %1070 = vmatpush1.bf16.msra.mxu0 %v930
          %1071 = vmatprep.subr.bf16.mxu0 %v935
          %1072 = vmatpush1.bf16.msra.mxu0 %v934
          %1073 = vmatprep.mubr.bf16.mxu0 %v679
          %1074 = vmatmul.mubr.bf16.gmra.mrb[0].mxu0 %v678
          %v1075 = vpop.f32.mrb[0].mxu0
          %v1076 = vadd.f32 0.0, %v1075
          %v1077 = vpop.f32.mrb[0].mxu0
          %v1078 = vadd.f32 0.0, %v1077
          %v1079 = vpop.f32.mrb[0].mxu0
          %v1080 = vpop.f32.mrb[0].mxu0
          %1081 = vdwg.mxu0
          %v1082 = vmax.f32 %v1035, 0.0
          %v1083 = vmax.f32 %v1037, 0.0
          %v1084 = vmax.f32 %v1076, 0.0
          %v1085 = vmax.f32 %v1078, 0.0
          %v1086 = vld [vmem:[#allocation9] sm:$0xff]
          %v1087 = vld [vmem:[#allocation9 + $0x8] sm:$0xff]
          %v1088 = vld [vmem:[#allocation9 + $0x10] sm:$0xff]
          %v1089 = vld [vmem:[#allocation9 + $0x18] sm:$0xff]
          %v1090 = vld [vmem:[#allocation9 + $0x20] sm:$0xff]
          %v1091 = vld [vmem:[#allocation9 + $0x28] sm:$0xff]
          %v1092 = vld [vmem:[#allocation9 + $0x30] sm:$0xff]
          %v1093 = vld [vmem:[#allocation9 + $0x38] sm:$0xff]
          %v1094 = vld [vmem:[#allocation9 + $0x40] sm:$0xff]
          %v1095 = vld [vmem:[#allocation9 + $0x48] sm:$0xff]
          %v1096 = vld [vmem:[#allocation9 + $0x50] sm:$0xff]
          %v1097 = vld [vmem:[#allocation9 + $0x58] sm:$0xff]
          %v1098 = vld [vmem:[#allocation9 + $0x60] sm:$0xff]
          %v1099 = vld [vmem:[#allocation9 + $0x68] sm:$0xff]
          %v1100 = vld [vmem:[#allocation9 + $0x70] sm:$0xff]
          %v1101 = vld [vmem:[#allocation9 + $0x78] sm:$0xff]
          %v1102 = vld [vmem:[#allocation9 + $0x80] sm:$0xff]
          %v1103 = vld [vmem:[#allocation9 + $0x88] sm:$0xff]
          %v1104 = vld [vmem:[#allocation9 + $0x90] sm:$0xff]
          %v1105 = vld [vmem:[#allocation9 + $0x98] sm:$0xff]
          %v1106 = vld [vmem:[#allocation9 + $0xa0] sm:$0xff]
          %v1107 = vld [vmem:[#allocation9 + $0xa8] sm:$0xff]
          %v1108 = vld [vmem:[#allocation9 + $0xb0] sm:$0xff]
          %v1109 = vld [vmem:[#allocation9 + $0xb8] sm:$0xff]
          %v1110 = vld [vmem:[#allocation9 + $0xc0] sm:$0xff]
          %v1111 = vld [vmem:[#allocation9 + $0xc8] sm:$0xff]
          %v1112 = vld [vmem:[#allocation9 + $0xd0] sm:$0xff]
          %v1113 = vld [vmem:[#allocation9 + $0xd8] sm:$0xff]
          %v1114 = vld [vmem:[#allocation9 + $0xe0] sm:$0xff]
          %v1115 = vld [vmem:[#allocation9 + $0xe8] sm:$0xff]
          %v1116 = vld [vmem:[#allocation9 + $0xf0] sm:$0xff]
          %v1117 = vld [vmem:[#allocation9 + $0xf8] sm:$0xff]
          %v1118 = vld [vmem:[#allocation9 + $0x100] sm:$0xff]
          %v1119 = vld [vmem:[#allocation9 + $0x108] sm:$0xff]
          %v1120 = vld [vmem:[#allocation9 + $0x110] sm:$0xff]
          %v1121 = vld [vmem:[#allocation9 + $0x118] sm:$0xff]
          %v1122 = vld [vmem:[#allocation9 + $0x120] sm:$0xff]
          %v1123 = vld [vmem:[#allocation9 + $0x128] sm:$0xff]
          %v1124 = vld [vmem:[#allocation9 + $0x130] sm:$0xff]
          %v1125 = vld [vmem:[#allocation9 + $0x138] sm:$0xff]
          %v1126 = vld [vmem:[#allocation9 + $0x140] sm:$0xff]
          %v1127 = vld [vmem:[#allocation9 + $0x148] sm:$0xff]
          %v1128 = vld [vmem:[#allocation9 + $0x150] sm:$0xff]
          %v1129 = vld [vmem:[#allocation9 + $0x158] sm:$0xff]
          %v1130 = vld [vmem:[#allocation9 + $0x160] sm:$0xff]
          %v1131 = vld [vmem:[#allocation9 + $0x168] sm:$0xff]
          %v1132 = vld [vmem:[#allocation9 + $0x170] sm:$0xff]
          %v1133 = vld [vmem:[#allocation9 + $0x178] sm:$0xff]
          %v1134 = vld [vmem:[#allocation9 + $0x180] sm:$0xff]
          %v1135 = vld [vmem:[#allocation9 + $0x188] sm:$0xff]
          %v1136 = vld [vmem:[#allocation9 + $0x190] sm:$0xff]
          %v1137 = vld [vmem:[#allocation9 + $0x198] sm:$0xff]
          %v1138 = vld [vmem:[#allocation9 + $0x1a0] sm:$0xff]
          %v1139 = vld [vmem:[#allocation9 + $0x1a8] sm:$0xff]
          %v1140 = vld [vmem:[#allocation9 + $0x1b0] sm:$0xff]
          %v1141 = vld [vmem:[#allocation9 + $0x1b8] sm:$0xff]
          %v1142 = vld [vmem:[#allocation9 + $0x1c0] sm:$0xff]
          %v1143 = vld [vmem:[#allocation9 + $0x1c8] sm:$0xff]
          %v1144 = vld [vmem:[#allocation9 + $0x1d0] sm:$0xff]
          %v1145 = vld [vmem:[#allocation9 + $0x1d8] sm:$0xff]
          %v1146 = vld [vmem:[#allocation9 + $0x1e0] sm:$0xff]
          %v1147 = vld [vmem:[#allocation9 + $0x1e8] sm:$0xff]
          %v1148 = vld [vmem:[#allocation9 + $0x1f0] sm:$0xff]
          %v1149 = vld [vmem:[#allocation9 + $0x1f8] sm:$0xff]
          %v1150 = vld [vmem:[#allocation9 + $0x200] sm:$0xff]
          %v1151 = vld [vmem:[#allocation9 + $0x208] sm:$0xff]
          %v1152 = vld [vmem:[#allocation9 + $0x210] sm:$0xff]
          %v1153 = vld [vmem:[#allocation9 + $0x218] sm:$0xff]
          %v1154 = vld [vmem:[#allocation9 + $0x220] sm:$0xff]
          %v1155 = vld [vmem:[#allocation9 + $0x228] sm:$0xff]
          %v1156 = vld [vmem:[#allocation9 + $0x230] sm:$0xff]
          %v1157 = vld [vmem:[#allocation9 + $0x238] sm:$0xff]
          %v1158 = vld [vmem:[#allocation9 + $0x240] sm:$0xff]
          %v1159 = vld [vmem:[#allocation9 + $0x248] sm:$0xff]
          %v1160 = vld [vmem:[#allocation9 + $0x250] sm:$0xff]
          %v1161 = vld [vmem:[#allocation9 + $0x258] sm:$0xff]
          %v1162 = vld [vmem:[#allocation9 + $0x260] sm:$0xff]
          %v1163 = vld [vmem:[#allocation9 + $0x268] sm:$0xff]
          %v1164 = vld [vmem:[#allocation9 + $0x270] sm:$0xff]
          %v1165 = vld [vmem:[#allocation9 + $0x278] sm:$0xff]
          %v1166 = vld [vmem:[#allocation9 + $0x280] sm:$0xff]
          %v1167 = vld [vmem:[#allocation9 + $0x288] sm:$0xff]
          %v1168 = vld [vmem:[#allocation9 + $0x290] sm:$0xff]
          %v1169 = vld [vmem:[#allocation9 + $0x298] sm:$0xff]
          %v1170 = vld [vmem:[#allocation9 + $0x2a0] sm:$0xff]
          %v1171 = vld [vmem:[#allocation9 + $0x2a8] sm:$0xff]
          %v1172 = vld [vmem:[#allocation9 + $0x2b0] sm:$0xff]
          %v1173 = vld [vmem:[#allocation9 + $0x2b8] sm:$0xff]
          %v1174 = vld [vmem:[#allocation9 + $0x2c0] sm:$0xff]
          %v1175 = vld [vmem:[#allocation9 + $0x2c8] sm:$0xff]
          %v1176 = vld [vmem:[#allocation9 + $0x2d0] sm:$0xff]
          %v1177 = vld [vmem:[#allocation9 + $0x2d8] sm:$0xff]
          %v1178 = vld [vmem:[#allocation9 + $0x2e0] sm:$0xff]
          %v1179 = vld [vmem:[#allocation9 + $0x2e8] sm:$0xff]
          %v1180 = vld [vmem:[#allocation9 + $0x2f0] sm:$0xff]
          %v1181 = vld [vmem:[#allocation9 + $0x2f8] sm:$0xff]
          %v1182 = vld [vmem:[#allocation9 + $0x300] sm:$0xff]
          %v1183 = vld [vmem:[#allocation9 + $0x308] sm:$0xff]
          %v1184 = vld [vmem:[#allocation9 + $0x310] sm:$0xff]
          %v1185 = vld [vmem:[#allocation9 + $0x318] sm:$0xff]
          %v1186 = vld [vmem:[#allocation9 + $0x320] sm:$0xff]
          %v1187 = vld [vmem:[#allocation9 + $0x328] sm:$0xff]
          %v1188 = vld [vmem:[#allocation9 + $0x330] sm:$0xff]
          %v1189 = vld [vmem:[#allocation9 + $0x338] sm:$0xff]
          %v1190 = vld [vmem:[#allocation9 + $0x340] sm:$0xff]
          %v1191 = vld [vmem:[#allocation9 + $0x348] sm:$0xff]
          %v1192 = vld [vmem:[#allocation9 + $0x350] sm:$0xff]
          %v1193 = vld [vmem:[#allocation9 + $0x358] sm:$0xff]
          %v1194 = vld [vmem:[#allocation9 + $0x360] sm:$0xff]
          %v1195 = vld [vmem:[#allocation9 + $0x368] sm:$0xff]
          %v1196 = vld [vmem:[#allocation9 + $0x370] sm:$0xff]
          %v1197 = vld [vmem:[#allocation9 + $0x378] sm:$0xff]
          %v1198 = vld [vmem:[#allocation9 + $0x380] sm:$0xff]
          %v1199 = vld [vmem:[#allocation9 + $0x388] sm:$0xff]
          %v1200 = vld [vmem:[#allocation9 + $0x390] sm:$0xff]
          %v1201 = vld [vmem:[#allocation9 + $0x398] sm:$0xff]
          %v1202 = vld [vmem:[#allocation9 + $0x3a0] sm:$0xff]
          %v1203 = vld [vmem:[#allocation9 + $0x3a8] sm:$0xff]
          %v1204 = vld [vmem:[#allocation9 + $0x3b0] sm:$0xff]
          %v1205 = vld [vmem:[#allocation9 + $0x3b8] sm:$0xff]
          %v1206 = vld [vmem:[#allocation9 + $0x3c0] sm:$0xff]
          %v1207 = vld [vmem:[#allocation9 + $0x3c8] sm:$0xff]
          %v1208 = vld [vmem:[#allocation9 + $0x3d0] sm:$0xff]
          %v1209 = vld [vmem:[#allocation9 + $0x3d8] sm:$0xff]
          %v1210 = vld [vmem:[#allocation9 + $0x3e0] sm:$0xff]
          %v1211 = vld [vmem:[#allocation9 + $0x3e8] sm:$0xff]
          %v1212 = vld [vmem:[#allocation9 + $0x3f0] sm:$0xff]
          %v1213 = vld [vmem:[#allocation9 + $0x3f8] sm:$0xff]
          %v1214 = vld [vmem:[#allocation9 + $0x400] sm:$0xff]
          %v1215 = vld [vmem:[#allocation9 + $0x408] sm:$0xff]
          %v1216 = vld [vmem:[#allocation9 + $0x410] sm:$0xff]
          %v1217 = vld [vmem:[#allocation9 + $0x418] sm:$0xff]
          %v1218 = vld [vmem:[#allocation9 + $0x420] sm:$0xff]
          %v1219 = vld [vmem:[#allocation9 + $0x428] sm:$0xff]
          %v1220 = vld [vmem:[#allocation9 + $0x430] sm:$0xff]
          %v1221 = vld [vmem:[#allocation9 + $0x438] sm:$0xff]
          %v1222 = vld [vmem:[#allocation9 + $0x440] sm:$0xff]
          %v1223 = vld [vmem:[#allocation9 + $0x448] sm:$0xff]
          %v1224 = vld [vmem:[#allocation9 + $0x450] sm:$0xff]
          %v1225 = vld [vmem:[#allocation9 + $0x458] sm:$0xff]
          %v1226 = vld [vmem:[#allocation9 + $0x460] sm:$0xff]
          %v1227 = vld [vmem:[#allocation9 + $0x468] sm:$0xff]
          %v1228 = vld [vmem:[#allocation9 + $0x470] sm:$0xff]
          %v1229 = vld [vmem:[#allocation9 + $0x478] sm:$0xff]
          %v1230 = vld [vmem:[#allocation9 + $0x480] sm:$0xff]
          %v1231 = vld [vmem:[#allocation9 + $0x488] sm:$0xff]
          %v1232 = vld [vmem:[#allocation9 + $0x490] sm:$0xff]
          %v1233 = vld [vmem:[#allocation9 + $0x498] sm:$0xff]
          %v1234 = vld [vmem:[#allocation9 + $0x4a0] sm:$0xff]
          %v1235 = vld [vmem:[#allocation9 + $0x4a8] sm:$0xff]
          %v1236 = vld [vmem:[#allocation9 + $0x4b0] sm:$0xff]
          %v1237 = vld [vmem:[#allocation9 + $0x4b8] sm:$0xff]
          %v1238 = vld [vmem:[#allocation9 + $0x4c0] sm:$0xff]
          %v1239 = vld [vmem:[#allocation9 + $0x4c8] sm:$0xff]
          %v1240 = vld [vmem:[#allocation9 + $0x4d0] sm:$0xff]
          %v1241 = vld [vmem:[#allocation9 + $0x4d8] sm:$0xff]
          %v1242 = vld [vmem:[#allocation9 + $0x4e0] sm:$0xff]
          %v1243 = vld [vmem:[#allocation9 + $0x4e8] sm:$0xff]
          %v1244 = vld [vmem:[#allocation9 + $0x4f0] sm:$0xff]
          %v1245 = vld [vmem:[#allocation9 + $0x4f8] sm:$0xff]
          %v1246 = vld [vmem:[#allocation9 + $0x500] sm:$0xff]
          %v1247 = vld [vmem:[#allocation9 + $0x508] sm:$0xff]
          %v1248 = vld [vmem:[#allocation9 + $0x510] sm:$0xff]
          %v1249 = vld [vmem:[#allocation9 + $0x518] sm:$0xff]
          %v1250 = vld [vmem:[#allocation9 + $0x520] sm:$0xff]
          %v1251 = vld [vmem:[#allocation9 + $0x528] sm:$0xff]
          %v1252 = vld [vmem:[#allocation9 + $0x530] sm:$0xff]
          %v1253 = vld [vmem:[#allocation9 + $0x538] sm:$0xff]
          %v1254 = vld [vmem:[#allocation9 + $0x540] sm:$0xff]
          %v1255 = vld [vmem:[#allocation9 + $0x548] sm:$0xff]
          %v1256 = vld [vmem:[#allocation9 + $0x550] sm:$0xff]
          %v1257 = vld [vmem:[#allocation9 + $0x558] sm:$0xff]
          %v1258 = vld [vmem:[#allocation9 + $0x560] sm:$0xff]
          %v1259 = vld [vmem:[#allocation9 + $0x568] sm:$0xff]
          %v1260 = vld [vmem:[#allocation9 + $0x570] sm:$0xff]
          %v1261 = vld [vmem:[#allocation9 + $0x578] sm:$0xff]
          %v1262 = vld [vmem:[#allocation9 + $0x580] sm:$0xff]
          %v1263 = vld [vmem:[#allocation9 + $0x588] sm:$0xff]
          %v1264 = vld [vmem:[#allocation9 + $0x590] sm:$0xff]
          %v1265 = vld [vmem:[#allocation9 + $0x598] sm:$0xff]
          %v1266 = vld [vmem:[#allocation9 + $0x5a0] sm:$0xff]
          %v1267 = vld [vmem:[#allocation9 + $0x5a8] sm:$0xff]
          %v1268 = vld [vmem:[#allocation9 + $0x5b0] sm:$0xff]
          %v1269 = vld [vmem:[#allocation9 + $0x5b8] sm:$0xff]
          %v1270 = vld [vmem:[#allocation9 + $0x5c0] sm:$0xff]
          %v1271 = vld [vmem:[#allocation9 + $0x5c8] sm:$0xff]
          %v1272 = vld [vmem:[#allocation9 + $0x5d0] sm:$0xff]
          %v1273 = vld [vmem:[#allocation9 + $0x5d8] sm:$0xff]
          %v1274 = vld [vmem:[#allocation9 + $0x5e0] sm:$0xff]
          %v1275 = vld [vmem:[#allocation9 + $0x5e8] sm:$0xff]
          %v1276 = vld [vmem:[#allocation9 + $0x5f0] sm:$0xff]
          %v1277 = vld [vmem:[#allocation9 + $0x5f8] sm:$0xff]
          %v1278 = vld [vmem:[#allocation9 + $0x600] sm:$0xff]
          %v1279 = vld [vmem:[#allocation9 + $0x608] sm:$0xff]
          %v1280 = vld [vmem:[#allocation9 + $0x610] sm:$0xff]
          %v1281 = vld [vmem:[#allocation9 + $0x618] sm:$0xff]
          %v1282 = vld [vmem:[#allocation9 + $0x620] sm:$0xff]
          %v1283 = vld [vmem:[#allocation9 + $0x628] sm:$0xff]
          %v1284 = vld [vmem:[#allocation9 + $0x630] sm:$0xff]
          %v1285 = vld [vmem:[#allocation9 + $0x638] sm:$0xff]
          %v1286 = vld [vmem:[#allocation9 + $0x640] sm:$0xff]
          %v1287 = vld [vmem:[#allocation9 + $0x648] sm:$0xff]
          %v1288 = vld [vmem:[#allocation9 + $0x650] sm:$0xff]
          %v1289 = vld [vmem:[#allocation9 + $0x658] sm:$0xff]
          %v1290 = vld [vmem:[#allocation9 + $0x660] sm:$0xff]
          %v1291 = vld [vmem:[#allocation9 + $0x668] sm:$0xff]
          %v1292 = vld [vmem:[#allocation9 + $0x670] sm:$0xff]
          %v1293 = vld [vmem:[#allocation9 + $0x678] sm:$0xff]
          %v1294 = vld [vmem:[#allocation9 + $0x680] sm:$0xff]
          %v1295 = vld [vmem:[#allocation9 + $0x688] sm:$0xff]
          %v1296 = vld [vmem:[#allocation9 + $0x690] sm:$0xff]
          %v1297 = vld [vmem:[#allocation9 + $0x698] sm:$0xff]
          %v1298 = vld [vmem:[#allocation9 + $0x6a0] sm:$0xff]
          %v1299 = vld [vmem:[#allocation9 + $0x6a8] sm:$0xff]
          %v1300 = vld [vmem:[#allocation9 + $0x6b0] sm:$0xff]
          %v1301 = vld [vmem:[#allocation9 + $0x6b8] sm:$0xff]
          %v1302 = vld [vmem:[#allocation9 + $0x6c0] sm:$0xff]
          %v1303 = vld [vmem:[#allocation9 + $0x6c8] sm:$0xff]
          %v1304 = vld [vmem:[#allocation9 + $0x6d0] sm:$0xff]
          %v1305 = vld [vmem:[#allocation9 + $0x6d8] sm:$0xff]
          %v1306 = vld [vmem:[#allocation9 + $0x6e0] sm:$0xff]
          %v1307 = vld [vmem:[#allocation9 + $0x6e8] sm:$0xff]
          %v1308 = vld [vmem:[#allocation9 + $0x6f0] sm:$0xff]
          %v1309 = vld [vmem:[#allocation9 + $0x6f8] sm:$0xff]
          %v1310 = vld [vmem:[#allocation9 + $0x700] sm:$0xff]
          %v1311 = vld [vmem:[#allocation9 + $0x708] sm:$0xff]
          %v1312 = vld [vmem:[#allocation9 + $0x710] sm:$0xff]
          %v1313 = vld [vmem:[#allocation9 + $0x718] sm:$0xff]
          %v1314 = vld [vmem:[#allocation9 + $0x720] sm:$0xff]
          %v1315 = vld [vmem:[#allocation9 + $0x728] sm:$0xff]
          %v1316 = vld [vmem:[#allocation9 + $0x730] sm:$0xff]
          %v1317 = vld [vmem:[#allocation9 + $0x738] sm:$0xff]
          %v1318 = vld [vmem:[#allocation9 + $0x740] sm:$0xff]
          %v1319 = vld [vmem:[#allocation9 + $0x748] sm:$0xff]
          %v1320 = vld [vmem:[#allocation9 + $0x750] sm:$0xff]
          %v1321 = vld [vmem:[#allocation9 + $0x758] sm:$0xff]
          %v1322 = vld [vmem:[#allocation9 + $0x760] sm:$0xff]
          %v1323 = vld [vmem:[#allocation9 + $0x768] sm:$0xff]
          %v1324 = vld [vmem:[#allocation9 + $0x770] sm:$0xff]
          %v1325 = vld [vmem:[#allocation9 + $0x778] sm:$0xff]
          %v1326 = vld [vmem:[#allocation9 + $0x780] sm:$0xff]
          %v1327 = vld [vmem:[#allocation9 + $0x788] sm:$0xff]
          %v1328 = vld [vmem:[#allocation9 + $0x790] sm:$0xff]
          %v1329 = vld [vmem:[#allocation9 + $0x798] sm:$0xff]
          %v1330 = vld [vmem:[#allocation9 + $0x7a0] sm:$0xff]
          %v1331 = vld [vmem:[#allocation9 + $0x7a8] sm:$0xff]
          %v1332 = vld [vmem:[#allocation9 + $0x7b0] sm:$0xff]
          %v1333 = vld [vmem:[#allocation9 + $0x7b8] sm:$0xff]
          %v1334 = vld [vmem:[#allocation9 + $0x7c0] sm:$0xff]
          %v1335 = vld [vmem:[#allocation9 + $0x7c8] sm:$0xff]
          %v1336 = vld [vmem:[#allocation9 + $0x7d0] sm:$0xff]
          %v1337 = vld [vmem:[#allocation9 + $0x7d8] sm:$0xff]
          %v1338 = vld [vmem:[#allocation9 + $0x7e0] sm:$0xff]
          %v1339 = vld [vmem:[#allocation9 + $0x7e8] sm:$0xff]
          %v1340 = vld [vmem:[#allocation9 + $0x7f0] sm:$0xff]
          %v1341 = vld [vmem:[#allocation9 + $0x7f8] sm:$0xff]
          %v1342 = vpack.c.bf16 %v1082, %v1082
          %v1343 = vpack.c.bf16 %v1083, %v1083
          %v1344 = vpack.c.bf16 %v1084, %v1084
          %v1345 = vpack.c.bf16 %v1085, %v1085
          %v1602 = vunpack.c.l.b16 %v1086
          %v1603 = vunpack.c.h.b16 %v1086
          %v1604 = vunpack.c.l.b16 %v1087
          %v1605 = vunpack.c.h.b16 %v1087
          %v1606 = vunpack.c.l.b16 %v1088
          %v1607 = vunpack.c.h.b16 %v1088
          %v1608 = vunpack.c.l.b16 %v1089
          %v1609 = vunpack.c.h.b16 %v1089
          %v1610 = vunpack.c.l.b16 %v1090
          %v1611 = vunpack.c.h.b16 %v1090
          %v1612 = vunpack.c.l.b16 %v1091
          %v1613 = vunpack.c.h.b16 %v1091
          %v1614 = vunpack.c.l.b16 %v1092
          %v1615 = vunpack.c.h.b16 %v1092
          %v1616 = vunpack.c.l.b16 %v1093
          %v1617 = vunpack.c.h.b16 %v1093
          %v1618 = vunpack.c.l.b16 %v1094
          %v1619 = vunpack.c.h.b16 %v1094
          %v1620 = vunpack.c.l.b16 %v1095
          %v1621 = vunpack.c.h.b16 %v1095
          %v1622 = vunpack.c.l.b16 %v1096
          %v1623 = vunpack.c.h.b16 %v1096
          %v1624 = vunpack.c.l.b16 %v1097
          %v1625 = vunpack.c.h.b16 %v1097
          %v1626 = vunpack.c.l.b16 %v1098
          %v1627 = vunpack.c.h.b16 %v1098
          %v1628 = vunpack.c.l.b16 %v1099
          %v1629 = vunpack.c.h.b16 %v1099
          %v1630 = vunpack.c.l.b16 %v1100
          %v1631 = vunpack.c.h.b16 %v1100
          %v1632 = vunpack.c.l.b16 %v1101
          %v1633 = vunpack.c.h.b16 %v1101
          %v1634 = vunpack.c.l.b16 %v1102
          %v1635 = vunpack.c.h.b16 %v1102
          %v1636 = vunpack.c.l.b16 %v1103
          %v1637 = vunpack.c.h.b16 %v1103
          %v1638 = vunpack.c.l.b16 %v1104
          %v1639 = vunpack.c.h.b16 %v1104
          %v1640 = vunpack.c.l.b16 %v1105
          %v1641 = vunpack.c.h.b16 %v1105
          %v1642 = vunpack.c.l.b16 %v1106
          %v1643 = vunpack.c.h.b16 %v1106
          %v1644 = vunpack.c.l.b16 %v1107
          %v1645 = vunpack.c.h.b16 %v1107
          %v1646 = vunpack.c.l.b16 %v1108
          %v1647 = vunpack.c.h.b16 %v1108
          %v1648 = vunpack.c.l.b16 %v1109
          %v1649 = vunpack.c.h.b16 %v1109
          %v1650 = vunpack.c.l.b16 %v1110
          %v1651 = vunpack.c.h.b16 %v1110
          %v1652 = vunpack.c.l.b16 %v1111
          %v1653 = vunpack.c.h.b16 %v1111
          %v1654 = vunpack.c.l.b16 %v1112
          %v1655 = vunpack.c.h.b16 %v1112
          %v1656 = vunpack.c.l.b16 %v1113
          %v1657 = vunpack.c.h.b16 %v1113
          %v1658 = vunpack.c.l.b16 %v1114
          %v1659 = vunpack.c.h.b16 %v1114
          %v1660 = vunpack.c.l.b16 %v1115
          %v1661 = vunpack.c.h.b16 %v1115
          %v1662 = vunpack.c.l.b16 %v1116
          %v1663 = vunpack.c.h.b16 %v1116
          %v1664 = vunpack.c.l.b16 %v1117
          %v1665 = vunpack.c.h.b16 %v1117
          %v1666 = vunpack.c.l.b16 %v1118
          %v1667 = vunpack.c.h.b16 %v1118
          %v1668 = vunpack.c.l.b16 %v1119
          %v1669 = vunpack.c.h.b16 %v1119
          %v1670 = vunpack.c.l.b16 %v1120
          %v1671 = vunpack.c.h.b16 %v1120
          %v1672 = vunpack.c.l.b16 %v1121
          %v1673 = vunpack.c.h.b16 %v1121
          %v1674 = vunpack.c.l.b16 %v1122
          %v1675 = vunpack.c.h.b16 %v1122
          %v1676 = vunpack.c.l.b16 %v1123
          %v1677 = vunpack.c.h.b16 %v1123
          %v1678 = vunpack.c.l.b16 %v1124
          %v1679 = vunpack.c.h.b16 %v1124
          %v1680 = vunpack.c.l.b16 %v1125
          %v1681 = vunpack.c.h.b16 %v1125
          %v1682 = vunpack.c.l.b16 %v1126
          %v1683 = vunpack.c.h.b16 %v1126
          %v1684 = vunpack.c.l.b16 %v1127
          %v1685 = vunpack.c.h.b16 %v1127
          %v1686 = vunpack.c.l.b16 %v1128
          %v1687 = vunpack.c.h.b16 %v1128
          %v1688 = vunpack.c.l.b16 %v1129
          %v1689 = vunpack.c.h.b16 %v1129
          %v1690 = vunpack.c.l.b16 %v1130
          %v1691 = vunpack.c.h.b16 %v1130
          %v1692 = vunpack.c.l.b16 %v1131
          %v1693 = vunpack.c.h.b16 %v1131
          %v1694 = vunpack.c.l.b16 %v1132
          %v1695 = vunpack.c.h.b16 %v1132
          %v1696 = vunpack.c.l.b16 %v1133
          %v1697 = vunpack.c.h.b16 %v1133
          %v1698 = vunpack.c.l.b16 %v1134
          %v1699 = vunpack.c.h.b16 %v1134
          %v1700 = vunpack.c.l.b16 %v1135
          %v1701 = vunpack.c.h.b16 %v1135
          %v1702 = vunpack.c.l.b16 %v1136
          %v1703 = vunpack.c.h.b16 %v1136
          %v1704 = vunpack.c.l.b16 %v1137
          %v1705 = vunpack.c.h.b16 %v1137
          %v1706 = vunpack.c.l.b16 %v1138
          %v1707 = vunpack.c.h.b16 %v1138
          %v1708 = vunpack.c.l.b16 %v1139
          %v1709 = vunpack.c.h.b16 %v1139
          %v1710 = vunpack.c.l.b16 %v1140
          %v1711 = vunpack.c.h.b16 %v1140
          %v1712 = vunpack.c.l.b16 %v1141
          %v1713 = vunpack.c.h.b16 %v1141
          %v1714 = vunpack.c.l.b16 %v1142
          %v1715 = vunpack.c.h.b16 %v1142
          %v1716 = vunpack.c.l.b16 %v1143
          %v1717 = vunpack.c.h.b16 %v1143
          %v1718 = vunpack.c.l.b16 %v1144
          %v1719 = vunpack.c.h.b16 %v1144
          %v1720 = vunpack.c.l.b16 %v1145
          %v1721 = vunpack.c.h.b16 %v1145
          %v1722 = vunpack.c.l.b16 %v1146
          %v1723 = vunpack.c.h.b16 %v1146
          %v1724 = vunpack.c.l.b16 %v1147
          %v1725 = vunpack.c.h.b16 %v1147
          %v1726 = vunpack.c.l.b16 %v1148
          %v1727 = vunpack.c.h.b16 %v1148
          %v1728 = vunpack.c.l.b16 %v1149
          %v1729 = vunpack.c.h.b16 %v1149
          %v1730 = vunpack.c.l.b16 %v1150
          %v1731 = vunpack.c.h.b16 %v1150
          %v1732 = vunpack.c.l.b16 %v1151
          %v1733 = vunpack.c.h.b16 %v1151
          %v1734 = vunpack.c.l.b16 %v1152
          %v1735 = vunpack.c.h.b16 %v1152
          %v1736 = vunpack.c.l.b16 %v1153
          %v1737 = vunpack.c.h.b16 %v1153
          %v1738 = vunpack.c.l.b16 %v1154
          %v1739 = vunpack.c.h.b16 %v1154
          %v1740 = vunpack.c.l.b16 %v1155
          %v1741 = vunpack.c.h.b16 %v1155
          %v1742 = vunpack.c.l.b16 %v1156
          %v1743 = vunpack.c.h.b16 %v1156
          %v1744 = vunpack.c.l.b16 %v1157
          %v1745 = vunpack.c.h.b16 %v1157
          %v1746 = vunpack.c.l.b16 %v1158
          %v1747 = vunpack.c.h.b16 %v1158
          %v1748 = vunpack.c.l.b16 %v1159
          %v1749 = vunpack.c.h.b16 %v1159
          %v1750 = vunpack.c.l.b16 %v1160
          %v1751 = vunpack.c.h.b16 %v1160
          %v1752 = vunpack.c.l.b16 %v1161
          %v1753 = vunpack.c.h.b16 %v1161
          %v1754 = vunpack.c.l.b16 %v1162
          %v1755 = vunpack.c.h.b16 %v1162
          %v1756 = vunpack.c.l.b16 %v1163
          %v1757 = vunpack.c.h.b16 %v1163
          %v1758 = vunpack.c.l.b16 %v1164
          %v1759 = vunpack.c.h.b16 %v1164
          %v1760 = vunpack.c.l.b16 %v1165
          %v1761 = vunpack.c.h.b16 %v1165
          %v1762 = vunpack.c.l.b16 %v1166
          %v1763 = vunpack.c.h.b16 %v1166
          %v1764 = vunpack.c.l.b16 %v1167
          %v1765 = vunpack.c.h.b16 %v1167
          %v1766 = vunpack.c.l.b16 %v1168
          %v1767 = vunpack.c.h.b16 %v1168
          %v1768 = vunpack.c.l.b16 %v1169
          %v1769 = vunpack.c.h.b16 %v1169
          %v1770 = vunpack.c.l.b16 %v1170
          %v1771 = vunpack.c.h.b16 %v1170
          %v1772 = vunpack.c.l.b16 %v1171
          %v1773 = vunpack.c.h.b16 %v1171
          %v1774 = vunpack.c.l.b16 %v1172
          %v1775 = vunpack.c.h.b16 %v1172
          %v1776 = vunpack.c.l.b16 %v1173
          %v1777 = vunpack.c.h.b16 %v1173
          %v1778 = vunpack.c.l.b16 %v1174
          %v1779 = vunpack.c.h.b16 %v1174
          %v1780 = vunpack.c.l.b16 %v1175
          %v1781 = vunpack.c.h.b16 %v1175
          %v1782 = vunpack.c.l.b16 %v1176
          %v1783 = vunpack.c.h.b16 %v1176
          %v1784 = vunpack.c.l.b16 %v1177
          %v1785 = vunpack.c.h.b16 %v1177
          %v1786 = vunpack.c.l.b16 %v1178
          %v1787 = vunpack.c.h.b16 %v1178
          %v1788 = vunpack.c.l.b16 %v1179
          %v1789 = vunpack.c.h.b16 %v1179
          %v1790 = vunpack.c.l.b16 %v1180
          %v1791 = vunpack.c.h.b16 %v1180
          %v1792 = vunpack.c.l.b16 %v1181
          %v1793 = vunpack.c.h.b16 %v1181
          %v1794 = vunpack.c.l.b16 %v1182
          %v1795 = vunpack.c.h.b16 %v1182
          %v1796 = vunpack.c.l.b16 %v1183
          %v1797 = vunpack.c.h.b16 %v1183
          %v1798 = vunpack.c.l.b16 %v1184
          %v1799 = vunpack.c.h.b16 %v1184
          %v1800 = vunpack.c.l.b16 %v1185
          %v1801 = vunpack.c.h.b16 %v1185
          %v1802 = vunpack.c.l.b16 %v1186
          %v1803 = vunpack.c.h.b16 %v1186
          %v1804 = vunpack.c.l.b16 %v1187
          %v1805 = vunpack.c.h.b16 %v1187
          %v1806 = vunpack.c.l.b16 %v1188
          %v1807 = vunpack.c.h.b16 %v1188
          %v1808 = vunpack.c.l.b16 %v1189
          %v1809 = vunpack.c.h.b16 %v1189
          %v1810 = vunpack.c.l.b16 %v1190
          %v1811 = vunpack.c.h.b16 %v1190
          %v1812 = vunpack.c.l.b16 %v1191
          %v1813 = vunpack.c.h.b16 %v1191
          %v1814 = vunpack.c.l.b16 %v1192
          %v1815 = vunpack.c.h.b16 %v1192
          %v1816 = vunpack.c.l.b16 %v1193
          %v1817 = vunpack.c.h.b16 %v1193
          %v1818 = vunpack.c.l.b16 %v1194
          %v1819 = vunpack.c.h.b16 %v1194
          %v1820 = vunpack.c.l.b16 %v1195
          %v1821 = vunpack.c.h.b16 %v1195
          %v1822 = vunpack.c.l.b16 %v1196
          %v1823 = vunpack.c.h.b16 %v1196
          %v1824 = vunpack.c.l.b16 %v1197
          %v1825 = vunpack.c.h.b16 %v1197
          %v1826 = vunpack.c.l.b16 %v1198
          %v1827 = vunpack.c.h.b16 %v1198
          %v1828 = vunpack.c.l.b16 %v1199
          %v1829 = vunpack.c.h.b16 %v1199
          %v1830 = vunpack.c.l.b16 %v1200
          %v1831 = vunpack.c.h.b16 %v1200
          %v1832 = vunpack.c.l.b16 %v1201
          %v1833 = vunpack.c.h.b16 %v1201
          %v1834 = vunpack.c.l.b16 %v1202
          %v1835 = vunpack.c.h.b16 %v1202
          %v1836 = vunpack.c.l.b16 %v1203
          %v1837 = vunpack.c.h.b16 %v1203
          %v1838 = vunpack.c.l.b16 %v1204
          %v1839 = vunpack.c.h.b16 %v1204
          %v1840 = vunpack.c.l.b16 %v1205
          %v1841 = vunpack.c.h.b16 %v1205
          %v1842 = vunpack.c.l.b16 %v1206
          %v1843 = vunpack.c.h.b16 %v1206
          %v1844 = vunpack.c.l.b16 %v1207
          %v1845 = vunpack.c.h.b16 %v1207
          %v1846 = vunpack.c.l.b16 %v1208
          %v1847 = vunpack.c.h.b16 %v1208
          %v1848 = vunpack.c.l.b16 %v1209
          %v1849 = vunpack.c.h.b16 %v1209
          %v1850 = vunpack.c.l.b16 %v1210
          %v1851 = vunpack.c.h.b16 %v1210
          %v1852 = vunpack.c.l.b16 %v1211
          %v1853 = vunpack.c.h.b16 %v1211
          %v1854 = vunpack.c.l.b16 %v1212
          %v1855 = vunpack.c.h.b16 %v1212
          %v1856 = vunpack.c.l.b16 %v1213
          %v1857 = vunpack.c.h.b16 %v1213
          %v1858 = vunpack.c.l.b16 %v1214
          %v1859 = vunpack.c.h.b16 %v1214
          %v1860 = vunpack.c.l.b16 %v1215
          %v1861 = vunpack.c.h.b16 %v1215
          %v1862 = vunpack.c.l.b16 %v1216
          %v1863 = vunpack.c.h.b16 %v1216
          %v1864 = vunpack.c.l.b16 %v1217
          %v1865 = vunpack.c.h.b16 %v1217
          %v1866 = vunpack.c.l.b16 %v1218
          %v1867 = vunpack.c.h.b16 %v1218
          %v1868 = vunpack.c.l.b16 %v1219
          %v1869 = vunpack.c.h.b16 %v1219
          %v1870 = vunpack.c.l.b16 %v1220
          %v1871 = vunpack.c.h.b16 %v1220
          %v1872 = vunpack.c.l.b16 %v1221
          %v1873 = vunpack.c.h.b16 %v1221
          %v1874 = vunpack.c.l.b16 %v1222
          %v1875 = vunpack.c.h.b16 %v1222
          %v1876 = vunpack.c.l.b16 %v1223
          %v1877 = vunpack.c.h.b16 %v1223
          %v1878 = vunpack.c.l.b16 %v1224
          %v1879 = vunpack.c.h.b16 %v1224
          %v1880 = vunpack.c.l.b16 %v1225
          %v1881 = vunpack.c.h.b16 %v1225
          %v1882 = vunpack.c.l.b16 %v1226
          %v1883 = vunpack.c.h.b16 %v1226
          %v1884 = vunpack.c.l.b16 %v1227
          %v1885 = vunpack.c.h.b16 %v1227
          %v1886 = vunpack.c.l.b16 %v1228
          %v1887 = vunpack.c.h.b16 %v1228
          %v1888 = vunpack.c.l.b16 %v1229
          %v1889 = vunpack.c.h.b16 %v1229
          %v1890 = vunpack.c.l.b16 %v1230
          %v1891 = vunpack.c.h.b16 %v1230
          %v1892 = vunpack.c.l.b16 %v1231
          %v1893 = vunpack.c.h.b16 %v1231
          %v1894 = vunpack.c.l.b16 %v1232
          %v1895 = vunpack.c.h.b16 %v1232
          %v1896 = vunpack.c.l.b16 %v1233
          %v1897 = vunpack.c.h.b16 %v1233
          %v1898 = vunpack.c.l.b16 %v1234
          %v1899 = vunpack.c.h.b16 %v1234
          %v1900 = vunpack.c.l.b16 %v1235
          %v1901 = vunpack.c.h.b16 %v1235
          %v1902 = vunpack.c.l.b16 %v1236
          %v1903 = vunpack.c.h.b16 %v1236
          %v1904 = vunpack.c.l.b16 %v1237
          %v1905 = vunpack.c.h.b16 %v1237
          %v1906 = vunpack.c.l.b16 %v1238
          %v1907 = vunpack.c.h.b16 %v1238
          %v1908 = vunpack.c.l.b16 %v1239
          %v1909 = vunpack.c.h.b16 %v1239
          %v1910 = vunpack.c.l.b16 %v1240
          %v1911 = vunpack.c.h.b16 %v1240
          %v1912 = vunpack.c.l.b16 %v1241
          %v1913 = vunpack.c.h.b16 %v1241
          %v1914 = vunpack.c.l.b16 %v1242
          %v1915 = vunpack.c.h.b16 %v1242
          %v1916 = vunpack.c.l.b16 %v1243
          %v1917 = vunpack.c.h.b16 %v1243
          %v1918 = vunpack.c.l.b16 %v1244
          %v1919 = vunpack.c.h.b16 %v1244
          %v1920 = vunpack.c.l.b16 %v1245
          %v1921 = vunpack.c.h.b16 %v1245
          %v1922 = vunpack.c.l.b16 %v1246
          %v1923 = vunpack.c.h.b16 %v1246
          %v1924 = vunpack.c.l.b16 %v1247
          %v1925 = vunpack.c.h.b16 %v1247
          %v1926 = vunpack.c.l.b16 %v1248
          %v1927 = vunpack.c.h.b16 %v1248
          %v1928 = vunpack.c.l.b16 %v1249
          %v1929 = vunpack.c.h.b16 %v1249
          %v1930 = vunpack.c.l.b16 %v1250
          %v1931 = vunpack.c.h.b16 %v1250
          %v1932 = vunpack.c.l.b16 %v1251
          %v1933 = vunpack.c.h.b16 %v1251
          %v1934 = vunpack.c.l.b16 %v1252
          %v1935 = vunpack.c.h.b16 %v1252
          %v1936 = vunpack.c.l.b16 %v1253
          %v1937 = vunpack.c.h.b16 %v1253
          %v1938 = vunpack.c.l.b16 %v1254
          %v1939 = vunpack.c.h.b16 %v1254
          %v1940 = vunpack.c.l.b16 %v1255
          %v1941 = vunpack.c.h.b16 %v1255
          %v1942 = vunpack.c.l.b16 %v1256
          %v1943 = vunpack.c.h.b16 %v1256
          %v1944 = vunpack.c.l.b16 %v1257
          %v1945 = vunpack.c.h.b16 %v1257
          %v1946 = vunpack.c.l.b16 %v1258
          %v1947 = vunpack.c.h.b16 %v1258
          %v1948 = vunpack.c.l.b16 %v1259
          %v1949 = vunpack.c.h.b16 %v1259
          %v1950 = vunpack.c.l.b16 %v1260
          %v1951 = vunpack.c.h.b16 %v1260
          %v1952 = vunpack.c.l.b16 %v1261
          %v1953 = vunpack.c.h.b16 %v1261
          %v1954 = vunpack.c.l.b16 %v1262
          %v1955 = vunpack.c.h.b16 %v1262
          %v1956 = vunpack.c.l.b16 %v1263
          %v1957 = vunpack.c.h.b16 %v1263
          %v1958 = vunpack.c.l.b16 %v1264
          %v1959 = vunpack.c.h.b16 %v1264
          %v1960 = vunpack.c.l.b16 %v1265
          %v1961 = vunpack.c.h.b16 %v1265
          %v1962 = vunpack.c.l.b16 %v1266
          %v1963 = vunpack.c.h.b16 %v1266
          %v1964 = vunpack.c.l.b16 %v1267
          %v1965 = vunpack.c.h.b16 %v1267
          %v1966 = vunpack.c.l.b16 %v1268
          %v1967 = vunpack.c.h.b16 %v1268
          %v1968 = vunpack.c.l.b16 %v1269
          %v1969 = vunpack.c.h.b16 %v1269
          %v1970 = vunpack.c.l.b16 %v1270
          %v1971 = vunpack.c.h.b16 %v1270
          %v1972 = vunpack.c.l.b16 %v1271
          %v1973 = vunpack.c.h.b16 %v1271
          %v1974 = vunpack.c.l.b16 %v1272
          %v1975 = vunpack.c.h.b16 %v1272
          %v1976 = vunpack.c.l.b16 %v1273
          %v1977 = vunpack.c.h.b16 %v1273
          %v1978 = vunpack.c.l.b16 %v1274
          %v1979 = vunpack.c.h.b16 %v1274
          %v1980 = vunpack.c.l.b16 %v1275
          %v1981 = vunpack.c.h.b16 %v1275
          %v1982 = vunpack.c.l.b16 %v1276
          %v1983 = vunpack.c.h.b16 %v1276
          %v1984 = vunpack.c.l.b16 %v1277
          %v1985 = vunpack.c.h.b16 %v1277
          %v1986 = vunpack.c.l.b16 %v1278
          %v1987 = vunpack.c.h.b16 %v1278
          %v1988 = vunpack.c.l.b16 %v1279
          %v1989 = vunpack.c.h.b16 %v1279
          %v1990 = vunpack.c.l.b16 %v1280
          %v1991 = vunpack.c.h.b16 %v1280
          %v1992 = vunpack.c.l.b16 %v1281
          %v1993 = vunpack.c.h.b16 %v1281
          %v1994 = vunpack.c.l.b16 %v1282
          %v1995 = vunpack.c.h.b16 %v1282
          %v1996 = vunpack.c.l.b16 %v1283
          %v1997 = vunpack.c.h.b16 %v1283
          %v1998 = vunpack.c.l.b16 %v1284
          %v1999 = vunpack.c.h.b16 %v1284
          %v2000 = vunpack.c.l.b16 %v1285
          %v2001 = vunpack.c.h.b16 %v1285
          %v2002 = vunpack.c.l.b16 %v1286
          %v2003 = vunpack.c.h.b16 %v1286
          %v2004 = vunpack.c.l.b16 %v1287
          %v2005 = vunpack.c.h.b16 %v1287
          %v2006 = vunpack.c.l.b16 %v1288
          %v2007 = vunpack.c.h.b16 %v1288
          %v2008 = vunpack.c.l.b16 %v1289
          %v2009 = vunpack.c.h.b16 %v1289
          %v2010 = vunpack.c.l.b16 %v1290
          %v2011 = vunpack.c.h.b16 %v1290
          %v2012 = vunpack.c.l.b16 %v1291
          %v2013 = vunpack.c.h.b16 %v1291
          %v2014 = vunpack.c.l.b16 %v1292
          %v2015 = vunpack.c.h.b16 %v1292
          %v2016 = vunpack.c.l.b16 %v1293
          %v2017 = vunpack.c.h.b16 %v1293
          %v2018 = vunpack.c.l.b16 %v1294
          %v2019 = vunpack.c.h.b16 %v1294
          %v2020 = vunpack.c.l.b16 %v1295
          %v2021 = vunpack.c.h.b16 %v1295
          %v2022 = vunpack.c.l.b16 %v1296
          %v2023 = vunpack.c.h.b16 %v1296
          %v2024 = vunpack.c.l.b16 %v1297
          %v2025 = vunpack.c.h.b16 %v1297
          %v2026 = vunpack.c.l.b16 %v1298
          %v2027 = vunpack.c.h.b16 %v1298
          %v2028 = vunpack.c.l.b16 %v1299
          %v2029 = vunpack.c.h.b16 %v1299
          %v2030 = vunpack.c.l.b16 %v1300
          %v2031 = vunpack.c.h.b16 %v1300
          %v2032 = vunpack.c.l.b16 %v1301
          %v2033 = vunpack.c.h.b16 %v1301
          %v2034 = vunpack.c.l.b16 %v1302
          %v2035 = vunpack.c.h.b16 %v1302
          %v2036 = vunpack.c.l.b16 %v1303
          %v2037 = vunpack.c.h.b16 %v1303
          %v2038 = vunpack.c.l.b16 %v1304
          %v2039 = vunpack.c.h.b16 %v1304
          %v2040 = vunpack.c.l.b16 %v1305
          %v2041 = vunpack.c.h.b16 %v1305
          %v2042 = vunpack.c.l.b16 %v1306
          %v2043 = vunpack.c.h.b16 %v1306
          %v2044 = vunpack.c.l.b16 %v1307
          %v2045 = vunpack.c.h.b16 %v1307
          %v2046 = vunpack.c.l.b16 %v1308
          %v2047 = vunpack.c.h.b16 %v1308
          %v2048 = vunpack.c.l.b16 %v1309
          %v2049 = vunpack.c.h.b16 %v1309
          %v2050 = vunpack.c.l.b16 %v1310
          %v2051 = vunpack.c.h.b16 %v1310
          %v2052 = vunpack.c.l.b16 %v1311
          %v2053 = vunpack.c.h.b16 %v1311
          %v2054 = vunpack.c.l.b16 %v1312
          %v2055 = vunpack.c.h.b16 %v1312
          %v2056 = vunpack.c.l.b16 %v1313
          %v2057 = vunpack.c.h.b16 %v1313
          %v2058 = vunpack.c.l.b16 %v1314
          %v2059 = vunpack.c.h.b16 %v1314
          %v2060 = vunpack.c.l.b16 %v1315
          %v2061 = vunpack.c.h.b16 %v1315
          %v2062 = vunpack.c.l.b16 %v1316
          %v2063 = vunpack.c.h.b16 %v1316
          %v2064 = vunpack.c.l.b16 %v1317
          %v2065 = vunpack.c.h.b16 %v1317
          %v2066 = vunpack.c.l.b16 %v1318
          %v2067 = vunpack.c.h.b16 %v1318
          %v2068 = vunpack.c.l.b16 %v1319
          %v2069 = vunpack.c.h.b16 %v1319
          %v2070 = vunpack.c.l.b16 %v1320
          %v2071 = vunpack.c.h.b16 %v1320
          %v2072 = vunpack.c.l.b16 %v1321
          %v2073 = vunpack.c.h.b16 %v1321
          %v2074 = vunpack.c.l.b16 %v1322
          %v2075 = vunpack.c.h.b16 %v1322
          %v2076 = vunpack.c.l.b16 %v1323
          %v2077 = vunpack.c.h.b16 %v1323
          %v2078 = vunpack.c.l.b16 %v1324
          %v2079 = vunpack.c.h.b16 %v1324
          %v2080 = vunpack.c.l.b16 %v1325
          %v2081 = vunpack.c.h.b16 %v1325
          %v2082 = vunpack.c.l.b16 %v1326
          %v2083 = vunpack.c.h.b16 %v1326
          %v2084 = vunpack.c.l.b16 %v1327
          %v2085 = vunpack.c.h.b16 %v1327
          %v2086 = vunpack.c.l.b16 %v1328
          %v2087 = vunpack.c.h.b16 %v1328
          %v2088 = vunpack.c.l.b16 %v1329
          %v2089 = vunpack.c.h.b16 %v1329
          %v2090 = vunpack.c.l.b16 %v1330
          %v2091 = vunpack.c.h.b16 %v1330
          %v2092 = vunpack.c.l.b16 %v1331
          %v2093 = vunpack.c.h.b16 %v1331
          %v2094 = vunpack.c.l.b16 %v1332
          %v2095 = vunpack.c.h.b16 %v1332
          %v2096 = vunpack.c.l.b16 %v1333
          %v2097 = vunpack.c.h.b16 %v1333
          %v2098 = vunpack.c.l.b16 %v1334
          %v2099 = vunpack.c.h.b16 %v1334
          %v2100 = vunpack.c.l.b16 %v1335
          %v2101 = vunpack.c.h.b16 %v1335
          %v2102 = vunpack.c.l.b16 %v1336
          %v2103 = vunpack.c.h.b16 %v1336
          %v2104 = vunpack.c.l.b16 %v1337
          %v2105 = vunpack.c.h.b16 %v1337
          %v2106 = vunpack.c.l.b16 %v1338
          %v2107 = vunpack.c.h.b16 %v1338
          %v2108 = vunpack.c.l.b16 %v1339
          %v2109 = vunpack.c.h.b16 %v1339
          %v2110 = vunpack.c.l.b16 %v1340
          %v2111 = vunpack.c.h.b16 %v1340
          %v2112 = vunpack.c.l.b16 %v1341
          %v2113 = vunpack.c.h.b16 %v1341
          %v2114 = vpack.c.b16 %v1610, %v1602
          %v2115 = vpack.c.b16 %v1611, %v1603
          %v2116 = vpack.c.b16 %v1612, %v1604
          %v2117 = vpack.c.b16 %v1613, %v1605
          %v2118 = vpack.c.b16 %v1614, %v1606
          %v2119 = vpack.c.b16 %v1615, %v1607
          %v2120 = vpack.c.b16 %v1616, %v1608
          %v2121 = vpack.c.b16 %v1617, %v1609
          %v2122 = vpack.c.b16 %v1626, %v1618
          %v2123 = vpack.c.b16 %v1627, %v1619
          %v2124 = vpack.c.b16 %v1628, %v1620
          %v2125 = vpack.c.b16 %v1629, %v1621
          %v2126 = vpack.c.b16 %v1630, %v1622
          %v2127 = vpack.c.b16 %v1631, %v1623
          %v2128 = vpack.c.b16 %v1632, %v1624
          %v2129 = vpack.c.b16 %v1633, %v1625
          %v2130 = vpack.c.b16 %v1642, %v1634
          %v2131 = vpack.c.b16 %v1643, %v1635
          %v2132 = vpack.c.b16 %v1644, %v1636
          %v2133 = vpack.c.b16 %v1645, %v1637
          %v2134 = vpack.c.b16 %v1646, %v1638
          %v2135 = vpack.c.b16 %v1647, %v1639
          %v2136 = vpack.c.b16 %v1648, %v1640
          %v2137 = vpack.c.b16 %v1649, %v1641
          %v2138 = vpack.c.b16 %v1658, %v1650
          %v2139 = vpack.c.b16 %v1659, %v1651
          %v2140 = vpack.c.b16 %v1660, %v1652
          %v2141 = vpack.c.b16 %v1661, %v1653
          %v2142 = vpack.c.b16 %v1662, %v1654
          %v2143 = vpack.c.b16 %v1663, %v1655
          %v2144 = vpack.c.b16 %v1664, %v1656
          %v2145 = vpack.c.b16 %v1665, %v1657
          %v2146 = vpack.c.b16 %v1674, %v1666
          %v2147 = vpack.c.b16 %v1675, %v1667
          %v2148 = vpack.c.b16 %v1676, %v1668
          %v2149 = vpack.c.b16 %v1677, %v1669
          %v2150 = vpack.c.b16 %v1678, %v1670
          %v2151 = vpack.c.b16 %v1679, %v1671
          %v2152 = vpack.c.b16 %v1680, %v1672
          %v2153 = vpack.c.b16 %v1681, %v1673
          %v2154 = vpack.c.b16 %v1690, %v1682
          %v2155 = vpack.c.b16 %v1691, %v1683
          %v2156 = vpack.c.b16 %v1692, %v1684
          %v2157 = vpack.c.b16 %v1693, %v1685
          %v2158 = vpack.c.b16 %v1694, %v1686
          %v2159 = vpack.c.b16 %v1695, %v1687
          %v2160 = vpack.c.b16 %v1696, %v1688
          %v2161 = vpack.c.b16 %v1697, %v1689
          %v2162 = vpack.c.b16 %v1706, %v1698
          %v2163 = vpack.c.b16 %v1707, %v1699
          %v2164 = vpack.c.b16 %v1708, %v1700
          %v2165 = vpack.c.b16 %v1709, %v1701
          %v2166 = vpack.c.b16 %v1710, %v1702
          %v2167 = vpack.c.b16 %v1711, %v1703
          %v2168 = vpack.c.b16 %v1712, %v1704
          %v2169 = vpack.c.b16 %v1713, %v1705
          %v2170 = vpack.c.b16 %v1722, %v1714
          %v2171 = vpack.c.b16 %v1723, %v1715
          %v2172 = vpack.c.b16 %v1724, %v1716
          %v2173 = vpack.c.b16 %v1725, %v1717
          %v2174 = vpack.c.b16 %v1726, %v1718
          %v2175 = vpack.c.b16 %v1727, %v1719
          %v2176 = vpack.c.b16 %v1728, %v1720
          %v2177 = vpack.c.b16 %v1729, %v1721
          %v2178 = vpack.c.b16 %v1738, %v1730
          %v2179 = vpack.c.b16 %v1739, %v1731
          %v2180 = vpack.c.b16 %v1740, %v1732
          %v2181 = vpack.c.b16 %v1741, %v1733
          %v2182 = vpack.c.b16 %v1742, %v1734
          %v2183 = vpack.c.b16 %v1743, %v1735
          %v2184 = vpack.c.b16 %v1744, %v1736
          %v2185 = vpack.c.b16 %v1745, %v1737
          %v2186 = vpack.c.b16 %v1754, %v1746
          %v2187 = vpack.c.b16 %v1755, %v1747
          %v2188 = vpack.c.b16 %v1756, %v1748
          %v2189 = vpack.c.b16 %v1757, %v1749
          %v2190 = vpack.c.b16 %v1758, %v1750
          %v2191 = vpack.c.b16 %v1759, %v1751
          %v2192 = vpack.c.b16 %v1760, %v1752
          %v2193 = vpack.c.b16 %v1761, %v1753
          %v2194 = vpack.c.b16 %v1770, %v1762
          %v2195 = vpack.c.b16 %v1771, %v1763
          %v2196 = vpack.c.b16 %v1772, %v1764
          %v2197 = vpack.c.b16 %v1773, %v1765
          %v2198 = vpack.c.b16 %v1774, %v1766
          %v2199 = vpack.c.b16 %v1775, %v1767
          %v2200 = vpack.c.b16 %v1776, %v1768
          %v2201 = vpack.c.b16 %v1777, %v1769
          %v2202 = vpack.c.b16 %v1786, %v1778
          %v2203 = vpack.c.b16 %v1787, %v1779
          %v2204 = vpack.c.b16 %v1788, %v1780
          %v2205 = vpack.c.b16 %v1789, %v1781
          %v2206 = vpack.c.b16 %v1790, %v1782
          %v2207 = vpack.c.b16 %v1791, %v1783
          %v2208 = vpack.c.b16 %v1792, %v1784
          %v2209 = vpack.c.b16 %v1793, %v1785
          %v2210 = vpack.c.b16 %v1802, %v1794
          %v2211 = vpack.c.b16 %v1803, %v1795
          %v2212 = vpack.c.b16 %v1804, %v1796
          %v2213 = vpack.c.b16 %v1805, %v1797
          %v2214 = vpack.c.b16 %v1806, %v1798
          %v2215 = vpack.c.b16 %v1807, %v1799
          %v2216 = vpack.c.b16 %v1808, %v1800
          %v2217 = vpack.c.b16 %v1809, %v1801
          %v2218 = vpack.c.b16 %v1818, %v1810
          %v2219 = vpack.c.b16 %v1819, %v1811
          %v2220 = vpack.c.b16 %v1820, %v1812
          %v2221 = vpack.c.b16 %v1821, %v1813
          %v2222 = vpack.c.b16 %v1822, %v1814
          %v2223 = vpack.c.b16 %v1823, %v1815
          %v2224 = vpack.c.b16 %v1824, %v1816
          %v2225 = vpack.c.b16 %v1825, %v1817
          %v2226 = vpack.c.b16 %v1834, %v1826
          %v2227 = vpack.c.b16 %v1835, %v1827
          %v2228 = vpack.c.b16 %v1836, %v1828
          %v2229 = vpack.c.b16 %v1837, %v1829
          %v2230 = vpack.c.b16 %v1838, %v1830
          %v2231 = vpack.c.b16 %v1839, %v1831
          %v2232 = vpack.c.b16 %v1840, %v1832
          %v2233 = vpack.c.b16 %v1841, %v1833
          %v2234 = vpack.c.b16 %v1850, %v1842
          %v2235 = vpack.c.b16 %v1851, %v1843
          %v2236 = vpack.c.b16 %v1852, %v1844
          %v2237 = vpack.c.b16 %v1853, %v1845
          %v2238 = vpack.c.b16 %v1854, %v1846
          %v2239 = vpack.c.b16 %v1855, %v1847
          %v2240 = vpack.c.b16 %v1856, %v1848
          %v2241 = vpack.c.b16 %v1857, %v1849
          %v2242 = vpack.c.b16 %v1866, %v1858
          %v2243 = vpack.c.b16 %v1867, %v1859
          %v2244 = vpack.c.b16 %v1868, %v1860
          %v2245 = vpack.c.b16 %v1869, %v1861
          %v2246 = vpack.c.b16 %v1870, %v1862
          %v2247 = vpack.c.b16 %v1871, %v1863
          %v2248 = vpack.c.b16 %v1872, %v1864
          %v2249 = vpack.c.b16 %v1873, %v1865
          %v2250 = vpack.c.b16 %v1882, %v1874
          %v2251 = vpack.c.b16 %v1883, %v1875
          %v2252 = vpack.c.b16 %v1884, %v1876
          %v2253 = vpack.c.b16 %v1885, %v1877
          %v2254 = vpack.c.b16 %v1886, %v1878
          %v2255 = vpack.c.b16 %v1887, %v1879
          %v2256 = vpack.c.b16 %v1888, %v1880
          %v2257 = vpack.c.b16 %v1889, %v1881
          %v2258 = vpack.c.b16 %v1898, %v1890
          %v2259 = vpack.c.b16 %v1899, %v1891
          %v2260 = vpack.c.b16 %v1900, %v1892
          %v2261 = vpack.c.b16 %v1901, %v1893
          %v2262 = vpack.c.b16 %v1902, %v1894
          %v2263 = vpack.c.b16 %v1903, %v1895
          %v2264 = vpack.c.b16 %v1904, %v1896
          %v2265 = vpack.c.b16 %v1905, %v1897
          %v2266 = vpack.c.b16 %v1914, %v1906
          %v2267 = vpack.c.b16 %v1915, %v1907
          %v2268 = vpack.c.b16 %v1916, %v1908
          %v2269 = vpack.c.b16 %v1917, %v1909
          %v2270 = vpack.c.b16 %v1918, %v1910
          %v2271 = vpack.c.b16 %v1919, %v1911
          %v2272 = vpack.c.b16 %v1920, %v1912
          %v2273 = vpack.c.b16 %v1921, %v1913
          %v2274 = vpack.c.b16 %v1930, %v1922
          %v2275 = vpack.c.b16 %v1931, %v1923
          %v2276 = vpack.c.b16 %v1932, %v1924
          %v2277 = vpack.c.b16 %v1933, %v1925
          %v2278 = vpack.c.b16 %v1934, %v1926
          %v2279 = vpack.c.b16 %v1935, %v1927
          %v2280 = vpack.c.b16 %v1936, %v1928
          %v2281 = vpack.c.b16 %v1937, %v1929
          %v2282 = vpack.c.b16 %v1946, %v1938
          %v2283 = vpack.c.b16 %v1947, %v1939
          %v2284 = vpack.c.b16 %v1948, %v1940
          %v2285 = vpack.c.b16 %v1949, %v1941
          %v2286 = vpack.c.b16 %v1950, %v1942
          %v2287 = vpack.c.b16 %v1951, %v1943
          %v2288 = vpack.c.b16 %v1952, %v1944
          %v2289 = vpack.c.b16 %v1953, %v1945
          %v2290 = vpack.c.b16 %v1962, %v1954
          %v2291 = vpack.c.b16 %v1963, %v1955
          %v2292 = vpack.c.b16 %v1964, %v1956
          %v2293 = vpack.c.b16 %v1965, %v1957
          %v2294 = vpack.c.b16 %v1966, %v1958
          %v2295 = vpack.c.b16 %v1967, %v1959
          %v2296 = vpack.c.b16 %v1968, %v1960
          %v2297 = vpack.c.b16 %v1969, %v1961
          %v2298 = vpack.c.b16 %v1978, %v1970
          %v2299 = vpack.c.b16 %v1979, %v1971
          %v2300 = vpack.c.b16 %v1980, %v1972
          %v2301 = vpack.c.b16 %v1981, %v1973
          %v2302 = vpack.c.b16 %v1982, %v1974
          %v2303 = vpack.c.b16 %v1983, %v1975
          %v2304 = vpack.c.b16 %v1984, %v1976
          %v2305 = vpack.c.b16 %v1985, %v1977
          %v2306 = vpack.c.b16 %v1994, %v1986
          %v2307 = vpack.c.b16 %v1995, %v1987
          %v2308 = vpack.c.b16 %v1996, %v1988
          %v2309 = vpack.c.b16 %v1997, %v1989
          %v2310 = vpack.c.b16 %v1998, %v1990
          %v2311 = vpack.c.b16 %v1999, %v1991
          %v2312 = vpack.c.b16 %v2000, %v1992
          %v2313 = vpack.c.b16 %v2001, %v1993
          %v2314 = vpack.c.b16 %v2010, %v2002
          %v2315 = vpack.c.b16 %v2011, %v2003
          %v2316 = vpack.c.b16 %v2012, %v2004
          %v2317 = vpack.c.b16 %v2013, %v2005
          %v2318 = vpack.c.b16 %v2014, %v2006
          %v2319 = vpack.c.b16 %v2015, %v2007
          %v2320 = vpack.c.b16 %v2016, %v2008
          %v2321 = vpack.c.b16 %v2017, %v2009
          %v2322 = vpack.c.b16 %v2026, %v2018
          %v2323 = vpack.c.b16 %v2027, %v2019
          %v2324 = vpack.c.b16 %v2028, %v2020
          %v2325 = vpack.c.b16 %v2029, %v2021
          %v2326 = vpack.c.b16 %v2030, %v2022
          %v2327 = vpack.c.b16 %v2031, %v2023
          %v2328 = vpack.c.b16 %v2032, %v2024
          %v2329 = vpack.c.b16 %v2033, %v2025
          %v2330 = vpack.c.b16 %v2042, %v2034
          %v2331 = vpack.c.b16 %v2043, %v2035
          %v2332 = vpack.c.b16 %v2044, %v2036
          %v2333 = vpack.c.b16 %v2045, %v2037
          %v2334 = vpack.c.b16 %v2046, %v2038
          %v2335 = vpack.c.b16 %v2047, %v2039
          %v2336 = vpack.c.b16 %v2048, %v2040
          %v2337 = vpack.c.b16 %v2049, %v2041
          %v2338 = vpack.c.b16 %v2058, %v2050
          %v2339 = vpack.c.b16 %v2059, %v2051
          %v2340 = vpack.c.b16 %v2060, %v2052
          %v2341 = vpack.c.b16 %v2061, %v2053
          %v2342 = vpack.c.b16 %v2062, %v2054
          %v2343 = vpack.c.b16 %v2063, %v2055
          %v2344 = vpack.c.b16 %v2064, %v2056
          %v2345 = vpack.c.b16 %v2065, %v2057
          %v2346 = vpack.c.b16 %v2074, %v2066
          %v2347 = vpack.c.b16 %v2075, %v2067
          %v2348 = vpack.c.b16 %v2076, %v2068
          %v2349 = vpack.c.b16 %v2077, %v2069
          %v2350 = vpack.c.b16 %v2078, %v2070
          %v2351 = vpack.c.b16 %v2079, %v2071
          %v2352 = vpack.c.b16 %v2080, %v2072
          %v2353 = vpack.c.b16 %v2081, %v2073
          %v2354 = vpack.c.b16 %v2090, %v2082
          %v2355 = vpack.c.b16 %v2091, %v2083
          %v2356 = vpack.c.b16 %v2092, %v2084
          %v2357 = vpack.c.b16 %v2093, %v2085
          %v2358 = vpack.c.b16 %v2094, %v2086
          %v2359 = vpack.c.b16 %v2095, %v2087
          %v2360 = vpack.c.b16 %v2096, %v2088
          %v2361 = vpack.c.b16 %v2097, %v2089
          %v2362 = vpack.c.b16 %v2106, %v2098
          %v2363 = vpack.c.b16 %v2107, %v2099
          %v2364 = vpack.c.b16 %v2108, %v2100
          %v2365 = vpack.c.b16 %v2109, %v2101
          %v2366 = vpack.c.b16 %v2110, %v2102
          %v2367 = vpack.c.b16 %v2111, %v2103
          %v2368 = vpack.c.b16 %v2112, %v2104
          %v2369 = vpack.c.b16 %v2113, %v2105
          %2626 = vmatprep.subr.bf16.mxu0 %v2115
          %2627 = vmatpush1.bf16.msra.mxu0 %v2114
          %2628 = vmatprep.subr.bf16.mxu0 %v2123
          %2629 = vmatpush1.bf16.msra.mxu0 %v2122
          %2630 = vmatprep.subr.bf16.mxu0 %v2131
          %2631 = vmatpush1.bf16.msra.mxu0 %v2130
          %2632 = vmatprep.subr.bf16.mxu0 %v2139
          %2633 = vmatpush1.bf16.msra.mxu0 %v2138
          %2634 = vmatprep.subr.bf16.mxu0 %v2147
          %2635 = vmatpush1.bf16.msra.mxu0 %v2146
          %2636 = vmatprep.subr.bf16.mxu0 %v2155
          %2637 = vmatpush1.bf16.msra.mxu0 %v2154
          %2638 = vmatprep.subr.bf16.mxu0 %v2163
          %2639 = vmatpush1.bf16.msra.mxu0 %v2162
          %2640 = vmatprep.subr.bf16.mxu0 %v2171
          %2641 = vmatpush1.bf16.msra.mxu0 %v2170
          %2642 = vmatprep.subr.bf16.mxu0 %v2179
          %2643 = vmatpush1.bf16.msra.mxu0 %v2178
          %2644 = vmatprep.subr.bf16.mxu0 %v2187
          %2645 = vmatpush1.bf16.msra.mxu0 %v2186
          %2646 = vmatprep.subr.bf16.mxu0 %v2195
          %2647 = vmatpush1.bf16.msra.mxu0 %v2194
          %2648 = vmatprep.subr.bf16.mxu0 %v2203
          %2649 = vmatpush1.bf16.msra.mxu0 %v2202
          %2650 = vmatprep.subr.bf16.mxu0 %v2211
          %2651 = vmatpush1.bf16.msra.mxu0 %v2210
          %2652 = vmatprep.subr.bf16.mxu0 %v2219
          %2653 = vmatpush1.bf16.msra.mxu0 %v2218
          %2654 = vmatprep.subr.bf16.mxu0 %v2227
          %2655 = vmatpush1.bf16.msra.mxu0 %v2226
          %2656 = vmatprep.subr.bf16.mxu0 %v2235
          %2657 = vmatpush1.bf16.msra.mxu0 %v2234
          %2658 = vmatprep.mubr.bf16.mxu0 %v1343
          %2659 = vmatmul.mubr.bf16.gmra.mrb[0].mxu0 %v1342
          %v2660 = vpop.f32.mrb[0].mxu0
          %v2661 = vadd.f32 0.0, %v2660
          %v2662 = vpop.f32.mrb[0].mxu0
          %v2663 = vadd.f32 0.0, %v2662
          %v2664 = vpop.f32.mrb[0].mxu0
          %v2665 = vpop.f32.mrb[0].mxu0
          %2666 = vdwg.mxu0
          %2667 = vmatprep.subr.bf16.mxu0 %v2243
          %2668 = vmatpush1.bf16.msra.mxu0 %v2242
          %2669 = vmatprep.subr.bf16.mxu0 %v2251
          %2670 = vmatpush1.bf16.msra.mxu0 %v2250
          %2671 = vmatprep.subr.bf16.mxu0 %v2259
          %2672 = vmatpush1.bf16.msra.mxu0 %v2258
          %2673 = vmatprep.subr.bf16.mxu0 %v2267
          %2674 = vmatpush1.bf16.msra.mxu0 %v2266
          %2675 = vmatprep.subr.bf16.mxu0 %v2275
          %2676 = vmatpush1.bf16.msra.mxu0 %v2274
          %2677 = vmatprep.subr.bf16.mxu0 %v2283
          %2678 = vmatpush1.bf16.msra.mxu0 %v2282
          %2679 = vmatprep.subr.bf16.mxu0 %v2291
          %2680 = vmatpush1.bf16.msra.mxu0 %v2290
          %2681 = vmatprep.subr.bf16.mxu0 %v2299
          %2682 = vmatpush1.bf16.msra.mxu0 %v2298
          %2683 = vmatprep.subr.bf16.mxu0 %v2307
          %2684 = vmatpush1.bf16.msra.mxu0 %v2306
          %2685 = vmatprep.subr.bf16.mxu0 %v2315
          %2686 = vmatpush1.bf16.msra.mxu0 %v2314
          %2687 = vmatprep.subr.bf16.mxu0 %v2323
          %2688 = vmatpush1.bf16.msra.mxu0 %v2322
          %2689 = vmatprep.subr.bf16.mxu0 %v2331
          %2690 = vmatpush1.bf16.msra.mxu0 %v2330
          %2691 = vmatprep.subr.bf16.mxu0 %v2339
          %2692 = vmatpush1.bf16.msra.mxu0 %v2338
          %2693 = vmatprep.subr.bf16.mxu0 %v2347
          %2694 = vmatpush1.bf16.msra.mxu0 %v2346
          %2695 = vmatprep.subr.bf16.mxu0 %v2355
          %2696 = vmatpush1.bf16.msra.mxu0 %v2354
          %2697 = vmatprep.subr.bf16.mxu0 %v2363
          %2698 = vmatpush1.bf16.msra.mxu0 %v2362
          %2699 = vmatprep.mubr.bf16.mxu0 %v1345
          %2700 = vmatmul.mubr.bf16.gmra.mrb[0].mxu0 %v1344
          %v2701 = vpop.f32.mrb[0].mxu0
          %v2702 = vadd.f32 %v2661, %v2701
          %v2703 = vpop.f32.mrb[0].mxu0
          %v2704 = vadd.f32 %v2663, %v2703
          %v2705 = vpop.f32.mrb[0].mxu0
          %v2706 = vpop.f32.mrb[0].mxu0
          %2707 = vdwg.mxu0
          %2708 = vmatprep.subr.bf16.mxu0 %v2117
          %2709 = vmatpush1.bf16.msra.mxu0 %v2116
          %2710 = vmatprep.subr.bf16.mxu0 %v2125
          %2711 = vmatpush1.bf16.msra.mxu0 %v2124
          %2712 = vmatprep.subr.bf16.mxu0 %v2133
          %2713 = vmatpush1.bf16.msra.mxu0 %v2132
          %2714 = vmatprep.subr.bf16.mxu0 %v2141
          %2715 = vmatpush1.bf16.msra.mxu0 %v2140
          %2716 = vmatprep.subr.bf16.mxu0 %v2149
          %2717 = vmatpush1.bf16.msra.mxu0 %v2148
          %2718 = vmatprep.subr.bf16.mxu0 %v2157
          %2719 = vmatpush1.bf16.msra.mxu0 %v2156
          %2720 = vmatprep.subr.bf16.mxu0 %v2165
          %2721 = vmatpush1.bf16.msra.mxu0 %v2164
          %2722 = vmatprep.subr.bf16.mxu0 %v2173
          %2723 = vmatpush1.bf16.msra.mxu0 %v2172
          %2724 = vmatprep.subr.bf16.mxu0 %v2181
          %2725 = vmatpush1.bf16.msra.mxu0 %v2180
          %2726 = vmatprep.subr.bf16.mxu0 %v2189
          %2727 = vmatpush1.bf16.msra.mxu0 %v2188
          %2728 = vmatprep.subr.bf16.mxu0 %v2197
          %2729 = vmatpush1.bf16.msra.mxu0 %v2196
          %2730 = vmatprep.subr.bf16.mxu0 %v2205
          %2731 = vmatpush1.bf16.msra.mxu0 %v2204
          %2732 = vmatprep.subr.bf16.mxu0 %v2213
          %2733 = vmatpush1.bf16.msra.mxu0 %v2212
          %2734 = vmatprep.subr.bf16.mxu0 %v2221
          %2735 = vmatpush1.bf16.msra.mxu0 %v2220
          %2736 = vmatprep.subr.bf16.mxu0 %v2229
          %2737 = vmatpush1.bf16.msra.mxu0 %v2228
          %2738 = vmatprep.subr.bf16.mxu0 %v2237
          %2739 = vmatpush1.bf16.msra.mxu0 %v2236
          %2740 = vmatprep.mubr.bf16.mxu0 %v1343
          %2741 = vmatmul.mubr.bf16.gmra.mrb[0].mxu0 %v1342
          %v2742 = vpop.f32.mrb[0].mxu0
          %v2743 = vadd.f32 0.0, %v2742
          %v2744 = vpop.f32.mrb[0].mxu0
          %v2745 = vadd.f32 0.0, %v2744
          %v2746 = vpop.f32.mrb[0].mxu0
          %v2747 = vpop.f32.mrb[0].mxu0
          %2748 = vdwg.mxu0
          %2749 = vmatprep.subr.bf16.mxu0 %v2245
          %2750 = vmatpush1.bf16.msra.mxu0 %v2244
          %2751 = vmatprep.subr.bf16.mxu0 %v2253
          %2752 = vmatpush1.bf16.msra.mxu0 %v2252
          %2753 = vmatprep.subr.bf16.mxu0 %v2261
          %2754 = vmatpush1.bf16.msra.mxu0 %v2260
          %2755 = vmatprep.subr.bf16.mxu0 %v2269
          %2756 = vmatpush1.bf16.msra.mxu0 %v2268
          %2757 = vmatprep.subr.bf16.mxu0 %v2277
          %2758 = vmatpush1.bf16.msra.mxu0 %v2276
          %2759 = vmatprep.subr.bf16.mxu0 %v2285
          %2760 = vmatpush1.bf16.msra.mxu0 %v2284
          %2761 = vmatprep.subr.bf16.mxu0 %v2293
          %2762 = vmatpush1.bf16.msra.mxu0 %v2292
          %2763 = vmatprep.subr.bf16.mxu0 %v2301
          %2764 = vmatpush1.bf16.msra.mxu0 %v2300
          %2765 = vmatprep.subr.bf16.mxu0 %v2309
          %2766 = vmatpush1.bf16.msra.mxu0 %v2308
          %2767 = vmatprep.subr.bf16.mxu0 %v2317
          %2768 = vmatpush1.bf16.msra.mxu0 %v2316
          %2769 = vmatprep.subr.bf16.mxu0 %v2325
          %2770 = vmatpush1.bf16.msra.mxu0 %v2324
          %2771 = vmatprep.subr.bf16.mxu0 %v2333
          %2772 = vmatpush1.bf16.msra.mxu0 %v2332
          %2773 = vmatprep.subr.bf16.mxu0 %v2341
          %2774 = vmatpush1.bf16.msra.mxu0 %v2340
          %2775 = vmatprep.subr.bf16.mxu0 %v2349
          %2776 = vmatpush1.bf16.msra.mxu0 %v2348
          %2777 = vmatprep.subr.bf16.mxu0 %v2357
          %2778 = vmatpush1.bf16.msra.mxu0 %v2356
          %2779 = vmatprep.subr.bf16.mxu0 %v2365
          %2780 = vmatpush1.bf16.msra.mxu0 %v2364
          %2781 = vmatprep.mubr.bf16.mxu0 %v1345
          %2782 = vmatmul.mubr.bf16.gmra.mrb[0].mxu0 %v1344
          %v2783 = vpop.f32.mrb[0].mxu0
          %v2784 = vadd.f32 %v2743, %v2783
          %v2785 = vpop.f32.mrb[0].mxu0
          %v2786 = vadd.f32 %v2745, %v2785
          %v2787 = vpop.f32.mrb[0].mxu0
          %v2788 = vpop.f32.mrb[0].mxu0
          %2789 = vdwg.mxu0
          %2790 = vmatprep.subr.bf16.mxu0 %v2119
          %2791 = vmatpush1.bf16.msra.mxu0 %v2118
          %2792 = vmatprep.subr.bf16.mxu0 %v2127
          %2793 = vmatpush1.bf16.msra.mxu0 %v2126
          %2794 = vmatprep.subr.bf16.mxu0 %v2135
          %2795 = vmatpush1.bf16.msra.mxu0 %v2134
          %2796 = vmatprep.subr.bf16.mxu0 %v2143
          %2797 = vmatpush1.bf16.msra.mxu0 %v2142
          %2798 = vmatprep.subr.bf16.mxu0 %v2151
          %2799 = vmatpush1.bf16.msra.mxu0 %v2150
          %2800 = vmatprep.subr.bf16.mxu0 %v2159
          %2801 = vmatpush1.bf16.msra.mxu0 %v2158
          %2802 = vmatprep.subr.bf16.mxu0 %v2167
          %2803 = vmatpush1.bf16.msra.mxu0 %v2166
          %2804 = vmatprep.subr.bf16.mxu0 %v2175
          %2805 = vmatpush1.bf16.msra.mxu0 %v2174
          %2806 = vmatprep.subr.bf16.mxu0 %v2183
          %2807 = vmatpush1.bf16.msra.mxu0 %v2182
          %2808 = vmatprep.subr.bf16.mxu0 %v2191
          %2809 = vmatpush1.bf16.msra.mxu0 %v2190
          %2810 = vmatprep.subr.bf16.mxu0 %v2199
          %2811 = vmatpush1.bf16.msra.mxu0 %v2198
          %2812 = vmatprep.subr.bf16.mxu0 %v2207
          %2813 = vmatpush1.bf16.msra.mxu0 %v2206
          %2814 = vmatprep.subr.bf16.mxu0 %v2215
          %2815 = vmatpush1.bf16.msra.mxu0 %v2214
          %2816 = vmatprep.subr.bf16.mxu0 %v2223
          %2817 = vmatpush1.bf16.msra.mxu0 %v2222
          %2818 = vmatprep.subr.bf16.mxu0 %v2231
          %2819 = vmatpush1.bf16.msra.mxu0 %v2230
          %2820 = vmatprep.subr.bf16.mxu0 %v2239
          %2821 = vmatpush1.bf16.msra.mxu0 %v2238
          %2822 = vmatprep.mubr.bf16.mxu0 %v1343
          %2823 = vmatmul.mubr.bf16.gmra.mrb[0].mxu0 %v1342
          %v2824 = vpop.f32.mrb[0].mxu0
          %v2825 = vadd.f32 0.0, %v2824
          %v2826 = vpop.f32.mrb[0].mxu0
          %v2827 = vadd.f32 0.0, %v2826
          %v2828 = vpop.f32.mrb[0].mxu0
          %v2829 = vpop.f32.mrb[0].mxu0
          %2830 = vdwg.mxu0
          %2831 = vmatprep.subr.bf16.mxu0 %v2247
          %2832 = vmatpush1.bf16.msra.mxu0 %v2246
          %2833 = vmatprep.subr.bf16.mxu0 %v2255
          %2834 = vmatpush1.bf16.msra.mxu0 %v2254
          %2835 = vmatprep.subr.bf16.mxu0 %v2263
          %2836 = vmatpush1.bf16.msra.mxu0 %v2262
          %2837 = vmatprep.subr.bf16.mxu0 %v2271
          %2838 = vmatpush1.bf16.msra.mxu0 %v2270
          %2839 = vmatprep.subr.bf16.mxu0 %v2279
          %2840 = vmatpush1.bf16.msra.mxu0 %v2278
          %2841 = vmatprep.subr.bf16.mxu0 %v2287
          %2842 = vmatpush1.bf16.msra.mxu0 %v2286
          %2843 = vmatprep.subr.bf16.mxu0 %v2295
          %2844 = vmatpush1.bf16.msra.mxu0 %v2294
          %2845 = vmatprep.subr.bf16.mxu0 %v2303
          %2846 = vmatpush1.bf16.msra.mxu0 %v2302
          %2847 = vmatprep.subr.bf16.mxu0 %v2311
          %2848 = vmatpush1.bf16.msra.mxu0 %v2310
          %2849 = vmatprep.subr.bf16.mxu0 %v2319
          %2850 = vmatpush1.bf16.msra.mxu0 %v2318
          %2851 = vmatprep.subr.bf16.mxu0 %v2327
          %2852 = vmatpush1.bf16.msra.mxu0 %v2326
          %2853 = vmatprep.subr.bf16.mxu0 %v2335
          %2854 = vmatpush1.bf16.msra.mxu0 %v2334
          %2855 = vmatprep.subr.bf16.mxu0 %v2343
          %2856 = vmatpush1.bf16.msra.mxu0 %v2342
          %2857 = vmatprep.subr.bf16.mxu0 %v2351
          %2858 = vmatpush1.bf16.msra.mxu0 %v2350
          %2859 = vmatprep.subr.bf16.mxu0 %v2359
          %2860 = vmatpush1.bf16.msra.mxu0 %v2358
          %2861 = vmatprep.subr.bf16.mxu0 %v2367
          %2862 = vmatpush1.bf16.msra.mxu0 %v2366
          %2863 = vmatprep.mubr.bf16.mxu0 %v1345
          %2864 = vmatmul.mubr.bf16.gmra.mrb[0].mxu0 %v1344
          %v2865 = vpop.f32.mrb[0].mxu0
          %v2866 = vadd.f32 %v2825, %v2865
          %v2867 = vpop.f32.mrb[0].mxu0
          %v2868 = vadd.f32 %v2827, %v2867
          %v2869 = vpop.f32.mrb[0].mxu0
          %v2870 = vpop.f32.mrb[0].mxu0
          %2871 = vdwg.mxu0
          %2872 = vmatprep.subr.bf16.mxu0 %v2121
          %2873 = vmatpush1.bf16.msra.mxu0 %v2120
          %2874 = vmatprep.subr.bf16.mxu0 %v2129
          %2875 = vmatpush1.bf16.msra.mxu0 %v2128
          %2876 = vmatprep.subr.bf16.mxu0 %v2137
          %2877 = vmatpush1.bf16.msra.mxu0 %v2136
          %2878 = vmatprep.subr.bf16.mxu0 %v2145
          %2879 = vmatpush1.bf16.msra.mxu0 %v2144
          %2880 = vmatprep.subr.bf16.mxu0 %v2153
          %2881 = vmatpush1.bf16.msra.mxu0 %v2152
          %2882 = vmatprep.subr.bf16.mxu0 %v2161
          %2883 = vmatpush1.bf16.msra.mxu0 %v2160
          %2884 = vmatprep.subr.bf16.mxu0 %v2169
          %2885 = vmatpush1.bf16.msra.mxu0 %v2168
          %2886 = vmatprep.subr.bf16.mxu0 %v2177
          %2887 = vmatpush1.bf16.msra.mxu0 %v2176
          %2888 = vmatprep.subr.bf16.mxu0 %v2185
          %2889 = vmatpush1.bf16.msra.mxu0 %v2184
          %2890 = vmatprep.subr.bf16.mxu0 %v2193
          %2891 = vmatpush1.bf16.msra.mxu0 %v2192
          %2892 = vmatprep.subr.bf16.mxu0 %v2201
          %2893 = vmatpush1.bf16.msra.mxu0 %v2200
          %2894 = vmatprep.subr.bf16.mxu0 %v2209
          %2895 = vmatpush1.bf16.msra.mxu0 %v2208
          %2896 = vmatprep.subr.bf16.mxu0 %v2217
          %2897 = vmatpush1.bf16.msra.mxu0 %v2216
          %2898 = vmatprep.subr.bf16.mxu0 %v2225
          %2899 = vmatpush1.bf16.msra.mxu0 %v2224
          %2900 = vmatprep.subr.bf16.mxu0 %v2233
          %2901 = vmatpush1.bf16.msra.mxu0 %v2232
          %2902 = vmatprep.subr.bf16.mxu0 %v2241
          %2903 = vmatpush1.bf16.msra.mxu0 %v2240
          %2904 = vmatprep.mubr.bf16.mxu0 %v1343
          %2905 = vmatmul.mubr.bf16.gmra.mrb[0].mxu0 %v1342
          %v2906 = vpop.f32.mrb[0].mxu0
          %v2907 = vadd.f32 0.0, %v2906
          %v2908 = vpop.f32.mrb[0].mxu0
          %v2909 = vadd.f32 0.0, %v2908
          %v2910 = vpop.f32.mrb[0].mxu0
          %v2911 = vpop.f32.mrb[0].mxu0
          %2912 = vdwg.mxu0
          %2913 = vmatprep.subr.bf16.mxu0 %v2249
          %2914 = vmatpush1.bf16.msra.mxu0 %v2248
          %2915 = vmatprep.subr.bf16.mxu0 %v2257
          %2916 = vmatpush1.bf16.msra.mxu0 %v2256
          %2917 = vmatprep.subr.bf16.mxu0 %v2265
          %2918 = vmatpush1.bf16.msra.mxu0 %v2264
          %2919 = vmatprep.subr.bf16.mxu0 %v2273
          %2920 = vmatpush1.bf16.msra.mxu0 %v2272
          %2921 = vmatprep.subr.bf16.mxu0 %v2281
          %2922 = vmatpush1.bf16.msra.mxu0 %v2280
          %2923 = vmatprep.subr.bf16.mxu0 %v2289
          %2924 = vmatpush1.bf16.msra.mxu0 %v2288
          %2925 = vmatprep.subr.bf16.mxu0 %v2297
          %2926 = vmatpush1.bf16.msra.mxu0 %v2296
          %2927 = vmatprep.subr.bf16.mxu0 %v2305
          %2928 = vmatpush1.bf16.msra.mxu0 %v2304
          %2929 = vmatprep.subr.bf16.mxu0 %v2313
          %2930 = vmatpush1.bf16.msra.mxu0 %v2312
          %2931 = vmatprep.subr.bf16.mxu0 %v2321
          %2932 = vmatpush1.bf16.msra.mxu0 %v2320
          %2933 = vmatprep.subr.bf16.mxu0 %v2329
          %2934 = vmatpush1.bf16.msra.mxu0 %v2328
          %2935 = vmatprep.subr.bf16.mxu0 %v2337
          %2936 = vmatpush1.bf16.msra.mxu0 %v2336
          %2937 = vmatprep.subr.bf16.mxu0 %v2345
          %2938 = vmatpush1.bf16.msra.mxu0 %v2344
          %2939 = vmatprep.subr.bf16.mxu0 %v2353
          %2940 = vmatpush1.bf16.msra.mxu0 %v2352
          %2941 = vmatprep.subr.bf16.mxu0 %v2361
          %2942 = vmatpush1.bf16.msra.mxu0 %v2360
          %2943 = vmatprep.subr.bf16.mxu0 %v2369
          %2944 = vmatpush1.bf16.msra.mxu0 %v2368
          %2945 = vmatprep.mubr.bf16.mxu0 %v1345
          %2946 = vmatmul.mubr.bf16.gmra.mrb[0].mxu0 %v1344
          %v2947 = vpop.f32.mrb[0].mxu0
          %v2948 = vadd.f32 %v2907, %v2947
          %v2949 = vpop.f32.mrb[0].mxu0
          %v2950 = vadd.f32 %v2909, %v2949
          %v2951 = vpop.f32.mrb[0].mxu0
          %v2952 = vpop.f32.mrb[0].mxu0
          %2953 = vdwg.mxu0
          %v2954 = vmax.f32 %v2702, 0.0
          %v2955 = vmax.f32 %v2704, 0.0
          %v2956 = vmax.f32 %v2784, 0.0
          %v2957 = vmax.f32 %v2786, 0.0
          %v2958 = vmax.f32 %v2866, 0.0
          %v2959 = vmax.f32 %v2868, 0.0
          %v2960 = vmax.f32 %v2948, 0.0
          %v2961 = vmax.f32 %v2950, 0.0
          %v2962 = vpack.c.bf16 %v2954, %v2954
          %v2963 = vpack.c.bf16 %v2955, %v2955
          %v2964 = vpack.c.bf16 %v2956, %v2956
          %v2965 = vpack.c.bf16 %v2957, %v2957
          %v2966 = vpack.c.bf16 %v2958, %v2958
          %v2967 = vpack.c.bf16 %v2959, %v2959
          %v2968 = vpack.c.bf16 %v2960, %v2960
          %v2969 = vpack.c.bf16 %v2961, %v2961
          %v2978 = vunpack.c.l.b16 %v2962
          %v2979 = vunpack.c.l.b16 %v2963
          %v2980 = vunpack.c.l.b16 %v2964
          %v2981 = vunpack.c.l.b16 %v2965
          %v2982 = vunpack.c.l.b16 %v2966
          %v2983 = vunpack.c.l.b16 %v2967
          %v2984 = vunpack.c.l.b16 %v2968
          %v2985 = vunpack.c.l.b16 %v2969
          %v2986 = vpack.c.b16 %v2979, %v2978
          %v2987 = vpack.c.b16 %v2981, %v2980
          %v2988 = vpack.c.b16 %v2983, %v2982
          %v2989 = vpack.c.b16 %v2985, %v2984
          %2994 = vst [vmem:[#allocation2] sm:$0xff] %v2986
          %2995 = vst [vmem:[#allocation2 + $0x8] sm:$0xff] %v2987
          %2996 = vst [vmem:[#allocation2 + $0x10] sm:$0xff] %v2988
          %2997 = vst [vmem:[#allocation2 + $0x18] sm:$0xff] %v2989
          %v2998 = vld [vmem:[%s5] sm:$0xff]
          %v2999 = vld [vmem:[%s5 + $0x8] sm:$0xff]
          %v3000 = vld [vmem:[%s5 + $0x10] sm:$0xff]
          %v3001 = vld [vmem:[%s5 + $0x18] sm:$0xff]
          %v3002 = vld [vmem:[%s5 + $0x20] sm:$0xff]
          %v3003 = vld [vmem:[%s5 + $0x28] sm:$0xff]
          %v3004 = vld [vmem:[%s5 + $0x30] sm:$0xf]
          %v3005 = vld [vmem:[%s5 + $0x38] sm:$0xf]
          %v3006 = vld [vmem:[%s5 + $0x40] sm:$0xf]
          %v3007 = vld [vmem:[#allocation13] sm:$0xff]
          %v3008 = vld [vmem:[#allocation13 + $0x8] sm:$0xff]
          %v3009 = vld [vmem:[#allocation13 + $0x10] sm:$0xff]
          %v3010 = vld [vmem:[#allocation13 + $0x18] sm:$0xff]
          %v3011 = vld [vmem:[#allocation13 + $0x20] sm:$0xff]
          %v3012 = vld [vmem:[#allocation13 + $0x28] sm:$0xff]
          %v3013 = vld [vmem:[#allocation13 + $0x30] sm:$0xff]
          %v3014 = vld [vmem:[#allocation13 + $0x38] sm:$0xff]
          %v3015 = vld [vmem:[#allocation13 + $0x40] sm:$0xff]
          %v3016 = vld [vmem:[#allocation13 + $0x48] sm:$0xff]
          %v3017 = vld [vmem:[#allocation13 + $0x50] sm:$0xff]
          %v3018 = vld [vmem:[#allocation13 + $0x58] sm:$0xff]
          %v3019 = vld [vmem:[#allocation13 + $0x60] sm:$0xff]
          %v3020 = vld [vmem:[#allocation13 + $0x68] sm:$0xff]
          %v3021 = vld [vmem:[#allocation13 + $0x70] sm:$0xff]
          %v3022 = vld [vmem:[#allocation13 + $0x78] sm:$0xff]
          %v3023 = vld [vmem:[#allocation13 + $0x80] sm:$0xff]
          %v3024 = vld [vmem:[#allocation13 + $0x88] sm:$0xff]
          %v3025 = vld [vmem:[#allocation13 + $0x90] sm:$0xff]
          %v3026 = vld [vmem:[#allocation13 + $0x98] sm:$0xff]
          %v3027 = vld [vmem:[#allocation13 + $0xa0] sm:$0xff]
          %v3028 = vld [vmem:[#allocation13 + $0xa8] sm:$0xff]
          %v3029 = vld [vmem:[#allocation13 + $0xb0] sm:$0xff]
          %v3030 = vld [vmem:[#allocation13 + $0xb8] sm:$0xff]
          %v3031 = vld [vmem:[#allocation13 + $0xc0] sm:$0xff]
          %v3032 = vld [vmem:[#allocation13 + $0xc8] sm:$0xff]
          %v3033 = vld [vmem:[#allocation13 + $0xd0] sm:$0xff]
          %v3034 = vld [vmem:[#allocation13 + $0xd8] sm:$0xff]
          %v3035 = vld [vmem:[#allocation13 + $0xe0] sm:$0xff]
          %v3036 = vld [vmem:[#allocation13 + $0xe8] sm:$0xff]
          %v3037 = vld [vmem:[#allocation13 + $0xf0] sm:$0xff]
          %v3038 = vld [vmem:[#allocation13 + $0xf8] sm:$0xff]
          %v3039 = vld [vmem:[#allocation13 + $0x100] sm:$0xff]
          %v3040 = vld [vmem:[#allocation13 + $0x108] sm:$0xff]
          %v3041 = vld [vmem:[#allocation13 + $0x110] sm:$0xff]
          %v3042 = vld [vmem:[#allocation13 + $0x118] sm:$0xff]
          %v3043 = vld [vmem:[#allocation13 + $0x120] sm:$0xff]
          %v3044 = vld [vmem:[#allocation13 + $0x128] sm:$0xff]
          %v3045 = vld [vmem:[#allocation13 + $0x130] sm:$0xff]
          %v3046 = vld [vmem:[#allocation13 + $0x138] sm:$0xff]
          %v3047 = vld [vmem:[#allocation13 + $0x140] sm:$0xff]
          %v3048 = vld [vmem:[#allocation13 + $0x148] sm:$0xff]
          %v3049 = vld [vmem:[#allocation13 + $0x150] sm:$0xff]
          %v3050 = vld [vmem:[#allocation13 + $0x158] sm:$0xff]
          %v3051 = vld [vmem:[#allocation13 + $0x160] sm:$0xff]
          %v3052 = vld [vmem:[#allocation13 + $0x168] sm:$0xff]
          %v3053 = vld [vmem:[#allocation13 + $0x170] sm:$0xff]
          %v3054 = vld [vmem:[#allocation13 + $0x178] sm:$0xff]
          %v3055 = vld [vmem:[#allocation13 + $0x180] sm:$0xff]
          %v3056 = vld [vmem:[#allocation13 + $0x188] sm:$0xff]
          %v3057 = vld [vmem:[#allocation13 + $0x190] sm:$0xff]
          %v3058 = vld [vmem:[#allocation13 + $0x198] sm:$0xff]
          %v3059 = vld [vmem:[#allocation13 + $0x1a0] sm:$0xff]
          %v3060 = vld [vmem:[#allocation13 + $0x1a8] sm:$0xff]
          %v3061 = vld [vmem:[#allocation13 + $0x1b0] sm:$0xff]
          %v3062 = vld [vmem:[#allocation13 + $0x1b8] sm:$0xff]
          %v3063 = vld [vmem:[#allocation13 + $0x1c0] sm:$0xff]
          %v3064 = vld [vmem:[#allocation13 + $0x1c8] sm:$0xff]
          %v3065 = vld [vmem:[#allocation13 + $0x1d0] sm:$0xff]
          %v3066 = vld [vmem:[#allocation13 + $0x1d8] sm:$0xff]
          %v3067 = vld [vmem:[#allocation13 + $0x1e0] sm:$0xff]
          %v3068 = vld [vmem:[#allocation13 + $0x1e8] sm:$0xff]
          %v3069 = vld [vmem:[#allocation13 + $0x1f0] sm:$0xff]
          %v3070 = vld [vmem:[#allocation13 + $0x1f8] sm:$0xff]
          %v3071 = vld [vmem:[#allocation13 + $0x200] sm:$0xff]
          %v3072 = vld [vmem:[#allocation13 + $0x208] sm:$0xff]
          %v3073 = vld [vmem:[#allocation13 + $0x210] sm:$0xff]
          %v3074 = vld [vmem:[#allocation13 + $0x218] sm:$0xff]
          %v3075 = vld [vmem:[#allocation13 + $0x220] sm:$0xff]
          %v3076 = vld [vmem:[#allocation13 + $0x228] sm:$0xff]
          %v3077 = vld [vmem:[#allocation13 + $0x230] sm:$0xff]
          %v3078 = vld [vmem:[#allocation13 + $0x238] sm:$0xff]
          %v3079 = vld [vmem:[#allocation13 + $0x240] sm:$0xff]
          %v3080 = vld [vmem:[#allocation13 + $0x248] sm:$0xff]
          %v3081 = vld [vmem:[#allocation13 + $0x250] sm:$0xff]
          %v3082 = vld [vmem:[#allocation13 + $0x258] sm:$0xff]
          %v3083 = vld [vmem:[#allocation13 + $0x260] sm:$0xff]
          %v3084 = vld [vmem:[#allocation13 + $0x268] sm:$0xff]
          %v3085 = vld [vmem:[#allocation13 + $0x270] sm:$0xff]
          %v3086 = vld [vmem:[#allocation13 + $0x278] sm:$0xff]
          %v3087 = vld [vmem:[#allocation13 + $0x280] sm:$0xff]
          %v3088 = vld [vmem:[#allocation13 + $0x288] sm:$0xff]
          %v3089 = vld [vmem:[#allocation13 + $0x290] sm:$0xff]
          %v3090 = vld [vmem:[#allocation13 + $0x298] sm:$0xff]
          %v3091 = vld [vmem:[#allocation13 + $0x2a0] sm:$0xff]
          %v3092 = vld [vmem:[#allocation13 + $0x2a8] sm:$0xff]
          %v3093 = vld [vmem:[#allocation13 + $0x2b0] sm:$0xff]
          %v3094 = vld [vmem:[#allocation13 + $0x2b8] sm:$0xff]
          %v3095 = vld [vmem:[#allocation13 + $0x2c0] sm:$0xff]
          %v3096 = vld [vmem:[#allocation13 + $0x2c8] sm:$0xff]
          %v3097 = vld [vmem:[#allocation13 + $0x2d0] sm:$0xff]
          %v3098 = vld [vmem:[#allocation13 + $0x2d8] sm:$0xff]
          %v3099 = vld [vmem:[#allocation13 + $0x2e0] sm:$0xff]
          %v3100 = vld [vmem:[#allocation13 + $0x2e8] sm:$0xff]
          %v3101 = vld [vmem:[#allocation13 + $0x2f0] sm:$0xff]
          %v3102 = vld [vmem:[#allocation13 + $0x2f8] sm:$0xff]
          %v3103 = vld [vmem:[#allocation13 + $0x300] sm:$0xff]
          %v3104 = vld [vmem:[#allocation13 + $0x308] sm:$0xff]
          %v3105 = vld [vmem:[#allocation13 + $0x310] sm:$0xff]
          %v3106 = vld [vmem:[#allocation13 + $0x318] sm:$0xff]
          %v3107 = vld [vmem:[#allocation13 + $0x320] sm:$0xff]
          %v3108 = vld [vmem:[#allocation13 + $0x328] sm:$0xff]
          %v3109 = vld [vmem:[#allocation13 + $0x330] sm:$0xff]
          %v3110 = vld [vmem:[#allocation13 + $0x338] sm:$0xff]
          %v3111 = vld [vmem:[#allocation13 + $0x340] sm:$0xff]
          %v3112 = vld [vmem:[#allocation13 + $0x348] sm:$0xff]
          %v3113 = vld [vmem:[#allocation13 + $0x350] sm:$0xff]
          %v3114 = vld [vmem:[#allocation13 + $0x358] sm:$0xff]
          %v3115 = vld [vmem:[#allocation13 + $0x360] sm:$0xff]
          %v3116 = vld [vmem:[#allocation13 + $0x368] sm:$0xff]
          %v3117 = vld [vmem:[#allocation13 + $0x370] sm:$0xff]
          %v3118 = vld [vmem:[#allocation13 + $0x378] sm:$0xff]
          %v3119 = vld [vmem:[#allocation13 + $0x380] sm:$0xff]
          %v3120 = vld [vmem:[#allocation13 + $0x388] sm:$0xff]
          %v3121 = vld [vmem:[#allocation13 + $0x390] sm:$0xff]
          %v3122 = vld [vmem:[#allocation13 + $0x398] sm:$0xff]
          %v3123 = vld [vmem:[#allocation13 + $0x3a0] sm:$0xff]
          %v3124 = vld [vmem:[#allocation13 + $0x3a8] sm:$0xff]
          %v3125 = vld [vmem:[#allocation13 + $0x3b0] sm:$0xff]
          %v3126 = vld [vmem:[#allocation13 + $0x3b8] sm:$0xff]
          %v3127 = vld [vmem:[#allocation13 + $0x3c0] sm:$0xff]
          %v3128 = vld [vmem:[#allocation13 + $0x3c8] sm:$0xff]
          %v3129 = vld [vmem:[#allocation13 + $0x3d0] sm:$0xff]
          %v3130 = vld [vmem:[#allocation13 + $0x3d8] sm:$0xff]
          %v3131 = vld [vmem:[#allocation13 + $0x3e0] sm:$0xff]
          %v3132 = vld [vmem:[#allocation13 + $0x3e8] sm:$0xff]
          %v3133 = vld [vmem:[#allocation13 + $0x3f0] sm:$0xff]
          %v3134 = vld [vmem:[#allocation13 + $0x3f8] sm:$0xff]
          %v3135 = vld [vmem:[#allocation13 + $0x400] sm:$0xff]
          %v3136 = vld [vmem:[#allocation13 + $0x408] sm:$0xff]
          %v3137 = vld [vmem:[#allocation13 + $0x410] sm:$0xff]
          %v3138 = vld [vmem:[#allocation13 + $0x418] sm:$0xff]
          %v3139 = vld [vmem:[#allocation13 + $0x420] sm:$0xff]
          %v3140 = vld [vmem:[#allocation13 + $0x428] sm:$0xff]
          %v3141 = vld [vmem:[#allocation13 + $0x430] sm:$0xff]
          %v3142 = vld [vmem:[#allocation13 + $0x438] sm:$0xff]
          %v3143 = vld [vmem:[#allocation13 + $0x440] sm:$0xff]
          %v3144 = vld [vmem:[#allocation13 + $0x448] sm:$0xff]
          %v3145 = vld [vmem:[#allocation13 + $0x450] sm:$0xff]
          %v3146 = vld [vmem:[#allocation13 + $0x458] sm:$0xff]
          %v3147 = vld [vmem:[#allocation13 + $0x460] sm:$0xff]
          %v3148 = vld [vmem:[#allocation13 + $0x468] sm:$0xff]
          %v3149 = vld [vmem:[#allocation13 + $0x470] sm:$0xff]
          %v3150 = vld [vmem:[#allocation13 + $0x478] sm:$0xff]
          %v3151 = vld [vmem:[#allocation13 + $0x480] sm:$0xff]
          %v3152 = vld [vmem:[#allocation13 + $0x488] sm:$0xff]
          %v3153 = vld [vmem:[#allocation13 + $0x490] sm:$0xff]
          %v3154 = vld [vmem:[#allocation13 + $0x498] sm:$0xff]
          %v3155 = vld [vmem:[#allocation13 + $0x4a0] sm:$0x33]
          %v3156 = vld [vmem:[#allocation13 + $0x4a8] sm:$0x33]
          %v3157 = vld [vmem:[#allocation13 + $0x4b0] sm:$0x33]
          %v3158 = vld [vmem:[#allocation13 + $0x4b8] sm:$0x33]
          %v3159 = vpack.c.bf16 %v3001, %v2998
          %v3160 = vpack.c.bf16 %v3002, %v2999
          %v3161 = vpack.c.bf16 %v3003, %v3000
          %v3162 = vpack.c.bf16 %v3004, %v3004
          %v3163 = vpack.c.bf16 %v3005, %v3005
          %v3164 = vpack.c.bf16 %v3006, %v3006
          %v3317 = vunpack.c.l.b16 %v3007
          %v3318 = vunpack.c.h.b16 %v3007
          %v3319 = vunpack.c.l.b16 %v3008
          %v3320 = vunpack.c.h.b16 %v3008
          %v3321 = vunpack.c.l.b16 %v3009
          %v3322 = vunpack.c.h.b16 %v3009
          %v3323 = vunpack.c.l.b16 %v3010
          %v3324 = vunpack.c.h.b16 %v3010
          %v3325 = vunpack.c.l.b16 %v3011
          %v3326 = vunpack.c.h.b16 %v3011
          %v3327 = vunpack.c.l.b16 %v3012
          %v3328 = vunpack.c.h.b16 %v3012
          %v3329 = vunpack.c.l.b16 %v3013
          %v3330 = vunpack.c.h.b16 %v3013
          %v3331 = vunpack.c.l.b16 %v3014
          %v3332 = vunpack.c.h.b16 %v3014
          %v3333 = vunpack.c.l.b16 %v3015
          %v3334 = vunpack.c.h.b16 %v3015
          %v3335 = vunpack.c.l.b16 %v3016
          %v3336 = vunpack.c.h.b16 %v3016
          %v3337 = vunpack.c.l.b16 %v3017
          %v3338 = vunpack.c.h.b16 %v3017
          %v3339 = vunpack.c.l.b16 %v3018
          %v3340 = vunpack.c.h.b16 %v3018
          %v3341 = vunpack.c.l.b16 %v3019
          %v3342 = vunpack.c.h.b16 %v3019
          %v3343 = vunpack.c.l.b16 %v3020
          %v3344 = vunpack.c.h.b16 %v3020
          %v3345 = vunpack.c.l.b16 %v3021
          %v3346 = vunpack.c.h.b16 %v3021
          %v3347 = vunpack.c.l.b16 %v3022
          %v3348 = vunpack.c.h.b16 %v3022
          %v3349 = vunpack.c.l.b16 %v3023
          %v3350 = vunpack.c.h.b16 %v3023
          %v3351 = vunpack.c.l.b16 %v3024
          %v3352 = vunpack.c.h.b16 %v3024
          %v3353 = vunpack.c.l.b16 %v3025
          %v3354 = vunpack.c.h.b16 %v3025
          %v3355 = vunpack.c.l.b16 %v3026
          %v3356 = vunpack.c.h.b16 %v3026
          %v3357 = vunpack.c.l.b16 %v3027
          %v3358 = vunpack.c.h.b16 %v3027
          %v3359 = vunpack.c.l.b16 %v3028
          %v3360 = vunpack.c.h.b16 %v3028
          %v3361 = vunpack.c.l.b16 %v3029
          %v3362 = vunpack.c.h.b16 %v3029
          %v3363 = vunpack.c.l.b16 %v3030
          %v3364 = vunpack.c.h.b16 %v3030
          %v3365 = vunpack.c.l.b16 %v3031
          %v3366 = vunpack.c.h.b16 %v3031
          %v3367 = vunpack.c.l.b16 %v3032
          %v3368 = vunpack.c.h.b16 %v3032
          %v3369 = vunpack.c.l.b16 %v3033
          %v3370 = vunpack.c.h.b16 %v3033
          %v3371 = vunpack.c.l.b16 %v3034
          %v3372 = vunpack.c.h.b16 %v3034
          %v3373 = vunpack.c.l.b16 %v3035
          %v3374 = vunpack.c.h.b16 %v3035
          %v3375 = vunpack.c.l.b16 %v3036
          %v3376 = vunpack.c.h.b16 %v3036
          %v3377 = vunpack.c.l.b16 %v3037
          %v3378 = vunpack.c.h.b16 %v3037
          %v3379 = vunpack.c.l.b16 %v3038
          %v3380 = vunpack.c.h.b16 %v3038
          %v3381 = vunpack.c.l.b16 %v3039
          %v3382 = vunpack.c.h.b16 %v3039
          %v3383 = vunpack.c.l.b16 %v3040
          %v3384 = vunpack.c.h.b16 %v3040
          %v3385 = vunpack.c.l.b16 %v3041
          %v3386 = vunpack.c.h.b16 %v3041
          %v3387 = vunpack.c.l.b16 %v3042
          %v3388 = vunpack.c.h.b16 %v3042
          %v3389 = vunpack.c.l.b16 %v3043
          %v3390 = vunpack.c.h.b16 %v3043
          %v3391 = vunpack.c.l.b16 %v3044
          %v3392 = vunpack.c.h.b16 %v3044
          %v3393 = vunpack.c.l.b16 %v3045
          %v3394 = vunpack.c.h.b16 %v3045
          %v3395 = vunpack.c.l.b16 %v3046
          %v3396 = vunpack.c.h.b16 %v3046
          %v3397 = vunpack.c.l.b16 %v3047
          %v3398 = vunpack.c.h.b16 %v3047
          %v3399 = vunpack.c.l.b16 %v3048
          %v3400 = vunpack.c.h.b16 %v3048
          %v3401 = vunpack.c.l.b16 %v3049
          %v3402 = vunpack.c.h.b16 %v3049
          %v3403 = vunpack.c.l.b16 %v3050
          %v3404 = vunpack.c.h.b16 %v3050
          %v3405 = vunpack.c.l.b16 %v3051
          %v3406 = vunpack.c.h.b16 %v3051
          %v3407 = vunpack.c.l.b16 %v3052
          %v3408 = vunpack.c.h.b16 %v3052
          %v3409 = vunpack.c.l.b16 %v3053
          %v3410 = vunpack.c.h.b16 %v3053
          %v3411 = vunpack.c.l.b16 %v3054
          %v3412 = vunpack.c.h.b16 %v3054
          %v3413 = vunpack.c.l.b16 %v3055
          %v3414 = vunpack.c.h.b16 %v3055
          %v3415 = vunpack.c.l.b16 %v3056
          %v3416 = vunpack.c.h.b16 %v3056
          %v3417 = vunpack.c.l.b16 %v3057
          %v3418 = vunpack.c.h.b16 %v3057
          %v3419 = vunpack.c.l.b16 %v3058
          %v3420 = vunpack.c.h.b16 %v3058
          %v3421 = vunpack.c.l.b16 %v3059
          %v3422 = vunpack.c.h.b16 %v3059
          %v3423 = vunpack.c.l.b16 %v3060
          %v3424 = vunpack.c.h.b16 %v3060
          %v3425 = vunpack.c.l.b16 %v3061
          %v3426 = vunpack.c.h.b16 %v3061
          %v3427 = vunpack.c.l.b16 %v3062
          %v3428 = vunpack.c.h.b16 %v3062
          %v3429 = vunpack.c.l.b16 %v3063
          %v3430 = vunpack.c.h.b16 %v3063
          %v3431 = vunpack.c.l.b16 %v3064
          %v3432 = vunpack.c.h.b16 %v3064
          %v3433 = vunpack.c.l.b16 %v3065
          %v3434 = vunpack.c.h.b16 %v3065
          %v3435 = vunpack.c.l.b16 %v3066
          %v3436 = vunpack.c.h.b16 %v3066
          %v3437 = vunpack.c.l.b16 %v3067
          %v3438 = vunpack.c.h.b16 %v3067
          %v3439 = vunpack.c.l.b16 %v3068
          %v3440 = vunpack.c.h.b16 %v3068
          %v3441 = vunpack.c.l.b16 %v3069
          %v3442 = vunpack.c.h.b16 %v3069
          %v3443 = vunpack.c.l.b16 %v3070
          %v3444 = vunpack.c.h.b16 %v3070
          %v3445 = vunpack.c.l.b16 %v3071
          %v3446 = vunpack.c.h.b16 %v3071
          %v3447 = vunpack.c.l.b16 %v3072
          %v3448 = vunpack.c.h.b16 %v3072
          %v3449 = vunpack.c.l.b16 %v3073
          %v3450 = vunpack.c.h.b16 %v3073
          %v3451 = vunpack.c.l.b16 %v3074
          %v3452 = vunpack.c.h.b16 %v3074
          %v3453 = vunpack.c.l.b16 %v3075
          %v3454 = vunpack.c.h.b16 %v3075
          %v3455 = vunpack.c.l.b16 %v3076
          %v3456 = vunpack.c.h.b16 %v3076
          %v3457 = vunpack.c.l.b16 %v3077
          %v3458 = vunpack.c.h.b16 %v3077
          %v3459 = vunpack.c.l.b16 %v3078
          %v3460 = vunpack.c.h.b16 %v3078
          %v3461 = vunpack.c.l.b16 %v3079
          %v3462 = vunpack.c.h.b16 %v3079
          %v3463 = vunpack.c.l.b16 %v3080
          %v3464 = vunpack.c.h.b16 %v3080
          %v3465 = vunpack.c.l.b16 %v3081
          %v3466 = vunpack.c.h.b16 %v3081
          %v3467 = vunpack.c.l.b16 %v3082
          %v3468 = vunpack.c.h.b16 %v3082
          %v3469 = vunpack.c.l.b16 %v3083
          %v3470 = vunpack.c.h.b16 %v3083
          %v3471 = vunpack.c.l.b16 %v3084
          %v3472 = vunpack.c.h.b16 %v3084
          %v3473 = vunpack.c.l.b16 %v3085
          %v3474 = vunpack.c.h.b16 %v3085
          %v3475 = vunpack.c.l.b16 %v3086
          %v3476 = vunpack.c.h.b16 %v3086
          %v3477 = vunpack.c.l.b16 %v3087
          %v3478 = vunpack.c.h.b16 %v3087
          %v3479 = vunpack.c.l.b16 %v3088
          %v3480 = vunpack.c.h.b16 %v3088
          %v3481 = vunpack.c.l.b16 %v3089
          %v3482 = vunpack.c.h.b16 %v3089
          %v3483 = vunpack.c.l.b16 %v3090
          %v3484 = vunpack.c.h.b16 %v3090
          %v3485 = vunpack.c.l.b16 %v3091
          %v3486 = vunpack.c.h.b16 %v3091
          %v3487 = vunpack.c.l.b16 %v3092
          %v3488 = vunpack.c.h.b16 %v3092
          %v3489 = vunpack.c.l.b16 %v3093
          %v3490 = vunpack.c.h.b16 %v3093
          %v3491 = vunpack.c.l.b16 %v3094
          %v3492 = vunpack.c.h.b16 %v3094
          %v3493 = vunpack.c.l.b16 %v3095
          %v3494 = vunpack.c.h.b16 %v3095
          %v3495 = vunpack.c.l.b16 %v3096
          %v3496 = vunpack.c.h.b16 %v3096
          %v3497 = vunpack.c.l.b16 %v3097
          %v3498 = vunpack.c.h.b16 %v3097
          %v3499 = vunpack.c.l.b16 %v3098
          %v3500 = vunpack.c.h.b16 %v3098
          %v3501 = vunpack.c.l.b16 %v3099
          %v3502 = vunpack.c.h.b16 %v3099
          %v3503 = vunpack.c.l.b16 %v3100
          %v3504 = vunpack.c.h.b16 %v3100
          %v3505 = vunpack.c.l.b16 %v3101
          %v3506 = vunpack.c.h.b16 %v3101
          %v3507 = vunpack.c.l.b16 %v3102
          %v3508 = vunpack.c.h.b16 %v3102
          %v3509 = vunpack.c.l.b16 %v3103
          %v3510 = vunpack.c.h.b16 %v3103
          %v3511 = vunpack.c.l.b16 %v3104
          %v3512 = vunpack.c.h.b16 %v3104
          %v3513 = vunpack.c.l.b16 %v3105
          %v3514 = vunpack.c.h.b16 %v3105
          %v3515 = vunpack.c.l.b16 %v3106
          %v3516 = vunpack.c.h.b16 %v3106
          %v3517 = vunpack.c.l.b16 %v3107
          %v3518 = vunpack.c.h.b16 %v3107
          %v3519 = vunpack.c.l.b16 %v3108
          %v3520 = vunpack.c.h.b16 %v3108
          %v3521 = vunpack.c.l.b16 %v3109
          %v3522 = vunpack.c.h.b16 %v3109
          %v3523 = vunpack.c.l.b16 %v3110
          %v3524 = vunpack.c.h.b16 %v3110
          %v3525 = vunpack.c.l.b16 %v3111
          %v3526 = vunpack.c.h.b16 %v3111
          %v3527 = vunpack.c.l.b16 %v3112
          %v3528 = vunpack.c.h.b16 %v3112
          %v3529 = vunpack.c.l.b16 %v3113
          %v3530 = vunpack.c.h.b16 %v3113
          %v3531 = vunpack.c.l.b16 %v3114
          %v3532 = vunpack.c.h.b16 %v3114
          %v3533 = vunpack.c.l.b16 %v3115
          %v3534 = vunpack.c.h.b16 %v3115
          %v3535 = vunpack.c.l.b16 %v3116
          %v3536 = vunpack.c.h.b16 %v3116
          %v3537 = vunpack.c.l.b16 %v3117
          %v3538 = vunpack.c.h.b16 %v3117
          %v3539 = vunpack.c.l.b16 %v3118
          %v3540 = vunpack.c.h.b16 %v3118
          %v3541 = vunpack.c.l.b16 %v3119
          %v3542 = vunpack.c.h.b16 %v3119
          %v3543 = vunpack.c.l.b16 %v3120
          %v3544 = vunpack.c.h.b16 %v3120
          %v3545 = vunpack.c.l.b16 %v3121
          %v3546 = vunpack.c.h.b16 %v3121
          %v3547 = vunpack.c.l.b16 %v3122
          %v3548 = vunpack.c.h.b16 %v3122
          %v3549 = vunpack.c.l.b16 %v3123
          %v3550 = vunpack.c.h.b16 %v3123
          %v3551 = vunpack.c.l.b16 %v3124
          %v3552 = vunpack.c.h.b16 %v3124
          %v3553 = vunpack.c.l.b16 %v3125
          %v3554 = vunpack.c.h.b16 %v3125
          %v3555 = vunpack.c.l.b16 %v3126
          %v3556 = vunpack.c.h.b16 %v3126
          %v3557 = vunpack.c.l.b16 %v3127
          %v3558 = vunpack.c.h.b16 %v3127
          %v3559 = vunpack.c.l.b16 %v3128
          %v3560 = vunpack.c.h.b16 %v3128
          %v3561 = vunpack.c.l.b16 %v3129
          %v3562 = vunpack.c.h.b16 %v3129
          %v3563 = vunpack.c.l.b16 %v3130
          %v3564 = vunpack.c.h.b16 %v3130
          %v3565 = vunpack.c.l.b16 %v3131
          %v3566 = vunpack.c.h.b16 %v3131
          %v3567 = vunpack.c.l.b16 %v3132
          %v3568 = vunpack.c.h.b16 %v3132
          %v3569 = vunpack.c.l.b16 %v3133
          %v3570 = vunpack.c.h.b16 %v3133
          %v3571 = vunpack.c.l.b16 %v3134
          %v3572 = vunpack.c.h.b16 %v3134
          %v3573 = vunpack.c.l.b16 %v3135
          %v3574 = vunpack.c.h.b16 %v3135
          %v3575 = vunpack.c.l.b16 %v3136
          %v3576 = vunpack.c.h.b16 %v3136
          %v3577 = vunpack.c.l.b16 %v3137
          %v3578 = vunpack.c.h.b16 %v3137
          %v3579 = vunpack.c.l.b16 %v3138
          %v3580 = vunpack.c.h.b16 %v3138
          %v3581 = vunpack.c.l.b16 %v3139
          %v3582 = vunpack.c.h.b16 %v3139
          %v3583 = vunpack.c.l.b16 %v3140
          %v3584 = vunpack.c.h.b16 %v3140
          %v3585 = vunpack.c.l.b16 %v3141
          %v3586 = vunpack.c.h.b16 %v3141
          %v3587 = vunpack.c.l.b16 %v3142
          %v3588 = vunpack.c.h.b16 %v3142
          %v3589 = vunpack.c.l.b16 %v3143
          %v3590 = vunpack.c.h.b16 %v3143
          %v3591 = vunpack.c.l.b16 %v3144
          %v3592 = vunpack.c.h.b16 %v3144
          %v3593 = vunpack.c.l.b16 %v3145
          %v3594 = vunpack.c.h.b16 %v3145
          %v3595 = vunpack.c.l.b16 %v3146
          %v3596 = vunpack.c.h.b16 %v3146
          %v3597 = vunpack.c.l.b16 %v3147
          %v3598 = vunpack.c.h.b16 %v3147
          %v3599 = vunpack.c.l.b16 %v3148
          %v3600 = vunpack.c.h.b16 %v3148
          %v3601 = vunpack.c.l.b16 %v3149
          %v3602 = vunpack.c.h.b16 %v3149
          %v3603 = vunpack.c.l.b16 %v3150
          %v3604 = vunpack.c.h.b16 %v3150
          %v3605 = vunpack.c.l.b16 %v3151
          %v3606 = vunpack.c.h.b16 %v3151
          %v3607 = vunpack.c.l.b16 %v3152
          %v3608 = vunpack.c.h.b16 %v3152
          %v3609 = vunpack.c.l.b16 %v3153
          %v3610 = vunpack.c.h.b16 %v3153
          %v3611 = vunpack.c.l.b16 %v3154
          %v3612 = vunpack.c.h.b16 %v3154
          %v3613 = vunpack.c.l.b16 %v3155
          %v3614 = vunpack.c.h.b16 %v3155
          %v3615 = vunpack.c.l.b16 %v3156
          %v3616 = vunpack.c.h.b16 %v3156
          %v3617 = vunpack.c.l.b16 %v3157
          %v3618 = vunpack.c.h.b16 %v3157
          %v3619 = vunpack.c.l.b16 %v3158
          %v3620 = vunpack.c.h.b16 %v3158
          %v3621 = vpack.c.b16 %v3325, %v3317
          %v3622 = vpack.c.b16 %v3326, %v3318
          %v3623 = vpack.c.b16 %v3327, %v3319
          %v3624 = vpack.c.b16 %v3328, %v3320
          %v3625 = vpack.c.b16 %v3329, %v3321
          %v3626 = vpack.c.b16 %v3330, %v3322
          %v3627 = vpack.c.b16 %v3331, %v3323
          %v3628 = vpack.c.b16 %v3332, %v3324
          %v3629 = vpack.c.b16 %v3341, %v3333
          %v3630 = vpack.c.b16 %v3342, %v3334
          %v3631 = vpack.c.b16 %v3343, %v3335
          %v3632 = vpack.c.b16 %v3344, %v3336
          %v3633 = vpack.c.b16 %v3345, %v3337
          %v3634 = vpack.c.b16 %v3346, %v3338
          %v3635 = vpack.c.b16 %v3347, %v3339
          %v3636 = vpack.c.b16 %v3348, %v3340
          %v3637 = vpack.c.b16 %v3357, %v3349
          %v3638 = vpack.c.b16 %v3358, %v3350
          %v3639 = vpack.c.b16 %v3359, %v3351
          %v3640 = vpack.c.b16 %v3360, %v3352
          %v3641 = vpack.c.b16 %v3361, %v3353
          %v3642 = vpack.c.b16 %v3362, %v3354
          %v3643 = vpack.c.b16 %v3363, %v3355
          %v3644 = vpack.c.b16 %v3364, %v3356
          %v3645 = vpack.c.b16 %v3373, %v3365
          %v3646 = vpack.c.b16 %v3374, %v3366
          %v3647 = vpack.c.b16 %v3375, %v3367
          %v3648 = vpack.c.b16 %v3376, %v3368
          %v3649 = vpack.c.b16 %v3377, %v3369
          %v3650 = vpack.c.b16 %v3378, %v3370
          %v3651 = vpack.c.b16 %v3379, %v3371
          %v3652 = vpack.c.b16 %v3380, %v3372
          %v3653 = vpack.c.b16 %v3389, %v3381
          %v3654 = vpack.c.b16 %v3390, %v3382
          %v3655 = vpack.c.b16 %v3391, %v3383
          %v3656 = vpack.c.b16 %v3392, %v3384
          %v3657 = vpack.c.b16 %v3393, %v3385
          %v3658 = vpack.c.b16 %v3394, %v3386
          %v3659 = vpack.c.b16 %v3395, %v3387
          %v3660 = vpack.c.b16 %v3396, %v3388
          %v3661 = vpack.c.b16 %v3405, %v3397
          %v3662 = vpack.c.b16 %v3406, %v3398
          %v3663 = vpack.c.b16 %v3407, %v3399
          %v3664 = vpack.c.b16 %v3408, %v3400
          %v3665 = vpack.c.b16 %v3409, %v3401
          %v3666 = vpack.c.b16 %v3410, %v3402
          %v3667 = vpack.c.b16 %v3411, %v3403
          %v3668 = vpack.c.b16 %v3412, %v3404
          %v3669 = vpack.c.b16 %v3421, %v3413
          %v3670 = vpack.c.b16 %v3422, %v3414
          %v3671 = vpack.c.b16 %v3423, %v3415
          %v3672 = vpack.c.b16 %v3424, %v3416
          %v3673 = vpack.c.b16 %v3425, %v3417
          %v3674 = vpack.c.b16 %v3426, %v3418
          %v3675 = vpack.c.b16 %v3427, %v3419
          %v3676 = vpack.c.b16 %v3428, %v3420
          %v3677 = vpack.c.b16 %v3437, %v3429
          %v3678 = vpack.c.b16 %v3438, %v3430
          %v3679 = vpack.c.b16 %v3439, %v3431
          %v3680 = vpack.c.b16 %v3440, %v3432
          %v3681 = vpack.c.b16 %v3441, %v3433
          %v3682 = vpack.c.b16 %v3442, %v3434
          %v3683 = vpack.c.b16 %v3443, %v3435
          %v3684 = vpack.c.b16 %v3444, %v3436
          %v3685 = vpack.c.b16 %v3453, %v3445
          %v3686 = vpack.c.b16 %v3454, %v3446
          %v3687 = vpack.c.b16 %v3455, %v3447
          %v3688 = vpack.c.b16 %v3456, %v3448
          %v3689 = vpack.c.b16 %v3457, %v3449
          %v3690 = vpack.c.b16 %v3458, %v3450
          %v3691 = vpack.c.b16 %v3459, %v3451
          %v3692 = vpack.c.b16 %v3460, %v3452
          %v3693 = vpack.c.b16 %v3469, %v3461
          %v3694 = vpack.c.b16 %v3470, %v3462
          %v3695 = vpack.c.b16 %v3471, %v3463
          %v3696 = vpack.c.b16 %v3472, %v3464
          %v3697 = vpack.c.b16 %v3473, %v3465
          %v3698 = vpack.c.b16 %v3474, %v3466
          %v3699 = vpack.c.b16 %v3475, %v3467
          %v3700 = vpack.c.b16 %v3476, %v3468
          %v3701 = vpack.c.b16 %v3485, %v3477
          %v3702 = vpack.c.b16 %v3486, %v3478
          %v3703 = vpack.c.b16 %v3487, %v3479
          %v3704 = vpack.c.b16 %v3488, %v3480
          %v3705 = vpack.c.b16 %v3489, %v3481
          %v3706 = vpack.c.b16 %v3490, %v3482
          %v3707 = vpack.c.b16 %v3491, %v3483
          %v3708 = vpack.c.b16 %v3492, %v3484
          %v3709 = vpack.c.b16 %v3501, %v3493
          %v3710 = vpack.c.b16 %v3502, %v3494
          %v3711 = vpack.c.b16 %v3503, %v3495
          %v3712 = vpack.c.b16 %v3504, %v3496
          %v3713 = vpack.c.b16 %v3505, %v3497
          %v3714 = vpack.c.b16 %v3506, %v3498
          %v3715 = vpack.c.b16 %v3507, %v3499
          %v3716 = vpack.c.b16 %v3508, %v3500
          %v3717 = vpack.c.b16 %v3517, %v3509
          %v3718 = vpack.c.b16 %v3518, %v3510
          %v3719 = vpack.c.b16 %v3519, %v3511
          %v3720 = vpack.c.b16 %v3520, %v3512
          %v3721 = vpack.c.b16 %v3521, %v3513
          %v3722 = vpack.c.b16 %v3522, %v3514
          %v3723 = vpack.c.b16 %v3523, %v3515
          %v3724 = vpack.c.b16 %v3524, %v3516
          %v3725 = vpack.c.b16 %v3533, %v3525
          %v3726 = vpack.c.b16 %v3534, %v3526
          %v3727 = vpack.c.b16 %v3535, %v3527
          %v3728 = vpack.c.b16 %v3536, %v3528
          %v3729 = vpack.c.b16 %v3537, %v3529
          %v3730 = vpack.c.b16 %v3538, %v3530
          %v3731 = vpack.c.b16 %v3539, %v3531
          %v3732 = vpack.c.b16 %v3540, %v3532
          %v3733 = vpack.c.b16 %v3549, %v3541
          %v3734 = vpack.c.b16 %v3550, %v3542
          %v3735 = vpack.c.b16 %v3551, %v3543
          %v3736 = vpack.c.b16 %v3552, %v3544
          %v3737 = vpack.c.b16 %v3553, %v3545
          %v3738 = vpack.c.b16 %v3554, %v3546
          %v3739 = vpack.c.b16 %v3555, %v3547
          %v3740 = vpack.c.b16 %v3556, %v3548
          %v3741 = vpack.c.b16 %v3565, %v3557
          %v3742 = vpack.c.b16 %v3566, %v3558
          %v3743 = vpack.c.b16 %v3567, %v3559
          %v3744 = vpack.c.b16 %v3568, %v3560
          %v3745 = vpack.c.b16 %v3569, %v3561
          %v3746 = vpack.c.b16 %v3570, %v3562
          %v3747 = vpack.c.b16 %v3571, %v3563
          %v3748 = vpack.c.b16 %v3572, %v3564
          %v3749 = vpack.c.b16 %v3581, %v3573
          %v3750 = vpack.c.b16 %v3582, %v3574
          %v3751 = vpack.c.b16 %v3583, %v3575
          %v3752 = vpack.c.b16 %v3584, %v3576
          %v3753 = vpack.c.b16 %v3585, %v3577
          %v3754 = vpack.c.b16 %v3586, %v3578
          %v3755 = vpack.c.b16 %v3587, %v3579
          %v3756 = vpack.c.b16 %v3588, %v3580
          %v3757 = vpack.c.b16 %v3597, %v3589
          %v3758 = vpack.c.b16 %v3598, %v3590
          %v3759 = vpack.c.b16 %v3599, %v3591
          %v3760 = vpack.c.b16 %v3600, %v3592
          %v3761 = vpack.c.b16 %v3601, %v3593
          %v3762 = vpack.c.b16 %v3602, %v3594
          %v3763 = vpack.c.b16 %v3603, %v3595
          %v3764 = vpack.c.b16 %v3604, %v3596
          %v3765 = vpack.c.b16 %v3613, %v3605
          %v3766 = vpack.c.b16 %v3614, %v3606
          %v3767 = vpack.c.b16 %v3615, %v3607
          %v3768 = vpack.c.b16 %v3616, %v3608
          %v3769 = vpack.c.b16 %v3617, %v3609
          %v3770 = vpack.c.b16 %v3618, %v3610
          %v3771 = vpack.c.b16 %v3619, %v3611
          %v3772 = vpack.c.b16 %v3620, %v3612
          %vm3917 = vcmask 359424
          %v3919 = vsel %vm3917, %v3161, 0
          %v3922 = vsel %vm3917, %v3164, 0
          %vm3924 = vcmask 1045504
          %v3926 = vsel %vm3924, %v3765, 0
          %v3929 = vsel %vm3924, %v3766, 0
          %v3932 = vsel %vm3924, %v3767, 0
          %v3935 = vsel %vm3924, %v3768, 0
          %v3938 = vsel %vm3924, %v3769, 0
          %v3941 = vsel %vm3924, %v3770, 0
          %v3944 = vsel %vm3924, %v3771, 0
          %v3947 = vsel %vm3924, %v3772, 0
          %3949 = vmatprep.subr.bf16.mxu0 %v3622
          %3950 = vmatpush1.bf16.msra.mxu0 %v3621
          %3951 = vmatprep.subr.bf16.mxu0 %v3630
          %3952 = vmatpush1.bf16.msra.mxu0 %v3629
          %3953 = vmatprep.subr.bf16.mxu0 %v3638
          %3954 = vmatpush1.bf16.msra.mxu0 %v3637
          %3955 = vmatprep.subr.bf16.mxu0 %v3646
          %3956 = vmatpush1.bf16.msra.mxu0 %v3645
          %3957 = vmatprep.subr.bf16.mxu0 %v3654
          %3958 = vmatpush1.bf16.msra.mxu0 %v3653
          %3959 = vmatprep.subr.bf16.mxu0 %v3662
          %3960 = vmatpush1.bf16.msra.mxu0 %v3661
          %3961 = vmatprep.subr.bf16.mxu0 %v3670
          %3962 = vmatpush1.bf16.msra.mxu0 %v3669
          %3963 = vmatprep.subr.bf16.mxu0 %v3678
          %3964 = vmatpush1.bf16.msra.mxu0 %v3677
          %3965 = vmatprep.subr.bf16.mxu0 %v3686
          %3966 = vmatpush1.bf16.msra.mxu0 %v3685
          %3967 = vmatprep.subr.bf16.mxu0 %v3694
          %3968 = vmatpush1.bf16.msra.mxu0 %v3693
          %3969 = vmatprep.subr.bf16.mxu0 %v3702
          %3970 = vmatpush1.bf16.msra.mxu0 %v3701
          %3971 = vmatprep.subr.bf16.mxu0 %v3710
          %3972 = vmatpush1.bf16.msra.mxu0 %v3709
          %3973 = vmatprep.subr.bf16.mxu0 %v3718
          %3974 = vmatpush1.bf16.msra.mxu0 %v3717
          %3975 = vmatprep.subr.bf16.mxu0 %v3726
          %3976 = vmatpush1.bf16.msra.mxu0 %v3725
          %3977 = vmatprep.subr.bf16.mxu0 %v3734
          %3978 = vmatpush1.bf16.msra.mxu0 %v3733
          %3979 = vmatprep.subr.bf16.mxu0 %v3742
          %3980 = vmatpush1.bf16.msra.mxu0 %v3741
          %3981 = vmatprep.mubr.bf16.mxu0 %v3160
          %3982 = vmatmul.mubr.bf16.gmra.mrb[0].mxu0 %v3159
          %v3983 = vpop.f32.mrb[0].mxu0
          %v3984 = vadd.f32 0.0, %v3983
          %v3985 = vpop.f32.mrb[0].mxu0
          %v3986 = vadd.f32 0.0, %v3985
          %v3987 = vpop.f32.mrb[0].mxu0
          %v3988 = vadd.f32 0.0, %v3987
          %v3989 = vpop.f32.mrb[0].mxu0
          %v3990 = vadd.f32 0.0, %v3989
          %3991 = vmatprep.mubr.bf16.mxu0 %v3163
          %3992 = vmatmul.mubr.bf16.gmra.mrb[0].mxu0 %v3162
          %v3993 = vpop.f32.mrb[0].mxu0
          %v3994 = vadd.f32 0.0, %v3993
          %v3995 = vpop.f32.mrb[0].mxu0
          %v3996 = vadd.f32 0.0, %v3995
          %v3997 = vpop.f32.mrb[0].mxu0
          %v3998 = vpop.f32.mrb[0].mxu0
          %3999 = vdwg.mxu0
          %4000 = vmatprep.subr.bf16.mxu0 %v3750
          %4001 = vmatpush1.bf16.msra.mxu0 %v3749
          %4002 = vmatprep.subr.bf16.mxu0 %v3758
          %4003 = vmatpush1.bf16.msra.mxu0 %v3757
          %4004 = vmatprep.subr.bf16.mxu0 %v3929
          %4005 = vmatpush1.bf16.msra.mxu0 %v3926
          %4006 = vmatprep.subr.bf16.mxu0 0
          %4007 = vmatpush1.bf16.msra.mxu0 0
          %4008 = vmatprep.subr.bf16.mxu0 0
          %4009 = vmatpush1.bf16.msra.mxu0 0
          %4010 = vmatprep.subr.bf16.mxu0 0
          %4011 = vmatpush1.bf16.msra.mxu0 0
          %4012 = vmatprep.subr.bf16.mxu0 0
          %4013 = vmatpush1.bf16.msra.mxu0 0
          %4014 = vmatprep.subr.bf16.mxu0 0
          %4015 = vmatpush1.bf16.msra.mxu0 0
          %4016 = vmatprep.subr.bf16.mxu0 0
          %4017 = vmatpush1.bf16.msra.mxu0 0
          %4018 = vmatprep.subr.bf16.mxu0 0
          %4019 = vmatpush1.bf16.msra.mxu0 0
          %4020 = vmatprep.subr.bf16.mxu0 0
          %4021 = vmatpush1.bf16.msra.mxu0 0
          %4022 = vmatprep.subr.bf16.mxu0 0
          %4023 = vmatpush1.bf16.msra.mxu0 0
          %4024 = vmatprep.subr.bf16.mxu0 0
          %4025 = vmatpush1.bf16.msra.mxu0 0
          %4026 = vmatprep.subr.bf16.mxu0 0
          %4027 = vmatpush1.bf16.msra.mxu0 0
          %4028 = vmatprep.subr.bf16.mxu0 0
          %4029 = vmatpush1.bf16.msra.mxu0 0
          %4030 = vmatprep.subr.bf16.mxu0 0
          %4031 = vmatpush1.bf16.msra.mxu0 0
          %4032 = vmatprep.mubr.bf16.mxu0 0
          %4033 = vmatmul.mubr.bf16.gmra.mrb[0].mxu0 %v3919
          %v4034 = vpop.f32.mrb[0].mxu0
          %v4035 = vadd.f32 %v3984, %v4034
          %v4036 = vpop.f32.mrb[0].mxu0
          %v4037 = vadd.f32 %v3986, %v4036
          %v4038 = vpop.f32.mrb[0].mxu0
          %v4039 = vadd.f32 %v3988, %v4038
          %v4040 = vpop.f32.mrb[0].mxu0
          %v4041 = vadd.f32 %v3990, %v4040
          %4042 = vmatprep.mubr.bf16.mxu0 0
          %4043 = vmatmul.mubr.bf16.gmra.mrb[0].mxu0 %v3922
          %v4044 = vpop.f32.mrb[0].mxu0
          %v4045 = vadd.f32 %v3994, %v4044
          %v4046 = vpop.f32.mrb[0].mxu0
          %v4047 = vadd.f32 %v3996, %v4046
          %v4048 = vpop.f32.mrb[0].mxu0
          %v4049 = vpop.f32.mrb[0].mxu0
          %4050 = vdwg.mxu0
          %4051 = vmatprep.subr.bf16.mxu0 %v3624
          %4052 = vmatpush1.bf16.msra.mxu0 %v3623
          %4053 = vmatprep.subr.bf16.mxu0 %v3632
          %4054 = vmatpush1.bf16.msra.mxu0 %v3631
          %4055 = vmatprep.subr.bf16.mxu0 %v3640
          %4056 = vmatpush1.bf16.msra.mxu0 %v3639
          %4057 = vmatprep.subr.bf16.mxu0 %v3648
          %4058 = vmatpush1.bf16.msra.mxu0 %v3647
          %4059 = vmatprep.subr.bf16.mxu0 %v3656
          %4060 = vmatpush1.bf16.msra.mxu0 %v3655
          %4061 = vmatprep.subr.bf16.mxu0 %v3664
          %4062 = vmatpush1.bf16.msra.mxu0 %v3663
          %4063 = vmatprep.subr.bf16.mxu0 %v3672
          %4064 = vmatpush1.bf16.msra.mxu0 %v3671
          %4065 = vmatprep.subr.bf16.mxu0 %v3680
          %4066 = vmatpush1.bf16.msra.mxu0 %v3679
          %4067 = vmatprep.subr.bf16.mxu0 %v3688
          %4068 = vmatpush1.bf16.msra.mxu0 %v3687
          %4069 = vmatprep.subr.bf16.mxu0 %v3696
          %4070 = vmatpush1.bf16.msra.mxu0 %v3695
          %4071 = vmatprep.subr.bf16.mxu0 %v3704
          %4072 = vmatpush1.bf16.msra.mxu0 %v3703
          %4073 = vmatprep.subr.bf16.mxu0 %v3712
          %4074 = vmatpush1.bf16.msra.mxu0 %v3711
          %4075 = vmatprep.subr.bf16.mxu0 %v3720
          %4076 = vmatpush1.bf16.msra.mxu0 %v3719
          %4077 = vmatprep.subr.bf16.mxu0 %v3728
          %4078 = vmatpush1.bf16.msra.mxu0 %v3727
          %4079 = vmatprep.subr.bf16.mxu0 %v3736
          %4080 = vmatpush1.bf16.msra.mxu0 %v3735
          %4081 = vmatprep.subr.bf16.mxu0 %v3744
          %4082 = vmatpush1.bf16.msra.mxu0 %v3743
          %4083 = vmatprep.mubr.bf16.mxu0 %v3160
          %4084 = vmatmul.mubr.bf16.gmra.mrb[0].mxu0 %v3159
          %v4085 = vpop.f32.mrb[0].mxu0
          %v4086 = vadd.f32 0.0, %v4085
          %v4087 = vpop.f32.mrb[0].mxu0
          %v4088 = vadd.f32 0.0, %v4087
          %v4089 = vpop.f32.mrb[0].mxu0
          %v4090 = vadd.f32 0.0, %v4089
          %v4091 = vpop.f32.mrb[0].mxu0
          %v4092 = vadd.f32 0.0, %v4091
          %4093 = vmatprep.mubr.bf16.mxu0 %v3163
          %4094 = vmatmul.mubr.bf16.gmra.mrb[0].mxu0 %v3162
          %v4095 = vpop.f32.mrb[0].mxu0
          %v4096 = vadd.f32 0.0, %v4095
          %v4097 = vpop.f32.mrb[0].mxu0
          %v4098 = vadd.f32 0.0, %v4097
          %v4099 = vpop.f32.mrb[0].mxu0
          %v4100 = vpop.f32.mrb[0].mxu0
          %4101 = vdwg.mxu0
          %4102 = vmatprep.subr.bf16.mxu0 %v3752
          %4103 = vmatpush1.bf16.msra.mxu0 %v3751
          %4104 = vmatprep.subr.bf16.mxu0 %v3760
          %4105 = vmatpush1.bf16.msra.mxu0 %v3759
          %4106 = vmatprep.subr.bf16.mxu0 %v3935
          %4107 = vmatpush1.bf16.msra.mxu0 %v3932
          %4108 = vmatprep.subr.bf16.mxu0 0
          %4109 = vmatpush1.bf16.msra.mxu0 0
          %4110 = vmatprep.subr.bf16.mxu0 0
          %4111 = vmatpush1.bf16.msra.mxu0 0
          %4112 = vmatprep.subr.bf16.mxu0 0
          %4113 = vmatpush1.bf16.msra.mxu0 0
          %4114 = vmatprep.subr.bf16.mxu0 0
          %4115 = vmatpush1.bf16.msra.mxu0 0
          %4116 = vmatprep.subr.bf16.mxu0 0
          %4117 = vmatpush1.bf16.msra.mxu0 0
          %4118 = vmatprep.subr.bf16.mxu0 0
          %4119 = vmatpush1.bf16.msra.mxu0 0
          %4120 = vmatprep.subr.bf16.mxu0 0
          %4121 = vmatpush1.bf16.msra.mxu0 0
          %4122 = vmatprep.subr.bf16.mxu0 0
          %4123 = vmatpush1.bf16.msra.mxu0 0
          %4124 = vmatprep.subr.bf16.mxu0 0
          %4125 = vmatpush1.bf16.msra.mxu0 0
          %4126 = vmatprep.subr.bf16.mxu0 0
          %4127 = vmatpush1.bf16.msra.mxu0 0
          %4128 = vmatprep.subr.bf16.mxu0 0
          %4129 = vmatpush1.bf16.msra.mxu0 0
          %4130 = vmatprep.subr.bf16.mxu0 0
          %4131 = vmatpush1.bf16.msra.mxu0 0
          %4132 = vmatprep.subr.bf16.mxu0 0
          %4133 = vmatpush1.bf16.msra.mxu0 0
          %4134 = vmatprep.mubr.bf16.mxu0 0
          %4135 = vmatmul.mubr.bf16.gmra.mrb[0].mxu0 %v3919
          %v4136 = vpop.f32.mrb[0].mxu0
          %v4137 = vadd.f32 %v4086, %v4136
          %v4138 = vpop.f32.mrb[0].mxu0
          %v4139 = vadd.f32 %v4088, %v4138
          %v4140 = vpop.f32.mrb[0].mxu0
          %v4141 = vadd.f32 %v4090, %v4140
          %v4142 = vpop.f32.mrb[0].mxu0
          %v4143 = vadd.f32 %v4092, %v4142
          %4144 = vmatprep.mubr.bf16.mxu0 0
          %4145 = vmatmul.mubr.bf16.gmra.mrb[0].mxu0 %v3922
          %v4146 = vpop.f32.mrb[0].mxu0
          %v4147 = vadd.f32 %v4096, %v4146
          %v4148 = vpop.f32.mrb[0].mxu0
          %v4149 = vadd.f32 %v4098, %v4148
          %v4150 = vpop.f32.mrb[0].mxu0
          %v4151 = vpop.f32.mrb[0].mxu0
          %4152 = vdwg.mxu0
          %4153 = vmatprep.subr.bf16.mxu0 %v3626
          %4154 = vmatpush1.bf16.msra.mxu0 %v3625
          %4155 = vmatprep.subr.bf16.mxu0 %v3634
          %4156 = vmatpush1.bf16.msra.mxu0 %v3633
          %4157 = vmatprep.subr.bf16.mxu0 %v3642
          %4158 = vmatpush1.bf16.msra.mxu0 %v3641
          %4159 = vmatprep.subr.bf16.mxu0 %v3650
          %4160 = vmatpush1.bf16.msra.mxu0 %v3649
          %4161 = vmatprep.subr.bf16.mxu0 %v3658
          %4162 = vmatpush1.bf16.msra.mxu0 %v3657
          %4163 = vmatprep.subr.bf16.mxu0 %v3666
          %4164 = vmatpush1.bf16.msra.mxu0 %v3665
          %4165 = vmatprep.subr.bf16.mxu0 %v3674
          %4166 = vmatpush1.bf16.msra.mxu0 %v3673
          %4167 = vmatprep.subr.bf16.mxu0 %v3682
          %4168 = vmatpush1.bf16.msra.mxu0 %v3681
          %4169 = vmatprep.subr.bf16.mxu0 %v3690
          %4170 = vmatpush1.bf16.msra.mxu0 %v3689
          %4171 = vmatprep.subr.bf16.mxu0 %v3698
          %4172 = vmatpush1.bf16.msra.mxu0 %v3697
          %4173 = vmatprep.subr.bf16.mxu0 %v3706
          %4174 = vmatpush1.bf16.msra.mxu0 %v3705
          %4175 = vmatprep.subr.bf16.mxu0 %v3714
          %4176 = vmatpush1.bf16.msra.mxu0 %v3713
          %4177 = vmatprep.subr.bf16.mxu0 %v3722
          %4178 = vmatpush1.bf16.msra.mxu0 %v3721
          %4179 = vmatprep.subr.bf16.mxu0 %v3730
          %4180 = vmatpush1.bf16.msra.mxu0 %v3729
          %4181 = vmatprep.subr.bf16.mxu0 %v3738
          %4182 = vmatpush1.bf16.msra.mxu0 %v3737
          %4183 = vmatprep.subr.bf16.mxu0 %v3746
          %4184 = vmatpush1.bf16.msra.mxu0 %v3745
          %4185 = vmatprep.mubr.bf16.mxu0 %v3160
          %4186 = vmatmul.mubr.bf16.gmra.mrb[0].mxu0 %v3159
          %v4187 = vpop.f32.mrb[0].mxu0
          %v4188 = vadd.f32 0.0, %v4187
          %v4189 = vpop.f32.mrb[0].mxu0
          %v4190 = vadd.f32 0.0, %v4189
          %v4191 = vpop.f32.mrb[0].mxu0
          %v4192 = vadd.f32 0.0, %v4191
          %v4193 = vpop.f32.mrb[0].mxu0
          %v4194 = vadd.f32 0.0, %v4193
          %4195 = vmatprep.mubr.bf16.mxu0 %v3163
          %4196 = vmatmul.mubr.bf16.gmra.mrb[0].mxu0 %v3162
          %v4197 = vpop.f32.mrb[0].mxu0
          %v4198 = vadd.f32 0.0, %v4197
          %v4199 = vpop.f32.mrb[0].mxu0
          %v4200 = vadd.f32 0.0, %v4199
          %v4201 = vpop.f32.mrb[0].mxu0
          %v4202 = vpop.f32.mrb[0].mxu0
          %4203 = vdwg.mxu0
          %4204 = vmatprep.subr.bf16.mxu0 %v3754
          %4205 = vmatpush1.bf16.msra.mxu0 %v3753
          %4206 = vmatprep.subr.bf16.mxu0 %v3762
          %4207 = vmatpush1.bf16.msra.mxu0 %v3761
          %4208 = vmatprep.subr.bf16.mxu0 %v3941
          %4209 = vmatpush1.bf16.msra.mxu0 %v3938
          %4210 = vmatprep.subr.bf16.mxu0 0
          %4211 = vmatpush1.bf16.msra.mxu0 0
          %4212 = vmatprep.subr.bf16.mxu0 0
          %4213 = vmatpush1.bf16.msra.mxu0 0
          %4214 = vmatprep.subr.bf16.mxu0 0
          %4215 = vmatpush1.bf16.msra.mxu0 0
          %4216 = vmatprep.subr.bf16.mxu0 0
          %4217 = vmatpush1.bf16.msra.mxu0 0
          %4218 = vmatprep.subr.bf16.mxu0 0
          %4219 = vmatpush1.bf16.msra.mxu0 0
          %4220 = vmatprep.subr.bf16.mxu0 0
          %4221 = vmatpush1.bf16.msra.mxu0 0
          %4222 = vmatprep.subr.bf16.mxu0 0
          %4223 = vmatpush1.bf16.msra.mxu0 0
          %4224 = vmatprep.subr.bf16.mxu0 0
          %4225 = vmatpush1.bf16.msra.mxu0 0
          %4226 = vmatprep.subr.bf16.mxu0 0
          %4227 = vmatpush1.bf16.msra.mxu0 0
          %4228 = vmatprep.subr.bf16.mxu0 0
          %4229 = vmatpush1.bf16.msra.mxu0 0
          %4230 = vmatprep.subr.bf16.mxu0 0
          %4231 = vmatpush1.bf16.msra.mxu0 0
          %4232 = vmatprep.subr.bf16.mxu0 0
          %4233 = vmatpush1.bf16.msra.mxu0 0
          %4234 = vmatprep.subr.bf16.mxu0 0
          %4235 = vmatpush1.bf16.msra.mxu0 0
          %4236 = vmatprep.mubr.bf16.mxu0 0
          %4237 = vmatmul.mubr.bf16.gmra.mrb[0].mxu0 %v3919
          %v4238 = vpop.f32.mrb[0].mxu0
          %v4239 = vadd.f32 %v4188, %v4238
          %v4240 = vpop.f32.mrb[0].mxu0
          %v4241 = vadd.f32 %v4190, %v4240
          %v4242 = vpop.f32.mrb[0].mxu0
          %v4243 = vadd.f32 %v4192, %v4242
          %v4244 = vpop.f32.mrb[0].mxu0
          %v4245 = vadd.f32 %v4194, %v4244
          %4246 = vmatprep.mubr.bf16.mxu0 0
          %4247 = vmatmul.mubr.bf16.gmra.mrb[0].mxu0 %v3922
          %v4248 = vpop.f32.mrb[0].mxu0
          %v4249 = vadd.f32 %v4198, %v4248
          %v4250 = vpop.f32.mrb[0].mxu0
          %v4251 = vadd.f32 %v4200, %v4250
          %v4252 = vpop.f32.mrb[0].mxu0
          %v4253 = vpop.f32.mrb[0].mxu0
          %4254 = vdwg.mxu0
          %4255 = vmatprep.subr.bf16.mxu0 %v3628
          %4256 = vmatpush1.bf16.msra.mxu0 %v3627
          %4257 = vmatprep.subr.bf16.mxu0 %v3636
          %4258 = vmatpush1.bf16.msra.mxu0 %v3635
          %4259 = vmatprep.subr.bf16.mxu0 %v3644
          %4260 = vmatpush1.bf16.msra.mxu0 %v3643
          %4261 = vmatprep.subr.bf16.mxu0 %v3652
          %4262 = vmatpush1.bf16.msra.mxu0 %v3651
          %4263 = vmatprep.subr.bf16.mxu0 %v3660
          %4264 = vmatpush1.bf16.msra.mxu0 %v3659
          %4265 = vmatprep.subr.bf16.mxu0 %v3668
          %4266 = vmatpush1.bf16.msra.mxu0 %v3667
          %4267 = vmatprep.subr.bf16.mxu0 %v3676
          %4268 = vmatpush1.bf16.msra.mxu0 %v3675
          %4269 = vmatprep.subr.bf16.mxu0 %v3684
          %4270 = vmatpush1.bf16.msra.mxu0 %v3683
          %4271 = vmatprep.subr.bf16.mxu0 %v3692
          %4272 = vmatpush1.bf16.msra.mxu0 %v3691
          %4273 = vmatprep.subr.bf16.mxu0 %v3700
          %4274 = vmatpush1.bf16.msra.mxu0 %v3699
          %4275 = vmatprep.subr.bf16.mxu0 %v3708
          %4276 = vmatpush1.bf16.msra.mxu0 %v3707
          %4277 = vmatprep.subr.bf16.mxu0 %v3716
          %4278 = vmatpush1.bf16.msra.mxu0 %v3715
          %4279 = vmatprep.subr.bf16.mxu0 %v3724
          %4280 = vmatpush1.bf16.msra.mxu0 %v3723
          %4281 = vmatprep.subr.bf16.mxu0 %v3732
          %4282 = vmatpush1.bf16.msra.mxu0 %v3731
          %4283 = vmatprep.subr.bf16.mxu0 %v3740
          %4284 = vmatpush1.bf16.msra.mxu0 %v3739
          %4285 = vmatprep.subr.bf16.mxu0 %v3748
          %4286 = vmatpush1.bf16.msra.mxu0 %v3747
          %4287 = vmatprep.mubr.bf16.mxu0 %v3160
          %4288 = vmatmul.mubr.bf16.gmra.mrb[0].mxu0 %v3159
          %v4289 = vpop.f32.mrb[0].mxu0
          %v4290 = vadd.f32 0.0, %v4289
          %v4291 = vpop.f32.mrb[0].mxu0
          %v4292 = vadd.f32 0.0, %v4291
          %v4293 = vpop.f32.mrb[0].mxu0
          %v4294 = vadd.f32 0.0, %v4293
          %v4295 = vpop.f32.mrb[0].mxu0
          %v4296 = vadd.f32 0.0, %v4295
          %4297 = vmatprep.mubr.bf16.mxu0 %v3163
          %4298 = vmatmul.mubr.bf16.gmra.mrb[0].mxu0 %v3162
          %v4299 = vpop.f32.mrb[0].mxu0
          %v4300 = vadd.f32 0.0, %v4299
          %v4301 = vpop.f32.mrb[0].mxu0
          %v4302 = vadd.f32 0.0, %v4301
          %v4303 = vpop.f32.mrb[0].mxu0
          %v4304 = vpop.f32.mrb[0].mxu0
          %4305 = vdwg.mxu0
          %4306 = vmatprep.subr.bf16.mxu0 %v3756
          %4307 = vmatpush1.bf16.msra.mxu0 %v3755
          %4308 = vmatprep.subr.bf16.mxu0 %v3764
          %4309 = vmatpush1.bf16.msra.mxu0 %v3763
          %4310 = vmatprep.subr.bf16.mxu0 %v3947
          %4311 = vmatpush1.bf16.msra.mxu0 %v3944
          %4312 = vmatprep.subr.bf16.mxu0 0
          %4313 = vmatpush1.bf16.msra.mxu0 0
          %4314 = vmatprep.subr.bf16.mxu0 0
          %4315 = vmatpush1.bf16.msra.mxu0 0
          %4316 = vmatprep.subr.bf16.mxu0 0
          %4317 = vmatpush1.bf16.msra.mxu0 0
          %4318 = vmatprep.subr.bf16.mxu0 0
          %4319 = vmatpush1.bf16.msra.mxu0 0
          %4320 = vmatprep.subr.bf16.mxu0 0
          %4321 = vmatpush1.bf16.msra.mxu0 0
          %4322 = vmatprep.subr.bf16.mxu0 0
          %4323 = vmatpush1.bf16.msra.mxu0 0
          %4324 = vmatprep.subr.bf16.mxu0 0
          %4325 = vmatpush1.bf16.msra.mxu0 0
          %4326 = vmatprep.subr.bf16.mxu0 0
          %4327 = vmatpush1.bf16.msra.mxu0 0
          %4328 = vmatprep.subr.bf16.mxu0 0
          %4329 = vmatpush1.bf16.msra.mxu0 0
          %4330 = vmatprep.subr.bf16.mxu0 0
          %4331 = vmatpush1.bf16.msra.mxu0 0
          %4332 = vmatprep.subr.bf16.mxu0 0
          %4333 = vmatpush1.bf16.msra.mxu0 0
          %4334 = vmatprep.subr.bf16.mxu0 0
          %4335 = vmatpush1.bf16.msra.mxu0 0
          %4336 = vmatprep.subr.bf16.mxu0 0
          %4337 = vmatpush1.bf16.msra.mxu0 0
          %4338 = vmatprep.mubr.bf16.mxu0 0
          %4339 = vmatmul.mubr.bf16.gmra.mrb[0].mxu0 %v3919
          %v4340 = vpop.f32.mrb[0].mxu0
          %v4341 = vadd.f32 %v4290, %v4340
          %v4342 = vpop.f32.mrb[0].mxu0
          %v4343 = vadd.f32 %v4292, %v4342
          %v4344 = vpop.f32.mrb[0].mxu0
          %v4345 = vadd.f32 %v4294, %v4344
          %v4346 = vpop.f32.mrb[0].mxu0
          %v4347 = vadd.f32 %v4296, %v4346
          %4348 = vmatprep.mubr.bf16.mxu0 0
          %4349 = vmatmul.mubr.bf16.gmra.mrb[0].mxu0 %v3922
          %v4350 = vpop.f32.mrb[0].mxu0
          %v4351 = vadd.f32 %v4300, %v4350
          %v4352 = vpop.f32.mrb[0].mxu0
          %v4353 = vadd.f32 %v4302, %v4352
          %v4354 = vpop.f32.mrb[0].mxu0
          %v4355 = vpop.f32.mrb[0].mxu0
          %4356 = vdwg.mxu0
          %v4357 = vld [vmem:[#allocation12] sm:$0xf]
          %v4358 = vld [vmem:[#allocation12 + $0x4] sm:$0xf]
          %v4359 = vld [vmem:[#allocation12 + $0x8] sm:$0x3]
          %v4360 = vpack.c.bf16 %v4039, %v4035
          %v4361 = vpack.c.bf16 %v4041, %v4037
          %v4362 = vpack.c.bf16 %v4141, %v4137
          %v4363 = vpack.c.bf16 %v4143, %v4139
          %v4364 = vpack.c.bf16 %v4243, %v4239
          %v4365 = vpack.c.bf16 %v4245, %v4241
          %v4366 = vpack.c.bf16 %v4345, %v4341
          %v4367 = vpack.c.bf16 %v4347, %v4343
          %v4368 = vpack.c.bf16 %v4045, %v4045
          %v4369 = vpack.c.bf16 %v4047, %v4047
          %v4370 = vpack.c.bf16 %v4147, %v4147
          %v4371 = vpack.c.bf16 %v4149, %v4149
          %v4372 = vpack.c.bf16 %v4249, %v4249
          %v4373 = vpack.c.bf16 %v4251, %v4251
          %v4374 = vpack.c.bf16 %v4351, %v4351
          %v4375 = vpack.c.bf16 %v4353, %v4353
          %v4379 = vunpack.c.l.b16 %v4357
          %v4380 = vunpack.c.l.b16 %v4358
          %v4381 = vunpack.c.l.b16 %v4359
          %v4382 = vpack.c.b16 %v4380, %v4379
          %v4383 = vpack.c.b16 %v4381, %v4381
          %vm4384 = vcmask 162816
          %v4386 = vsel %vm4384, %v4382, 0
          %v4389 = vsel %vm4384, %v4383, 0
          %v4392 = vsel %vm562, %v4368, 0
          %v4395 = vsel %vm562, %v4369, 0
          %v4398 = vsel %vm562, %v4370, 0
          %v4401 = vsel %vm562, %v4371, 0
          %v4404 = vsel %vm562, %v4372, 0
          %v4407 = vsel %vm562, %v4373, 0
          %v4410 = vsel %vm562, %v4374, 0
          %v4413 = vsel %vm562, %v4375, 0
          %4415 = vmatprep.subr.bf16.mxu0 %v4361
          %4416 = vmatpush1.bf16.msra.mxu0 %v4360
          %4417 = vmatprep.subr.bf16.mxu0 %v4395
          %4418 = vmatpush1.bf16.msra.mxu0 %v4392
          %4419 = vmatprep.subr.bf16.mxu0 0
          %4420 = vmatpush1.bf16.msra.mxu0 0
          %4421 = vmatprep.subr.bf16.mxu0 0
          %4422 = vmatpush1.bf16.msra.mxu0 0
          %4423 = vmatprep.subr.bf16.mxu0 0
          %4424 = vmatpush1.bf16.msra.mxu0 0
          %4425 = vmatprep.subr.bf16.mxu0 0
          %4426 = vmatpush1.bf16.msra.mxu0 0
          %4427 = vmatprep.subr.bf16.mxu0 0
          %4428 = vmatpush1.bf16.msra.mxu0 0
          %4429 = vmatprep.subr.bf16.mxu0 0
          %4430 = vmatpush1.bf16.msra.mxu0 0
          %4431 = vmatprep.subr.bf16.mxu0 0
          %4432 = vmatpush1.bf16.msra.mxu0 0
          %4433 = vmatprep.subr.bf16.mxu0 0
          %4434 = vmatpush1.bf16.msra.mxu0 0
          %4435 = vmatprep.subr.bf16.mxu0 0
          %4436 = vmatpush1.bf16.msra.mxu0 0
          %4437 = vmatprep.subr.bf16.mxu0 0
          %4438 = vmatpush1.bf16.msra.mxu0 0
          %4439 = vmatprep.subr.bf16.mxu0 0
          %4440 = vmatpush1.bf16.msra.mxu0 0
          %4441 = vmatprep.subr.bf16.mxu0 0
          %4442 = vmatpush1.bf16.msra.mxu0 0
          %4443 = vmatprep.subr.bf16.mxu0 0
          %4444 = vmatpush1.bf16.msra.mxu0 0
          %4445 = vmatprep.subr.bf16.mxu0 0
          %4446 = vmatpush1.bf16.msra.mxu0 0
          %4447 = vmatprep.mubr.bf16.mxu0 0
          %4448 = vmatmul.mubr.bf16.gmra.mrb[0].mxu0 %v4386
          %v4449 = vpop.f32.mrb[0].mxu0
          %v4450 = vadd.f32 0.0, %v4449
          %v4451 = vpop.f32.mrb[0].mxu0
          %v4452 = vadd.f32 0.0, %v4451
          %v4453 = vpop.f32.mrb[0].mxu0
          %v4454 = vadd.f32 0.0, %v4453
          %v4455 = vpop.f32.mrb[0].mxu0
          %v4456 = vadd.f32 0.0, %v4455
          %4457 = vmatprep.mubr.bf16.mxu0 0
          %4458 = vmatmul.mubr.bf16.gmra.mrb[0].mxu0 %v4389
          %v4459 = vpop.f32.mrb[0].mxu0
          %v4460 = vadd.f32 0.0, %v4459
          %v4461 = vpop.f32.mrb[0].mxu0
          %v4462 = vadd.f32 0.0, %v4461
          %v4463 = vpop.f32.mrb[0].mxu0
          %v4464 = vpop.f32.mrb[0].mxu0
          %4465 = vdwg.mxu0
          %4466 = vmatprep.subr.bf16.mxu0 %v4363
          %4467 = vmatpush1.bf16.msra.mxu0 %v4362
          %4468 = vmatprep.subr.bf16.mxu0 %v4401
          %4469 = vmatpush1.bf16.msra.mxu0 %v4398
          %4470 = vmatprep.subr.bf16.mxu0 0
          %4471 = vmatpush1.bf16.msra.mxu0 0
          %4472 = vmatprep.subr.bf16.mxu0 0
          %4473 = vmatpush1.bf16.msra.mxu0 0
          %4474 = vmatprep.subr.bf16.mxu0 0
          %4475 = vmatpush1.bf16.msra.mxu0 0
          %4476 = vmatprep.subr.bf16.mxu0 0
          %4477 = vmatpush1.bf16.msra.mxu0 0
          %4478 = vmatprep.subr.bf16.mxu0 0
          %4479 = vmatpush1.bf16.msra.mxu0 0
          %4480 = vmatprep.subr.bf16.mxu0 0
          %4481 = vmatpush1.bf16.msra.mxu0 0
          %4482 = vmatprep.subr.bf16.mxu0 0
          %4483 = vmatpush1.bf16.msra.mxu0 0
          %4484 = vmatprep.subr.bf16.mxu0 0
          %4485 = vmatpush1.bf16.msra.mxu0 0
          %4486 = vmatprep.subr.bf16.mxu0 0
          %4487 = vmatpush1.bf16.msra.mxu0 0
          %4488 = vmatprep.subr.bf16.mxu0 0
          %4489 = vmatpush1.bf16.msra.mxu0 0
          %4490 = vmatprep.subr.bf16.mxu0 0
          %4491 = vmatpush1.bf16.msra.mxu0 0
          %4492 = vmatprep.subr.bf16.mxu0 0
          %4493 = vmatpush1.bf16.msra.mxu0 0
          %4494 = vmatprep.subr.bf16.mxu0 0
          %4495 = vmatpush1.bf16.msra.mxu0 0
          %4496 = vmatprep.subr.bf16.mxu0 0
          %4497 = vmatpush1.bf16.msra.mxu0 0
          %4498 = vmatprep.mubr.bf16.mxu0 0
          %4499 = vmatmul.mubr.bf16.gmra.mrb[0].mxu0 %v4386
          %v4500 = vpop.f32.mrb[0].mxu0
          %v4501 = vadd.f32 0.0, %v4500
          %v4502 = vpop.f32.mrb[0].mxu0
          %v4503 = vadd.f32 0.0, %v4502
          %v4504 = vpop.f32.mrb[0].mxu0
          %v4505 = vadd.f32 0.0, %v4504
          %v4506 = vpop.f32.mrb[0].mxu0
          %v4507 = vadd.f32 0.0, %v4506
          %4508 = vmatprep.mubr.bf16.mxu0 0
          %4509 = vmatmul.mubr.bf16.gmra.mrb[0].mxu0 %v4389
          %v4510 = vpop.f32.mrb[0].mxu0
          %v4511 = vadd.f32 0.0, %v4510
          %v4512 = vpop.f32.mrb[0].mxu0
          %v4513 = vadd.f32 0.0, %v4512
          %v4514 = vpop.f32.mrb[0].mxu0
          %v4515 = vpop.f32.mrb[0].mxu0
          %4516 = vdwg.mxu0
          %4517 = vmatprep.subr.bf16.mxu0 %v4365
          %4518 = vmatpush1.bf16.msra.mxu0 %v4364
          %4519 = vmatprep.subr.bf16.mxu0 %v4407
          %4520 = vmatpush1.bf16.msra.mxu0 %v4404
          %4521 = vmatprep.subr.bf16.mxu0 0
          %4522 = vmatpush1.bf16.msra.mxu0 0
          %4523 = vmatprep.subr.bf16.mxu0 0
          %4524 = vmatpush1.bf16.msra.mxu0 0
          %4525 = vmatprep.subr.bf16.mxu0 0
          %4526 = vmatpush1.bf16.msra.mxu0 0
          %4527 = vmatprep.subr.bf16.mxu0 0
          %4528 = vmatpush1.bf16.msra.mxu0 0
          %4529 = vmatprep.subr.bf16.mxu0 0
          %4530 = vmatpush1.bf16.msra.mxu0 0
          %4531 = vmatprep.subr.bf16.mxu0 0
          %4532 = vmatpush1.bf16.msra.mxu0 0
          %4533 = vmatprep.subr.bf16.mxu0 0
          %4534 = vmatpush1.bf16.msra.mxu0 0
          %4535 = vmatprep.subr.bf16.mxu0 0
          %4536 = vmatpush1.bf16.msra.mxu0 0
          %4537 = vmatprep.subr.bf16.mxu0 0
          %4538 = vmatpush1.bf16.msra.mxu0 0
          %4539 = vmatprep.subr.bf16.mxu0 0
          %4540 = vmatpush1.bf16.msra.mxu0 0
          %4541 = vmatprep.subr.bf16.mxu0 0
          %4542 = vmatpush1.bf16.msra.mxu0 0
          %4543 = vmatprep.subr.bf16.mxu0 0
          %4544 = vmatpush1.bf16.msra.mxu0 0
          %4545 = vmatprep.subr.bf16.mxu0 0
          %4546 = vmatpush1.bf16.msra.mxu0 0
          %4547 = vmatprep.subr.bf16.mxu0 0
          %4548 = vmatpush1.bf16.msra.mxu0 0
          %4549 = vmatprep.mubr.bf16.mxu0 0
          %4550 = vmatmul.mubr.bf16.gmra.mrb[0].mxu0 %v4386
          %v4551 = vpop.f32.mrb[0].mxu0
          %v4552 = vadd.f32 0.0, %v4551
          %v4553 = vpop.f32.mrb[0].mxu0
          %v4554 = vadd.f32 0.0, %v4553
          %v4555 = vpop.f32.mrb[0].mxu0
          %v4556 = vadd.f32 0.0, %v4555
          %v4557 = vpop.f32.mrb[0].mxu0
          %v4558 = vadd.f32 0.0, %v4557
          %4559 = vmatprep.mubr.bf16.mxu0 0
          %4560 = vmatmul.mubr.bf16.gmra.mrb[0].mxu0 %v4389
          %v4561 = vpop.f32.mrb[0].mxu0
          %v4562 = vadd.f32 0.0, %v4561
          %v4563 = vpop.f32.mrb[0].mxu0
          %v4564 = vadd.f32 0.0, %v4563
          %v4565 = vpop.f32.mrb[0].mxu0
          %v4566 = vpop.f32.mrb[0].mxu0
          %4567 = vdwg.mxu0
          %4568 = vmatprep.subr.bf16.mxu0 %v4367
          %4569 = vmatpush1.bf16.msra.mxu0 %v4366
          %4570 = vmatprep.subr.bf16.mxu0 %v4413
          %4571 = vmatpush1.bf16.msra.mxu0 %v4410
          %4572 = vmatprep.subr.bf16.mxu0 0
          %4573 = vmatpush1.bf16.msra.mxu0 0
          %4574 = vmatprep.subr.bf16.mxu0 0
          %4575 = vmatpush1.bf16.msra.mxu0 0
          %4576 = vmatprep.subr.bf16.mxu0 0
          %4577 = vmatpush1.bf16.msra.mxu0 0
          %4578 = vmatprep.subr.bf16.mxu0 0
          %4579 = vmatpush1.bf16.msra.mxu0 0
          %4580 = vmatprep.subr.bf16.mxu0 0
          %4581 = vmatpush1.bf16.msra.mxu0 0
          %4582 = vmatprep.subr.bf16.mxu0 0
          %4583 = vmatpush1.bf16.msra.mxu0 0
          %4584 = vmatprep.subr.bf16.mxu0 0
          %4585 = vmatpush1.bf16.msra.mxu0 0
          %4586 = vmatprep.subr.bf16.mxu0 0
          %4587 = vmatpush1.bf16.msra.mxu0 0
          %4588 = vmatprep.subr.bf16.mxu0 0
          %4589 = vmatpush1.bf16.msra.mxu0 0
          %4590 = vmatprep.subr.bf16.mxu0 0
          %4591 = vmatpush1.bf16.msra.mxu0 0
          %4592 = vmatprep.subr.bf16.mxu0 0
          %4593 = vmatpush1.bf16.msra.mxu0 0
          %4594 = vmatprep.subr.bf16.mxu0 0
          %4595 = vmatpush1.bf16.msra.mxu0 0
          %4596 = vmatprep.subr.bf16.mxu0 0
          %4597 = vmatpush1.bf16.msra.mxu0 0
          %4598 = vmatprep.subr.bf16.mxu0 0
          %4599 = vmatpush1.bf16.msra.mxu0 0
          %4600 = vmatprep.mubr.bf16.mxu0 0
          %4601 = vmatmul.mubr.bf16.gmra.mrb[0].mxu0 %v4386
          %v4602 = vpop.f32.mrb[0].mxu0
          %v4603 = vadd.f32 0.0, %v4602
          %v4604 = vpop.f32.mrb[0].mxu0
          %v4605 = vadd.f32 0.0, %v4604
          %v4606 = vpop.f32.mrb[0].mxu0
          %v4607 = vadd.f32 0.0, %v4606
          %v4608 = vpop.f32.mrb[0].mxu0
          %v4609 = vadd.f32 0.0, %v4608
          %4610 = vmatprep.mubr.bf16.mxu0 0
          %4611 = vmatmul.mubr.bf16.gmra.mrb[0].mxu0 %v4389
          %v4612 = vpop.f32.mrb[0].mxu0
          %v4613 = vadd.f32 0.0, %v4612
          %v4614 = vpop.f32.mrb[0].mxu0
          %v4615 = vadd.f32 0.0, %v4614
          %v4616 = vpop.f32.mrb[0].mxu0
          %v4617 = vpop.f32.mrb[0].mxu0
          %4618 = vdwg.mxu0
          %vm4619 = vcmp.gt.f32.partialorder %v4450, 0.0
          %vm4620 = vcmp.gt.f32.partialorder %v4452, 0.0
          %vm4621 = vcmp.gt.f32.partialorder %v4501, 0.0
          %vm4622 = vcmp.gt.f32.partialorder %v4503, 0.0
          %vm4623 = vcmp.gt.f32.partialorder %v4552, 0.0
          %vm4624 = vcmp.gt.f32.partialorder %v4554, 0.0
          %vm4625 = vcmp.gt.f32.partialorder %v4603, 0.0
          %vm4626 = vcmp.gt.f32.partialorder %v4605, 0.0
          %vm4627 = vcmp.gt.f32.partialorder %v4454, 0.0
          %vm4628 = vcmp.gt.f32.partialorder %v4456, 0.0
          %vm4629 = vcmp.gt.f32.partialorder %v4505, 0.0
          %vm4630 = vcmp.gt.f32.partialorder %v4507, 0.0
          %vm4631 = vcmp.gt.f32.partialorder %v4556, 0.0
          %vm4632 = vcmp.gt.f32.partialorder %v4558, 0.0
          %vm4633 = vcmp.gt.f32.partialorder %v4607, 0.0
          %vm4634 = vcmp.gt.f32.partialorder %v4609, 0.0
          %vm4635 = vcmp.gt.f32.partialorder %v4460, 0.0
          %vm4636 = vcmp.gt.f32.partialorder %v4462, 0.0
          %vm4637 = vcmp.gt.f32.partialorder %v4511, 0.0
          %vm4638 = vcmp.gt.f32.partialorder %v4513, 0.0
          %vm4639 = vcmp.gt.f32.partialorder %v4562, 0.0
          %vm4640 = vcmp.gt.f32.partialorder %v4564, 0.0
          %vm4641 = vcmp.gt.f32.partialorder %v4613, 0.0
          %vm4642 = vcmp.gt.f32.partialorder %v4615, 0.0
          %v4643 = vmul.f32 %v4450, 0.2
          %v4644 = vmul.f32 %v4452, 0.2
          %v4645 = vmul.f32 %v4501, 0.2
          %v4646 = vmul.f32 %v4503, 0.2
          %v4647 = vmul.f32 %v4552, 0.2
          %v4648 = vmul.f32 %v4554, 0.2
          %v4649 = vmul.f32 %v4603, 0.2
          %v4650 = vmul.f32 %v4605, 0.2
          %v4651 = vmul.f32 %v4454, 0.2
          %v4652 = vmul.f32 %v4456, 0.2
          %v4653 = vmul.f32 %v4505, 0.2
          %v4654 = vmul.f32 %v4507, 0.2
          %v4655 = vmul.f32 %v4556, 0.2
          %v4656 = vmul.f32 %v4558, 0.2
          %v4657 = vmul.f32 %v4607, 0.2
          %v4658 = vmul.f32 %v4609, 0.2
          %v4659 = vmul.f32 %v4460, 0.2
          %v4660 = vmul.f32 %v4462, 0.2
          %v4661 = vmul.f32 %v4511, 0.2
          %v4662 = vmul.f32 %v4513, 0.2
          %v4663 = vmul.f32 %v4562, 0.2
          %v4664 = vmul.f32 %v4564, 0.2
          %v4665 = vmul.f32 %v4613, 0.2
          %v4666 = vmul.f32 %v4615, 0.2
          %v4667 = vsel %vm4619, %v4450, %v4643
          %v4668 = vsel %vm4620, %v4452, %v4644
          %v4669 = vsel %vm4621, %v4501, %v4645
          %v4670 = vsel %vm4622, %v4503, %v4646
          %v4671 = vsel %vm4623, %v4552, %v4647
          %v4672 = vsel %vm4624, %v4554, %v4648
          %v4673 = vsel %vm4625, %v4603, %v4649
          %v4674 = vsel %vm4626, %v4605, %v4650
          %v4675 = vsel %vm4627, %v4454, %v4651
          %v4676 = vsel %vm4628, %v4456, %v4652
          %v4677 = vsel %vm4629, %v4505, %v4653
          %v4678 = vsel %vm4630, %v4507, %v4654
          %v4679 = vsel %vm4631, %v4556, %v4655
          %v4680 = vsel %vm4632, %v4558, %v4656
          %v4681 = vsel %vm4633, %v4607, %v4657
          %v4682 = vsel %vm4634, %v4609, %v4658
          %v4683 = vsel %vm4635, %v4460, %v4659
          %v4684 = vsel %vm4636, %v4462, %v4660
          %v4685 = vsel %vm4637, %v4511, %v4661
          %v4686 = vsel %vm4638, %v4513, %v4662
          %v4687 = vsel %vm4639, %v4562, %v4663
          %v4688 = vsel %vm4640, %v4564, %v4664
          %v4689 = vsel %vm4641, %v4613, %v4665
          %v4690 = vsel %vm4642, %v4615, %v4666
          %v4691 = vpack.c.bf16 %v4675, %v4667
          %v4692 = vpack.c.bf16 %v4676, %v4668
          %v4693 = vpack.c.bf16 %v4677, %v4669
          %v4694 = vpack.c.bf16 %v4678, %v4670
          %v4695 = vpack.c.bf16 %v4679, %v4671
          %v4696 = vpack.c.bf16 %v4680, %v4672
          %v4697 = vpack.c.bf16 %v4681, %v4673
          %v4698 = vpack.c.bf16 %v4682, %v4674
          %v4699 = vpack.c.bf16 %v4683, %v4683
          %v4700 = vpack.c.bf16 %v4684, %v4684
          %v4701 = vpack.c.bf16 %v4685, %v4685
          %v4702 = vpack.c.bf16 %v4686, %v4686
          %v4703 = vpack.c.bf16 %v4687, %v4687
          %v4704 = vpack.c.bf16 %v4688, %v4688
          %v4705 = vpack.c.bf16 %v4689, %v4689
          %v4706 = vpack.c.bf16 %v4690, %v4690
          %v4723 = vunpack.c.l.b16 %v4691
          %v4724 = vunpack.c.l.b16 %v4692
          %v4725 = vunpack.c.l.b16 %v4693
          %v4726 = vunpack.c.l.b16 %v4694
          %v4727 = vunpack.c.l.b16 %v4695
          %v4728 = vunpack.c.l.b16 %v4696
          %v4729 = vunpack.c.l.b16 %v4697
          %v4730 = vunpack.c.l.b16 %v4698
          %v4731 = vunpack.c.h.b16 %v4691
          %v4732 = vunpack.c.h.b16 %v4692
          %v4733 = vunpack.c.h.b16 %v4693
          %v4734 = vunpack.c.h.b16 %v4694
          %v4735 = vunpack.c.h.b16 %v4695
          %v4736 = vunpack.c.h.b16 %v4696
          %v4737 = vunpack.c.h.b16 %v4697
          %v4738 = vunpack.c.h.b16 %v4698
          %v4739 = vunpack.c.l.b16 %v4699
          %v4740 = vunpack.c.l.b16 %v4700
          %v4741 = vunpack.c.l.b16 %v4701
          %v4742 = vunpack.c.l.b16 %v4702
          %v4743 = vunpack.c.l.b16 %v4703
          %v4744 = vunpack.c.l.b16 %v4704
          %v4745 = vunpack.c.l.b16 %v4705
          %v4746 = vunpack.c.l.b16 %v4706
          %v4747 = vpack.c.b16 %v4724, %v4723
          %v4748 = vpack.c.b16 %v4726, %v4725
          %v4749 = vpack.c.b16 %v4728, %v4727
          %v4750 = vpack.c.b16 %v4730, %v4729
          %v4751 = vpack.c.b16 %v4732, %v4731
          %v4752 = vpack.c.b16 %v4734, %v4733
          %v4753 = vpack.c.b16 %v4736, %v4735
          %v4754 = vpack.c.b16 %v4738, %v4737
          %v4755 = vpack.c.b16 %v4740, %v4739
          %v4756 = vpack.c.b16 %v4742, %v4741
          %v4757 = vpack.c.b16 %v4744, %v4743
          %v4758 = vpack.c.b16 %v4746, %v4745
          %4771 = vst [vmem:[#allocation3] sm:$0xff] %v4747
          %4772 = vst [vmem:[#allocation3 + $0x8] sm:$0xff] %v4748
          %4773 = vst [vmem:[#allocation3 + $0x10] sm:$0xff] %v4749
          %4774 = vst [vmem:[#allocation3 + $0x18] sm:$0xff] %v4750
          %4775 = vst [vmem:[#allocation3 + $0x20] sm:$0xff] %v4751
          %4776 = vst [vmem:[#allocation3 + $0x28] sm:$0xff] %v4752
          %4777 = vst [vmem:[#allocation3 + $0x30] sm:$0xff] %v4753
          %4778 = vst [vmem:[#allocation3 + $0x38] sm:$0xff] %v4754
          %4779 = vst [vmem:[#allocation3 + $0x40] sm:$0x33] %v4755
          %4780 = vst [vmem:[#allocation3 + $0x48] sm:$0x33] %v4756
          %4781 = vst [vmem:[#allocation3 + $0x50] sm:$0x33] %v4757
          %4782 = vst [vmem:[#allocation3 + $0x58] sm:$0x33] %v4758
          %vm4783 = vcmask 156672
          %4784 = vst.msk [vmem:[#allocation17] sm:$0x3] %vm4783, 0.0
          %4785 = vst.msk [vmem:[#allocation18] sm:$0x3] %vm4783, 0.0
        $region96: #{net_forward.1} parent=59 // pred_fallthru
          _
        %v4786 = vld [vmem:[#allocation2] sm:$0xff]
        %v4787 = vld [vmem:[#allocation2 + $0x8] sm:$0xff]
        %v4788 = vld [vmem:[#allocation2 + $0x10] sm:$0xff]
        %v4789 = vld [vmem:[#allocation2 + $0x18] sm:$0xff]
        %v4790 = vld [vmem:[%s467] sm:$0xff]
        %v4791 = vld [vmem:[%s467 + $0x8] sm:$0xff]
        %v4792 = vld [vmem:[%s467 + $0x10] sm:$0xff]
        %v4793 = vld [vmem:[%s467 + $0x18] sm:$0xff]
        %v4794 = vld [vmem:[%s467 + $0x20] sm:$0xff]
        %v4795 = vld [vmem:[%s467 + $0x28] sm:$0xff]
        %v4796 = vld [vmem:[%s467 + $0x30] sm:$0xff]
        %v4797 = vld [vmem:[%s467 + $0x38] sm:$0xff]
        %v4798 = vld [vmem:[%s467 + $0x40] sm:$0xff]
        %v4799 = vld [vmem:[%s467 + $0x48] sm:$0xff]
        %v4800 = vld [vmem:[%s467 + $0x50] sm:$0xff]
        %v4801 = vld [vmem:[%s467 + $0x58] sm:$0xff]
        %v4802 = vld [vmem:[%s467 + $0x60] sm:$0xff]
        %v4803 = vld [vmem:[%s467 + $0x68] sm:$0xff]
        %v4804 = vld [vmem:[%s467 + $0x70] sm:$0xff]
        %v4805 = vld [vmem:[%s467 + $0x78] sm:$0xff]
        %v4806 = vld [vmem:[%s467 + $0x80] sm:$0xff]
        %v4807 = vld [vmem:[%s467 + $0x88] sm:$0xff]
        %v4808 = vld [vmem:[%s467 + $0x90] sm:$0xff]
        %v4809 = vld [vmem:[%s467 + $0x98] sm:$0xff]
        %v4810 = vld [vmem:[%s467 + $0xa0] sm:$0xff]
        %v4811 = vld [vmem:[%s467 + $0xa8] sm:$0xff]
        %v4812 = vld [vmem:[%s467 + $0xb0] sm:$0xff]
        %v4813 = vld [vmem:[%s467 + $0xb8] sm:$0xff]
        %v4814 = vld [vmem:[%s467 + $0xc0] sm:$0xff]
        %v4815 = vld [vmem:[%s467 + $0xc8] sm:$0xff]
        %v4816 = vld [vmem:[%s467 + $0xd0] sm:$0xff]
        %v4817 = vld [vmem:[%s467 + $0xd8] sm:$0xff]
        %v4818 = vld [vmem:[%s467 + $0xe0] sm:$0xff]
        %v4819 = vld [vmem:[%s467 + $0xe8] sm:$0xff]
        %v4820 = vld [vmem:[%s467 + $0xf0] sm:$0xff]
        %v4821 = vld [vmem:[%s467 + $0xf8] sm:$0xff]
        %v4822 = vld [vmem:[%s467 + $0x100] sm:$0xff]
        %v4823 = vld [vmem:[%s467 + $0x108] sm:$0xff]
        %v4824 = vld [vmem:[%s467 + $0x110] sm:$0xff]
        %v4825 = vld [vmem:[%s467 + $0x118] sm:$0xff]
        %v4826 = vld [vmem:[%s467 + $0x120] sm:$0xff]
        %v4827 = vld [vmem:[%s467 + $0x128] sm:$0xff]
        %v4828 = vld [vmem:[%s467 + $0x130] sm:$0xff]
        %v4829 = vld [vmem:[%s467 + $0x138] sm:$0xff]
        %v4830 = vld [vmem:[%s467 + $0x140] sm:$0xff]
        %v4831 = vld [vmem:[%s467 + $0x148] sm:$0xff]
        %v4832 = vld [vmem:[%s467 + $0x150] sm:$0xff]
        %v4833 = vld [vmem:[%s467 + $0x158] sm:$0xff]
        %v4834 = vld [vmem:[%s467 + $0x160] sm:$0xff]
        %v4835 = vld [vmem:[%s467 + $0x168] sm:$0xff]
        %v4836 = vld [vmem:[%s467 + $0x170] sm:$0xff]
        %v4837 = vld [vmem:[%s467 + $0x178] sm:$0xff]
        %v4838 = vld [vmem:[%s467 + $0x180] sm:$0xff]
        %v4839 = vld [vmem:[%s467 + $0x188] sm:$0xff]
        %v4840 = vld [vmem:[%s467 + $0x190] sm:$0xff]
        %v4841 = vld [vmem:[%s467 + $0x198] sm:$0xff]
        %v4842 = vld [vmem:[%s467 + $0x1a0] sm:$0xff]
        %v4843 = vld [vmem:[%s467 + $0x1a8] sm:$0xff]
        %v4844 = vld [vmem:[%s467 + $0x1b0] sm:$0xff]
        %v4845 = vld [vmem:[%s467 + $0x1b8] sm:$0xff]
        %v4846 = vld [vmem:[%s467 + $0x1c0] sm:$0xff]
        %v4847 = vld [vmem:[%s467 + $0x1c8] sm:$0xff]
        %v4848 = vld [vmem:[%s467 + $0x1d0] sm:$0xff]
        %v4849 = vld [vmem:[%s467 + $0x1d8] sm:$0xff]
        %v4850 = vld [vmem:[%s467 + $0x1e0] sm:$0xff]
        %v4851 = vld [vmem:[%s467 + $0x1e8] sm:$0xff]
        %v4852 = vld [vmem:[%s467 + $0x1f0] sm:$0xff]
        %v4853 = vld [vmem:[%s467 + $0x1f8] sm:$0xff]
        %v4854 = vld [vmem:[%s467 + $0x200] sm:$0xff]
        %v4855 = vld [vmem:[%s467 + $0x208] sm:$0xff]
        %v4856 = vld [vmem:[%s467 + $0x210] sm:$0xff]
        %v4857 = vld [vmem:[%s467 + $0x218] sm:$0xff]
        %v4858 = vld [vmem:[%s467 + $0x220] sm:$0xff]
        %v4859 = vld [vmem:[%s467 + $0x228] sm:$0xff]
        %v4860 = vld [vmem:[%s467 + $0x230] sm:$0xff]
        %v4861 = vld [vmem:[%s467 + $0x238] sm:$0xff]
        %v4862 = vld [vmem:[%s467 + $0x240] sm:$0xff]
        %v4863 = vld [vmem:[%s467 + $0x248] sm:$0xff]
        %v4864 = vld [vmem:[%s467 + $0x250] sm:$0xff]
        %v4865 = vld [vmem:[%s467 + $0x258] sm:$0xff]
        %v4866 = vld [vmem:[%s467 + $0x260] sm:$0xff]
        %v4867 = vld [vmem:[%s467 + $0x268] sm:$0xff]
        %v4868 = vld [vmem:[%s467 + $0x270] sm:$0xff]
        %v4869 = vld [vmem:[%s467 + $0x278] sm:$0xff]
        %v4870 = vld [vmem:[%s467 + $0x280] sm:$0xff]
        %v4871 = vld [vmem:[%s467 + $0x288] sm:$0xff]
        %v4872 = vld [vmem:[%s467 + $0x290] sm:$0xff]
        %v4873 = vld [vmem:[%s467 + $0x298] sm:$0xff]
        %v4874 = vld [vmem:[%s467 + $0x2a0] sm:$0xff]
        %v4875 = vld [vmem:[%s467 + $0x2a8] sm:$0xff]
        %v4876 = vld [vmem:[%s467 + $0x2b0] sm:$0xff]
        %v4877 = vld [vmem:[%s467 + $0x2b8] sm:$0xff]
        %v4878 = vld [vmem:[%s467 + $0x2c0] sm:$0xff]
        %v4879 = vld [vmem:[%s467 + $0x2c8] sm:$0xff]
        %v4880 = vld [vmem:[%s467 + $0x2d0] sm:$0xff]
        %v4881 = vld [vmem:[%s467 + $0x2d8] sm:$0xff]
        %v4882 = vld [vmem:[%s467 + $0x2e0] sm:$0xff]
        %v4883 = vld [vmem:[%s467 + $0x2e8] sm:$0xff]
        %v4884 = vld [vmem:[%s467 + $0x2f0] sm:$0xff]
        %v4885 = vld [vmem:[%s467 + $0x2f8] sm:$0xff]
        %v4886 = vld [vmem:[%s467 + $0x300] sm:$0xff]
        %v4887 = vld [vmem:[%s467 + $0x308] sm:$0xff]
        %v4888 = vld [vmem:[%s467 + $0x310] sm:$0xff]
        %v4889 = vld [vmem:[%s467 + $0x318] sm:$0xff]
        %v4890 = vld [vmem:[%s467 + $0x320] sm:$0xff]
        %v4891 = vld [vmem:[%s467 + $0x328] sm:$0xff]
        %v4892 = vld [vmem:[%s467 + $0x330] sm:$0xff]
        %v4893 = vld [vmem:[%s467 + $0x338] sm:$0xff]
        %v4894 = vld [vmem:[%s467 + $0x340] sm:$0xff]
        %v4895 = vld [vmem:[%s467 + $0x348] sm:$0xff]
        %v4896 = vld [vmem:[%s467 + $0x350] sm:$0xff]
        %v4897 = vld [vmem:[%s467 + $0x358] sm:$0xff]
        %v4898 = vld [vmem:[%s467 + $0x360] sm:$0xff]
        %v4899 = vld [vmem:[%s467 + $0x368] sm:$0xff]
        %v4900 = vld [vmem:[%s467 + $0x370] sm:$0xff]
        %v4901 = vld [vmem:[%s467 + $0x378] sm:$0xff]
        %v4902 = vld [vmem:[%s467 + $0x380] sm:$0xff]
        %v4903 = vld [vmem:[%s467 + $0x388] sm:$0xff]
        %v4904 = vld [vmem:[%s467 + $0x390] sm:$0xff]
        %v4905 = vld [vmem:[%s467 + $0x398] sm:$0xff]
        %v4906 = vld [vmem:[%s467 + $0x3a0] sm:$0xff]
        %v4907 = vld [vmem:[%s467 + $0x3a8] sm:$0xff]
        %v4908 = vld [vmem:[%s467 + $0x3b0] sm:$0xff]
        %v4909 = vld [vmem:[%s467 + $0x3b8] sm:$0xff]
        %v4910 = vld [vmem:[%s467 + $0x3c0] sm:$0xff]
        %v4911 = vld [vmem:[%s467 + $0x3c8] sm:$0xff]
        %v4912 = vld [vmem:[%s467 + $0x3d0] sm:$0xff]
        %v4913 = vld [vmem:[%s467 + $0x3d8] sm:$0xff]
        %v4914 = vld [vmem:[%s467 + $0x3e0] sm:$0xff]
        %v4915 = vld [vmem:[%s467 + $0x3e8] sm:$0xff]
        %v4916 = vld [vmem:[%s467 + $0x3f0] sm:$0xff]
        %v4917 = vld [vmem:[%s467 + $0x3f8] sm:$0xff]
        %v4918 = vld [vmem:[%s467 + $0x400] sm:$0xff]
        %v4919 = vld [vmem:[%s467 + $0x408] sm:$0xff]
        %v4920 = vld [vmem:[%s467 + $0x410] sm:$0xff]
        %v4921 = vld [vmem:[%s467 + $0x418] sm:$0xff]
        %v4922 = vld [vmem:[%s467 + $0x420] sm:$0xff]
        %v4923 = vld [vmem:[%s467 + $0x428] sm:$0xff]
        %v4924 = vld [vmem:[%s467 + $0x430] sm:$0xff]
        %v4925 = vld [vmem:[%s467 + $0x438] sm:$0xff]
        %v4926 = vld [vmem:[%s467 + $0x440] sm:$0xff]
        %v4927 = vld [vmem:[%s467 + $0x448] sm:$0xff]
        %v4928 = vld [vmem:[%s467 + $0x450] sm:$0xff]
        %v4929 = vld [vmem:[%s467 + $0x458] sm:$0xff]
        %v4930 = vld [vmem:[%s467 + $0x460] sm:$0xff]
        %v4931 = vld [vmem:[%s467 + $0x468] sm:$0xff]
        %v4932 = vld [vmem:[%s467 + $0x470] sm:$0xff]
        %v4933 = vld [vmem:[%s467 + $0x478] sm:$0xff]
        %v4934 = vld [vmem:[%s467 + $0x480] sm:$0xff]
        %v4935 = vld [vmem:[%s467 + $0x488] sm:$0xff]
        %v4936 = vld [vmem:[%s467 + $0x490] sm:$0xff]
        %v4937 = vld [vmem:[%s467 + $0x498] sm:$0xff]
        %v4938 = vld [vmem:[%s467 + $0x4a0] sm:$0xff]
        %v4939 = vld [vmem:[%s467 + $0x4a8] sm:$0xff]
        %v4940 = vld [vmem:[%s467 + $0x4b0] sm:$0xff]
        %v4941 = vld [vmem:[%s467 + $0x4b8] sm:$0xff]
        %v4942 = vld [vmem:[%s467 + $0x4c0] sm:$0xff]
        %v4943 = vld [vmem:[%s467 + $0x4c8] sm:$0xff]
        %v4944 = vld [vmem:[%s467 + $0x4d0] sm:$0xff]
        %v4945 = vld [vmem:[%s467 + $0x4d8] sm:$0xff]
        %v4946 = vld [vmem:[%s467 + $0x4e0] sm:$0xff]
        %v4947 = vld [vmem:[%s467 + $0x4e8] sm:$0xff]
        %v4948 = vld [vmem:[%s467 + $0x4f0] sm:$0xff]
        %v4949 = vld [vmem:[%s467 + $0x4f8] sm:$0xff]
        %v4950 = vld [vmem:[%s467 + $0x500] sm:$0xff]
        %v4951 = vld [vmem:[%s467 + $0x508] sm:$0xff]
        %v4952 = vld [vmem:[%s467 + $0x510] sm:$0xff]
        %v4953 = vld [vmem:[%s467 + $0x518] sm:$0xff]
        %v4954 = vld [vmem:[%s467 + $0x520] sm:$0xff]
        %v4955 = vld [vmem:[%s467 + $0x528] sm:$0xff]
        %v4956 = vld [vmem:[%s467 + $0x530] sm:$0xff]
        %v4957 = vld [vmem:[%s467 + $0x538] sm:$0xff]
        %v4958 = vld [vmem:[%s467 + $0x540] sm:$0xff]
        %v4959 = vld [vmem:[%s467 + $0x548] sm:$0xff]
        %v4960 = vld [vmem:[%s467 + $0x550] sm:$0xff]
        %v4961 = vld [vmem:[%s467 + $0x558] sm:$0xff]
        %v4962 = vld [vmem:[%s467 + $0x560] sm:$0xff]
        %v4963 = vld [vmem:[%s467 + $0x568] sm:$0xff]
        %v4964 = vld [vmem:[%s467 + $0x570] sm:$0xff]
        %v4965 = vld [vmem:[%s467 + $0x578] sm:$0xff]
        %v4966 = vld [vmem:[%s467 + $0x580] sm:$0xff]
        %v4967 = vld [vmem:[%s467 + $0x588] sm:$0xff]
        %v4968 = vld [vmem:[%s467 + $0x590] sm:$0xff]
        %v4969 = vld [vmem:[%s467 + $0x598] sm:$0xff]
        %v4970 = vld [vmem:[%s467 + $0x5a0] sm:$0xff]
        %v4971 = vld [vmem:[%s467 + $0x5a8] sm:$0xff]
        %v4972 = vld [vmem:[%s467 + $0x5b0] sm:$0xff]
        %v4973 = vld [vmem:[%s467 + $0x5b8] sm:$0xff]
        %v4974 = vld [vmem:[%s467 + $0x5c0] sm:$0xff]
        %v4975 = vld [vmem:[%s467 + $0x5c8] sm:$0xff]
        %v4976 = vld [vmem:[%s467 + $0x5d0] sm:$0xff]
        %v4977 = vld [vmem:[%s467 + $0x5d8] sm:$0xff]
        %v4978 = vld [vmem:[%s467 + $0x5e0] sm:$0xff]
        %v4979 = vld [vmem:[%s467 + $0x5e8] sm:$0xff]
        %v4980 = vld [vmem:[%s467 + $0x5f0] sm:$0xff]
        %v4981 = vld [vmem:[%s467 + $0x5f8] sm:$0xff]
        %v4982 = vld [vmem:[%s467 + $0x600] sm:$0xff]
        %v4983 = vld [vmem:[%s467 + $0x608] sm:$0xff]
        %v4984 = vld [vmem:[%s467 + $0x610] sm:$0xff]
        %v4985 = vld [vmem:[%s467 + $0x618] sm:$0xff]
        %v4986 = vld [vmem:[%s467 + $0x620] sm:$0xff]
        %v4987 = vld [vmem:[%s467 + $0x628] sm:$0xff]
        %v4988 = vld [vmem:[%s467 + $0x630] sm:$0xff]
        %v4989 = vld [vmem:[%s467 + $0x638] sm:$0xff]
        %v4990 = vld [vmem:[%s467 + $0x640] sm:$0xff]
        %v4991 = vld [vmem:[%s467 + $0x648] sm:$0xff]
        %v4992 = vld [vmem:[%s467 + $0x650] sm:$0xff]
        %v4993 = vld [vmem:[%s467 + $0x658] sm:$0xff]
        %v4994 = vld [vmem:[%s467 + $0x660] sm:$0xff]
        %v4995 = vld [vmem:[%s467 + $0x668] sm:$0xff]
        %v4996 = vld [vmem:[%s467 + $0x670] sm:$0xff]
        %v4997 = vld [vmem:[%s467 + $0x678] sm:$0xff]
        %v4998 = vld [vmem:[%s467 + $0x680] sm:$0xff]
        %v4999 = vld [vmem:[%s467 + $0x688] sm:$0xff]
        %v5000 = vld [vmem:[%s467 + $0x690] sm:$0xff]
        %v5001 = vld [vmem:[%s467 + $0x698] sm:$0xff]
        %v5002 = vld [vmem:[%s467 + $0x6a0] sm:$0xff]
        %v5003 = vld [vmem:[%s467 + $0x6a8] sm:$0xff]
        %v5004 = vld [vmem:[%s467 + $0x6b0] sm:$0xff]
        %v5005 = vld [vmem:[%s467 + $0x6b8] sm:$0xff]
        %v5006 = vld [vmem:[%s467 + $0x6c0] sm:$0xff]
        %v5007 = vld [vmem:[%s467 + $0x6c8] sm:$0xff]
        %v5008 = vld [vmem:[%s467 + $0x6d0] sm:$0xff]
        %v5009 = vld [vmem:[%s467 + $0x6d8] sm:$0xff]
        %v5010 = vld [vmem:[%s467 + $0x6e0] sm:$0xff]
        %v5011 = vld [vmem:[%s467 + $0x6e8] sm:$0xff]
        %v5012 = vld [vmem:[%s467 + $0x6f0] sm:$0xff]
        %v5013 = vld [vmem:[%s467 + $0x6f8] sm:$0xff]
        %v5014 = vld [vmem:[%s467 + $0x700] sm:$0xff]
        %v5015 = vld [vmem:[%s467 + $0x708] sm:$0xff]
        %v5016 = vld [vmem:[%s467 + $0x710] sm:$0xff]
        %v5017 = vld [vmem:[%s467 + $0x718] sm:$0xff]
        %v5018 = vld [vmem:[%s467 + $0x720] sm:$0xff]
        %v5019 = vld [vmem:[%s467 + $0x728] sm:$0xff]
        %v5020 = vld [vmem:[%s467 + $0x730] sm:$0xff]
        %v5021 = vld [vmem:[%s467 + $0x738] sm:$0xff]
        %v5022 = vld [vmem:[%s467 + $0x740] sm:$0xff]
        %v5023 = vld [vmem:[%s467 + $0x748] sm:$0xff]
        %v5024 = vld [vmem:[%s467 + $0x750] sm:$0xff]
        %v5025 = vld [vmem:[%s467 + $0x758] sm:$0xff]
        %v5026 = vld [vmem:[%s467 + $0x760] sm:$0xff]
        %v5027 = vld [vmem:[%s467 + $0x768] sm:$0xff]
        %v5028 = vld [vmem:[%s467 + $0x770] sm:$0xff]
        %v5029 = vld [vmem:[%s467 + $0x778] sm:$0xff]
        %v5030 = vld [vmem:[%s467 + $0x780] sm:$0xff]
        %v5031 = vld [vmem:[%s467 + $0x788] sm:$0xff]
        %v5032 = vld [vmem:[%s467 + $0x790] sm:$0xff]
        %v5033 = vld [vmem:[%s467 + $0x798] sm:$0xff]
        %v5034 = vld [vmem:[%s467 + $0x7a0] sm:$0xff]
        %v5035 = vld [vmem:[%s467 + $0x7a8] sm:$0xff]
        %v5036 = vld [vmem:[%s467 + $0x7b0] sm:$0xff]
        %v5037 = vld [vmem:[%s467 + $0x7b8] sm:$0xff]
        %v5038 = vld [vmem:[%s467 + $0x7c0] sm:$0xff]
        %v5039 = vld [vmem:[%s467 + $0x7c8] sm:$0xff]
        %v5040 = vld [vmem:[%s467 + $0x7d0] sm:$0xff]
        %v5041 = vld [vmem:[%s467 + $0x7d8] sm:$0xff]
        %v5042 = vld [vmem:[%s467 + $0x7e0] sm:$0xff]
        %v5043 = vld [vmem:[%s467 + $0x7e8] sm:$0xff]
        %v5044 = vld [vmem:[%s467 + $0x7f0] sm:$0xff]
        %v5045 = vld [vmem:[%s467 + $0x7f8] sm:$0xff]
        %v5050 = vunpack.c.l.b16 %v4786
        %v5051 = vunpack.c.h.b16 %v4786
        %v5052 = vunpack.c.l.b16 %v4787
        %v5053 = vunpack.c.h.b16 %v4787
        %v5054 = vunpack.c.l.b16 %v4788
        %v5055 = vunpack.c.h.b16 %v4788
        %v5056 = vunpack.c.l.b16 %v4789
        %v5057 = vunpack.c.h.b16 %v4789
        %v5058 = vpack.c.b16 %v5050, %v5050
        %v5059 = vpack.c.b16 %v5051, %v5051
        %v5060 = vpack.c.b16 %v5052, %v5052
        %v5061 = vpack.c.b16 %v5053, %v5053
        %v5062 = vpack.c.b16 %v5054, %v5054
        %v5063 = vpack.c.b16 %v5055, %v5055
        %v5064 = vpack.c.b16 %v5056, %v5056
        %v5065 = vpack.c.b16 %v5057, %v5057
        %v5330 = vunpack.c.l.b16 %v4790
        %v5331 = vunpack.c.h.b16 %v4790
        %v5332 = vunpack.c.l.b16 %v4791
        %v5333 = vunpack.c.h.b16 %v4791
        %v5334 = vunpack.c.l.b16 %v4792
        %v5335 = vunpack.c.h.b16 %v4792
        %v5336 = vunpack.c.l.b16 %v4793
        %v5337 = vunpack.c.h.b16 %v4793
        %v5338 = vunpack.c.l.b16 %v4794
        %v5339 = vunpack.c.h.b16 %v4794
        %v5340 = vunpack.c.l.b16 %v4795
        %v5341 = vunpack.c.h.b16 %v4795
        %v5342 = vunpack.c.l.b16 %v4796
        %v5343 = vunpack.c.h.b16 %v4796
        %v5344 = vunpack.c.l.b16 %v4797
        %v5345 = vunpack.c.h.b16 %v4797
        %v5346 = vunpack.c.l.b16 %v4798
        %v5347 = vunpack.c.h.b16 %v4798
        %v5348 = vunpack.c.l.b16 %v4799
        %v5349 = vunpack.c.h.b16 %v4799
        %v5350 = vunpack.c.l.b16 %v4800
        %v5351 = vunpack.c.h.b16 %v4800
        %v5352 = vunpack.c.l.b16 %v4801
        %v5353 = vunpack.c.h.b16 %v4801
        %v5354 = vunpack.c.l.b16 %v4802
        %v5355 = vunpack.c.h.b16 %v4802
        %v5356 = vunpack.c.l.b16 %v4803
        %v5357 = vunpack.c.h.b16 %v4803
        %v5358 = vunpack.c.l.b16 %v4804
        %v5359 = vunpack.c.h.b16 %v4804
        %v5360 = vunpack.c.l.b16 %v4805
        %v5361 = vunpack.c.h.b16 %v4805
        %v5362 = vunpack.c.l.b16 %v4806
        %v5363 = vunpack.c.h.b16 %v4806
        %v5364 = vunpack.c.l.b16 %v4807
        %v5365 = vunpack.c.h.b16 %v4807
        %v5366 = vunpack.c.l.b16 %v4808
        %v5367 = vunpack.c.h.b16 %v4808
        %v5368 = vunpack.c.l.b16 %v4809
        %v5369 = vunpack.c.h.b16 %v4809
        %v5370 = vunpack.c.l.b16 %v4810
        %v5371 = vunpack.c.h.b16 %v4810
        %v5372 = vunpack.c.l.b16 %v4811
        %v5373 = vunpack.c.h.b16 %v4811
        %v5374 = vunpack.c.l.b16 %v4812
        %v5375 = vunpack.c.h.b16 %v4812
        %v5376 = vunpack.c.l.b16 %v4813
        %v5377 = vunpack.c.h.b16 %v4813
        %v5378 = vunpack.c.l.b16 %v4814
        %v5379 = vunpack.c.h.b16 %v4814
        %v5380 = vunpack.c.l.b16 %v4815
        %v5381 = vunpack.c.h.b16 %v4815
        %v5382 = vunpack.c.l.b16 %v4816
        %v5383 = vunpack.c.h.b16 %v4816
        %v5384 = vunpack.c.l.b16 %v4817
        %v5385 = vunpack.c.h.b16 %v4817
        %v5386 = vunpack.c.l.b16 %v4818
        %v5387 = vunpack.c.h.b16 %v4818
        %v5388 = vunpack.c.l.b16 %v4819
        %v5389 = vunpack.c.h.b16 %v4819
        %v5390 = vunpack.c.l.b16 %v4820
        %v5391 = vunpack.c.h.b16 %v4820
        %v5392 = vunpack.c.l.b16 %v4821
        %v5393 = vunpack.c.h.b16 %v4821
        %v5394 = vunpack.c.l.b16 %v4822
        %v5395 = vunpack.c.h.b16 %v4822
        %v5396 = vunpack.c.l.b16 %v4823
        %v5397 = vunpack.c.h.b16 %v4823
        %v5398 = vunpack.c.l.b16 %v4824
        %v5399 = vunpack.c.h.b16 %v4824
        %v5400 = vunpack.c.l.b16 %v4825
        %v5401 = vunpack.c.h.b16 %v4825
        %v5402 = vunpack.c.l.b16 %v4826
        %v5403 = vunpack.c.h.b16 %v4826
        %v5404 = vunpack.c.l.b16 %v4827
        %v5405 = vunpack.c.h.b16 %v4827
        %v5406 = vunpack.c.l.b16 %v4828
        %v5407 = vunpack.c.h.b16 %v4828
        %v5408 = vunpack.c.l.b16 %v4829
        %v5409 = vunpack.c.h.b16 %v4829
        %v5410 = vunpack.c.l.b16 %v4830
        %v5411 = vunpack.c.h.b16 %v4830
        %v5412 = vunpack.c.l.b16 %v4831
        %v5413 = vunpack.c.h.b16 %v4831
        %v5414 = vunpack.c.l.b16 %v4832
        %v5415 = vunpack.c.h.b16 %v4832
        %v5416 = vunpack.c.l.b16 %v4833
        %v5417 = vunpack.c.h.b16 %v4833
        %v5418 = vunpack.c.l.b16 %v4834
        %v5419 = vunpack.c.h.b16 %v4834
        %v5420 = vunpack.c.l.b16 %v4835
        %v5421 = vunpack.c.h.b16 %v4835
        %v5422 = vunpack.c.l.b16 %v4836
        %v5423 = vunpack.c.h.b16 %v4836
        %v5424 = vunpack.c.l.b16 %v4837
        %v5425 = vunpack.c.h.b16 %v4837
        %v5426 = vunpack.c.l.b16 %v4838
        %v5427 = vunpack.c.h.b16 %v4838
        %v5428 = vunpack.c.l.b16 %v4839
        %v5429 = vunpack.c.h.b16 %v4839
        %v5430 = vunpack.c.l.b16 %v4840
        %v5431 = vunpack.c.h.b16 %v4840
        %v5432 = vunpack.c.l.b16 %v4841
        %v5433 = vunpack.c.h.b16 %v4841
        %v5434 = vunpack.c.l.b16 %v4842
        %v5435 = vunpack.c.h.b16 %v4842
        %v5436 = vunpack.c.l.b16 %v4843
        %v5437 = vunpack.c.h.b16 %v4843
        %v5438 = vunpack.c.l.b16 %v4844
        %v5439 = vunpack.c.h.b16 %v4844
        %v5440 = vunpack.c.l.b16 %v4845
        %v5441 = vunpack.c.h.b16 %v4845
        %v5442 = vunpack.c.l.b16 %v4846
        %v5443 = vunpack.c.h.b16 %v4846
        %v5444 = vunpack.c.l.b16 %v4847
        %v5445 = vunpack.c.h.b16 %v4847
        %v5446 = vunpack.c.l.b16 %v4848
        %v5447 = vunpack.c.h.b16 %v4848
        %v5448 = vunpack.c.l.b16 %v4849
        %v5449 = vunpack.c.h.b16 %v4849
        %v5450 = vunpack.c.l.b16 %v4850
        %v5451 = vunpack.c.h.b16 %v4850
        %v5452 = vunpack.c.l.b16 %v4851
        %v5453 = vunpack.c.h.b16 %v4851
        %v5454 = vunpack.c.l.b16 %v4852
        %v5455 = vunpack.c.h.b16 %v4852
        %v5456 = vunpack.c.l.b16 %v4853
        %v5457 = vunpack.c.h.b16 %v4853
        %v5458 = vunpack.c.l.b16 %v4854
        %v5459 = vunpack.c.h.b16 %v4854
        %v5460 = vunpack.c.l.b16 %v4855
        %v5461 = vunpack.c.h.b16 %v4855
        %v5462 = vunpack.c.l.b16 %v4856
        %v5463 = vunpack.c.h.b16 %v4856
        %v5464 = vunpack.c.l.b16 %v4857
        %v5465 = vunpack.c.h.b16 %v4857
        %v5466 = vunpack.c.l.b16 %v4858
        %v5467 = vunpack.c.h.b16 %v4858
        %v5468 = vunpack.c.l.b16 %v4859
        %v5469 = vunpack.c.h.b16 %v4859
        %v5470 = vunpack.c.l.b16 %v4860
        %v5471 = vunpack.c.h.b16 %v4860
        %v5472 = vunpack.c.l.b16 %v4861
        %v5473 = vunpack.c.h.b16 %v4861
        %v5474 = vunpack.c.l.b16 %v4862
        %v5475 = vunpack.c.h.b16 %v4862
        %v5476 = vunpack.c.l.b16 %v4863
        %v5477 = vunpack.c.h.b16 %v4863
        %v5478 = vunpack.c.l.b16 %v4864
        %v5479 = vunpack.c.h.b16 %v4864
        %v5480 = vunpack.c.l.b16 %v4865
        %v5481 = vunpack.c.h.b16 %v4865
        %v5482 = vunpack.c.l.b16 %v4866
        %v5483 = vunpack.c.h.b16 %v4866
        %v5484 = vunpack.c.l.b16 %v4867
        %v5485 = vunpack.c.h.b16 %v4867
        %v5486 = vunpack.c.l.b16 %v4868
        %v5487 = vunpack.c.h.b16 %v4868
        %v5488 = vunpack.c.l.b16 %v4869
        %v5489 = vunpack.c.h.b16 %v4869
        %v5490 = vunpack.c.l.b16 %v4870
        %v5491 = vunpack.c.h.b16 %v4870
        %v5492 = vunpack.c.l.b16 %v4871
        %v5493 = vunpack.c.h.b16 %v4871
        %v5494 = vunpack.c.l.b16 %v4872
        %v5495 = vunpack.c.h.b16 %v4872
        %v5496 = vunpack.c.l.b16 %v4873
        %v5497 = vunpack.c.h.b16 %v4873
        %v5498 = vunpack.c.l.b16 %v4874
        %v5499 = vunpack.c.h.b16 %v4874
        %v5500 = vunpack.c.l.b16 %v4875
        %v5501 = vunpack.c.h.b16 %v4875
        %v5502 = vunpack.c.l.b16 %v4876
        %v5503 = vunpack.c.h.b16 %v4876
        %v5504 = vunpack.c.l.b16 %v4877
        %v5505 = vunpack.c.h.b16 %v4877
        %v5506 = vunpack.c.l.b16 %v4878
        %v5507 = vunpack.c.h.b16 %v4878
        %v5508 = vunpack.c.l.b16 %v4879
        %v5509 = vunpack.c.h.b16 %v4879
        %v5510 = vunpack.c.l.b16 %v4880
        %v5511 = vunpack.c.h.b16 %v4880
        %v5512 = vunpack.c.l.b16 %v4881
        %v5513 = vunpack.c.h.b16 %v4881
        %v5514 = vunpack.c.l.b16 %v4882
        %v5515 = vunpack.c.h.b16 %v4882
        %v5516 = vunpack.c.l.b16 %v4883
        %v5517 = vunpack.c.h.b16 %v4883
        %v5518 = vunpack.c.l.b16 %v4884
        %v5519 = vunpack.c.h.b16 %v4884
        %v5520 = vunpack.c.l.b16 %v4885
        %v5521 = vunpack.c.h.b16 %v4885
        %v5522 = vunpack.c.l.b16 %v4886
        %v5523 = vunpack.c.h.b16 %v4886
        %v5524 = vunpack.c.l.b16 %v4887
        %v5525 = vunpack.c.h.b16 %v4887
        %v5526 = vunpack.c.l.b16 %v4888
        %v5527 = vunpack.c.h.b16 %v4888
        %v5528 = vunpack.c.l.b16 %v4889
        %v5529 = vunpack.c.h.b16 %v4889
        %v5530 = vunpack.c.l.b16 %v4890
        %v5531 = vunpack.c.h.b16 %v4890
        %v5532 = vunpack.c.l.b16 %v4891
        %v5533 = vunpack.c.h.b16 %v4891
        %v5534 = vunpack.c.l.b16 %v4892
        %v5535 = vunpack.c.h.b16 %v4892
        %v5536 = vunpack.c.l.b16 %v4893
        %v5537 = vunpack.c.h.b16 %v4893
        %v5538 = vunpack.c.l.b16 %v4894
        %v5539 = vunpack.c.h.b16 %v4894
        %v5540 = vunpack.c.l.b16 %v4895
        %v5541 = vunpack.c.h.b16 %v4895
        %v5542 = vunpack.c.l.b16 %v4896
        %v5543 = vunpack.c.h.b16 %v4896
        %v5544 = vunpack.c.l.b16 %v4897
        %v5545 = vunpack.c.h.b16 %v4897
        %v5546 = vunpack.c.l.b16 %v4898
        %v5547 = vunpack.c.h.b16 %v4898
        %v5548 = vunpack.c.l.b16 %v4899
        %v5549 = vunpack.c.h.b16 %v4899
        %v5550 = vunpack.c.l.b16 %v4900
        %v5551 = vunpack.c.h.b16 %v4900
        %v5552 = vunpack.c.l.b16 %v4901
        %v5553 = vunpack.c.h.b16 %v4901
        %v5554 = vunpack.c.l.b16 %v4902
        %v5555 = vunpack.c.h.b16 %v4902
        %v5556 = vunpack.c.l.b16 %v4903
        %v5557 = vunpack.c.h.b16 %v4903
        %v5558 = vunpack.c.l.b16 %v4904
        %v5559 = vunpack.c.h.b16 %v4904
        %v5560 = vunpack.c.l.b16 %v4905
        %v5561 = vunpack.c.h.b16 %v4905
        %v5562 = vunpack.c.l.b16 %v4906
        %v5563 = vunpack.c.h.b16 %v4906
        %v5564 = vunpack.c.l.b16 %v4907
        %v5565 = vunpack.c.h.b16 %v4907
        %v5566 = vunpack.c.l.b16 %v4908
        %v5567 = vunpack.c.h.b16 %v4908
        %v5568 = vunpack.c.l.b16 %v4909
        %v5569 = vunpack.c.h.b16 %v4909
        %v5570 = vunpack.c.l.b16 %v4910
        %v5571 = vunpack.c.h.b16 %v4910
        %v5572 = vunpack.c.l.b16 %v4911
        %v5573 = vunpack.c.h.b16 %v4911
        %v5574 = vunpack.c.l.b16 %v4912
        %v5575 = vunpack.c.h.b16 %v4912
        %v5576 = vunpack.c.l.b16 %v4913
        %v5577 = vunpack.c.h.b16 %v4913
        %v5578 = vunpack.c.l.b16 %v4914
        %v5579 = vunpack.c.h.b16 %v4914
        %v5580 = vunpack.c.l.b16 %v4915
        %v5581 = vunpack.c.h.b16 %v4915
        %v5582 = vunpack.c.l.b16 %v4916
        %v5583 = vunpack.c.h.b16 %v4916
        %v5584 = vunpack.c.l.b16 %v4917
        %v5585 = vunpack.c.h.b16 %v4917
        %v5586 = vunpack.c.l.b16 %v4918
        %v5587 = vunpack.c.h.b16 %v4918
        %v5588 = vunpack.c.l.b16 %v4919
        %v5589 = vunpack.c.h.b16 %v4919
        %v5590 = vunpack.c.l.b16 %v4920
        %v5591 = vunpack.c.h.b16 %v4920
        %v5592 = vunpack.c.l.b16 %v4921
        %v5593 = vunpack.c.h.b16 %v4921
        %v5594 = vunpack.c.l.b16 %v4922
        %v5595 = vunpack.c.h.b16 %v4922
        %v5596 = vunpack.c.l.b16 %v4923
        %v5597 = vunpack.c.h.b16 %v4923
        %v5598 = vunpack.c.l.b16 %v4924
        %v5599 = vunpack.c.h.b16 %v4924
        %v5600 = vunpack.c.l.b16 %v4925
        %v5601 = vunpack.c.h.b16 %v4925
        %v5602 = vunpack.c.l.b16 %v4926
        %v5603 = vunpack.c.h.b16 %v4926
        %v5604 = vunpack.c.l.b16 %v4927
        %v5605 = vunpack.c.h.b16 %v4927
        %v5606 = vunpack.c.l.b16 %v4928
        %v5607 = vunpack.c.h.b16 %v4928
        %v5608 = vunpack.c.l.b16 %v4929
        %v5609 = vunpack.c.h.b16 %v4929
        %v5610 = vunpack.c.l.b16 %v4930
        %v5611 = vunpack.c.h.b16 %v4930
        %v5612 = vunpack.c.l.b16 %v4931
        %v5613 = vunpack.c.h.b16 %v4931
        %v5614 = vunpack.c.l.b16 %v4932
        %v5615 = vunpack.c.h.b16 %v4932
        %v5616 = vunpack.c.l.b16 %v4933
        %v5617 = vunpack.c.h.b16 %v4933
        %v5618 = vunpack.c.l.b16 %v4934
        %v5619 = vunpack.c.h.b16 %v4934
        %v5620 = vunpack.c.l.b16 %v4935
        %v5621 = vunpack.c.h.b16 %v4935
        %v5622 = vunpack.c.l.b16 %v4936
        %v5623 = vunpack.c.h.b16 %v4936
        %v5624 = vunpack.c.l.b16 %v4937
        %v5625 = vunpack.c.h.b16 %v4937
        %v5626 = vunpack.c.l.b16 %v4938
        %v5627 = vunpack.c.h.b16 %v4938
        %v5628 = vunpack.c.l.b16 %v4939
        %v5629 = vunpack.c.h.b16 %v4939
        %v5630 = vunpack.c.l.b16 %v4940
        %v5631 = vunpack.c.h.b16 %v4940
        %v5632 = vunpack.c.l.b16 %v4941
        %v5633 = vunpack.c.h.b16 %v4941
        %v5634 = vunpack.c.l.b16 %v4942
        %v5635 = vunpack.c.h.b16 %v4942
        %v5636 = vunpack.c.l.b16 %v4943
        %v5637 = vunpack.c.h.b16 %v4943
        %v5638 = vunpack.c.l.b16 %v4944
        %v5639 = vunpack.c.h.b16 %v4944
        %v5640 = vunpack.c.l.b16 %v4945
        %v5641 = vunpack.c.h.b16 %v4945
        %v5642 = vunpack.c.l.b16 %v4946
        %v5643 = vunpack.c.h.b16 %v4946
        %v5644 = vunpack.c.l.b16 %v4947
        %v5645 = vunpack.c.h.b16 %v4947
        %v5646 = vunpack.c.l.b16 %v4948
        %v5647 = vunpack.c.h.b16 %v4948
        %v5648 = vunpack.c.l.b16 %v4949
        %v5649 = vunpack.c.h.b16 %v4949
        %v5650 = vunpack.c.l.b16 %v4950
        %v5651 = vunpack.c.h.b16 %v4950
        %v5652 = vunpack.c.l.b16 %v4951
        %v5653 = vunpack.c.h.b16 %v4951
        %v5654 = vunpack.c.l.b16 %v4952
        %v5655 = vunpack.c.h.b16 %v4952
        %v5656 = vunpack.c.l.b16 %v4953
        %v5657 = vunpack.c.h.b16 %v4953
        %v5658 = vunpack.c.l.b16 %v4954
        %v5659 = vunpack.c.h.b16 %v4954
        %v5660 = vunpack.c.l.b16 %v4955
        %v5661 = vunpack.c.h.b16 %v4955
        %v5662 = vunpack.c.l.b16 %v4956
        %v5663 = vunpack.c.h.b16 %v4956
        %v5664 = vunpack.c.l.b16 %v4957
        %v5665 = vunpack.c.h.b16 %v4957
        %v5666 = vunpack.c.l.b16 %v4958
        %v5667 = vunpack.c.h.b16 %v4958
        %v5668 = vunpack.c.l.b16 %v4959
        %v5669 = vunpack.c.h.b16 %v4959
        %v5670 = vunpack.c.l.b16 %v4960
        %v5671 = vunpack.c.h.b16 %v4960
        %v5672 = vunpack.c.l.b16 %v4961
        %v5673 = vunpack.c.h.b16 %v4961
        %v5674 = vunpack.c.l.b16 %v4962
        %v5675 = vunpack.c.h.b16 %v4962
        %v5676 = vunpack.c.l.b16 %v4963
        %v5677 = vunpack.c.h.b16 %v4963
        %v5678 = vunpack.c.l.b16 %v4964
        %v5679 = vunpack.c.h.b16 %v4964
        %v5680 = vunpack.c.l.b16 %v4965
        %v5681 = vunpack.c.h.b16 %v4965
        %v5682 = vunpack.c.l.b16 %v4966
        %v5683 = vunpack.c.h.b16 %v4966
        %v5684 = vunpack.c.l.b16 %v4967
        %v5685 = vunpack.c.h.b16 %v4967
        %v5686 = vunpack.c.l.b16 %v4968
        %v5687 = vunpack.c.h.b16 %v4968
        %v5688 = vunpack.c.l.b16 %v4969
        %v5689 = vunpack.c.h.b16 %v4969
        %v5690 = vunpack.c.l.b16 %v4970
        %v5691 = vunpack.c.h.b16 %v4970
        %v5692 = vunpack.c.l.b16 %v4971
        %v5693 = vunpack.c.h.b16 %v4971
        %v5694 = vunpack.c.l.b16 %v4972
        %v5695 = vunpack.c.h.b16 %v4972
        %v5696 = vunpack.c.l.b16 %v4973
        %v5697 = vunpack.c.h.b16 %v4973
        %v5698 = vunpack.c.l.b16 %v4974
        %v5699 = vunpack.c.h.b16 %v4974
        %v5700 = vunpack.c.l.b16 %v4975
        %v5701 = vunpack.c.h.b16 %v4975
        %v5702 = vunpack.c.l.b16 %v4976
        %v5703 = vunpack.c.h.b16 %v4976
        %v5704 = vunpack.c.l.b16 %v4977
        %v5705 = vunpack.c.h.b16 %v4977
        %v5706 = vunpack.c.l.b16 %v4978
        %v5707 = vunpack.c.h.b16 %v4978
        %v5708 = vunpack.c.l.b16 %v4979
        %v5709 = vunpack.c.h.b16 %v4979
        %v5710 = vunpack.c.l.b16 %v4980
        %v5711 = vunpack.c.h.b16 %v4980
        %v5712 = vunpack.c.l.b16 %v4981
        %v5713 = vunpack.c.h.b16 %v4981
        %v5714 = vunpack.c.l.b16 %v4982
        %v5715 = vunpack.c.h.b16 %v4982
        %v5716 = vunpack.c.l.b16 %v4983
        %v5717 = vunpack.c.h.b16 %v4983
        %v5718 = vunpack.c.l.b16 %v4984
        %v5719 = vunpack.c.h.b16 %v4984
        %v5720 = vunpack.c.l.b16 %v4985
        %v5721 = vunpack.c.h.b16 %v4985
        %v5722 = vunpack.c.l.b16 %v4986
        %v5723 = vunpack.c.h.b16 %v4986
        %v5724 = vunpack.c.l.b16 %v4987
        %v5725 = vunpack.c.h.b16 %v4987
        %v5726 = vunpack.c.l.b16 %v4988
        %v5727 = vunpack.c.h.b16 %v4988
        %v5728 = vunpack.c.l.b16 %v4989
        %v5729 = vunpack.c.h.b16 %v4989
        %v5730 = vunpack.c.l.b16 %v4990
        %v5731 = vunpack.c.h.b16 %v4990
        %v5732 = vunpack.c.l.b16 %v4991
        %v5733 = vunpack.c.h.b16 %v4991
        %v5734 = vunpack.c.l.b16 %v4992
        %v5735 = vunpack.c.h.b16 %v4992
        %v5736 = vunpack.c.l.b16 %v4993
        %v5737 = vunpack.c.h.b16 %v4993
        %v5738 = vunpack.c.l.b16 %v4994
        %v5739 = vunpack.c.h.b16 %v4994
        %v5740 = vunpack.c.l.b16 %v4995
        %v5741 = vunpack.c.h.b16 %v4995
        %v5742 = vunpack.c.l.b16 %v4996
        %v5743 = vunpack.c.h.b16 %v4996
        %v5744 = vunpack.c.l.b16 %v4997
        %v5745 = vunpack.c.h.b16 %v4997
        %v5746 = vunpack.c.l.b16 %v4998
        %v5747 = vunpack.c.h.b16 %v4998
        %v5748 = vunpack.c.l.b16 %v4999
        %v5749 = vunpack.c.h.b16 %v4999
        %v5750 = vunpack.c.l.b16 %v5000
        %v5751 = vunpack.c.h.b16 %v5000
        %v5752 = vunpack.c.l.b16 %v5001
        %v5753 = vunpack.c.h.b16 %v5001
        %v5754 = vunpack.c.l.b16 %v5002
        %v5755 = vunpack.c.h.b16 %v5002
        %v5756 = vunpack.c.l.b16 %v5003
        %v5757 = vunpack.c.h.b16 %v5003
        %v5758 = vunpack.c.l.b16 %v5004
        %v5759 = vunpack.c.h.b16 %v5004
        %v5760 = vunpack.c.l.b16 %v5005
        %v5761 = vunpack.c.h.b16 %v5005
        %v5762 = vunpack.c.l.b16 %v5006
        %v5763 = vunpack.c.h.b16 %v5006
        %v5764 = vunpack.c.l.b16 %v5007
        %v5765 = vunpack.c.h.b16 %v5007
        %v5766 = vunpack.c.l.b16 %v5008
        %v5767 = vunpack.c.h.b16 %v5008
        %v5768 = vunpack.c.l.b16 %v5009
        %v5769 = vunpack.c.h.b16 %v5009
        %v5770 = vunpack.c.l.b16 %v5010
        %v5771 = vunpack.c.h.b16 %v5010
        %v5772 = vunpack.c.l.b16 %v5011
        %v5773 = vunpack.c.h.b16 %v5011
        %v5774 = vunpack.c.l.b16 %v5012
        %v5775 = vunpack.c.h.b16 %v5012
        %v5776 = vunpack.c.l.b16 %v5013
        %v5777 = vunpack.c.h.b16 %v5013
        %v5778 = vunpack.c.l.b16 %v5014
        %v5779 = vunpack.c.h.b16 %v5014
        %v5780 = vunpack.c.l.b16 %v5015
        %v5781 = vunpack.c.h.b16 %v5015
        %v5782 = vunpack.c.l.b16 %v5016
        %v5783 = vunpack.c.h.b16 %v5016
        %v5784 = vunpack.c.l.b16 %v5017
        %v5785 = vunpack.c.h.b16 %v5017
        %v5786 = vunpack.c.l.b16 %v5018
        %v5787 = vunpack.c.h.b16 %v5018
        %v5788 = vunpack.c.l.b16 %v5019
        %v5789 = vunpack.c.h.b16 %v5019
        %v5790 = vunpack.c.l.b16 %v5020
        %v5791 = vunpack.c.h.b16 %v5020
        %v5792 = vunpack.c.l.b16 %v5021
        %v5793 = vunpack.c.h.b16 %v5021
        %v5794 = vunpack.c.l.b16 %v5022
        %v5795 = vunpack.c.h.b16 %v5022
        %v5796 = vunpack.c.l.b16 %v5023
        %v5797 = vunpack.c.h.b16 %v5023
        %v5798 = vunpack.c.l.b16 %v5024
        %v5799 = vunpack.c.h.b16 %v5024
        %v5800 = vunpack.c.l.b16 %v5025
        %v5801 = vunpack.c.h.b16 %v5025
        %v5802 = vunpack.c.l.b16 %v5026
        %v5803 = vunpack.c.h.b16 %v5026
        %v5804 = vunpack.c.l.b16 %v5027
        %v5805 = vunpack.c.h.b16 %v5027
        %v5806 = vunpack.c.l.b16 %v5028
        %v5807 = vunpack.c.h.b16 %v5028
        %v5808 = vunpack.c.l.b16 %v5029
        %v5809 = vunpack.c.h.b16 %v5029
        %v5810 = vunpack.c.l.b16 %v5030
        %v5811 = vunpack.c.h.b16 %v5030
        %v5812 = vunpack.c.l.b16 %v5031
        %v5813 = vunpack.c.h.b16 %v5031
        %v5814 = vunpack.c.l.b16 %v5032
        %v5815 = vunpack.c.h.b16 %v5032
        %v5816 = vunpack.c.l.b16 %v5033
        %v5817 = vunpack.c.h.b16 %v5033
        %v5818 = vunpack.c.l.b16 %v5034
        %v5819 = vunpack.c.h.b16 %v5034
        %v5820 = vunpack.c.l.b16 %v5035
        %v5821 = vunpack.c.h.b16 %v5035
        %v5822 = vunpack.c.l.b16 %v5036
        %v5823 = vunpack.c.h.b16 %v5036
        %v5824 = vunpack.c.l.b16 %v5037
        %v5825 = vunpack.c.h.b16 %v5037
        %v5826 = vunpack.c.l.b16 %v5038
        %v5827 = vunpack.c.h.b16 %v5038
        %v5828 = vunpack.c.l.b16 %v5039
        %v5829 = vunpack.c.h.b16 %v5039
        %v5830 = vunpack.c.l.b16 %v5040
        %v5831 = vunpack.c.h.b16 %v5040
        %v5832 = vunpack.c.l.b16 %v5041
        %v5833 = vunpack.c.h.b16 %v5041
        %v5834 = vunpack.c.l.b16 %v5042
        %v5835 = vunpack.c.h.b16 %v5042
        %v5836 = vunpack.c.l.b16 %v5043
        %v5837 = vunpack.c.h.b16 %v5043
        %v5838 = vunpack.c.l.b16 %v5044
        %v5839 = vunpack.c.h.b16 %v5044
        %v5840 = vunpack.c.l.b16 %v5045
        %v5841 = vunpack.c.h.b16 %v5045
        %v5842 = vpack.c.b16 %v5334, %v5330
        %v5843 = vpack.c.b16 %v5335, %v5331
        %v5844 = vpack.c.b16 %v5336, %v5332
        %v5845 = vpack.c.b16 %v5337, %v5333
        %v5846 = vpack.c.b16 %v5342, %v5338
        %v5847 = vpack.c.b16 %v5343, %v5339
        %v5848 = vpack.c.b16 %v5344, %v5340
        %v5849 = vpack.c.b16 %v5345, %v5341
        %v5850 = vpack.c.b16 %v5350, %v5346
        %v5851 = vpack.c.b16 %v5351, %v5347
        %v5852 = vpack.c.b16 %v5352, %v5348
        %v5853 = vpack.c.b16 %v5353, %v5349
        %v5854 = vpack.c.b16 %v5358, %v5354
        %v5855 = vpack.c.b16 %v5359, %v5355
        %v5856 = vpack.c.b16 %v5360, %v5356
        %v5857 = vpack.c.b16 %v5361, %v5357
        %v5858 = vpack.c.b16 %v5366, %v5362
        %v5859 = vpack.c.b16 %v5367, %v5363
        %v5860 = vpack.c.b16 %v5368, %v5364
        %v5861 = vpack.c.b16 %v5369, %v5365
        %v5862 = vpack.c.b16 %v5374, %v5370
        %v5863 = vpack.c.b16 %v5375, %v5371
        %v5864 = vpack.c.b16 %v5376, %v5372
        %v5865 = vpack.c.b16 %v5377, %v5373
        %v5866 = vpack.c.b16 %v5382, %v5378
        %v5867 = vpack.c.b16 %v5383, %v5379
        %v5868 = vpack.c.b16 %v5384, %v5380
        %v5869 = vpack.c.b16 %v5385, %v5381
        %v5870 = vpack.c.b16 %v5390, %v5386
        %v5871 = vpack.c.b16 %v5391, %v5387
        %v5872 = vpack.c.b16 %v5392, %v5388
        %v5873 = vpack.c.b16 %v5393, %v5389
        %v5874 = vpack.c.b16 %v5398, %v5394
        %v5875 = vpack.c.b16 %v5399, %v5395
        %v5876 = vpack.c.b16 %v5400, %v5396
        %v5877 = vpack.c.b16 %v5401, %v5397
        %v5878 = vpack.c.b16 %v5406, %v5402
        %v5879 = vpack.c.b16 %v5407, %v5403
        %v5880 = vpack.c.b16 %v5408, %v5404
        %v5881 = vpack.c.b16 %v5409, %v5405
        %v5882 = vpack.c.b16 %v5414, %v5410
        %v5883 = vpack.c.b16 %v5415, %v5411
        %v5884 = vpack.c.b16 %v5416, %v5412
        %v5885 = vpack.c.b16 %v5417, %v5413
        %v5886 = vpack.c.b16 %v5422, %v5418
        %v5887 = vpack.c.b16 %v5423, %v5419
        %v5888 = vpack.c.b16 %v5424, %v5420
        %v5889 = vpack.c.b16 %v5425, %v5421
        %v5890 = vpack.c.b16 %v5430, %v5426
        %v5891 = vpack.c.b16 %v5431, %v5427
        %v5892 = vpack.c.b16 %v5432, %v5428
        %v5893 = vpack.c.b16 %v5433, %v5429
        %v5894 = vpack.c.b16 %v5438, %v5434
        %v5895 = vpack.c.b16 %v5439, %v5435
        %v5896 = vpack.c.b16 %v5440, %v5436
        %v5897 = vpack.c.b16 %v5441, %v5437
        %v5898 = vpack.c.b16 %v5446, %v5442
        %v5899 = vpack.c.b16 %v5447, %v5443
        %v5900 = vpack.c.b16 %v5448, %v5444
        %v5901 = vpack.c.b16 %v5449, %v5445
        %v5902 = vpack.c.b16 %v5454, %v5450
        %v5903 = vpack.c.b16 %v5455, %v5451
        %v5904 = vpack.c.b16 %v5456, %v5452
        %v5905 = vpack.c.b16 %v5457, %v5453
        %v5906 = vpack.c.b16 %v5462, %v5458
        %v5907 = vpack.c.b16 %v5463, %v5459
        %v5908 = vpack.c.b16 %v5464, %v5460
        %v5909 = vpack.c.b16 %v5465, %v5461
        %v5910 = vpack.c.b16 %v5470, %v5466
        %v5911 = vpack.c.b16 %v5471, %v5467
        %v5912 = vpack.c.b16 %v5472, %v5468
        %v5913 = vpack.c.b16 %v5473, %v5469
        %v5914 = vpack.c.b16 %v5478, %v5474
        %v5915 = vpack.c.b16 %v5479, %v5475
        %v5916 = vpack.c.b16 %v5480, %v5476
        %v5917 = vpack.c.b16 %v5481, %v5477
        %v5918 = vpack.c.b16 %v5486, %v5482
        %v5919 = vpack.c.b16 %v5487, %v5483
        %v5920 = vpack.c.b16 %v5488, %v5484
        %v5921 = vpack.c.b16 %v5489, %v5485
        %v5922 = vpack.c.b16 %v5494, %v5490
        %v5923 = vpack.c.b16 %v5495, %v5491
        %v5924 = vpack.c.b16 %v5496, %v5492
        %v5925 = vpack.c.b16 %v5497, %v5493
        %v5926 = vpack.c.b16 %v5502, %v5498
        %v5927 = vpack.c.b16 %v5503, %v5499
        %v5928 = vpack.c.b16 %v5504, %v5500
        %v5929 = vpack.c.b16 %v5505, %v5501
        %v5930 = vpack.c.b16 %v5510, %v5506
        %v5931 = vpack.c.b16 %v5511, %v5507
        %v5932 = vpack.c.b16 %v5512, %v5508
        %v5933 = vpack.c.b16 %v5513, %v5509
        %v5934 = vpack.c.b16 %v5518, %v5514
        %v5935 = vpack.c.b16 %v5519, %v5515
        %v5936 = vpack.c.b16 %v5520, %v5516
        %v5937 = vpack.c.b16 %v5521, %v5517
        %v5938 = vpack.c.b16 %v5526, %v5522
        %v5939 = vpack.c.b16 %v5527, %v5523
        %v5940 = vpack.c.b16 %v5528, %v5524
        %v5941 = vpack.c.b16 %v5529, %v5525
        %v5942 = vpack.c.b16 %v5534, %v5530
        %v5943 = vpack.c.b16 %v5535, %v5531
        %v5944 = vpack.c.b16 %v5536, %v5532
        %v5945 = vpack.c.b16 %v5537, %v5533
        %v5946 = vpack.c.b16 %v5542, %v5538
        %v5947 = vpack.c.b16 %v5543, %v5539
        %v5948 = vpack.c.b16 %v5544, %v5540
        %v5949 = vpack.c.b16 %v5545, %v5541
        %v5950 = vpack.c.b16 %v5550, %v5546
        %v5951 = vpack.c.b16 %v5551, %v5547
        %v5952 = vpack.c.b16 %v5552, %v5548
        %v5953 = vpack.c.b16 %v5553, %v5549
        %v5954 = vpack.c.b16 %v5558, %v5554
        %v5955 = vpack.c.b16 %v5559, %v5555
        %v5956 = vpack.c.b16 %v5560, %v5556
        %v5957 = vpack.c.b16 %v5561, %v5557
        %v5958 = vpack.c.b16 %v5566, %v5562
        %v5959 = vpack.c.b16 %v5567, %v5563
        %v5960 = vpack.c.b16 %v5568, %v5564
        %v5961 = vpack.c.b16 %v5569, %v5565
        %v5962 = vpack.c.b16 %v5574, %v5570
        %v5963 = vpack.c.b16 %v5575, %v5571
        %v5964 = vpack.c.b16 %v5576, %v5572
        %v5965 = vpack.c.b16 %v5577, %v5573
        %v5966 = vpack.c.b16 %v5582, %v5578
        %v5967 = vpack.c.b16 %v5583, %v5579
        %v5968 = vpack.c.b16 %v5584, %v5580
        %v5969 = vpack.c.b16 %v5585, %v5581
        %v5970 = vpack.c.b16 %v5590, %v5586
        %v5971 = vpack.c.b16 %v5591, %v5587
        %v5972 = vpack.c.b16 %v5592, %v5588
        %v5973 = vpack.c.b16 %v5593, %v5589
        %v5974 = vpack.c.b16 %v5598, %v5594
        %v5975 = vpack.c.b16 %v5599, %v5595
        %v5976 = vpack.c.b16 %v5600, %v5596
        %v5977 = vpack.c.b16 %v5601, %v5597
        %v5978 = vpack.c.b16 %v5606, %v5602
        %v5979 = vpack.c.b16 %v5607, %v5603
        %v5980 = vpack.c.b16 %v5608, %v5604
        %v5981 = vpack.c.b16 %v5609, %v5605
        %v5982 = vpack.c.b16 %v5614, %v5610
        %v5983 = vpack.c.b16 %v5615, %v5611
        %v5984 = vpack.c.b16 %v5616, %v5612
        %v5985 = vpack.c.b16 %v5617, %v5613
        %v5986 = vpack.c.b16 %v5622, %v5618
        %v5987 = vpack.c.b16 %v5623, %v5619
        %v5988 = vpack.c.b16 %v5624, %v5620
        %v5989 = vpack.c.b16 %v5625, %v5621
        %v5990 = vpack.c.b16 %v5630, %v5626
        %v5991 = vpack.c.b16 %v5631, %v5627
        %v5992 = vpack.c.b16 %v5632, %v5628
        %v5993 = vpack.c.b16 %v5633, %v5629
        %v5994 = vpack.c.b16 %v5638, %v5634
        %v5995 = vpack.c.b16 %v5639, %v5635
        %v5996 = vpack.c.b16 %v5640, %v5636
        %v5997 = vpack.c.b16 %v5641, %v5637
        %v5998 = vpack.c.b16 %v5646, %v5642
        %v5999 = vpack.c.b16 %v5647, %v5643
        %v6000 = vpack.c.b16 %v5648, %v5644
        %v6001 = vpack.c.b16 %v5649, %v5645
        %v6002 = vpack.c.b16 %v5654, %v5650
        %v6003 = vpack.c.b16 %v5655, %v5651
        %v6004 = vpack.c.b16 %v5656, %v5652
        %v6005 = vpack.c.b16 %v5657, %v5653
        %v6006 = vpack.c.b16 %v5662, %v5658
        %v6007 = vpack.c.b16 %v5663, %v5659
        %v6008 = vpack.c.b16 %v5664, %v5660
        %v6009 = vpack.c.b16 %v5665, %v5661
        %v6010 = vpack.c.b16 %v5670, %v5666
        %v6011 = vpack.c.b16 %v5671, %v5667
        %v6012 = vpack.c.b16 %v5672, %v5668
        %v6013 = vpack.c.b16 %v5673, %v5669
        %v6014 = vpack.c.b16 %v5678, %v5674
        %v6015 = vpack.c.b16 %v5679, %v5675
        %v6016 = vpack.c.b16 %v5680, %v5676
        %v6017 = vpack.c.b16 %v5681, %v5677
        %v6018 = vpack.c.b16 %v5686, %v5682
        %v6019 = vpack.c.b16 %v5687, %v5683
        %v6020 = vpack.c.b16 %v5688, %v5684
        %v6021 = vpack.c.b16 %v5689, %v5685
        %v6022 = vpack.c.b16 %v5694, %v5690
        %v6023 = vpack.c.b16 %v5695, %v5691
        %v6024 = vpack.c.b16 %v5696, %v5692
        %v6025 = vpack.c.b16 %v5697, %v5693
        %v6026 = vpack.c.b16 %v5702, %v5698
        %v6027 = vpack.c.b16 %v5703, %v5699
        %v6028 = vpack.c.b16 %v5704, %v5700
        %v6029 = vpack.c.b16 %v5705, %v5701
        %v6030 = vpack.c.b16 %v5710, %v5706
        %v6031 = vpack.c.b16 %v5711, %v5707
        %v6032 = vpack.c.b16 %v5712, %v5708
        %v6033 = vpack.c.b16 %v5713, %v5709
        %v6034 = vpack.c.b16 %v5718, %v5714
        %v6035 = vpack.c.b16 %v5719, %v5715
        %v6036 = vpack.c.b16 %v5720, %v5716
        %v6037 = vpack.c.b16 %v5721, %v5717
        %v6038 = vpack.c.b16 %v5726, %v5722
        %v6039 = vpack.c.b16 %v5727, %v5723
        %v6040 = vpack.c.b16 %v5728, %v5724
        %v6041 = vpack.c.b16 %v5729, %v5725
        %v6042 = vpack.c.b16 %v5734, %v5730
        %v6043 = vpack.c.b16 %v5735, %v5731
        %v6044 = vpack.c.b16 %v5736, %v5732
        %v6045 = vpack.c.b16 %v5737, %v5733
        %v6046 = vpack.c.b16 %v5742, %v5738
        %v6047 = vpack.c.b16 %v5743, %v5739
        %v6048 = vpack.c.b16 %v5744, %v5740
        %v6049 = vpack.c.b16 %v5745, %v5741
        %v6050 = vpack.c.b16 %v5750, %v5746
        %v6051 = vpack.c.b16 %v5751, %v5747
        %v6052 = vpack.c.b16 %v5752, %v5748
        %v6053 = vpack.c.b16 %v5753, %v5749
        %v6054 = vpack.c.b16 %v5758, %v5754
        %v6055 = vpack.c.b16 %v5759, %v5755
        %v6056 = vpack.c.b16 %v5760, %v5756
        %v6057 = vpack.c.b16 %v5761, %v5757
        %v6058 = vpack.c.b16 %v5766, %v5762
        %v6059 = vpack.c.b16 %v5767, %v5763
        %v6060 = vpack.c.b16 %v5768, %v5764
        %v6061 = vpack.c.b16 %v5769, %v5765
        %v6062 = vpack.c.b16 %v5774, %v5770
        %v6063 = vpack.c.b16 %v5775, %v5771
        %v6064 = vpack.c.b16 %v5776, %v5772
        %v6065 = vpack.c.b16 %v5777, %v5773
        %v6066 = vpack.c.b16 %v5782, %v5778
        %v6067 = vpack.c.b16 %v5783, %v5779
        %v6068 = vpack.c.b16 %v5784, %v5780
        %v6069 = vpack.c.b16 %v5785, %v5781
        %v6070 = vpack.c.b16 %v5790, %v5786
        %v6071 = vpack.c.b16 %v5791, %v5787
        %v6072 = vpack.c.b16 %v5792, %v5788
        %v6073 = vpack.c.b16 %v5793, %v5789
        %v6074 = vpack.c.b16 %v5798, %v5794
        %v6075 = vpack.c.b16 %v5799, %v5795
        %v6076 = vpack.c.b16 %v5800, %v5796
        %v6077 = vpack.c.b16 %v5801, %v5797
        %v6078 = vpack.c.b16 %v5806, %v5802
        %v6079 = vpack.c.b16 %v5807, %v5803
        %v6080 = vpack.c.b16 %v5808, %v5804
        %v6081 = vpack.c.b16 %v5809, %v5805
        %v6082 = vpack.c.b16 %v5814, %v5810
        %v6083 = vpack.c.b16 %v5815, %v5811
        %v6084 = vpack.c.b16 %v5816, %v5812
        %v6085 = vpack.c.b16 %v5817, %v5813
        %v6086 = vpack.c.b16 %v5822, %v5818
        %v6087 = vpack.c.b16 %v5823, %v5819
        %v6088 = vpack.c.b16 %v5824, %v5820
        %v6089 = vpack.c.b16 %v5825, %v5821
        %v6090 = vpack.c.b16 %v5830, %v5826
        %v6091 = vpack.c.b16 %v5831, %v5827
        %v6092 = vpack.c.b16 %v5832, %v5828
        %v6093 = vpack.c.b16 %v5833, %v5829
        %v6094 = vpack.c.b16 %v5838, %v5834
        %v6095 = vpack.c.b16 %v5839, %v5835
        %v6096 = vpack.c.b16 %v5840, %v5836
        %v6097 = vpack.c.b16 %v5841, %v5837
        %6354 = vmatprep.subr.bf16.mxu0 %v5843
        %6355 = vmatpush1.bf16.msra.mxu0 %v5842
        %6356 = vmatprep.subr.bf16.mxu0 %v5847
        %6357 = vmatpush1.bf16.msra.mxu0 %v5846
        %6358 = vmatprep.subr.bf16.mxu0 %v5851
        %6359 = vmatpush1.bf16.msra.mxu0 %v5850
        %6360 = vmatprep.subr.bf16.mxu0 %v5855
        %6361 = vmatpush1.bf16.msra.mxu0 %v5854
        %6362 = vmatprep.subr.bf16.mxu0 %v5859
        %6363 = vmatpush1.bf16.msra.mxu0 %v5858
        %6364 = vmatprep.subr.bf16.mxu0 %v5863
        %6365 = vmatpush1.bf16.msra.mxu0 %v5862
        %6366 = vmatprep.subr.bf16.mxu0 %v5867
        %6367 = vmatpush1.bf16.msra.mxu0 %v5866
        %6368 = vmatprep.subr.bf16.mxu0 %v5871
        %6369 = vmatpush1.bf16.msra.mxu0 %v5870
        %6370 = vmatprep.subr.bf16.mxu0 %v5875
        %6371 = vmatpush1.bf16.msra.mxu0 %v5874
        %6372 = vmatprep.subr.bf16.mxu0 %v5879
        %6373 = vmatpush1.bf16.msra.mxu0 %v5878
        %6374 = vmatprep.subr.bf16.mxu0 %v5883
        %6375 = vmatpush1.bf16.msra.mxu0 %v5882
        %6376 = vmatprep.subr.bf16.mxu0 %v5887
        %6377 = vmatpush1.bf16.msra.mxu0 %v5886
        %6378 = vmatprep.subr.bf16.mxu0 %v5891
        %6379 = vmatpush1.bf16.msra.mxu0 %v5890
        %6380 = vmatprep.subr.bf16.mxu0 %v5895
        %6381 = vmatpush1.bf16.msra.mxu0 %v5894
        %6382 = vmatprep.subr.bf16.mxu0 %v5899
        %6383 = vmatpush1.bf16.msra.mxu0 %v5898
        %6384 = vmatprep.subr.bf16.mxu0 %v5903
        %6385 = vmatpush1.bf16.msra.mxu0 %v5902
        %6386 = vmatprep.mubr.bf16.mxu0 %v5059
        %6387 = vmatmul.mubr.bf16.gmra.mrb[0].mxu0 %v5058
        %v6388 = vpop.f32.mrb[0].mxu0
        %v6389 = vadd.f32 0.0, %v6388
        %v6390 = vpop.f32.mrb[0].mxu0
        %v6391 = vadd.f32 0.0, %v6390
        %v6392 = vpop.f32.mrb[0].mxu0
        %v6393 = vpop.f32.mrb[0].mxu0
        %6394 = vdwg.mxu0
        %6395 = vmatprep.subr.bf16.mxu0 %v5907
        %6396 = vmatpush1.bf16.msra.mxu0 %v5906
        %6397 = vmatprep.subr.bf16.mxu0 %v5911
        %6398 = vmatpush1.bf16.msra.mxu0 %v5910
        %6399 = vmatprep.subr.bf16.mxu0 %v5915
        %6400 = vmatpush1.bf16.msra.mxu0 %v5914
        %6401 = vmatprep.subr.bf16.mxu0 %v5919
        %6402 = vmatpush1.bf16.msra.mxu0 %v5918
        %6403 = vmatprep.subr.bf16.mxu0 %v5923
        %6404 = vmatpush1.bf16.msra.mxu0 %v5922
        %6405 = vmatprep.subr.bf16.mxu0 %v5927
        %6406 = vmatpush1.bf16.msra.mxu0 %v5926
        %6407 = vmatprep.subr.bf16.mxu0 %v5931
        %6408 = vmatpush1.bf16.msra.mxu0 %v5930
        %6409 = vmatprep.subr.bf16.mxu0 %v5935
        %6410 = vmatpush1.bf16.msra.mxu0 %v5934
        %6411 = vmatprep.subr.bf16.mxu0 %v5939
        %6412 = vmatpush1.bf16.msra.mxu0 %v5938
        %6413 = vmatprep.subr.bf16.mxu0 %v5943
        %6414 = vmatpush1.bf16.msra.mxu0 %v5942
        %6415 = vmatprep.subr.bf16.mxu0 %v5947
        %6416 = vmatpush1.bf16.msra.mxu0 %v5946
        %6417 = vmatprep.subr.bf16.mxu0 %v5951
        %6418 = vmatpush1.bf16.msra.mxu0 %v5950
        %6419 = vmatprep.subr.bf16.mxu0 %v5955
        %6420 = vmatpush1.bf16.msra.mxu0 %v5954
        %6421 = vmatprep.subr.bf16.mxu0 %v5959
        %6422 = vmatpush1.bf16.msra.mxu0 %v5958
        %6423 = vmatprep.subr.bf16.mxu0 %v5963
        %6424 = vmatpush1.bf16.msra.mxu0 %v5962
        %6425 = vmatprep.subr.bf16.mxu0 %v5967
        %6426 = vmatpush1.bf16.msra.mxu0 %v5966
        %6427 = vmatprep.mubr.bf16.mxu0 %v5061
        %6428 = vmatmul.mubr.bf16.gmra.mrb[0].mxu0 %v5060
        %v6429 = vpop.f32.mrb[0].mxu0
        %v6430 = vadd.f32 %v6389, %v6429
        %v6431 = vpop.f32.mrb[0].mxu0
        %v6432 = vadd.f32 %v6391, %v6431
        %v6433 = vpop.f32.mrb[0].mxu0
        %v6434 = vpop.f32.mrb[0].mxu0
        %6435 = vdwg.mxu0
        %6436 = vmatprep.subr.bf16.mxu0 %v5971
        %6437 = vmatpush1.bf16.msra.mxu0 %v5970
        %6438 = vmatprep.subr.bf16.mxu0 %v5975
        %6439 = vmatpush1.bf16.msra.mxu0 %v5974
        %6440 = vmatprep.subr.bf16.mxu0 %v5979
        %6441 = vmatpush1.bf16.msra.mxu0 %v5978
        %6442 = vmatprep.subr.bf16.mxu0 %v5983
        %6443 = vmatpush1.bf16.msra.mxu0 %v5982
        %6444 = vmatprep.subr.bf16.mxu0 %v5987
        %6445 = vmatpush1.bf16.msra.mxu0 %v5986
        %6446 = vmatprep.subr.bf16.mxu0 %v5991
        %6447 = vmatpush1.bf16.msra.mxu0 %v5990
        %6448 = vmatprep.subr.bf16.mxu0 %v5995
        %6449 = vmatpush1.bf16.msra.mxu0 %v5994
        %6450 = vmatprep.subr.bf16.mxu0 %v5999
        %6451 = vmatpush1.bf16.msra.mxu0 %v5998
        %6452 = vmatprep.subr.bf16.mxu0 %v6003
        %6453 = vmatpush1.bf16.msra.mxu0 %v6002
        %6454 = vmatprep.subr.bf16.mxu0 %v6007
        %6455 = vmatpush1.bf16.msra.mxu0 %v6006
        %6456 = vmatprep.subr.bf16.mxu0 %v6011
        %6457 = vmatpush1.bf16.msra.mxu0 %v6010
        %6458 = vmatprep.subr.bf16.mxu0 %v6015
        %6459 = vmatpush1.bf16.msra.mxu0 %v6014
        %6460 = vmatprep.subr.bf16.mxu0 %v6019
        %6461 = vmatpush1.bf16.msra.mxu0 %v6018
        %6462 = vmatprep.subr.bf16.mxu0 %v6023
        %6463 = vmatpush1.bf16.msra.mxu0 %v6022
        %6464 = vmatprep.subr.bf16.mxu0 %v6027
        %6465 = vmatpush1.bf16.msra.mxu0 %v6026
        %6466 = vmatprep.subr.bf16.mxu0 %v6031
        %6467 = vmatpush1.bf16.msra.mxu0 %v6030
        %6468 = vmatprep.mubr.bf16.mxu0 %v5063
        %6469 = vmatmul.mubr.bf16.gmra.mrb[0].mxu0 %v5062
        %v6470 = vpop.f32.mrb[0].mxu0
        %v6471 = vadd.f32 %v6430, %v6470
        %v6472 = vpop.f32.mrb[0].mxu0
        %v6473 = vadd.f32 %v6432, %v6472
        %v6474 = vpop.f32.mrb[0].mxu0
        %v6475 = vpop.f32.mrb[0].mxu0
        %6476 = vdwg.mxu0
        %6477 = vmatprep.subr.bf16.mxu0 %v6035
        %6478 = vmatpush1.bf16.msra.mxu0 %v6034
        %6479 = vmatprep.subr.bf16.mxu0 %v6039
        %6480 = vmatpush1.bf16.msra.mxu0 %v6038
        %6481 = vmatprep.subr.bf16.mxu0 %v6043
        %6482 = vmatpush1.bf16.msra.mxu0 %v6042
        %6483 = vmatprep.subr.bf16.mxu0 %v6047
        %6484 = vmatpush1.bf16.msra.mxu0 %v6046
        %6485 = vmatprep.subr.bf16.mxu0 %v6051
        %6486 = vmatpush1.bf16.msra.mxu0 %v6050
        %6487 = vmatprep.subr.bf16.mxu0 %v6055
        %6488 = vmatpush1.bf16.msra.mxu0 %v6054
        %6489 = vmatprep.subr.bf16.mxu0 %v6059
        %6490 = vmatpush1.bf16.msra.mxu0 %v6058
        %6491 = vmatprep.subr.bf16.mxu0 %v6063
        %6492 = vmatpush1.bf16.msra.mxu0 %v6062
        %6493 = vmatprep.subr.bf16.mxu0 %v6067
        %6494 = vmatpush1.bf16.msra.mxu0 %v6066
        %6495 = vmatprep.subr.bf16.mxu0 %v6071
        %6496 = vmatpush1.bf16.msra.mxu0 %v6070
        %6497 = vmatprep.subr.bf16.mxu0 %v6075
        %6498 = vmatpush1.bf16.msra.mxu0 %v6074
        %6499 = vmatprep.subr.bf16.mxu0 %v6079
        %6500 = vmatpush1.bf16.msra.mxu0 %v6078
        %6501 = vmatprep.subr.bf16.mxu0 %v6083
        %6502 = vmatpush1.bf16.msra.mxu0 %v6082
        %6503 = vmatprep.subr.bf16.mxu0 %v6087
        %6504 = vmatpush1.bf16.msra.mxu0 %v6086
        %6505 = vmatprep.subr.bf16.mxu0 %v6091
        %6506 = vmatpush1.bf16.msra.mxu0 %v6090
        %6507 = vmatprep.subr.bf16.mxu0 %v6095
        %6508 = vmatpush1.bf16.msra.mxu0 %v6094
        %6509 = vmatprep.mubr.bf16.mxu0 %v5065
        %6510 = vmatmul.mubr.bf16.gmra.mrb[0].mxu0 %v5064
        %v6511 = vpop.f32.mrb[0].mxu0
        %v6512 = vadd.f32 %v6471, %v6511
        %v6513 = vpop.f32.mrb[0].mxu0
        %v6514 = vadd.f32 %v6473, %v6513
        %v6515 = vpop.f32.mrb[0].mxu0
        %v6516 = vpop.f32.mrb[0].mxu0
        %6517 = vdwg.mxu0
        %6518 = vmatprep.subr.bf16.mxu0 %v5845
        %6519 = vmatpush1.bf16.msra.mxu0 %v5844
        %6520 = vmatprep.subr.bf16.mxu0 %v5849
        %6521 = vmatpush1.bf16.msra.mxu0 %v5848
        %6522 = vmatprep.subr.bf16.mxu0 %v5853
        %6523 = vmatpush1.bf16.msra.mxu0 %v5852
        %6524 = vmatprep.subr.bf16.mxu0 %v5857
        %6525 = vmatpush1.bf16.msra.mxu0 %v5856
        %6526 = vmatprep.subr.bf16.mxu0 %v5861
        %6527 = vmatpush1.bf16.msra.mxu0 %v5860
        %6528 = vmatprep.subr.bf16.mxu0 %v5865
        %6529 = vmatpush1.bf16.msra.mxu0 %v5864
        %6530 = vmatprep.subr.bf16.mxu0 %v5869
        %6531 = vmatpush1.bf16.msra.mxu0 %v5868
        %6532 = vmatprep.subr.bf16.mxu0 %v5873
        %6533 = vmatpush1.bf16.msra.mxu0 %v5872
        %6534 = vmatprep.subr.bf16.mxu0 %v5877
        %6535 = vmatpush1.bf16.msra.mxu0 %v5876
        %6536 = vmatprep.subr.bf16.mxu0 %v5881
        %6537 = vmatpush1.bf16.msra.mxu0 %v5880
        %6538 = vmatprep.subr.bf16.mxu0 %v5885
        %6539 = vmatpush1.bf16.msra.mxu0 %v5884
        %6540 = vmatprep.subr.bf16.mxu0 %v5889
        %6541 = vmatpush1.bf16.msra.mxu0 %v5888
        %6542 = vmatprep.subr.bf16.mxu0 %v5893
        %6543 = vmatpush1.bf16.msra.mxu0 %v5892
        %6544 = vmatprep.subr.bf16.mxu0 %v5897
        %6545 = vmatpush1.bf16.msra.mxu0 %v5896
        %6546 = vmatprep.subr.bf16.mxu0 %v5901
        %6547 = vmatpush1.bf16.msra.mxu0 %v5900
        %6548 = vmatprep.subr.bf16.mxu0 %v5905
        %6549 = vmatpush1.bf16.msra.mxu0 %v5904
        %6550 = vmatprep.mubr.bf16.mxu0 %v5059
        %6551 = vmatmul.mubr.bf16.gmra.mrb[0].mxu0 %v5058
        %v6552 = vpop.f32.mrb[0].mxu0
        %v6553 = vadd.f32 0.0, %v6552
        %v6554 = vpop.f32.mrb[0].mxu0
        %v6555 = vadd.f32 0.0, %v6554
        %v6556 = vpop.f32.mrb[0].mxu0
        %v6557 = vpop.f32.mrb[0].mxu0
        %6558 = vdwg.mxu0
        %6559 = vmatprep.subr.bf16.mxu0 %v5909
        %6560 = vmatpush1.bf16.msra.mxu0 %v5908
        %6561 = vmatprep.subr.bf16.mxu0 %v5913
        %6562 = vmatpush1.bf16.msra.mxu0 %v5912
        %6563 = vmatprep.subr.bf16.mxu0 %v5917
        %6564 = vmatpush1.bf16.msra.mxu0 %v5916
        %6565 = vmatprep.subr.bf16.mxu0 %v5921
        %6566 = vmatpush1.bf16.msra.mxu0 %v5920
        %6567 = vmatprep.subr.bf16.mxu0 %v5925
        %6568 = vmatpush1.bf16.msra.mxu0 %v5924
        %6569 = vmatprep.subr.bf16.mxu0 %v5929
        %6570 = vmatpush1.bf16.msra.mxu0 %v5928
        %6571 = vmatprep.subr.bf16.mxu0 %v5933
        %6572 = vmatpush1.bf16.msra.mxu0 %v5932
        %6573 = vmatprep.subr.bf16.mxu0 %v5937
        %6574 = vmatpush1.bf16.msra.mxu0 %v5936
        %6575 = vmatprep.subr.bf16.mxu0 %v5941
        %6576 = vmatpush1.bf16.msra.mxu0 %v5940
        %6577 = vmatprep.subr.bf16.mxu0 %v5945
        %6578 = vmatpush1.bf16.msra.mxu0 %v5944
        %6579 = vmatprep.subr.bf16.mxu0 %v5949
        %6580 = vmatpush1.bf16.msra.mxu0 %v5948
        %6581 = vmatprep.subr.bf16.mxu0 %v5953
        %6582 = vmatpush1.bf16.msra.mxu0 %v5952
        %6583 = vmatprep.subr.bf16.mxu0 %v5957
        %6584 = vmatpush1.bf16.msra.mxu0 %v5956
        %6585 = vmatprep.subr.bf16.mxu0 %v5961
        %6586 = vmatpush1.bf16.msra.mxu0 %v5960
        %6587 = vmatprep.subr.bf16.mxu0 %v5965
        %6588 = vmatpush1.bf16.msra.mxu0 %v5964
        %6589 = vmatprep.subr.bf16.mxu0 %v5969
        %6590 = vmatpush1.bf16.msra.mxu0 %v5968
        %6591 = vmatprep.mubr.bf16.mxu0 %v5061
        %6592 = vmatmul.mubr.bf16.gmra.mrb[0].mxu0 %v5060
        %v6593 = vpop.f32.mrb[0].mxu0
        %v6594 = vadd.f32 %v6553, %v6593
        %v6595 = vpop.f32.mrb[0].mxu0
        %v6596 = vadd.f32 %v6555, %v6595
        %v6597 = vpop.f32.mrb[0].mxu0
        %v6598 = vpop.f32.mrb[0].mxu0
        %6599 = vdwg.mxu0
        %6600 = vmatprep.subr.bf16.mxu0 %v5973
        %6601 = vmatpush1.bf16.msra.mxu0 %v5972
        %6602 = vmatprep.subr.bf16.mxu0 %v5977
        %6603 = vmatpush1.bf16.msra.mxu0 %v5976
        %6604 = vmatprep.subr.bf16.mxu0 %v5981
        %6605 = vmatpush1.bf16.msra.mxu0 %v5980
        %6606 = vmatprep.subr.bf16.mxu0 %v5985
        %6607 = vmatpush1.bf16.msra.mxu0 %v5984
        %6608 = vmatprep.subr.bf16.mxu0 %v5989
        %6609 = vmatpush1.bf16.msra.mxu0 %v5988
        %6610 = vmatprep.subr.bf16.mxu0 %v5993
        %6611 = vmatpush1.bf16.msra.mxu0 %v5992
        %6612 = vmatprep.subr.bf16.mxu0 %v5997
        %6613 = vmatpush1.bf16.msra.mxu0 %v5996
        %6614 = vmatprep.subr.bf16.mxu0 %v6001
        %6615 = vmatpush1.bf16.msra.mxu0 %v6000
        %6616 = vmatprep.subr.bf16.mxu0 %v6005
        %6617 = vmatpush1.bf16.msra.mxu0 %v6004
        %6618 = vmatprep.subr.bf16.mxu0 %v6009
        %6619 = vmatpush1.bf16.msra.mxu0 %v6008
        %6620 = vmatprep.subr.bf16.mxu0 %v6013
        %6621 = vmatpush1.bf16.msra.mxu0 %v6012
        %6622 = vmatprep.subr.bf16.mxu0 %v6017
        %6623 = vmatpush1.bf16.msra.mxu0 %v6016
        %6624 = vmatprep.subr.bf16.mxu0 %v6021
        %6625 = vmatpush1.bf16.msra.mxu0 %v6020
        %6626 = vmatprep.subr.bf16.mxu0 %v6025
        %6627 = vmatpush1.bf16.msra.mxu0 %v6024
        %6628 = vmatprep.subr.bf16.mxu0 %v6029
        %6629 = vmatpush1.bf16.msra.mxu0 %v6028
        %6630 = vmatprep.subr.bf16.mxu0 %v6033
        %6631 = vmatpush1.bf16.msra.mxu0 %v6032
        %6632 = vmatprep.mubr.bf16.mxu0 %v5063
        %6633 = vmatmul.mubr.bf16.gmra.mrb[0].mxu0 %v5062
        %v6634 = vpop.f32.mrb[0].mxu0
        %v6635 = vadd.f32 %v6594, %v6634
        %v6636 = vpop.f32.mrb[0].mxu0
        %v6637 = vadd.f32 %v6596, %v6636
        %v6638 = vpop.f32.mrb[0].mxu0
        %v6639 = vpop.f32.mrb[0].mxu0
        %6640 = vdwg.mxu0
        %6641 = vmatprep.subr.bf16.mxu0 %v6037
        %6642 = vmatpush1.bf16.msra.mxu0 %v6036
        %6643 = vmatprep.subr.bf16.mxu0 %v6041
        %6644 = vmatpush1.bf16.msra.mxu0 %v6040
        %6645 = vmatprep.subr.bf16.mxu0 %v6045
        %6646 = vmatpush1.bf16.msra.mxu0 %v6044
        %6647 = vmatprep.subr.bf16.mxu0 %v6049
        %6648 = vmatpush1.bf16.msra.mxu0 %v6048
        %6649 = vmatprep.subr.bf16.mxu0 %v6053
        %6650 = vmatpush1.bf16.msra.mxu0 %v6052
        %6651 = vmatprep.subr.bf16.mxu0 %v6057
        %6652 = vmatpush1.bf16.msra.mxu0 %v6056
        %6653 = vmatprep.subr.bf16.mxu0 %v6061
        %6654 = vmatpush1.bf16.msra.mxu0 %v6060
        %6655 = vmatprep.subr.bf16.mxu0 %v6065
        %6656 = vmatpush1.bf16.msra.mxu0 %v6064
        %6657 = vmatprep.subr.bf16.mxu0 %v6069
        %6658 = vmatpush1.bf16.msra.mxu0 %v6068
        %6659 = vmatprep.subr.bf16.mxu0 %v6073
        %6660 = vmatpush1.bf16.msra.mxu0 %v6072
        %6661 = vmatprep.subr.bf16.mxu0 %v6077
        %6662 = vmatpush1.bf16.msra.mxu0 %v6076
        %6663 = vmatprep.subr.bf16.mxu0 %v6081
        %6664 = vmatpush1.bf16.msra.mxu0 %v6080
        %6665 = vmatprep.subr.bf16.mxu0 %v6085
        %6666 = vmatpush1.bf16.msra.mxu0 %v6084
        %6667 = vmatprep.subr.bf16.mxu0 %v6089
        %6668 = vmatpush1.bf16.msra.mxu0 %v6088
        %6669 = vmatprep.subr.bf16.mxu0 %v6093
        %6670 = vmatpush1.bf16.msra.mxu0 %v6092
        %6671 = vmatprep.subr.bf16.mxu0 %v6097
        %6672 = vmatpush1.bf16.msra.mxu0 %v6096
        %6673 = vmatprep.mubr.bf16.mxu0 %v5065
        %6674 = vmatmul.mubr.bf16.gmra.mrb[0].mxu0 %v5064
        %v6675 = vpop.f32.mrb[0].mxu0
        %v6676 = vadd.f32 %v6635, %v6675
        %v6677 = vpop.f32.mrb[0].mxu0
        %v6678 = vadd.f32 %v6637, %v6677
        %v6679 = vpop.f32.mrb[0].mxu0
        %v6680 = vpop.f32.mrb[0].mxu0
        %6681 = vdwg.mxu0
        %v6682 = vmax.f32 %v6512, 0.0
        %v6683 = vmax.f32 %v6514, 0.0
        %v6684 = vmax.f32 %v6676, 0.0
        %v6685 = vmax.f32 %v6678, 0.0
        %vm6686 = vcmask 1043456
        %v6687 = vsel %vm6686, %v6682, 0.0
        %v6688 = vrot.slane %v6687, 4
        %v6689 = vadd.f32 %v6687, %v6688
        %v6690 = vrot.slane %v6689, 2
        %v6691 = vadd.f32 %v6689, %v6690
        %v6692 = vrot.slane %v6691, 1
        %v6693 = vadd.f32 %v6691, %v6692
        %v6694 = vsel %vm6686, %v6683, 0.0
        %v6695 = vrot.slane %v6694, 4
        %v6696 = vadd.f32 %v6694, %v6695
        %v6697 = vrot.slane %v6696, 2
        %v6698 = vadd.f32 %v6696, %v6697
        %v6699 = vrot.slane %v6698, 1
        %v6700 = vadd.f32 %v6698, %v6699
        %v6701 = vsel %vm6686, %v6684, 0.0
        %v6702 = vrot.slane %v6701, 4
        %v6703 = vadd.f32 %v6701, %v6702
        %v6704 = vrot.slane %v6703, 2
        %v6705 = vadd.f32 %v6703, %v6704
        %v6706 = vrot.slane %v6705, 1
        %v6707 = vadd.f32 %v6705, %v6706
        %v6708 = vsel %vm6686, %v6685, 0.0
        %v6709 = vrot.slane %v6708, 4
        %v6710 = vadd.f32 %v6708, %v6709
        %v6711 = vrot.slane %v6710, 2
        %v6712 = vadd.f32 %v6710, %v6711
        %v6713 = vrot.slane %v6712, 1
        %v6714 = vadd.f32 %v6712, %v6713
        %v6715 = vrcp.pop 4.0
        %v6716 = vmul.f32 %v6693, %v6715
        %v6717 = vmul.f32 %v6700, %v6715
        %v6718 = vmul.f32 %v6707, %v6715
        %v6719 = vmul.f32 %v6714, %v6715
        %v6724 = vrot.slane %v6682, 4
        %v6725 = vrot.slane %v6683, 4
        %v6726 = vrot.slane %v6684, 4
        %v6727 = vrot.slane %v6685, 4
        %v6732 = vsel %vm6686, %v6724, 0.0
        %v6733 = vrot.slane %v6732, 4
        %v6734 = vadd.f32 %v6732, %v6733
        %v6735 = vrot.slane %v6734, 2
        %v6736 = vadd.f32 %v6734, %v6735
        %v6737 = vrot.slane %v6736, 1
        %v6738 = vadd.f32 %v6736, %v6737
        %v6739 = vsel %vm6686, %v6725, 0.0
        %v6740 = vrot.slane %v6739, 4
        %v6741 = vadd.f32 %v6739, %v6740
        %v6742 = vrot.slane %v6741, 2
        %v6743 = vadd.f32 %v6741, %v6742
        %v6744 = vrot.slane %v6743, 1
        %v6745 = vadd.f32 %v6743, %v6744
        %v6746 = vsel %vm6686, %v6726, 0.0
        %v6747 = vrot.slane %v6746, 4
        %v6748 = vadd.f32 %v6746, %v6747
        %v6749 = vrot.slane %v6748, 2
        %v6750 = vadd.f32 %v6748, %v6749
        %v6751 = vrot.slane %v6750, 1
        %v6752 = vadd.f32 %v6750, %v6751
        %v6753 = vsel %vm6686, %v6727, 0.0
        %v6754 = vrot.slane %v6753, 4
        %v6755 = vadd.f32 %v6753, %v6754
        %v6756 = vrot.slane %v6755, 2
        %v6757 = vadd.f32 %v6755, %v6756
        %v6758 = vrot.slane %v6757, 1
        %v6759 = vadd.f32 %v6757, %v6758
        %v6760 = vmul.f32 %v6738, %v6715
        %v6761 = vmul.f32 %v6745, %v6715
        %v6762 = vmul.f32 %v6752, %v6715
        %v6763 = vmul.f32 %v6759, %v6715
        %vm6764 = vcmask 1040384
        %v6765 = vsel %vm6764, %v6716, %v6760
        %v6766 = vsel %vm6764, %v6717, %v6761
        %v6767 = vsel %vm6764, %v6718, %v6762
        %v6768 = vsel %vm6764, %v6719, %v6763
        %v6769 = vld [vmem:[#allocation12] sm:$0xf]
        %v6770 = vld [vmem:[#allocation12 + $0x4] sm:$0xf]
        %v6771 = vld [vmem:[#allocation12 + $0x8] sm:$0x3]
        %v6772 = vld [vmem:[#allocation3] sm:$0xff]
        %v6773 = vld [vmem:[#allocation3 + $0x8] sm:$0xff]
        %v6774 = vld [vmem:[#allocation3 + $0x10] sm:$0xff]
        %v6775 = vld [vmem:[#allocation3 + $0x18] sm:$0xff]
        %v6776 = vld [vmem:[#allocation3 + $0x20] sm:$0xff]
        %v6777 = vld [vmem:[#allocation3 + $0x28] sm:$0xff]
        %v6778 = vld [vmem:[#allocation3 + $0x30] sm:$0xff]
        %v6779 = vld [vmem:[#allocation3 + $0x38] sm:$0xff]
        %v6780 = vld [vmem:[#allocation3 + $0x40] sm:$0x33]
        %v6781 = vld [vmem:[#allocation3 + $0x48] sm:$0x33]
        %v6782 = vld [vmem:[#allocation3 + $0x50] sm:$0x33]
        %v6783 = vld [vmem:[#allocation3 + $0x58] sm:$0x33]
        %v6784 = vld [vmem:[%s484] sm:$0xff]
        %v6785 = vld [vmem:[%s484 + $0x8] sm:$0xff]
        %v6786 = vld [vmem:[%s484 + $0x10] sm:$0xff]
        %v6787 = vld [vmem:[%s484 + $0x18] sm:$0xff]
        %v6788 = vld [vmem:[%s484 + $0x20] sm:$0xff]
        %v6789 = vld [vmem:[%s484 + $0x28] sm:$0xff]
        %v6790 = vld [vmem:[%s484 + $0x30] sm:$0xff]
        %v6791 = vld [vmem:[%s484 + $0x38] sm:$0xff]
        %v6792 = vld [vmem:[%s484 + $0x40] sm:$0xff]
        %v6793 = vld [vmem:[%s484 + $0x48] sm:$0xff]
        %v6794 = vld [vmem:[%s484 + $0x50] sm:$0xff]
        %v6795 = vld [vmem:[%s484 + $0x58] sm:$0xff]
        %v6796 = vld [vmem:[%s484 + $0x60] sm:$0xff]
        %v6797 = vld [vmem:[%s484 + $0x68] sm:$0xff]
        %v6798 = vld [vmem:[%s484 + $0x70] sm:$0xff]
        %v6799 = vld [vmem:[%s484 + $0x78] sm:$0xff]
        %v6800 = vld [vmem:[%s484 + $0x80] sm:$0xff]
        %v6801 = vld [vmem:[%s484 + $0x88] sm:$0xff]
        %v6802 = vld [vmem:[%s484 + $0x90] sm:$0xff]
        %v6803 = vld [vmem:[%s484 + $0x98] sm:$0xff]
        %v6804 = vld [vmem:[%s484 + $0xa0] sm:$0xff]
        %v6805 = vld [vmem:[%s484 + $0xa8] sm:$0xff]
        %v6806 = vld [vmem:[%s484 + $0xb0] sm:$0xff]
        %v6807 = vld [vmem:[%s484 + $0xb8] sm:$0xff]
        %v6808 = vld [vmem:[%s484 + $0xc0] sm:$0xff]
        %v6809 = vld [vmem:[%s484 + $0xc8] sm:$0xff]
        %v6810 = vld [vmem:[%s484 + $0xd0] sm:$0xff]
        %v6811 = vld [vmem:[%s484 + $0xd8] sm:$0xff]
        %v6812 = vld [vmem:[%s484 + $0xe0] sm:$0xff]
        %v6813 = vld [vmem:[%s484 + $0xe8] sm:$0xff]
        %v6814 = vld [vmem:[%s484 + $0xf0] sm:$0xff]
        %v6815 = vld [vmem:[%s484 + $0xf8] sm:$0xff]
        %v6816 = vld [vmem:[%s484 + $0x100] sm:$0xff]
        %v6817 = vld [vmem:[%s484 + $0x108] sm:$0xff]
        %v6818 = vld [vmem:[%s484 + $0x110] sm:$0xff]
        %v6819 = vld [vmem:[%s484 + $0x118] sm:$0xff]
        %v6820 = vld [vmem:[%s484 + $0x120] sm:$0xff]
        %v6821 = vld [vmem:[%s484 + $0x128] sm:$0xff]
        %v6822 = vld [vmem:[%s484 + $0x130] sm:$0xff]
        %v6823 = vld [vmem:[%s484 + $0x138] sm:$0xff]
        %v6824 = vld [vmem:[%s484 + $0x140] sm:$0xff]
        %v6825 = vld [vmem:[%s484 + $0x148] sm:$0xff]
        %v6826 = vld [vmem:[%s484 + $0x150] sm:$0xff]
        %v6827 = vld [vmem:[%s484 + $0x158] sm:$0xff]
        %v6828 = vld [vmem:[%s484 + $0x160] sm:$0xff]
        %v6829 = vld [vmem:[%s484 + $0x168] sm:$0xff]
        %v6830 = vld [vmem:[%s484 + $0x170] sm:$0xff]
        %v6831 = vld [vmem:[%s484 + $0x178] sm:$0xff]
        %v6832 = vld [vmem:[%s484 + $0x180] sm:$0xff]
        %v6833 = vld [vmem:[%s484 + $0x188] sm:$0xff]
        %v6834 = vld [vmem:[%s484 + $0x190] sm:$0xff]
        %v6835 = vld [vmem:[%s484 + $0x198] sm:$0xff]
        %v6836 = vld [vmem:[%s484 + $0x1a0] sm:$0xff]
        %v6837 = vld [vmem:[%s484 + $0x1a8] sm:$0xff]
        %v6838 = vld [vmem:[%s484 + $0x1b0] sm:$0xff]
        %v6839 = vld [vmem:[%s484 + $0x1b8] sm:$0xff]
        %v6840 = vld [vmem:[%s484 + $0x1c0] sm:$0xff]
        %v6841 = vld [vmem:[%s484 + $0x1c8] sm:$0xff]
        %v6842 = vld [vmem:[%s484 + $0x1d0] sm:$0xff]
        %v6843 = vld [vmem:[%s484 + $0x1d8] sm:$0xff]
        %v6844 = vld [vmem:[%s484 + $0x1e0] sm:$0xff]
        %v6845 = vld [vmem:[%s484 + $0x1e8] sm:$0xff]
        %v6846 = vld [vmem:[%s484 + $0x1f0] sm:$0xff]
        %v6847 = vld [vmem:[%s484 + $0x1f8] sm:$0xff]
        %v6848 = vld [vmem:[%s484 + $0x200] sm:$0xff]
        %v6849 = vld [vmem:[%s484 + $0x208] sm:$0xff]
        %v6850 = vld [vmem:[%s484 + $0x210] sm:$0xff]
        %v6851 = vld [vmem:[%s484 + $0x218] sm:$0xff]
        %v6852 = vld [vmem:[%s484 + $0x220] sm:$0xff]
        %v6853 = vld [vmem:[%s484 + $0x228] sm:$0xff]
        %v6854 = vld [vmem:[%s484 + $0x230] sm:$0xff]
        %v6855 = vld [vmem:[%s484 + $0x238] sm:$0xff]
        %v6856 = vld [vmem:[%s484 + $0x240] sm:$0xff]
        %v6857 = vld [vmem:[%s484 + $0x248] sm:$0xff]
        %v6858 = vld [vmem:[%s484 + $0x250] sm:$0xff]
        %v6859 = vld [vmem:[%s484 + $0x258] sm:$0xff]
        %v6860 = vld [vmem:[%s484 + $0x260] sm:$0xff]
        %v6861 = vld [vmem:[%s484 + $0x268] sm:$0xff]
        %v6862 = vld [vmem:[%s484 + $0x270] sm:$0xff]
        %v6863 = vld [vmem:[%s484 + $0x278] sm:$0xff]
        %v6864 = vld [vmem:[%s484 + $0x280] sm:$0xff]
        %v6865 = vld [vmem:[%s484 + $0x288] sm:$0xff]
        %v6866 = vld [vmem:[%s484 + $0x290] sm:$0xff]
        %v6867 = vld [vmem:[%s484 + $0x298] sm:$0xff]
        %v6868 = vld [vmem:[%s484 + $0x2a0] sm:$0xff]
        %v6869 = vld [vmem:[%s484 + $0x2a8] sm:$0xff]
        %v6870 = vld [vmem:[%s484 + $0x2b0] sm:$0xff]
        %v6871 = vld [vmem:[%s484 + $0x2b8] sm:$0xff]
        %v6872 = vld [vmem:[%s484 + $0x2c0] sm:$0xff]
        %v6873 = vld [vmem:[%s484 + $0x2c8] sm:$0xff]
        %v6874 = vld [vmem:[%s484 + $0x2d0] sm:$0xff]
        %v6875 = vld [vmem:[%s484 + $0x2d8] sm:$0xff]
        %v6876 = vld [vmem:[%s484 + $0x2e0] sm:$0xff]
        %v6877 = vld [vmem:[%s484 + $0x2e8] sm:$0xff]
        %v6878 = vld [vmem:[%s484 + $0x2f0] sm:$0xff]
        %v6879 = vld [vmem:[%s484 + $0x2f8] sm:$0xff]
        %v6880 = vld [vmem:[%s484 + $0x300] sm:$0xff]
        %v6881 = vld [vmem:[%s484 + $0x308] sm:$0xff]
        %v6882 = vld [vmem:[%s484 + $0x310] sm:$0xff]
        %v6883 = vld [vmem:[%s484 + $0x318] sm:$0xff]
        %v6884 = vld [vmem:[%s484 + $0x320] sm:$0xff]
        %v6885 = vld [vmem:[%s484 + $0x328] sm:$0xff]
        %v6886 = vld [vmem:[%s484 + $0x330] sm:$0xff]
        %v6887 = vld [vmem:[%s484 + $0x338] sm:$0xff]
        %v6888 = vld [vmem:[%s484 + $0x340] sm:$0xff]
        %v6889 = vld [vmem:[%s484 + $0x348] sm:$0xff]
        %v6890 = vld [vmem:[%s484 + $0x350] sm:$0xff]
        %v6891 = vld [vmem:[%s484 + $0x358] sm:$0xff]
        %v6892 = vld [vmem:[%s484 + $0x360] sm:$0xff]
        %v6893 = vld [vmem:[%s484 + $0x368] sm:$0xff]
        %v6894 = vld [vmem:[%s484 + $0x370] sm:$0xff]
        %v6895 = vld [vmem:[%s484 + $0x378] sm:$0xff]
        %v6896 = vld [vmem:[%s484 + $0x380] sm:$0xff]
        %v6897 = vld [vmem:[%s484 + $0x388] sm:$0xff]
        %v6898 = vld [vmem:[%s484 + $0x390] sm:$0xff]
        %v6899 = vld [vmem:[%s484 + $0x398] sm:$0xff]
        %v6900 = vld [vmem:[%s484 + $0x3a0] sm:$0xff]
        %v6901 = vld [vmem:[%s484 + $0x3a8] sm:$0xff]
        %v6902 = vld [vmem:[%s484 + $0x3b0] sm:$0xff]
        %v6903 = vld [vmem:[%s484 + $0x3b8] sm:$0xff]
        %v6904 = vld [vmem:[%s484 + $0x3c0] sm:$0xff]
        %v6905 = vld [vmem:[%s484 + $0x3c8] sm:$0xff]
        %v6906 = vld [vmem:[%s484 + $0x3d0] sm:$0xff]
        %v6907 = vld [vmem:[%s484 + $0x3d8] sm:$0xff]
        %v6908 = vld [vmem:[%s484 + $0x3e0] sm:$0xff]
        %v6909 = vld [vmem:[%s484 + $0x3e8] sm:$0xff]
        %v6910 = vld [vmem:[%s484 + $0x3f0] sm:$0xff]
        %v6911 = vld [vmem:[%s484 + $0x3f8] sm:$0xff]
        %v6912 = vld [vmem:[%s484 + $0x400] sm:$0xff]
        %v6913 = vld [vmem:[%s484 + $0x408] sm:$0xff]
        %v6914 = vld [vmem:[%s484 + $0x410] sm:$0xff]
        %v6915 = vld [vmem:[%s484 + $0x418] sm:$0xff]
        %v6916 = vld [vmem:[%s484 + $0x420] sm:$0xff]
        %v6917 = vld [vmem:[%s484 + $0x428] sm:$0xff]
        %v6918 = vld [vmem:[%s484 + $0x430] sm:$0xff]
        %v6919 = vld [vmem:[%s484 + $0x438] sm:$0xff]
        %v6920 = vld [vmem:[%s484 + $0x440] sm:$0xff]
        %v6921 = vld [vmem:[%s484 + $0x448] sm:$0xff]
        %v6922 = vld [vmem:[%s484 + $0x450] sm:$0xff]
        %v6923 = vld [vmem:[%s484 + $0x458] sm:$0xff]
        %v6924 = vld [vmem:[%s484 + $0x460] sm:$0xff]
        %v6925 = vld [vmem:[%s484 + $0x468] sm:$0xff]
        %v6926 = vld [vmem:[%s484 + $0x470] sm:$0xff]
        %v6927 = vld [vmem:[%s484 + $0x478] sm:$0xff]
        %v6928 = vld [vmem:[%s484 + $0x480] sm:$0xff]
        %v6929 = vld [vmem:[%s484 + $0x488] sm:$0xff]
        %v6930 = vld [vmem:[%s484 + $0x490] sm:$0xff]
        %v6931 = vld [vmem:[%s484 + $0x498] sm:$0xff]
        %v6932 = vld [vmem:[%s484 + $0x4a0] sm:$0xff]
        %v6933 = vld [vmem:[%s484 + $0x4a8] sm:$0xff]
        %v6934 = vld [vmem:[%s484 + $0x4b0] sm:$0xff]
        %v6935 = vld [vmem:[%s484 + $0x4b8] sm:$0xff]
        %v6936 = vld [vmem:[%s484 + $0x4c0] sm:$0xff]
        %v6937 = vld [vmem:[%s484 + $0x4c8] sm:$0xff]
        %v6938 = vld [vmem:[%s484 + $0x4d0] sm:$0xff]
        %v6939 = vld [vmem:[%s484 + $0x4d8] sm:$0xff]
        %v6940 = vld [vmem:[%s484 + $0x4e0] sm:$0xff]
        %v6941 = vld [vmem:[%s484 + $0x4e8] sm:$0xff]
        %v6942 = vld [vmem:[%s484 + $0x4f0] sm:$0xff]
        %v6943 = vld [vmem:[%s484 + $0x4f8] sm:$0xff]
        %v6944 = vld [vmem:[%s484 + $0x500] sm:$0xff]
        %v6945 = vld [vmem:[%s484 + $0x508] sm:$0xff]
        %v6946 = vld [vmem:[%s484 + $0x510] sm:$0xff]
        %v6947 = vld [vmem:[%s484 + $0x518] sm:$0xff]
        %v6948 = vld [vmem:[%s484 + $0x520] sm:$0xff]
        %v6949 = vld [vmem:[%s484 + $0x528] sm:$0xff]
        %v6950 = vld [vmem:[%s484 + $0x530] sm:$0xff]
        %v6951 = vld [vmem:[%s484 + $0x538] sm:$0xff]
        %v6952 = vld [vmem:[%s484 + $0x540] sm:$0xff]
        %v6953 = vld [vmem:[%s484 + $0x548] sm:$0xff]
        %v6954 = vld [vmem:[%s484 + $0x550] sm:$0xff]
        %v6955 = vld [vmem:[%s484 + $0x558] sm:$0xff]
        %v6956 = vld [vmem:[%s484 + $0x560] sm:$0xff]
        %v6957 = vld [vmem:[%s484 + $0x568] sm:$0xff]
        %v6958 = vld [vmem:[%s484 + $0x570] sm:$0xff]
        %v6959 = vld [vmem:[%s484 + $0x578] sm:$0xff]
        %v6960 = vld [vmem:[%s484 + $0x580] sm:$0xff]
        %v6961 = vld [vmem:[%s484 + $0x588] sm:$0xff]
        %v6962 = vld [vmem:[%s484 + $0x590] sm:$0xff]
        %v6963 = vld [vmem:[%s484 + $0x598] sm:$0xff]
        %v6964 = vld [vmem:[%s484 + $0x5a0] sm:$0xff]
        %v6965 = vld [vmem:[%s484 + $0x5a8] sm:$0xff]
        %v6966 = vld [vmem:[%s484 + $0x5b0] sm:$0xff]
        %v6967 = vld [vmem:[%s484 + $0x5b8] sm:$0xff]
        %v6968 = vld [vmem:[%s484 + $0x5c0] sm:$0xff]
        %v6969 = vld [vmem:[%s484 + $0x5c8] sm:$0xff]
        %v6970 = vld [vmem:[%s484 + $0x5d0] sm:$0xff]
        %v6971 = vld [vmem:[%s484 + $0x5d8] sm:$0xff]
        %v6972 = vld [vmem:[%s484 + $0x5e0] sm:$0xff]
        %v6973 = vld [vmem:[%s484 + $0x5e8] sm:$0xff]
        %v6974 = vld [vmem:[%s484 + $0x5f0] sm:$0xff]
        %v6975 = vld [vmem:[%s484 + $0x5f8] sm:$0xff]
        %v6976 = vld [vmem:[%s484 + $0x600] sm:$0xff]
        %v6977 = vld [vmem:[%s484 + $0x608] sm:$0xff]
        %v6978 = vld [vmem:[%s484 + $0x610] sm:$0xff]
        %v6979 = vld [vmem:[%s484 + $0x618] sm:$0xff]
        %v6980 = vld [vmem:[%s484 + $0x620] sm:$0xff]
        %v6981 = vld [vmem:[%s484 + $0x628] sm:$0xff]
        %v6982 = vld [vmem:[%s484 + $0x630] sm:$0xff]
        %v6983 = vld [vmem:[%s484 + $0x638] sm:$0xff]
        %v6984 = vld [vmem:[%s484 + $0x640] sm:$0xff]
        %v6985 = vld [vmem:[%s484 + $0x648] sm:$0xff]
        %v6986 = vld [vmem:[%s484 + $0x650] sm:$0xff]
        %v6987 = vld [vmem:[%s484 + $0x658] sm:$0xff]
        %v6988 = vld [vmem:[%s484 + $0x660] sm:$0xff]
        %v6989 = vld [vmem:[%s484 + $0x668] sm:$0xff]
        %v6990 = vld [vmem:[%s484 + $0x670] sm:$0xff]
        %v6991 = vld [vmem:[%s484 + $0x678] sm:$0xff]
        %v6992 = vld [vmem:[%s484 + $0x680] sm:$0xff]
        %v6993 = vld [vmem:[%s484 + $0x688] sm:$0xff]
        %v6994 = vld [vmem:[%s484 + $0x690] sm:$0xff]
        %v6995 = vld [vmem:[%s484 + $0x698] sm:$0xff]
        %v6996 = vld [vmem:[%s484 + $0x6a0] sm:$0xff]
        %v6997 = vld [vmem:[%s484 + $0x6a8] sm:$0xff]
        %v6998 = vld [vmem:[%s484 + $0x6b0] sm:$0xff]
        %v6999 = vld [vmem:[%s484 + $0x6b8] sm:$0xff]
        %v7000 = vld [vmem:[%s484 + $0x6c0] sm:$0xff]
        %v7001 = vld [vmem:[%s484 + $0x6c8] sm:$0xff]
        %v7002 = vld [vmem:[%s484 + $0x6d0] sm:$0xff]
        %v7003 = vld [vmem:[%s484 + $0x6d8] sm:$0xff]
        %v7004 = vld [vmem:[%s484 + $0x6e0] sm:$0xff]
        %v7005 = vld [vmem:[%s484 + $0x6e8] sm:$0xff]
        %v7006 = vld [vmem:[%s484 + $0x6f0] sm:$0xff]
        %v7007 = vld [vmem:[%s484 + $0x6f8] sm:$0xff]
        %v7008 = vld [vmem:[%s484 + $0x700] sm:$0xff]
        %v7009 = vld [vmem:[%s484 + $0x708] sm:$0xff]
        %v7010 = vld [vmem:[%s484 + $0x710] sm:$0xff]
        %v7011 = vld [vmem:[%s484 + $0x718] sm:$0xff]
        %v7012 = vld [vmem:[%s484 + $0x720] sm:$0xff]
        %v7013 = vld [vmem:[%s484 + $0x728] sm:$0xff]
        %v7014 = vld [vmem:[%s484 + $0x730] sm:$0xff]
        %v7015 = vld [vmem:[%s484 + $0x738] sm:$0xff]
        %v7016 = vld [vmem:[%s484 + $0x740] sm:$0xff]
        %v7017 = vld [vmem:[%s484 + $0x748] sm:$0xff]
        %v7018 = vld [vmem:[%s484 + $0x750] sm:$0xff]
        %v7019 = vld [vmem:[%s484 + $0x758] sm:$0xff]
        %v7020 = vld [vmem:[%s484 + $0x760] sm:$0xff]
        %v7021 = vld [vmem:[%s484 + $0x768] sm:$0xff]
        %v7022 = vld [vmem:[%s484 + $0x770] sm:$0xff]
        %v7023 = vld [vmem:[%s484 + $0x778] sm:$0xff]
        %v7024 = vld [vmem:[%s484 + $0x780] sm:$0xff]
        %v7025 = vld [vmem:[%s484 + $0x788] sm:$0xff]
        %v7026 = vld [vmem:[%s484 + $0x790] sm:$0xff]
        %v7027 = vld [vmem:[%s484 + $0x798] sm:$0xff]
        %v7028 = vld [vmem:[%s484 + $0x7a0] sm:$0xff]
        %v7029 = vld [vmem:[%s484 + $0x7a8] sm:$0xff]
        %v7030 = vld [vmem:[%s484 + $0x7b0] sm:$0xff]
        %v7031 = vld [vmem:[%s484 + $0x7b8] sm:$0xff]
        %v7032 = vld [vmem:[%s484 + $0x7c0] sm:$0xff]
        %v7033 = vld [vmem:[%s484 + $0x7c8] sm:$0xff]
        %v7034 = vld [vmem:[%s484 + $0x7d0] sm:$0xff]
        %v7035 = vld [vmem:[%s484 + $0x7d8] sm:$0xff]
        %v7036 = vld [vmem:[%s484 + $0x7e0] sm:$0xff]
        %v7037 = vld [vmem:[%s484 + $0x7e8] sm:$0xff]
        %v7038 = vld [vmem:[%s484 + $0x7f0] sm:$0xff]
        %v7039 = vld [vmem:[%s484 + $0x7f8] sm:$0xff]
        %v7052 = vunpack.c.l.b16 %v6772
        %v7053 = vunpack.c.h.b16 %v6772
        %v7054 = vunpack.c.l.b16 %v6773
        %v7055 = vunpack.c.h.b16 %v6773
        %v7056 = vunpack.c.l.b16 %v6774
        %v7057 = vunpack.c.h.b16 %v6774
        %v7058 = vunpack.c.l.b16 %v6775
        %v7059 = vunpack.c.h.b16 %v6775
        %v7060 = vunpack.c.l.b16 %v6776
        %v7061 = vunpack.c.h.b16 %v6776
        %v7062 = vunpack.c.l.b16 %v6777
        %v7063 = vunpack.c.h.b16 %v6777
        %v7064 = vunpack.c.l.b16 %v6778
        %v7065 = vunpack.c.h.b16 %v6778
        %v7066 = vunpack.c.l.b16 %v6779
        %v7067 = vunpack.c.h.b16 %v6779
        %v7068 = vunpack.c.l.b16 %v6780
        %v7069 = vunpack.c.h.b16 %v6780
        %v7070 = vunpack.c.l.b16 %v6781
        %v7071 = vunpack.c.h.b16 %v6781
        %v7072 = vunpack.c.l.b16 %v6782
        %v7073 = vunpack.c.h.b16 %v6782
        %v7074 = vunpack.c.l.b16 %v6783
        %v7075 = vunpack.c.h.b16 %v6783
        %v7076 = vpack.c.b16 %v7060, %v7052
        %v7077 = vpack.c.b16 %v7061, %v7053
        %v7078 = vpack.c.b16 %v7062, %v7054
        %v7079 = vpack.c.b16 %v7063, %v7055
        %v7080 = vpack.c.b16 %v7064, %v7056
        %v7081 = vpack.c.b16 %v7065, %v7057
        %v7082 = vpack.c.b16 %v7066, %v7058
        %v7083 = vpack.c.b16 %v7067, %v7059
        %v7084 = vpack.c.b16 %v7068, %v7068
        %v7085 = vpack.c.b16 %v7069, %v7069
        %v7086 = vpack.c.b16 %v7070, %v7070
        %v7087 = vpack.c.b16 %v7071, %v7071
        %v7088 = vpack.c.b16 %v7072, %v7072
        %v7089 = vpack.c.b16 %v7073, %v7073
        %v7090 = vpack.c.b16 %v7074, %v7074
        %v7091 = vpack.c.b16 %v7075, %v7075
        %v7364 = vunpack.c.l.b16 %v6784
        %v7365 = vunpack.c.h.b16 %v6784
        %v7366 = vunpack.c.l.b16 %v6785
        %v7367 = vunpack.c.h.b16 %v6785
        %v7368 = vunpack.c.l.b16 %v6786
        %v7369 = vunpack.c.h.b16 %v6786
        %v7370 = vunpack.c.l.b16 %v6787
        %v7371 = vunpack.c.h.b16 %v6787
        %v7372 = vunpack.c.l.b16 %v6788
        %v7373 = vunpack.c.h.b16 %v6788
        %v7374 = vunpack.c.l.b16 %v6789
        %v7375 = vunpack.c.h.b16 %v6789
        %v7376 = vunpack.c.l.b16 %v6790
        %v7377 = vunpack.c.h.b16 %v6790
        %v7378 = vunpack.c.l.b16 %v6791
        %v7379 = vunpack.c.h.b16 %v6791
        %v7380 = vunpack.c.l.b16 %v6792
        %v7381 = vunpack.c.h.b16 %v6792
        %v7382 = vunpack.c.l.b16 %v6793
        %v7383 = vunpack.c.h.b16 %v6793
        %v7384 = vunpack.c.l.b16 %v6794
        %v7385 = vunpack.c.h.b16 %v6794
        %v7386 = vunpack.c.l.b16 %v6795
        %v7387 = vunpack.c.h.b16 %v6795
        %v7388 = vunpack.c.l.b16 %v6796
        %v7389 = vunpack.c.h.b16 %v6796
        %v7390 = vunpack.c.l.b16 %v6797
        %v7391 = vunpack.c.h.b16 %v6797
        %v7392 = vunpack.c.l.b16 %v6798
        %v7393 = vunpack.c.h.b16 %v6798
        %v7394 = vunpack.c.l.b16 %v6799
        %v7395 = vunpack.c.h.b16 %v6799
        %v7396 = vunpack.c.l.b16 %v6800
        %v7397 = vunpack.c.h.b16 %v6800
        %v7398 = vunpack.c.l.b16 %v6801
        %v7399 = vunpack.c.h.b16 %v6801
        %v7400 = vunpack.c.l.b16 %v6802
        %v7401 = vunpack.c.h.b16 %v6802
        %v7402 = vunpack.c.l.b16 %v6803
        %v7403 = vunpack.c.h.b16 %v6803
        %v7404 = vunpack.c.l.b16 %v6804
        %v7405 = vunpack.c.h.b16 %v6804
        %v7406 = vunpack.c.l.b16 %v6805
        %v7407 = vunpack.c.h.b16 %v6805
        %v7408 = vunpack.c.l.b16 %v6806
        %v7409 = vunpack.c.h.b16 %v6806
        %v7410 = vunpack.c.l.b16 %v6807
        %v7411 = vunpack.c.h.b16 %v6807
        %v7412 = vunpack.c.l.b16 %v6808
        %v7413 = vunpack.c.h.b16 %v6808
        %v7414 = vunpack.c.l.b16 %v6809
        %v7415 = vunpack.c.h.b16 %v6809
        %v7416 = vunpack.c.l.b16 %v6810
        %v7417 = vunpack.c.h.b16 %v6810
        %v7418 = vunpack.c.l.b16 %v6811
        %v7419 = vunpack.c.h.b16 %v6811
        %v7420 = vunpack.c.l.b16 %v6812
        %v7421 = vunpack.c.h.b16 %v6812
        %v7422 = vunpack.c.l.b16 %v6813
        %v7423 = vunpack.c.h.b16 %v6813
        %v7424 = vunpack.c.l.b16 %v6814
        %v7425 = vunpack.c.h.b16 %v6814
        %v7426 = vunpack.c.l.b16 %v6815
        %v7427 = vunpack.c.h.b16 %v6815
        %v7428 = vunpack.c.l.b16 %v6816
        %v7429 = vunpack.c.h.b16 %v6816
        %v7430 = vunpack.c.l.b16 %v6817
        %v7431 = vunpack.c.h.b16 %v6817
        %v7432 = vunpack.c.l.b16 %v6818
        %v7433 = vunpack.c.h.b16 %v6818
        %v7434 = vunpack.c.l.b16 %v6819
        %v7435 = vunpack.c.h.b16 %v6819
        %v7436 = vunpack.c.l.b16 %v6820
        %v7437 = vunpack.c.h.b16 %v6820
        %v7438 = vunpack.c.l.b16 %v6821
        %v7439 = vunpack.c.h.b16 %v6821
        %v7440 = vunpack.c.l.b16 %v6822
        %v7441 = vunpack.c.h.b16 %v6822
        %v7442 = vunpack.c.l.b16 %v6823
        %v7443 = vunpack.c.h.b16 %v6823
        %v7444 = vunpack.c.l.b16 %v6824
        %v7445 = vunpack.c.h.b16 %v6824
        %v7446 = vunpack.c.l.b16 %v6825
        %v7447 = vunpack.c.h.b16 %v6825
        %v7448 = vunpack.c.l.b16 %v6826
        %v7449 = vunpack.c.h.b16 %v6826
        %v7450 = vunpack.c.l.b16 %v6827
        %v7451 = vunpack.c.h.b16 %v6827
        %v7452 = vunpack.c.l.b16 %v6828
        %v7453 = vunpack.c.h.b16 %v6828
        %v7454 = vunpack.c.l.b16 %v6829
        %v7455 = vunpack.c.h.b16 %v6829
        %v7456 = vunpack.c.l.b16 %v6830
        %v7457 = vunpack.c.h.b16 %v6830
        %v7458 = vunpack.c.l.b16 %v6831
        %v7459 = vunpack.c.h.b16 %v6831
        %v7460 = vunpack.c.l.b16 %v6832
        %v7461 = vunpack.c.h.b16 %v6832
        %v7462 = vunpack.c.l.b16 %v6833
        %v7463 = vunpack.c.h.b16 %v6833
        %v7464 = vunpack.c.l.b16 %v6834
        %v7465 = vunpack.c.h.b16 %v6834
        %v7466 = vunpack.c.l.b16 %v6835
        %v7467 = vunpack.c.h.b16 %v6835
        %v7468 = vunpack.c.l.b16 %v6836
        %v7469 = vunpack.c.h.b16 %v6836
        %v7470 = vunpack.c.l.b16 %v6837
        %v7471 = vunpack.c.h.b16 %v6837
        %v7472 = vunpack.c.l.b16 %v6838
        %v7473 = vunpack.c.h.b16 %v6838
        %v7474 = vunpack.c.l.b16 %v6839
        %v7475 = vunpack.c.h.b16 %v6839
        %v7476 = vunpack.c.l.b16 %v6840
        %v7477 = vunpack.c.h.b16 %v6840
        %v7478 = vunpack.c.l.b16 %v6841
        %v7479 = vunpack.c.h.b16 %v6841
        %v7480 = vunpack.c.l.b16 %v6842
        %v7481 = vunpack.c.h.b16 %v6842
        %v7482 = vunpack.c.l.b16 %v6843
        %v7483 = vunpack.c.h.b16 %v6843
        %v7484 = vunpack.c.l.b16 %v6844
        %v7485 = vunpack.c.h.b16 %v6844
        %v7486 = vunpack.c.l.b16 %v6845
        %v7487 = vunpack.c.h.b16 %v6845
        %v7488 = vunpack.c.l.b16 %v6846
        %v7489 = vunpack.c.h.b16 %v6846
        %v7490 = vunpack.c.l.b16 %v6847
        %v7491 = vunpack.c.h.b16 %v6847
        %v7492 = vunpack.c.l.b16 %v6848
        %v7493 = vunpack.c.h.b16 %v6848
        %v7494 = vunpack.c.l.b16 %v6849
        %v7495 = vunpack.c.h.b16 %v6849
        %v7496 = vunpack.c.l.b16 %v6850
        %v7497 = vunpack.c.h.b16 %v6850
        %v7498 = vunpack.c.l.b16 %v6851
        %v7499 = vunpack.c.h.b16 %v6851
        %v7500 = vunpack.c.l.b16 %v6852
        %v7501 = vunpack.c.h.b16 %v6852
        %v7502 = vunpack.c.l.b16 %v6853
        %v7503 = vunpack.c.h.b16 %v6853
        %v7504 = vunpack.c.l.b16 %v6854
        %v7505 = vunpack.c.h.b16 %v6854
        %v7506 = vunpack.c.l.b16 %v6855
        %v7507 = vunpack.c.h.b16 %v6855
        %v7508 = vunpack.c.l.b16 %v6856
        %v7509 = vunpack.c.h.b16 %v6856
        %v7510 = vunpack.c.l.b16 %v6857
        %v7511 = vunpack.c.h.b16 %v6857
        %v7512 = vunpack.c.l.b16 %v6858
        %v7513 = vunpack.c.h.b16 %v6858
        %v7514 = vunpack.c.l.b16 %v6859
        %v7515 = vunpack.c.h.b16 %v6859
        %v7516 = vunpack.c.l.b16 %v6860
        %v7517 = vunpack.c.h.b16 %v6860
        %v7518 = vunpack.c.l.b16 %v6861
        %v7519 = vunpack.c.h.b16 %v6861
        %v7520 = vunpack.c.l.b16 %v6862
        %v7521 = vunpack.c.h.b16 %v6862
        %v7522 = vunpack.c.l.b16 %v6863
        %v7523 = vunpack.c.h.b16 %v6863
        %v7524 = vunpack.c.l.b16 %v6864
        %v7525 = vunpack.c.h.b16 %v6864
        %v7526 = vunpack.c.l.b16 %v6865
        %v7527 = vunpack.c.h.b16 %v6865
        %v7528 = vunpack.c.l.b16 %v6866
        %v7529 = vunpack.c.h.b16 %v6866
        %v7530 = vunpack.c.l.b16 %v6867
        %v7531 = vunpack.c.h.b16 %v6867
        %v7532 = vunpack.c.l.b16 %v6868
        %v7533 = vunpack.c.h.b16 %v6868
        %v7534 = vunpack.c.l.b16 %v6869
        %v7535 = vunpack.c.h.b16 %v6869
        %v7536 = vunpack.c.l.b16 %v6870
        %v7537 = vunpack.c.h.b16 %v6870
        %v7538 = vunpack.c.l.b16 %v6871
        %v7539 = vunpack.c.h.b16 %v6871
        %v7540 = vunpack.c.l.b16 %v6872
        %v7541 = vunpack.c.h.b16 %v6872
        %v7542 = vunpack.c.l.b16 %v6873
        %v7543 = vunpack.c.h.b16 %v6873
        %v7544 = vunpack.c.l.b16 %v6874
        %v7545 = vunpack.c.h.b16 %v6874
        %v7546 = vunpack.c.l.b16 %v6875
        %v7547 = vunpack.c.h.b16 %v6875
        %v7548 = vunpack.c.l.b16 %v6876
        %v7549 = vunpack.c.h.b16 %v6876
        %v7550 = vunpack.c.l.b16 %v6877
        %v7551 = vunpack.c.h.b16 %v6877
        %v7552 = vunpack.c.l.b16 %v6878
        %v7553 = vunpack.c.h.b16 %v6878
        %v7554 = vunpack.c.l.b16 %v6879
        %v7555 = vunpack.c.h.b16 %v6879
        %v7556 = vunpack.c.l.b16 %v6880
        %v7557 = vunpack.c.h.b16 %v6880
        %v7558 = vunpack.c.l.b16 %v6881
        %v7559 = vunpack.c.h.b16 %v6881
        %v7560 = vunpack.c.l.b16 %v6882
        %v7561 = vunpack.c.h.b16 %v6882
        %v7562 = vunpack.c.l.b16 %v6883
        %v7563 = vunpack.c.h.b16 %v6883
        %v7564 = vunpack.c.l.b16 %v6884
        %v7565 = vunpack.c.h.b16 %v6884
        %v7566 = vunpack.c.l.b16 %v6885
        %v7567 = vunpack.c.h.b16 %v6885
        %v7568 = vunpack.c.l.b16 %v6886
        %v7569 = vunpack.c.h.b16 %v6886
        %v7570 = vunpack.c.l.b16 %v6887
        %v7571 = vunpack.c.h.b16 %v6887
        %v7572 = vunpack.c.l.b16 %v6888
        %v7573 = vunpack.c.h.b16 %v6888
        %v7574 = vunpack.c.l.b16 %v6889
        %v7575 = vunpack.c.h.b16 %v6889
        %v7576 = vunpack.c.l.b16 %v6890
        %v7577 = vunpack.c.h.b16 %v6890
        %v7578 = vunpack.c.l.b16 %v6891
        %v7579 = vunpack.c.h.b16 %v6891
        %v7580 = vunpack.c.l.b16 %v6892
        %v7581 = vunpack.c.h.b16 %v6892
        %v7582 = vunpack.c.l.b16 %v6893
        %v7583 = vunpack.c.h.b16 %v6893
        %v7584 = vunpack.c.l.b16 %v6894
        %v7585 = vunpack.c.h.b16 %v6894
        %v7586 = vunpack.c.l.b16 %v6895
        %v7587 = vunpack.c.h.b16 %v6895
        %v7588 = vunpack.c.l.b16 %v6896
        %v7589 = vunpack.c.h.b16 %v6896
        %v7590 = vunpack.c.l.b16 %v6897
        %v7591 = vunpack.c.h.b16 %v6897
        %v7592 = vunpack.c.l.b16 %v6898
        %v7593 = vunpack.c.h.b16 %v6898
        %v7594 = vunpack.c.l.b16 %v6899
        %v7595 = vunpack.c.h.b16 %v6899
        %v7596 = vunpack.c.l.b16 %v6900
        %v7597 = vunpack.c.h.b16 %v6900
        %v7598 = vunpack.c.l.b16 %v6901
        %v7599 = vunpack.c.h.b16 %v6901
        %v7600 = vunpack.c.l.b16 %v6902
        %v7601 = vunpack.c.h.b16 %v6902
        %v7602 = vunpack.c.l.b16 %v6903
        %v7603 = vunpack.c.h.b16 %v6903
        %v7604 = vunpack.c.l.b16 %v6904
        %v7605 = vunpack.c.h.b16 %v6904
        %v7606 = vunpack.c.l.b16 %v6905
        %v7607 = vunpack.c.h.b16 %v6905
        %v7608 = vunpack.c.l.b16 %v6906
        %v7609 = vunpack.c.h.b16 %v6906
        %v7610 = vunpack.c.l.b16 %v6907
        %v7611 = vunpack.c.h.b16 %v6907
        %v7612 = vunpack.c.l.b16 %v6908
        %v7613 = vunpack.c.h.b16 %v6908
        %v7614 = vunpack.c.l.b16 %v6909
        %v7615 = vunpack.c.h.b16 %v6909
        %v7616 = vunpack.c.l.b16 %v6910
        %v7617 = vunpack.c.h.b16 %v6910
        %v7618 = vunpack.c.l.b16 %v6911
        %v7619 = vunpack.c.h.b16 %v6911
        %v7620 = vunpack.c.l.b16 %v6912
        %v7621 = vunpack.c.h.b16 %v6912
        %v7622 = vunpack.c.l.b16 %v6913
        %v7623 = vunpack.c.h.b16 %v6913
        %v7624 = vunpack.c.l.b16 %v6914
        %v7625 = vunpack.c.h.b16 %v6914
        %v7626 = vunpack.c.l.b16 %v6915
        %v7627 = vunpack.c.h.b16 %v6915
        %v7628 = vunpack.c.l.b16 %v6916
        %v7629 = vunpack.c.h.b16 %v6916
        %v7630 = vunpack.c.l.b16 %v6917
        %v7631 = vunpack.c.h.b16 %v6917
        %v7632 = vunpack.c.l.b16 %v6918
        %v7633 = vunpack.c.h.b16 %v6918
        %v7634 = vunpack.c.l.b16 %v6919
        %v7635 = vunpack.c.h.b16 %v6919
        %v7636 = vunpack.c.l.b16 %v6920
        %v7637 = vunpack.c.h.b16 %v6920
        %v7638 = vunpack.c.l.b16 %v6921
        %v7639 = vunpack.c.h.b16 %v6921
        %v7640 = vunpack.c.l.b16 %v6922
        %v7641 = vunpack.c.h.b16 %v6922
        %v7642 = vunpack.c.l.b16 %v6923
        %v7643 = vunpack.c.h.b16 %v6923
        %v7644 = vunpack.c.l.b16 %v6924
        %v7645 = vunpack.c.h.b16 %v6924
        %v7646 = vunpack.c.l.b16 %v6925
        %v7647 = vunpack.c.h.b16 %v6925
        %v7648 = vunpack.c.l.b16 %v6926
        %v7649 = vunpack.c.h.b16 %v6926
        %v7650 = vunpack.c.l.b16 %v6927
        %v7651 = vunpack.c.h.b16 %v6927
        %v7652 = vunpack.c.l.b16 %v6928
        %v7653 = vunpack.c.h.b16 %v6928
        %v7654 = vunpack.c.l.b16 %v6929
        %v7655 = vunpack.c.h.b16 %v6929
        %v7656 = vunpack.c.l.b16 %v6930
        %v7657 = vunpack.c.h.b16 %v6930
        %v7658 = vunpack.c.l.b16 %v6931
        %v7659 = vunpack.c.h.b16 %v6931
        %v7660 = vunpack.c.l.b16 %v6932
        %v7661 = vunpack.c.h.b16 %v6932
        %v7662 = vunpack.c.l.b16 %v6933
        %v7663 = vunpack.c.h.b16 %v6933
        %v7664 = vunpack.c.l.b16 %v6934
        %v7665 = vunpack.c.h.b16 %v6934
        %v7666 = vunpack.c.l.b16 %v6935
        %v7667 = vunpack.c.h.b16 %v6935
        %v7668 = vunpack.c.l.b16 %v6936
        %v7669 = vunpack.c.h.b16 %v6936
        %v7670 = vunpack.c.l.b16 %v6937
        %v7671 = vunpack.c.h.b16 %v6937
        %v7672 = vunpack.c.l.b16 %v6938
        %v7673 = vunpack.c.h.b16 %v6938
        %v7674 = vunpack.c.l.b16 %v6939
        %v7675 = vunpack.c.h.b16 %v6939
        %v7676 = vunpack.c.l.b16 %v6940
        %v7677 = vunpack.c.h.b16 %v6940
        %v7678 = vunpack.c.l.b16 %v6941
        %v7679 = vunpack.c.h.b16 %v6941
        %v7680 = vunpack.c.l.b16 %v6942
        %v7681 = vunpack.c.h.b16 %v6942
        %v7682 = vunpack.c.l.b16 %v6943
        %v7683 = vunpack.c.h.b16 %v6943
        %v7684 = vunpack.c.l.b16 %v6944
        %v7685 = vunpack.c.h.b16 %v6944
        %v7686 = vunpack.c.l.b16 %v6945
        %v7687 = vunpack.c.h.b16 %v6945
        %v7688 = vunpack.c.l.b16 %v6946
        %v7689 = vunpack.c.h.b16 %v6946
        %v7690 = vunpack.c.l.b16 %v6947
        %v7691 = vunpack.c.h.b16 %v6947
        %v7692 = vunpack.c.l.b16 %v6948
        %v7693 = vunpack.c.h.b16 %v6948
        %v7694 = vunpack.c.l.b16 %v6949
        %v7695 = vunpack.c.h.b16 %v6949
        %v7696 = vunpack.c.l.b16 %v6950
        %v7697 = vunpack.c.h.b16 %v6950
        %v7698 = vunpack.c.l.b16 %v6951
        %v7699 = vunpack.c.h.b16 %v6951
        %v7700 = vunpack.c.l.b16 %v6952
        %v7701 = vunpack.c.h.b16 %v6952
        %v7702 = vunpack.c.l.b16 %v6953
        %v7703 = vunpack.c.h.b16 %v6953
        %v7704 = vunpack.c.l.b16 %v6954
        %v7705 = vunpack.c.h.b16 %v6954
        %v7706 = vunpack.c.l.b16 %v6955
        %v7707 = vunpack.c.h.b16 %v6955
        %v7708 = vunpack.c.l.b16 %v6956
        %v7709 = vunpack.c.h.b16 %v6956
        %v7710 = vunpack.c.l.b16 %v6957
        %v7711 = vunpack.c.h.b16 %v6957
        %v7712 = vunpack.c.l.b16 %v6958
        %v7713 = vunpack.c.h.b16 %v6958
        %v7714 = vunpack.c.l.b16 %v6959
        %v7715 = vunpack.c.h.b16 %v6959
        %v7716 = vunpack.c.l.b16 %v6960
        %v7717 = vunpack.c.h.b16 %v6960
        %v7718 = vunpack.c.l.b16 %v6961
        %v7719 = vunpack.c.h.b16 %v6961
        %v7720 = vunpack.c.l.b16 %v6962
        %v7721 = vunpack.c.h.b16 %v6962
        %v7722 = vunpack.c.l.b16 %v6963
        %v7723 = vunpack.c.h.b16 %v6963
        %v7724 = vunpack.c.l.b16 %v6964
        %v7725 = vunpack.c.h.b16 %v6964
        %v7726 = vunpack.c.l.b16 %v6965
        %v7727 = vunpack.c.h.b16 %v6965
        %v7728 = vunpack.c.l.b16 %v6966
        %v7729 = vunpack.c.h.b16 %v6966
        %v7730 = vunpack.c.l.b16 %v6967
        %v7731 = vunpack.c.h.b16 %v6967
        %v7732 = vunpack.c.l.b16 %v6968
        %v7733 = vunpack.c.h.b16 %v6968
        %v7734 = vunpack.c.l.b16 %v6969
        %v7735 = vunpack.c.h.b16 %v6969
        %v7736 = vunpack.c.l.b16 %v6970
        %v7737 = vunpack.c.h.b16 %v6970
        %v7738 = vunpack.c.l.b16 %v6971
        %v7739 = vunpack.c.h.b16 %v6971
        %v7740 = vunpack.c.l.b16 %v6972
        %v7741 = vunpack.c.h.b16 %v6972
        %v7742 = vunpack.c.l.b16 %v6973
        %v7743 = vunpack.c.h.b16 %v6973
        %v7744 = vunpack.c.l.b16 %v6974
        %v7745 = vunpack.c.h.b16 %v6974
        %v7746 = vunpack.c.l.b16 %v6975
        %v7747 = vunpack.c.h.b16 %v6975
        %v7748 = vunpack.c.l.b16 %v6976
        %v7749 = vunpack.c.h.b16 %v6976
        %v7750 = vunpack.c.l.b16 %v6977
        %v7751 = vunpack.c.h.b16 %v6977
        %v7752 = vunpack.c.l.b16 %v6978
        %v7753 = vunpack.c.h.b16 %v6978
        %v7754 = vunpack.c.l.b16 %v6979
        %v7755 = vunpack.c.h.b16 %v6979
        %v7756 = vunpack.c.l.b16 %v6980
        %v7757 = vunpack.c.h.b16 %v6980
        %v7758 = vunpack.c.l.b16 %v6981
        %v7759 = vunpack.c.h.b16 %v6981
        %v7760 = vunpack.c.l.b16 %v6982
        %v7761 = vunpack.c.h.b16 %v6982
        %v7762 = vunpack.c.l.b16 %v6983
        %v7763 = vunpack.c.h.b16 %v6983
        %v7764 = vunpack.c.l.b16 %v6984
        %v7765 = vunpack.c.h.b16 %v6984
        %v7766 = vunpack.c.l.b16 %v6985
        %v7767 = vunpack.c.h.b16 %v6985
        %v7768 = vunpack.c.l.b16 %v6986
        %v7769 = vunpack.c.h.b16 %v6986
        %v7770 = vunpack.c.l.b16 %v6987
        %v7771 = vunpack.c.h.b16 %v6987
        %v7772 = vunpack.c.l.b16 %v6988
        %v7773 = vunpack.c.h.b16 %v6988
        %v7774 = vunpack.c.l.b16 %v6989
        %v7775 = vunpack.c.h.b16 %v6989
        %v7776 = vunpack.c.l.b16 %v6990
        %v7777 = vunpack.c.h.b16 %v6990
        %v7778 = vunpack.c.l.b16 %v6991
        %v7779 = vunpack.c.h.b16 %v6991
        %v7780 = vunpack.c.l.b16 %v6992
        %v7781 = vunpack.c.h.b16 %v6992
        %v7782 = vunpack.c.l.b16 %v6993
        %v7783 = vunpack.c.h.b16 %v6993
        %v7784 = vunpack.c.l.b16 %v6994
        %v7785 = vunpack.c.h.b16 %v6994
        %v7786 = vunpack.c.l.b16 %v6995
        %v7787 = vunpack.c.h.b16 %v6995
        %v7788 = vunpack.c.l.b16 %v6996
        %v7789 = vunpack.c.h.b16 %v6996
        %v7790 = vunpack.c.l.b16 %v6997
        %v7791 = vunpack.c.h.b16 %v6997
        %v7792 = vunpack.c.l.b16 %v6998
        %v7793 = vunpack.c.h.b16 %v6998
        %v7794 = vunpack.c.l.b16 %v6999
        %v7795 = vunpack.c.h.b16 %v6999
        %v7796 = vunpack.c.l.b16 %v7000
        %v7797 = vunpack.c.h.b16 %v7000
        %v7798 = vunpack.c.l.b16 %v7001
        %v7799 = vunpack.c.h.b16 %v7001
        %v7800 = vunpack.c.l.b16 %v7002
        %v7801 = vunpack.c.h.b16 %v7002
        %v7802 = vunpack.c.l.b16 %v7003
        %v7803 = vunpack.c.h.b16 %v7003
        %v7804 = vunpack.c.l.b16 %v7004
        %v7805 = vunpack.c.h.b16 %v7004
        %v7806 = vunpack.c.l.b16 %v7005
        %v7807 = vunpack.c.h.b16 %v7005
        %v7808 = vunpack.c.l.b16 %v7006
        %v7809 = vunpack.c.h.b16 %v7006
        %v7810 = vunpack.c.l.b16 %v7007
        %v7811 = vunpack.c.h.b16 %v7007
        %v7812 = vunpack.c.l.b16 %v7008
        %v7813 = vunpack.c.h.b16 %v7008
        %v7814 = vunpack.c.l.b16 %v7009
        %v7815 = vunpack.c.h.b16 %v7009
        %v7816 = vunpack.c.l.b16 %v7010
        %v7817 = vunpack.c.h.b16 %v7010
        %v7818 = vunpack.c.l.b16 %v7011
        %v7819 = vunpack.c.h.b16 %v7011
        %v7820 = vunpack.c.l.b16 %v7012
        %v7821 = vunpack.c.h.b16 %v7012
        %v7822 = vunpack.c.l.b16 %v7013
        %v7823 = vunpack.c.h.b16 %v7013
        %v7824 = vunpack.c.l.b16 %v7014
        %v7825 = vunpack.c.h.b16 %v7014
        %v7826 = vunpack.c.l.b16 %v7015
        %v7827 = vunpack.c.h.b16 %v7015
        %v7828 = vunpack.c.l.b16 %v7016
        %v7829 = vunpack.c.h.b16 %v7016
        %v7830 = vunpack.c.l.b16 %v7017
        %v7831 = vunpack.c.h.b16 %v7017
        %v7832 = vunpack.c.l.b16 %v7018
        %v7833 = vunpack.c.h.b16 %v7018
        %v7834 = vunpack.c.l.b16 %v7019
        %v7835 = vunpack.c.h.b16 %v7019
        %v7836 = vunpack.c.l.b16 %v7020
        %v7837 = vunpack.c.h.b16 %v7020
        %v7838 = vunpack.c.l.b16 %v7021
        %v7839 = vunpack.c.h.b16 %v7021
        %v7840 = vunpack.c.l.b16 %v7022
        %v7841 = vunpack.c.h.b16 %v7022
        %v7842 = vunpack.c.l.b16 %v7023
        %v7843 = vunpack.c.h.b16 %v7023
        %v7844 = vunpack.c.l.b16 %v7024
        %v7845 = vunpack.c.h.b16 %v7024
        %v7846 = vunpack.c.l.b16 %v7025
        %v7847 = vunpack.c.h.b16 %v7025
        %v7848 = vunpack.c.l.b16 %v7026
        %v7849 = vunpack.c.h.b16 %v7026
        %v7850 = vunpack.c.l.b16 %v7027
        %v7851 = vunpack.c.h.b16 %v7027
        %v7852 = vunpack.c.l.b16 %v7028
        %v7853 = vunpack.c.h.b16 %v7028
        %v7854 = vunpack.c.l.b16 %v7029
        %v7855 = vunpack.c.h.b16 %v7029
        %v7856 = vunpack.c.l.b16 %v7030
        %v7857 = vunpack.c.h.b16 %v7030
        %v7858 = vunpack.c.l.b16 %v7031
        %v7859 = vunpack.c.h.b16 %v7031
        %v7860 = vunpack.c.l.b16 %v7032
        %v7861 = vunpack.c.h.b16 %v7032
        %v7862 = vunpack.c.l.b16 %v7033
        %v7863 = vunpack.c.h.b16 %v7033
        %v7864 = vunpack.c.l.b16 %v7034
        %v7865 = vunpack.c.h.b16 %v7034
        %v7866 = vunpack.c.l.b16 %v7035
        %v7867 = vunpack.c.h.b16 %v7035
        %v7868 = vunpack.c.l.b16 %v7036
        %v7869 = vunpack.c.h.b16 %v7036
        %v7870 = vunpack.c.l.b16 %v7037
        %v7871 = vunpack.c.h.b16 %v7037
        %v7872 = vunpack.c.l.b16 %v7038
        %v7873 = vunpack.c.h.b16 %v7038
        %v7874 = vunpack.c.l.b16 %v7039
        %v7875 = vunpack.c.h.b16 %v7039
        %v7876 = vpack.c.b16 %v7368, %v7364
        %v7877 = vpack.c.b16 %v7369, %v7365
        %v7878 = vpack.c.b16 %v7370, %v7366
        %v7879 = vpack.c.b16 %v7371, %v7367
        %v7880 = vpack.c.b16 %v7376, %v7372
        %v7881 = vpack.c.b16 %v7377, %v7373
        %v7882 = vpack.c.b16 %v7378, %v7374
        %v7883 = vpack.c.b16 %v7379, %v7375
        %v7884 = vpack.c.b16 %v7384, %v7380
        %v7885 = vpack.c.b16 %v7385, %v7381
        %v7886 = vpack.c.b16 %v7386, %v7382
        %v7887 = vpack.c.b16 %v7387, %v7383
        %v7888 = vpack.c.b16 %v7392, %v7388
        %v7889 = vpack.c.b16 %v7393, %v7389
        %v7890 = vpack.c.b16 %v7394, %v7390
        %v7891 = vpack.c.b16 %v7395, %v7391
        %v7892 = vpack.c.b16 %v7400, %v7396
        %v7893 = vpack.c.b16 %v7401, %v7397
        %v7894 = vpack.c.b16 %v7402, %v7398
        %v7895 = vpack.c.b16 %v7403, %v7399
        %v7896 = vpack.c.b16 %v7408, %v7404
        %v7897 = vpack.c.b16 %v7409, %v7405
        %v7898 = vpack.c.b16 %v7410, %v7406
        %v7899 = vpack.c.b16 %v7411, %v7407
        %v7900 = vpack.c.b16 %v7416, %v7412
        %v7901 = vpack.c.b16 %v7417, %v7413
        %v7902 = vpack.c.b16 %v7418, %v7414
        %v7903 = vpack.c.b16 %v7419, %v7415
        %v7904 = vpack.c.b16 %v7424, %v7420
        %v7905 = vpack.c.b16 %v7425, %v7421
        %v7906 = vpack.c.b16 %v7426, %v7422
        %v7907 = vpack.c.b16 %v7427, %v7423
        %v7908 = vpack.c.b16 %v7432, %v7428
        %v7909 = vpack.c.b16 %v7433, %v7429
        %v7910 = vpack.c.b16 %v7434, %v7430
        %v7911 = vpack.c.b16 %v7435, %v7431
        %v7912 = vpack.c.b16 %v7440, %v7436
        %v7913 = vpack.c.b16 %v7441, %v7437
        %v7914 = vpack.c.b16 %v7442, %v7438
        %v7915 = vpack.c.b16 %v7443, %v7439
        %v7916 = vpack.c.b16 %v7448, %v7444
        %v7917 = vpack.c.b16 %v7449, %v7445
        %v7918 = vpack.c.b16 %v7450, %v7446
        %v7919 = vpack.c.b16 %v7451, %v7447
        %v7920 = vpack.c.b16 %v7456, %v7452
        %v7921 = vpack.c.b16 %v7457, %v7453
        %v7922 = vpack.c.b16 %v7458, %v7454
        %v7923 = vpack.c.b16 %v7459, %v7455
        %v7924 = vpack.c.b16 %v7464, %v7460
        %v7925 = vpack.c.b16 %v7465, %v7461
        %v7926 = vpack.c.b16 %v7466, %v7462
        %v7927 = vpack.c.b16 %v7467, %v7463
        %v7928 = vpack.c.b16 %v7472, %v7468
        %v7929 = vpack.c.b16 %v7473, %v7469
        %v7930 = vpack.c.b16 %v7474, %v7470
        %v7931 = vpack.c.b16 %v7475, %v7471
        %v7932 = vpack.c.b16 %v7480, %v7476
        %v7933 = vpack.c.b16 %v7481, %v7477
        %v7934 = vpack.c.b16 %v7482, %v7478
        %v7935 = vpack.c.b16 %v7483, %v7479
        %v7936 = vpack.c.b16 %v7488, %v7484
        %v7937 = vpack.c.b16 %v7489, %v7485
        %v7938 = vpack.c.b16 %v7490, %v7486
        %v7939 = vpack.c.b16 %v7491, %v7487
        %v7940 = vpack.c.b16 %v7496, %v7492
        %v7941 = vpack.c.b16 %v7497, %v7493
        %v7942 = vpack.c.b16 %v7498, %v7494
        %v7943 = vpack.c.b16 %v7499, %v7495
        %v7944 = vpack.c.b16 %v7504, %v7500
        %v7945 = vpack.c.b16 %v7505, %v7501
        %v7946 = vpack.c.b16 %v7506, %v7502
        %v7947 = vpack.c.b16 %v7507, %v7503
        %v7948 = vpack.c.b16 %v7512, %v7508
        %v7949 = vpack.c.b16 %v7513, %v7509
        %v7950 = vpack.c.b16 %v7514, %v7510
        %v7951 = vpack.c.b16 %v7515, %v7511
        %v7952 = vpack.c.b16 %v7520, %v7516
        %v7953 = vpack.c.b16 %v7521, %v7517
        %v7954 = vpack.c.b16 %v7522, %v7518
        %v7955 = vpack.c.b16 %v7523, %v7519
        %v7956 = vpack.c.b16 %v7528, %v7524
        %v7957 = vpack.c.b16 %v7529, %v7525
        %v7958 = vpack.c.b16 %v7530, %v7526
        %v7959 = vpack.c.b16 %v7531, %v7527
        %v7960 = vpack.c.b16 %v7536, %v7532
        %v7961 = vpack.c.b16 %v7537, %v7533
        %v7962 = vpack.c.b16 %v7538, %v7534
        %v7963 = vpack.c.b16 %v7539, %v7535
        %v7964 = vpack.c.b16 %v7544, %v7540
        %v7965 = vpack.c.b16 %v7545, %v7541
        %v7966 = vpack.c.b16 %v7546, %v7542
        %v7967 = vpack.c.b16 %v7547, %v7543
        %v7968 = vpack.c.b16 %v7552, %v7548
        %v7969 = vpack.c.b16 %v7553, %v7549
        %v7970 = vpack.c.b16 %v7554, %v7550
        %v7971 = vpack.c.b16 %v7555, %v7551
        %v7972 = vpack.c.b16 %v7560, %v7556
        %v7973 = vpack.c.b16 %v7561, %v7557
        %v7974 = vpack.c.b16 %v7562, %v7558
        %v7975 = vpack.c.b16 %v7563, %v7559
        %v7976 = vpack.c.b16 %v7568, %v7564
        %v7977 = vpack.c.b16 %v7569, %v7565
        %v7978 = vpack.c.b16 %v7570, %v7566
        %v7979 = vpack.c.b16 %v7571, %v7567
        %v7980 = vpack.c.b16 %v7576, %v7572
        %v7981 = vpack.c.b16 %v7577, %v7573
        %v7982 = vpack.c.b16 %v7578, %v7574
        %v7983 = vpack.c.b16 %v7579, %v7575
        %v7984 = vpack.c.b16 %v7584, %v7580
        %v7985 = vpack.c.b16 %v7585, %v7581
        %v7986 = vpack.c.b16 %v7586, %v7582
        %v7987 = vpack.c.b16 %v7587, %v7583
        %v7988 = vpack.c.b16 %v7592, %v7588
        %v7989 = vpack.c.b16 %v7593, %v7589
        %v7990 = vpack.c.b16 %v7594, %v7590
        %v7991 = vpack.c.b16 %v7595, %v7591
        %v7992 = vpack.c.b16 %v7600, %v7596
        %v7993 = vpack.c.b16 %v7601, %v7597
        %v7994 = vpack.c.b16 %v7602, %v7598
        %v7995 = vpack.c.b16 %v7603, %v7599
        %v7996 = vpack.c.b16 %v7608, %v7604
        %v7997 = vpack.c.b16 %v7609, %v7605
        %v7998 = vpack.c.b16 %v7610, %v7606
        %v7999 = vpack.c.b16 %v7611, %v7607
        %v8000 = vpack.c.b16 %v7616, %v7612
        %v8001 = vpack.c.b16 %v7617, %v7613
        %v8002 = vpack.c.b16 %v7618, %v7614
        %v8003 = vpack.c.b16 %v7619, %v7615
        %v8004 = vpack.c.b16 %v7624, %v7620
        %v8005 = vpack.c.b16 %v7625, %v7621
        %v8006 = vpack.c.b16 %v7626, %v7622
        %v8007 = vpack.c.b16 %v7627, %v7623
        %v8008 = vpack.c.b16 %v7632, %v7628
        %v8009 = vpack.c.b16 %v7633, %v7629
        %v8010 = vpack.c.b16 %v7634, %v7630
        %v8011 = vpack.c.b16 %v7635, %v7631
        %v8012 = vpack.c.b16 %v7640, %v7636
        %v8013 = vpack.c.b16 %v7641, %v7637
        %v8014 = vpack.c.b16 %v7642, %v7638
        %v8015 = vpack.c.b16 %v7643, %v7639
        %v8016 = vpack.c.b16 %v7648, %v7644
        %v8017 = vpack.c.b16 %v7649, %v7645
        %v8018 = vpack.c.b16 %v7650, %v7646
        %v8019 = vpack.c.b16 %v7651, %v7647
        %v8020 = vpack.c.b16 %v7656, %v7652
        %v8021 = vpack.c.b16 %v7657, %v7653
        %v8022 = vpack.c.b16 %v7658, %v7654
        %v8023 = vpack.c.b16 %v7659, %v7655
        %v8024 = vpack.c.b16 %v7664, %v7660
        %v8025 = vpack.c.b16 %v7665, %v7661
        %v8026 = vpack.c.b16 %v7666, %v7662
        %v8027 = vpack.c.b16 %v7667, %v7663
        %v8028 = vpack.c.b16 %v7672, %v7668
        %v8029 = vpack.c.b16 %v7673, %v7669
        %v8030 = vpack.c.b16 %v7674, %v7670
        %v8031 = vpack.c.b16 %v7675, %v7671
        %v8032 = vpack.c.b16 %v7680, %v7676
        %v8033 = vpack.c.b16 %v7681, %v7677
        %v8034 = vpack.c.b16 %v7682, %v7678
        %v8035 = vpack.c.b16 %v7683, %v7679
        %v8036 = vpack.c.b16 %v7688, %v7684
        %v8037 = vpack.c.b16 %v7689, %v7685
        %v8038 = vpack.c.b16 %v7690, %v7686
        %v8039 = vpack.c.b16 %v7691, %v7687
        %v8040 = vpack.c.b16 %v7696, %v7692
        %v8041 = vpack.c.b16 %v7697, %v7693
        %v8042 = vpack.c.b16 %v7698, %v7694
        %v8043 = vpack.c.b16 %v7699, %v7695
        %v8044 = vpack.c.b16 %v7704, %v7700
        %v8045 = vpack.c.b16 %v7705, %v7701
        %v8046 = vpack.c.b16 %v7706, %v7702
        %v8047 = vpack.c.b16 %v7707, %v7703
        %v8048 = vpack.c.b16 %v7712, %v7708
        %v8049 = vpack.c.b16 %v7713, %v7709
        %v8050 = vpack.c.b16 %v7714, %v7710
        %v8051 = vpack.c.b16 %v7715, %v7711
        %v8052 = vpack.c.b16 %v7720, %v7716
        %v8053 = vpack.c.b16 %v7721, %v7717
        %v8054 = vpack.c.b16 %v7722, %v7718
        %v8055 = vpack.c.b16 %v7723, %v7719
        %v8056 = vpack.c.b16 %v7728, %v7724
        %v8057 = vpack.c.b16 %v7729, %v7725
        %v8058 = vpack.c.b16 %v7730, %v7726
        %v8059 = vpack.c.b16 %v7731, %v7727
        %v8060 = vpack.c.b16 %v7736, %v7732
        %v8061 = vpack.c.b16 %v7737, %v7733
        %v8062 = vpack.c.b16 %v7738, %v7734
        %v8063 = vpack.c.b16 %v7739, %v7735
        %v8064 = vpack.c.b16 %v7744, %v7740
        %v8065 = vpack.c.b16 %v7745, %v7741
        %v8066 = vpack.c.b16 %v7746, %v7742
        %v8067 = vpack.c.b16 %v7747, %v7743
        %v8068 = vpack.c.b16 %v7752, %v7748
        %v8069 = vpack.c.b16 %v7753, %v7749
        %v8070 = vpack.c.b16 %v7754, %v7750
        %v8071 = vpack.c.b16 %v7755, %v7751
        %v8072 = vpack.c.b16 %v7760, %v7756
        %v8073 = vpack.c.b16 %v7761, %v7757
        %v8074 = vpack.c.b16 %v7762, %v7758
        %v8075 = vpack.c.b16 %v7763, %v7759
        %v8076 = vpack.c.b16 %v7768, %v7764
        %v8077 = vpack.c.b16 %v7769, %v7765
        %v8078 = vpack.c.b16 %v7770, %v7766
        %v8079 = vpack.c.b16 %v7771, %v7767
        %v8080 = vpack.c.b16 %v7776, %v7772
        %v8081 = vpack.c.b16 %v7777, %v7773
        %v8082 = vpack.c.b16 %v7778, %v7774
        %v8083 = vpack.c.b16 %v7779, %v7775
        %v8084 = vpack.c.b16 %v7784, %v7780
        %v8085 = vpack.c.b16 %v7785, %v7781
        %v8086 = vpack.c.b16 %v7786, %v7782
        %v8087 = vpack.c.b16 %v7787, %v7783
        %v8088 = vpack.c.b16 %v7792, %v7788
        %v8089 = vpack.c.b16 %v7793, %v7789
        %v8090 = vpack.c.b16 %v7794, %v7790
        %v8091 = vpack.c.b16 %v7795, %v7791
        %v8092 = vpack.c.b16 %v7800, %v7796
        %v8093 = vpack.c.b16 %v7801, %v7797
        %v8094 = vpack.c.b16 %v7802, %v7798
        %v8095 = vpack.c.b16 %v7803, %v7799
        %v8096 = vpack.c.b16 %v7808, %v7804
        %v8097 = vpack.c.b16 %v7809, %v7805
        %v8098 = vpack.c.b16 %v7810, %v7806
        %v8099 = vpack.c.b16 %v7811, %v7807
        %v8100 = vpack.c.b16 %v7816, %v7812
        %v8101 = vpack.c.b16 %v7817, %v7813
        %v8102 = vpack.c.b16 %v7818, %v7814
        %v8103 = vpack.c.b16 %v7819, %v7815
        %v8104 = vpack.c.b16 %v7824, %v7820
        %v8105 = vpack.c.b16 %v7825, %v7821
        %v8106 = vpack.c.b16 %v7826, %v7822
        %v8107 = vpack.c.b16 %v7827, %v7823
        %v8108 = vpack.c.b16 %v7832, %v7828
        %v8109 = vpack.c.b16 %v7833, %v7829
        %v8110 = vpack.c.b16 %v7834, %v7830
        %v8111 = vpack.c.b16 %v7835, %v7831
        %v8112 = vpack.c.b16 %v7840, %v7836
        %v8113 = vpack.c.b16 %v7841, %v7837
        %v8114 = vpack.c.b16 %v7842, %v7838
        %v8115 = vpack.c.b16 %v7843, %v7839
        %v8116 = vpack.c.b16 %v7848, %v7844
        %v8117 = vpack.c.b16 %v7849, %v7845
        %v8118 = vpack.c.b16 %v7850, %v7846
        %v8119 = vpack.c.b16 %v7851, %v7847
        %v8120 = vpack.c.b16 %v7856, %v7852
        %v8121 = vpack.c.b16 %v7857, %v7853
        %v8122 = vpack.c.b16 %v7858, %v7854
        %v8123 = vpack.c.b16 %v7859, %v7855
        %v8124 = vpack.c.b16 %v7864, %v7860
        %v8125 = vpack.c.b16 %v7865, %v7861
        %v8126 = vpack.c.b16 %v7866, %v7862
        %v8127 = vpack.c.b16 %v7867, %v7863
        %v8128 = vpack.c.b16 %v7872, %v7868
        %v8129 = vpack.c.b16 %v7873, %v7869
        %v8130 = vpack.c.b16 %v7874, %v7870
        %v8131 = vpack.c.b16 %v7875, %v7871
        %8388 = vmatprep.subr.bf16.mxu0 %v7877
        %8389 = vmatpush1.bf16.msra.mxu0 %v7876
        %8390 = vmatprep.subr.bf16.mxu0 %v7881
        %8391 = vmatpush1.bf16.msra.mxu0 %v7880
        %8392 = vmatprep.subr.bf16.mxu0 %v7885
        %8393 = vmatpush1.bf16.msra.mxu0 %v7884
        %8394 = vmatprep.subr.bf16.mxu0 %v7889
        %8395 = vmatpush1.bf16.msra.mxu0 %v7888
        %8396 = vmatprep.subr.bf16.mxu0 %v7893
        %8397 = vmatpush1.bf16.msra.mxu0 %v7892
        %8398 = vmatprep.subr.bf16.mxu0 %v7897
        %8399 = vmatpush1.bf16.msra.mxu0 %v7896
        %8400 = vmatprep.subr.bf16.mxu0 %v7901
        %8401 = vmatpush1.bf16.msra.mxu0 %v7900
        %8402 = vmatprep.subr.bf16.mxu0 %v7905
        %8403 = vmatpush1.bf16.msra.mxu0 %v7904
        %8404 = vmatprep.subr.bf16.mxu0 %v7909
        %8405 = vmatpush1.bf16.msra.mxu0 %v7908
        %8406 = vmatprep.subr.bf16.mxu0 %v7913
        %8407 = vmatpush1.bf16.msra.mxu0 %v7912
        %8408 = vmatprep.subr.bf16.mxu0 %v7917
        %8409 = vmatpush1.bf16.msra.mxu0 %v7916
        %8410 = vmatprep.subr.bf16.mxu0 %v7921
        %8411 = vmatpush1.bf16.msra.mxu0 %v7920
        %8412 = vmatprep.subr.bf16.mxu0 %v7925
        %8413 = vmatpush1.bf16.msra.mxu0 %v7924
        %8414 = vmatprep.subr.bf16.mxu0 %v7929
        %8415 = vmatpush1.bf16.msra.mxu0 %v7928
        %8416 = vmatprep.subr.bf16.mxu0 %v7933
        %8417 = vmatpush1.bf16.msra.mxu0 %v7932
        %8418 = vmatprep.subr.bf16.mxu0 %v7937
        %8419 = vmatpush1.bf16.msra.mxu0 %v7936
        %8420 = vmatprep.mubr.bf16.mxu0 %v7077
        %8421 = vmatmul.mubr.bf16.gmra.mrb[0].mxu0 %v7076
        %v8422 = vpop.f32.mrb[0].mxu0
        %v8423 = vadd.f32 0.0, %v8422
        %v8424 = vpop.f32.mrb[0].mxu0
        %v8425 = vadd.f32 0.0, %v8424
        %v8426 = vpop.f32.mrb[0].mxu0
        %v8427 = vadd.f32 0.0, %v8426
        %v8428 = vpop.f32.mrb[0].mxu0
        %v8429 = vadd.f32 0.0, %v8428
        %8430 = vmatprep.mubr.bf16.mxu0 %v7085
        %8431 = vmatmul.mubr.bf16.gmra.mrb[0].mxu0 %v7084
        %v8432 = vpop.f32.mrb[0].mxu0
        %v8433 = vadd.f32 0.0, %v8432
        %v8434 = vpop.f32.mrb[0].mxu0
        %v8435 = vadd.f32 0.0, %v8434
        %v8436 = vpop.f32.mrb[0].mxu0
        %v8437 = vpop.f32.mrb[0].mxu0
        %8438 = vdwg.mxu0
        %8439 = vmatprep.subr.bf16.mxu0 %v7941
        %8440 = vmatpush1.bf16.msra.mxu0 %v7940
        %8441 = vmatprep.subr.bf16.mxu0 %v7945
        %8442 = vmatpush1.bf16.msra.mxu0 %v7944
        %8443 = vmatprep.subr.bf16.mxu0 %v7949
        %8444 = vmatpush1.bf16.msra.mxu0 %v7948
        %8445 = vmatprep.subr.bf16.mxu0 %v7953
        %8446 = vmatpush1.bf16.msra.mxu0 %v7952
        %8447 = vmatprep.subr.bf16.mxu0 %v7957
        %8448 = vmatpush1.bf16.msra.mxu0 %v7956
        %8449 = vmatprep.subr.bf16.mxu0 %v7961
        %8450 = vmatpush1.bf16.msra.mxu0 %v7960
        %8451 = vmatprep.subr.bf16.mxu0 %v7965
        %8452 = vmatpush1.bf16.msra.mxu0 %v7964
        %8453 = vmatprep.subr.bf16.mxu0 %v7969
        %8454 = vmatpush1.bf16.msra.mxu0 %v7968
        %8455 = vmatprep.subr.bf16.mxu0 %v7973
        %8456 = vmatpush1.bf16.msra.mxu0 %v7972
        %8457 = vmatprep.subr.bf16.mxu0 %v7977
        %8458 = vmatpush1.bf16.msra.mxu0 %v7976
        %8459 = vmatprep.subr.bf16.mxu0 %v7981
        %8460 = vmatpush1.bf16.msra.mxu0 %v7980
        %8461 = vmatprep.subr.bf16.mxu0 %v7985
        %8462 = vmatpush1.bf16.msra.mxu0 %v7984
        %8463 = vmatprep.subr.bf16.mxu0 %v7989
        %8464 = vmatpush1.bf16.msra.mxu0 %v7988
        %8465 = vmatprep.subr.bf16.mxu0 %v7993
        %8466 = vmatpush1.bf16.msra.mxu0 %v7992
        %8467 = vmatprep.subr.bf16.mxu0 %v7997
        %8468 = vmatpush1.bf16.msra.mxu0 %v7996
        %8469 = vmatprep.subr.bf16.mxu0 %v8001
        %8470 = vmatpush1.bf16.msra.mxu0 %v8000
        %8471 = vmatprep.mubr.bf16.mxu0 %v7079
        %8472 = vmatmul.mubr.bf16.gmra.mrb[0].mxu0 %v7078
        %v8473 = vpop.f32.mrb[0].mxu0
        %v8474 = vadd.f32 %v8423, %v8473
        %v8475 = vpop.f32.mrb[0].mxu0
        %v8476 = vadd.f32 %v8425, %v8475
        %v8477 = vpop.f32.mrb[0].mxu0
        %v8478 = vadd.f32 %v8427, %v8477
        %v8479 = vpop.f32.mrb[0].mxu0
        %v8480 = vadd.f32 %v8429, %v8479
        %8481 = vmatprep.mubr.bf16.mxu0 %v7087
        %8482 = vmatmul.mubr.bf16.gmra.mrb[0].mxu0 %v7086
        %v8483 = vpop.f32.mrb[0].mxu0
        %v8484 = vadd.f32 %v8433, %v8483
        %v8485 = vpop.f32.mrb[0].mxu0
        %v8486 = vadd.f32 %v8435, %v8485
        %v8487 = vpop.f32.mrb[0].mxu0
        %v8488 = vpop.f32.mrb[0].mxu0
        %8489 = vdwg.mxu0
        %8490 = vmatprep.subr.bf16.mxu0 %v8005
        %8491 = vmatpush1.bf16.msra.mxu0 %v8004
        %8492 = vmatprep.subr.bf16.mxu0 %v8009
        %8493 = vmatpush1.bf16.msra.mxu0 %v8008
        %8494 = vmatprep.subr.bf16.mxu0 %v8013
        %8495 = vmatpush1.bf16.msra.mxu0 %v8012
        %8496 = vmatprep.subr.bf16.mxu0 %v8017
        %8497 = vmatpush1.bf16.msra.mxu0 %v8016
        %8498 = vmatprep.subr.bf16.mxu0 %v8021
        %8499 = vmatpush1.bf16.msra.mxu0 %v8020
        %8500 = vmatprep.subr.bf16.mxu0 %v8025
        %8501 = vmatpush1.bf16.msra.mxu0 %v8024
        %8502 = vmatprep.subr.bf16.mxu0 %v8029
        %8503 = vmatpush1.bf16.msra.mxu0 %v8028
        %8504 = vmatprep.subr.bf16.mxu0 %v8033
        %8505 = vmatpush1.bf16.msra.mxu0 %v8032
        %8506 = vmatprep.subr.bf16.mxu0 %v8037
        %8507 = vmatpush1.bf16.msra.mxu0 %v8036
        %8508 = vmatprep.subr.bf16.mxu0 %v8041
        %8509 = vmatpush1.bf16.msra.mxu0 %v8040
        %8510 = vmatprep.subr.bf16.mxu0 %v8045
        %8511 = vmatpush1.bf16.msra.mxu0 %v8044
        %8512 = vmatprep.subr.bf16.mxu0 %v8049
        %8513 = vmatpush1.bf16.msra.mxu0 %v8048
        %8514 = vmatprep.subr.bf16.mxu0 %v8053
        %8515 = vmatpush1.bf16.msra.mxu0 %v8052
        %8516 = vmatprep.subr.bf16.mxu0 %v8057
        %8517 = vmatpush1.bf16.msra.mxu0 %v8056
        %8518 = vmatprep.subr.bf16.mxu0 %v8061
        %8519 = vmatpush1.bf16.msra.mxu0 %v8060
        %8520 = vmatprep.subr.bf16.mxu0 %v8065
        %8521 = vmatpush1.bf16.msra.mxu0 %v8064
        %8522 = vmatprep.mubr.bf16.mxu0 %v7081
        %8523 = vmatmul.mubr.bf16.gmra.mrb[0].mxu0 %v7080
        %v8524 = vpop.f32.mrb[0].mxu0
        %v8525 = vadd.f32 %v8474, %v8524
        %v8526 = vpop.f32.mrb[0].mxu0
        %v8527 = vadd.f32 %v8476, %v8526
        %v8528 = vpop.f32.mrb[0].mxu0
        %v8529 = vadd.f32 %v8478, %v8528
        %v8530 = vpop.f32.mrb[0].mxu0
        %v8531 = vadd.f32 %v8480, %v8530
        %8532 = vmatprep.mubr.bf16.mxu0 %v7089
        %8533 = vmatmul.mubr.bf16.gmra.mrb[0].mxu0 %v7088
        %v8534 = vpop.f32.mrb[0].mxu0
        %v8535 = vadd.f32 %v8484, %v8534
        %v8536 = vpop.f32.mrb[0].mxu0
        %v8537 = vadd.f32 %v8486, %v8536
        %v8538 = vpop.f32.mrb[0].mxu0
        %v8539 = vpop.f32.mrb[0].mxu0
        %8540 = vdwg.mxu0
        %8541 = vmatprep.subr.bf16.mxu0 %v8069
        %8542 = vmatpush1.bf16.msra.mxu0 %v8068
        %8543 = vmatprep.subr.bf16.mxu0 %v8073
        %8544 = vmatpush1.bf16.msra.mxu0 %v8072
        %8545 = vmatprep.subr.bf16.mxu0 %v8077
        %8546 = vmatpush1.bf16.msra.mxu0 %v8076
        %8547 = vmatprep.subr.bf16.mxu0 %v8081
        %8548 = vmatpush1.bf16.msra.mxu0 %v8080
        %8549 = vmatprep.subr.bf16.mxu0 %v8085
        %8550 = vmatpush1.bf16.msra.mxu0 %v8084
        %8551 = vmatprep.subr.bf16.mxu0 %v8089
        %8552 = vmatpush1.bf16.msra.mxu0 %v8088
        %8553 = vmatprep.subr.bf16.mxu0 %v8093
        %8554 = vmatpush1.bf16.msra.mxu0 %v8092
        %8555 = vmatprep.subr.bf16.mxu0 %v8097
        %8556 = vmatpush1.bf16.msra.mxu0 %v8096
        %8557 = vmatprep.subr.bf16.mxu0 %v8101
        %8558 = vmatpush1.bf16.msra.mxu0 %v8100
        %8559 = vmatprep.subr.bf16.mxu0 %v8105
        %8560 = vmatpush1.bf16.msra.mxu0 %v8104
        %8561 = vmatprep.subr.bf16.mxu0 %v8109
        %8562 = vmatpush1.bf16.msra.mxu0 %v8108
        %8563 = vmatprep.subr.bf16.mxu0 %v8113
        %8564 = vmatpush1.bf16.msra.mxu0 %v8112
        %8565 = vmatprep.subr.bf16.mxu0 %v8117
        %8566 = vmatpush1.bf16.msra.mxu0 %v8116
        %8567 = vmatprep.subr.bf16.mxu0 %v8121
        %8568 = vmatpush1.bf16.msra.mxu0 %v8120
        %8569 = vmatprep.subr.bf16.mxu0 %v8125
        %8570 = vmatpush1.bf16.msra.mxu0 %v8124
        %8571 = vmatprep.subr.bf16.mxu0 %v8129
        %8572 = vmatpush1.bf16.msra.mxu0 %v8128
        %8573 = vmatprep.mubr.bf16.mxu0 %v7083
        %8574 = vmatmul.mubr.bf16.gmra.mrb[0].mxu0 %v7082
        %v8575 = vpop.f32.mrb[0].mxu0
        %v8576 = vadd.f32 %v8525, %v8575
        %v8577 = vpop.f32.mrb[0].mxu0
        %v8578 = vadd.f32 %v8527, %v8577
        %v8579 = vpop.f32.mrb[0].mxu0
        %v8580 = vadd.f32 %v8529, %v8579
        %v8581 = vpop.f32.mrb[0].mxu0
        %v8582 = vadd.f32 %v8531, %v8581
        %8583 = vmatprep.mubr.bf16.mxu0 %v7091
        %8584 = vmatmul.mubr.bf16.gmra.mrb[0].mxu0 %v7090
        %v8585 = vpop.f32.mrb[0].mxu0
        %v8586 = vadd.f32 %v8535, %v8585
        %v8587 = vpop.f32.mrb[0].mxu0
        %v8588 = vadd.f32 %v8537, %v8587
        %v8589 = vpop.f32.mrb[0].mxu0
        %v8590 = vpop.f32.mrb[0].mxu0
        %8591 = vdwg.mxu0
        %8592 = vmatprep.subr.bf16.mxu0 %v7879
        %8593 = vmatpush1.bf16.msra.mxu0 %v7878
        %8594 = vmatprep.subr.bf16.mxu0 %v7883
        %8595 = vmatpush1.bf16.msra.mxu0 %v7882
        %8596 = vmatprep.subr.bf16.mxu0 %v7887
        %8597 = vmatpush1.bf16.msra.mxu0 %v7886
        %8598 = vmatprep.subr.bf16.mxu0 %v7891
        %8599 = vmatpush1.bf16.msra.mxu0 %v7890
        %8600 = vmatprep.subr.bf16.mxu0 %v7895
        %8601 = vmatpush1.bf16.msra.mxu0 %v7894
        %8602 = vmatprep.subr.bf16.mxu0 %v7899
        %8603 = vmatpush1.bf16.msra.mxu0 %v7898
        %8604 = vmatprep.subr.bf16.mxu0 %v7903
        %8605 = vmatpush1.bf16.msra.mxu0 %v7902
        %8606 = vmatprep.subr.bf16.mxu0 %v7907
        %8607 = vmatpush1.bf16.msra.mxu0 %v7906
        %8608 = vmatprep.subr.bf16.mxu0 %v7911
        %8609 = vmatpush1.bf16.msra.mxu0 %v7910
        %8610 = vmatprep.subr.bf16.mxu0 %v7915
        %8611 = vmatpush1.bf16.msra.mxu0 %v7914
        %8612 = vmatprep.subr.bf16.mxu0 %v7919
        %8613 = vmatpush1.bf16.msra.mxu0 %v7918
        %8614 = vmatprep.subr.bf16.mxu0 %v7923
        %8615 = vmatpush1.bf16.msra.mxu0 %v7922
        %8616 = vmatprep.subr.bf16.mxu0 %v7927
        %8617 = vmatpush1.bf16.msra.mxu0 %v7926
        %8618 = vmatprep.subr.bf16.mxu0 %v7931
        %8619 = vmatpush1.bf16.msra.mxu0 %v7930
        %8620 = vmatprep.subr.bf16.mxu0 %v7935
        %8621 = vmatpush1.bf16.msra.mxu0 %v7934
        %8622 = vmatprep.subr.bf16.mxu0 %v7939
        %8623 = vmatpush1.bf16.msra.mxu0 %v7938
        %8624 = vmatprep.mubr.bf16.mxu0 %v7077
        %8625 = vmatmul.mubr.bf16.gmra.mrb[0].mxu0 %v7076
        %v8626 = vpop.f32.mrb[0].mxu0
        %v8627 = vadd.f32 0.0, %v8626
        %v8628 = vpop.f32.mrb[0].mxu0
        %v8629 = vadd.f32 0.0, %v8628
        %v8630 = vpop.f32.mrb[0].mxu0
        %v8631 = vadd.f32 0.0, %v8630
        %v8632 = vpop.f32.mrb[0].mxu0
        %v8633 = vadd.f32 0.0, %v8632
        %8634 = vmatprep.mubr.bf16.mxu0 %v7085
        %8635 = vmatmul.mubr.bf16.gmra.mrb[0].mxu0 %v7084
        %v8636 = vpop.f32.mrb[0].mxu0
        %v8637 = vadd.f32 0.0, %v8636
        %v8638 = vpop.f32.mrb[0].mxu0
        %v8639 = vadd.f32 0.0, %v8638
        %v8640 = vpop.f32.mrb[0].mxu0
        %v8641 = vpop.f32.mrb[0].mxu0
        %8642 = vdwg.mxu0
        %8643 = vmatprep.subr.bf16.mxu0 %v7943
        %8644 = vmatpush1.bf16.msra.mxu0 %v7942
        %8645 = vmatprep.subr.bf16.mxu0 %v7947
        %8646 = vmatpush1.bf16.msra.mxu0 %v7946
        %8647 = vmatprep.subr.bf16.mxu0 %v7951
        %8648 = vmatpush1.bf16.msra.mxu0 %v7950
        %8649 = vmatprep.subr.bf16.mxu0 %v7955
        %8650 = vmatpush1.bf16.msra.mxu0 %v7954
        %8651 = vmatprep.subr.bf16.mxu0 %v7959
        %8652 = vmatpush1.bf16.msra.mxu0 %v7958
        %8653 = vmatprep.subr.bf16.mxu0 %v7963
        %8654 = vmatpush1.bf16.msra.mxu0 %v7962
        %8655 = vmatprep.subr.bf16.mxu0 %v7967
        %8656 = vmatpush1.bf16.msra.mxu0 %v7966
        %8657 = vmatprep.subr.bf16.mxu0 %v7971
        %8658 = vmatpush1.bf16.msra.mxu0 %v7970
        %8659 = vmatprep.subr.bf16.mxu0 %v7975
        %8660 = vmatpush1.bf16.msra.mxu0 %v7974
        %8661 = vmatprep.subr.bf16.mxu0 %v7979
        %8662 = vmatpush1.bf16.msra.mxu0 %v7978
        %8663 = vmatprep.subr.bf16.mxu0 %v7983
        %8664 = vmatpush1.bf16.msra.mxu0 %v7982
        %8665 = vmatprep.subr.bf16.mxu0 %v7987
        %8666 = vmatpush1.bf16.msra.mxu0 %v7986
        %8667 = vmatprep.subr.bf16.mxu0 %v7991
        %8668 = vmatpush1.bf16.msra.mxu0 %v7990
        %8669 = vmatprep.subr.bf16.mxu0 %v7995
        %8670 = vmatpush1.bf16.msra.mxu0 %v7994
        %8671 = vmatprep.subr.bf16.mxu0 %v7999
        %8672 = vmatpush1.bf16.msra.mxu0 %v7998
        %8673 = vmatprep.subr.bf16.mxu0 %v8003
        %8674 = vmatpush1.bf16.msra.mxu0 %v8002
        %8675 = vmatprep.mubr.bf16.mxu0 %v7079
        %8676 = vmatmul.mubr.bf16.gmra.mrb[0].mxu0 %v7078
        %v8677 = vpop.f32.mrb[0].mxu0
        %v8678 = vadd.f32 %v8627, %v8677
        %v8679 = vpop.f32.mrb[0].mxu0
        %v8680 = vadd.f32 %v8629, %v8679
        %v8681 = vpop.f32.mrb[0].mxu0
        %v8682 = vadd.f32 %v8631, %v8681
        %v8683 = vpop.f32.mrb[0].mxu0
        %v8684 = vadd.f32 %v8633, %v8683
        %8685 = vmatprep.mubr.bf16.mxu0 %v7087
        %8686 = vmatmul.mubr.bf16.gmra.mrb[0].mxu0 %v7086
        %v8687 = vpop.f32.mrb[0].mxu0
        %v8688 = vadd.f32 %v8637, %v8687
        %v8689 = vpop.f32.mrb[0].mxu0
        %v8690 = vadd.f32 %v8639, %v8689
        %v8691 = vpop.f32.mrb[0].mxu0
        %v8692 = vpop.f32.mrb[0].mxu0
        %8693 = vdwg.mxu0
        %8694 = vmatprep.subr.bf16.mxu0 %v8007
        %8695 = vmatpush1.bf16.msra.mxu0 %v8006
        %8696 = vmatprep.subr.bf16.mxu0 %v8011
        %8697 = vmatpush1.bf16.msra.mxu0 %v8010
        %8698 = vmatprep.subr.bf16.mxu0 %v8015
        %8699 = vmatpush1.bf16.msra.mxu0 %v8014
        %8700 = vmatprep.subr.bf16.mxu0 %v8019
        %8701 = vmatpush1.bf16.msra.mxu0 %v8018
        %8702 = vmatprep.subr.bf16.mxu0 %v8023
        %8703 = vmatpush1.bf16.msra.mxu0 %v8022
        %8704 = vmatprep.subr.bf16.mxu0 %v8027
        %8705 = vmatpush1.bf16.msra.mxu0 %v8026
        %8706 = vmatprep.subr.bf16.mxu0 %v8031
        %8707 = vmatpush1.bf16.msra.mxu0 %v8030
        %8708 = vmatprep.subr.bf16.mxu0 %v8035
        %8709 = vmatpush1.bf16.msra.mxu0 %v8034
        %8710 = vmatprep.subr.bf16.mxu0 %v8039
        %8711 = vmatpush1.bf16.msra.mxu0 %v8038
        %8712 = vmatprep.subr.bf16.mxu0 %v8043
        %8713 = vmatpush1.bf16.msra.mxu0 %v8042
        %8714 = vmatprep.subr.bf16.mxu0 %v8047
        %8715 = vmatpush1.bf16.msra.mxu0 %v8046
        %8716 = vmatprep.subr.bf16.mxu0 %v8051
        %8717 = vmatpush1.bf16.msra.mxu0 %v8050
        %8718 = vmatprep.subr.bf16.mxu0 %v8055
        %8719 = vmatpush1.bf16.msra.mxu0 %v8054
        %8720 = vmatprep.subr.bf16.mxu0 %v8059
        %8721 = vmatpush1.bf16.msra.mxu0 %v8058
        %8722 = vmatprep.subr.bf16.mxu0 %v8063
        %8723 = vmatpush1.bf16.msra.mxu0 %v8062
        %8724 = vmatprep.subr.bf16.mxu0 %v8067
        %8725 = vmatpush1.bf16.msra.mxu0 %v8066
        %8726 = vmatprep.mubr.bf16.mxu0 %v7081
        %8727 = vmatmul.mubr.bf16.gmra.mrb[0].mxu0 %v7080
        %v8728 = vpop.f32.mrb[0].mxu0
        %v8729 = vadd.f32 %v8678, %v8728
        %v8730 = vpop.f32.mrb[0].mxu0
        %v8731 = vadd.f32 %v8680, %v8730
        %v8732 = vpop.f32.mrb[0].mxu0
        %v8733 = vadd.f32 %v8682, %v8732
        %v8734 = vpop.f32.mrb[0].mxu0
        %v8735 = vadd.f32 %v8684, %v8734
        %8736 = vmatprep.mubr.bf16.mxu0 %v7089
        %8737 = vmatmul.mubr.bf16.gmra.mrb[0].mxu0 %v7088
        %v8738 = vpop.f32.mrb[0].mxu0
        %v8739 = vadd.f32 %v8688, %v8738
        %v8740 = vpop.f32.mrb[0].mxu0
        %v8741 = vadd.f32 %v8690, %v8740
        %v8742 = vpop.f32.mrb[0].mxu0
        %v8743 = vpop.f32.mrb[0].mxu0
        %8744 = vdwg.mxu0
        %8745 = vmatprep.subr.bf16.mxu0 %v8071
        %8746 = vmatpush1.bf16.msra.mxu0 %v8070
        %8747 = vmatprep.subr.bf16.mxu0 %v8075
        %8748 = vmatpush1.bf16.msra.mxu0 %v8074
        %8749 = vmatprep.subr.bf16.mxu0 %v8079
        %8750 = vmatpush1.bf16.msra.mxu0 %v8078
        %8751 = vmatprep.subr.bf16.mxu0 %v8083
        %8752 = vmatpush1.bf16.msra.mxu0 %v8082
        %8753 = vmatprep.subr.bf16.mxu0 %v8087
        %8754 = vmatpush1.bf16.msra.mxu0 %v8086
        %8755 = vmatprep.subr.bf16.mxu0 %v8091
        %8756 = vmatpush1.bf16.msra.mxu0 %v8090
        %8757 = vmatprep.subr.bf16.mxu0 %v8095
        %8758 = vmatpush1.bf16.msra.mxu0 %v8094
        %8759 = vmatprep.subr.bf16.mxu0 %v8099
        %8760 = vmatpush1.bf16.msra.mxu0 %v8098
        %8761 = vmatprep.subr.bf16.mxu0 %v8103
        %8762 = vmatpush1.bf16.msra.mxu0 %v8102
        %8763 = vmatprep.subr.bf16.mxu0 %v8107
        %8764 = vmatpush1.bf16.msra.mxu0 %v8106
        %8765 = vmatprep.subr.bf16.mxu0 %v8111
        %8766 = vmatpush1.bf16.msra.mxu0 %v8110
        %8767 = vmatprep.subr.bf16.mxu0 %v8115
        %8768 = vmatpush1.bf16.msra.mxu0 %v8114
        %8769 = vmatprep.subr.bf16.mxu0 %v8119
        %8770 = vmatpush1.bf16.msra.mxu0 %v8118
        %8771 = vmatprep.subr.bf16.mxu0 %v8123
        %8772 = vmatpush1.bf16.msra.mxu0 %v8122
        %8773 = vmatprep.subr.bf16.mxu0 %v8127
        %8774 = vmatpush1.bf16.msra.mxu0 %v8126
        %8775 = vmatprep.subr.bf16.mxu0 %v8131
        %8776 = vmatpush1.bf16.msra.mxu0 %v8130
        %8777 = vmatprep.mubr.bf16.mxu0 %v7083
        %8778 = vmatmul.mubr.bf16.gmra.mrb[0].mxu0 %v7082
        %v8779 = vpop.f32.mrb[0].mxu0
        %v8780 = vadd.f32 %v8729, %v8779
        %v8781 = vpop.f32.mrb[0].mxu0
        %v8782 = vadd.f32 %v8731, %v8781
        %v8783 = vpop.f32.mrb[0].mxu0
        %v8784 = vadd.f32 %v8733, %v8783
        %v8785 = vpop.f32.mrb[0].mxu0
        %v8786 = vadd.f32 %v8735, %v8785
        %8787 = vmatprep.mubr.bf16.mxu0 %v7091
        %8788 = vmatmul.mubr.bf16.gmra.mrb[0].mxu0 %v7090
        %v8789 = vpop.f32.mrb[0].mxu0
        %v8790 = vadd.f32 %v8739, %v8789
        %v8791 = vpop.f32.mrb[0].mxu0
        %v8792 = vadd.f32 %v8741, %v8791
        %v8793 = vpop.f32.mrb[0].mxu0
        %v8794 = vpop.f32.mrb[0].mxu0
        %8795 = vdwg.mxu0
        %v8796 = vpack.c.bf16 %v8580, %v8576
        %v8797 = vpack.c.bf16 %v8582, %v8578
        %v8798 = vpack.c.bf16 %v8784, %v8780
        %v8799 = vpack.c.bf16 %v8786, %v8782
        %v8800 = vpack.c.bf16 %v8586, %v8586
        %v8801 = vpack.c.bf16 %v8588, %v8588
        %v8802 = vpack.c.bf16 %v8790, %v8790
        %v8803 = vpack.c.bf16 %v8792, %v8792
        %v8807 = vunpack.c.l.b16 %v6769
        %v8808 = vunpack.c.l.b16 %v6770
        %v8809 = vunpack.c.l.b16 %v6771
        %v8810 = vpack.c.b16 %v8808, %v8807
        %v8811 = vpack.c.b16 %v8809, %v8809
        %vm8812 = vcmask 162816
        %v8814 = vsel %vm8812, %v8810, 0
        %v8817 = vsel %vm8812, %v8811, 0
        %vm8819 = vcmask 1041408
        %v8821 = vsel %vm8819, %v8800, 0
        %v8824 = vsel %vm8819, %v8801, 0
        %v8827 = vsel %vm8819, %v8802, 0
        %v8830 = vsel %vm8819, %v8803, 0
        %8832 = vmatprep.subr.bf16.mxu0 %v8797
        %8833 = vmatpush1.bf16.msra.mxu0 %v8796
        %8834 = vmatprep.subr.bf16.mxu0 %v8824
        %8835 = vmatpush1.bf16.msra.mxu0 %v8821
        %8836 = vmatprep.subr.bf16.mxu0 0
        %8837 = vmatpush1.bf16.msra.mxu0 0
        %8838 = vmatprep.subr.bf16.mxu0 0
        %8839 = vmatpush1.bf16.msra.mxu0 0
        %8840 = vmatprep.subr.bf16.mxu0 0
        %8841 = vmatpush1.bf16.msra.mxu0 0
        %8842 = vmatprep.subr.bf16.mxu0 0
        %8843 = vmatpush1.bf16.msra.mxu0 0
        %8844 = vmatprep.subr.bf16.mxu0 0
        %8845 = vmatpush1.bf16.msra.mxu0 0
        %8846 = vmatprep.subr.bf16.mxu0 0
        %8847 = vmatpush1.bf16.msra.mxu0 0
        %8848 = vmatprep.subr.bf16.mxu0 0
        %8849 = vmatpush1.bf16.msra.mxu0 0
        %8850 = vmatprep.subr.bf16.mxu0 0
        %8851 = vmatpush1.bf16.msra.mxu0 0
        %8852 = vmatprep.subr.bf16.mxu0 0
        %8853 = vmatpush1.bf16.msra.mxu0 0
        %8854 = vmatprep.subr.bf16.mxu0 0
        %8855 = vmatpush1.bf16.msra.mxu0 0
        %8856 = vmatprep.subr.bf16.mxu0 0
        %8857 = vmatpush1.bf16.msra.mxu0 0
        %8858 = vmatprep.subr.bf16.mxu0 0
        %8859 = vmatpush1.bf16.msra.mxu0 0
        %8860 = vmatprep.subr.bf16.mxu0 0
        %8861 = vmatpush1.bf16.msra.mxu0 0
        %8862 = vmatprep.subr.bf16.mxu0 0
        %8863 = vmatpush1.bf16.msra.mxu0 0
        %8864 = vmatprep.mubr.bf16.mxu0 0
        %8865 = vmatmul.mubr.bf16.gmra.mrb[0].mxu0 %v8814
        %v8866 = vpop.f32.mrb[0].mxu0
        %v8867 = vadd.f32 0.0, %v8866
        %v8868 = vpop.f32.mrb[0].mxu0
        %v8869 = vadd.f32 0.0, %v8868
        %v8870 = vpop.f32.mrb[0].mxu0
        %v8871 = vadd.f32 0.0, %v8870
        %v8872 = vpop.f32.mrb[0].mxu0
        %v8873 = vadd.f32 0.0, %v8872
        %8874 = vmatprep.mubr.bf16.mxu0 0
        %8875 = vmatmul.mubr.bf16.gmra.mrb[0].mxu0 %v8817
        %v8876 = vpop.f32.mrb[0].mxu0
        %v8877 = vadd.f32 0.0, %v8876
        %v8878 = vpop.f32.mrb[0].mxu0
        %v8879 = vadd.f32 0.0, %v8878
        %v8880 = vpop.f32.mrb[0].mxu0
        %v8881 = vpop.f32.mrb[0].mxu0
        %8882 = vdwg.mxu0
        %8883 = vmatprep.subr.bf16.mxu0 %v8799
        %8884 = vmatpush1.bf16.msra.mxu0 %v8798
        %8885 = vmatprep.subr.bf16.mxu0 %v8830
        %8886 = vmatpush1.bf16.msra.mxu0 %v8827
        %8887 = vmatprep.subr.bf16.mxu0 0
        %8888 = vmatpush1.bf16.msra.mxu0 0
        %8889 = vmatprep.subr.bf16.mxu0 0
        %8890 = vmatpush1.bf16.msra.mxu0 0
        %8891 = vmatprep.subr.bf16.mxu0 0
        %8892 = vmatpush1.bf16.msra.mxu0 0
        %8893 = vmatprep.subr.bf16.mxu0 0
        %8894 = vmatpush1.bf16.msra.mxu0 0
        %8895 = vmatprep.subr.bf16.mxu0 0
        %8896 = vmatpush1.bf16.msra.mxu0 0
        %8897 = vmatprep.subr.bf16.mxu0 0
        %8898 = vmatpush1.bf16.msra.mxu0 0
        %8899 = vmatprep.subr.bf16.mxu0 0
        %8900 = vmatpush1.bf16.msra.mxu0 0
        %8901 = vmatprep.subr.bf16.mxu0 0
        %8902 = vmatpush1.bf16.msra.mxu0 0
        %8903 = vmatprep.subr.bf16.mxu0 0
        %8904 = vmatpush1.bf16.msra.mxu0 0
        %8905 = vmatprep.subr.bf16.mxu0 0
        %8906 = vmatpush1.bf16.msra.mxu0 0
        %8907 = vmatprep.subr.bf16.mxu0 0
        %8908 = vmatpush1.bf16.msra.mxu0 0
        %8909 = vmatprep.subr.bf16.mxu0 0
        %8910 = vmatpush1.bf16.msra.mxu0 0
        %8911 = vmatprep.subr.bf16.mxu0 0
        %8912 = vmatpush1.bf16.msra.mxu0 0
        %8913 = vmatprep.subr.bf16.mxu0 0
        %8914 = vmatpush1.bf16.msra.mxu0 0
        %8915 = vmatprep.mubr.bf16.mxu0 0
        %8916 = vmatmul.mubr.bf16.gmra.mrb[0].mxu0 %v8814
        %v8917 = vpop.f32.mrb[0].mxu0
        %v8918 = vadd.f32 0.0, %v8917
        %v8919 = vpop.f32.mrb[0].mxu0
        %v8920 = vadd.f32 0.0, %v8919
        %v8921 = vpop.f32.mrb[0].mxu0
        %v8922 = vadd.f32 0.0, %v8921
        %v8923 = vpop.f32.mrb[0].mxu0
        %v8924 = vadd.f32 0.0, %v8923
        %8925 = vmatprep.mubr.bf16.mxu0 0
        %8926 = vmatmul.mubr.bf16.gmra.mrb[0].mxu0 %v8817
        %v8927 = vpop.f32.mrb[0].mxu0
        %v8928 = vadd.f32 0.0, %v8927
        %v8929 = vpop.f32.mrb[0].mxu0
        %v8930 = vadd.f32 0.0, %v8929
        %v8931 = vpop.f32.mrb[0].mxu0
        %v8932 = vpop.f32.mrb[0].mxu0
        %8933 = vdwg.mxu0
        %vm8934 = vcmp.gt.f32.partialorder %v8867, 0.0
        %vm8935 = vcmp.gt.f32.partialorder %v8869, 0.0
        %vm8936 = vcmp.gt.f32.partialorder %v8918, 0.0
        %vm8937 = vcmp.gt.f32.partialorder %v8920, 0.0
        %vm8938 = vcmp.gt.f32.partialorder %v8871, 0.0
        %vm8939 = vcmp.gt.f32.partialorder %v8873, 0.0
        %vm8940 = vcmp.gt.f32.partialorder %v8922, 0.0
        %vm8941 = vcmp.gt.f32.partialorder %v8924, 0.0
        %vm8942 = vcmp.gt.f32.partialorder %v8877, 0.0
        %vm8943 = vcmp.gt.f32.partialorder %v8879, 0.0
        %vm8944 = vcmp.gt.f32.partialorder %v8928, 0.0
        %vm8945 = vcmp.gt.f32.partialorder %v8930, 0.0
        %v8946 = vmul.f32 %v8867, 0.2
        %v8947 = vmul.f32 %v8869, 0.2
        %v8948 = vmul.f32 %v8918, 0.2
        %v8949 = vmul.f32 %v8920, 0.2
        %v8950 = vmul.f32 %v8871, 0.2
        %v8951 = vmul.f32 %v8873, 0.2
        %v8952 = vmul.f32 %v8922, 0.2
        %v8953 = vmul.f32 %v8924, 0.2
        %v8954 = vmul.f32 %v8877, 0.2
        %v8955 = vmul.f32 %v8879, 0.2
        %v8956 = vmul.f32 %v8928, 0.2
        %v8957 = vmul.f32 %v8930, 0.2
        %v8958 = vsel %vm8934, %v8867, %v8946
        %v8959 = vsel %vm8935, %v8869, %v8947
        %v8960 = vsel %vm8936, %v8918, %v8948
        %v8961 = vsel %vm8937, %v8920, %v8949
        %v8962 = vsel %vm8938, %v8871, %v8950
        %v8963 = vsel %vm8939, %v8873, %v8951
        %v8964 = vsel %vm8940, %v8922, %v8952
        %v8965 = vsel %vm8941, %v8924, %v8953
        %v8966 = vsel %vm8942, %v8877, %v8954
        %v8967 = vsel %vm8943, %v8879, %v8955
        %v8968 = vsel %vm8944, %v8928, %v8956
        %v8969 = vsel %vm8945, %v8930, %v8957
        %v8970 = vpack.c.bf16 %v6765, %v6765
        %v8971 = vpack.c.bf16 %v6766, %v6766
        %v8972 = vpack.c.bf16 %v6767, %v6767
        %v8973 = vpack.c.bf16 %v6768, %v6768
        %v8974 = vld [vmem:[#allocation18] sm:$0x3]
        %v8975 = vpack.c.bf16 %v8962, %v8958
        %v8976 = vpack.c.bf16 %v8963, %v8959
        %v8977 = vpack.c.bf16 %v8964, %v8960
        %v8978 = vpack.c.bf16 %v8965, %v8961
        %v8979 = vpack.c.bf16 %v8966, %v8966
        %v8980 = vpack.c.bf16 %v8967, %v8967
        %v8981 = vpack.c.bf16 %v8968, %v8968
        %v8982 = vpack.c.bf16 %v8969, %v8969
        %8983 = vmatprep.subr.bf16.mxu0 %v8976
        %8984 = vmatpush1.bf16.xpose.msra.mxu0 %v8975
        %8985 = vmatprep.subr.bf16.mxu0 %v8980
        %8986 = vmatpush1.bf16.xpose.msra.mxu0 %v8979
        %8987 = vmatprep.subr.bf16.mxu0 0
        %8988 = vmatpush1.bf16.xpose.msra.mxu0 0
        %8989 = vmatprep.subr.bf16.mxu0 0
        %8990 = vmatpush1.bf16.xpose.msra.mxu0 0
        %8991 = vmatprep.subr.bf16.mxu0 0
        %8992 = vmatpush1.bf16.xpose.msra.mxu0 0
        %8993 = vmatprep.subr.bf16.mxu0 0
        %8994 = vmatpush1.bf16.xpose.msra.mxu0 0
        %8995 = vmatprep.subr.bf16.mxu0 0
        %8996 = vmatpush1.bf16.xpose.msra.mxu0 0
        %8997 = vmatprep.subr.bf16.mxu0 0
        %8998 = vmatpush1.bf16.xpose.msra.mxu0 0
        %8999 = vmatprep.subr.bf16.mxu0 0
        %9000 = vmatpush1.bf16.xpose.msra.mxu0 0
        %9001 = vmatprep.subr.bf16.mxu0 0
        %9002 = vmatpush1.bf16.xpose.msra.mxu0 0
        %9003 = vmatprep.subr.bf16.mxu0 0
        %9004 = vmatpush1.bf16.xpose.msra.mxu0 0
        %9005 = vmatprep.subr.bf16.mxu0 0
        %9006 = vmatpush1.bf16.xpose.msra.mxu0 0
        %9007 = vmatprep.subr.bf16.mxu0 0
        %9008 = vmatpush1.bf16.xpose.msra.mxu0 0
        %9009 = vmatprep.subr.bf16.mxu0 0
        %9010 = vmatpush1.bf16.xpose.msra.mxu0 0
        %9011 = vmatprep.subr.bf16.mxu0 0
        %9012 = vmatpush1.bf16.xpose.msra.mxu0 0
        %9013 = vmatprep.subr.bf16.mxu0 0
        %9014 = vmatpush1.bf16.xpose.msra.mxu0 0
        %9015 = vmatprep.mubr.bf16.mxu0 %v8971
        %9016 = vmatmul.mubr.bf16.gmra.mrb[0].mxu0 %v8970
        %v9017 = vpop.f32.mrb[0].mxu0
        %v9018 = vadd.f32 0.0, %v9017
        %v9019 = vpop.f32.mrb[0].mxu0
        %v9020 = vpop.f32.mrb[0].mxu0
        %v9021 = vpop.f32.mrb[0].mxu0
        %9022 = vdwg.mxu0
        %9023 = vmatprep.subr.bf16.mxu0 %v8978
        %9024 = vmatpush1.bf16.xpose.msra.mxu0 %v8977
        %9025 = vmatprep.subr.bf16.mxu0 %v8982
        %9026 = vmatpush1.bf16.xpose.msra.mxu0 %v8981
        %9027 = vmatprep.subr.bf16.mxu0 0
        %9028 = vmatpush1.bf16.xpose.msra.mxu0 0
        %9029 = vmatprep.subr.bf16.mxu0 0
        %9030 = vmatpush1.bf16.xpose.msra.mxu0 0
        %9031 = vmatprep.subr.bf16.mxu0 0
        %9032 = vmatpush1.bf16.xpose.msra.mxu0 0
        %9033 = vmatprep.subr.bf16.mxu0 0
        %9034 = vmatpush1.bf16.xpose.msra.mxu0 0
        %9035 = vmatprep.subr.bf16.mxu0 0
        %9036 = vmatpush1.bf16.xpose.msra.mxu0 0
        %9037 = vmatprep.subr.bf16.mxu0 0
        %9038 = vmatpush1.bf16.xpose.msra.mxu0 0
        %9039 = vmatprep.subr.bf16.mxu0 0
        %9040 = vmatpush1.bf16.xpose.msra.mxu0 0
        %9041 = vmatprep.subr.bf16.mxu0 0
        %9042 = vmatpush1.bf16.xpose.msra.mxu0 0
        %9043 = vmatprep.subr.bf16.mxu0 0
        %9044 = vmatpush1.bf16.xpose.msra.mxu0 0
        %9045 = vmatprep.subr.bf16.mxu0 0
        %9046 = vmatpush1.bf16.xpose.msra.mxu0 0
        %9047 = vmatprep.subr.bf16.mxu0 0
        %9048 = vmatpush1.bf16.xpose.msra.mxu0 0
        %9049 = vmatprep.subr.bf16.mxu0 0
        %9050 = vmatpush1.bf16.xpose.msra.mxu0 0
        %9051 = vmatprep.subr.bf16.mxu0 0
        %9052 = vmatpush1.bf16.xpose.msra.mxu0 0
        %9053 = vmatprep.subr.bf16.mxu0 0
        %9054 = vmatpush1.bf16.xpose.msra.mxu0 0
        %9055 = vmatprep.mubr.bf16.mxu0 %v8973
        %9056 = vmatmul.mubr.bf16.gmra.mrb[0].mxu0 %v8972
        %v9057 = vpop.f32.mrb[0].mxu0
        %v9058 = vadd.f32 %v9018, %v9057
        %v9059 = vpop.f32.mrb[0].mxu0
        %v9060 = vpop.f32.mrb[0].mxu0
        %v9061 = vpop.f32.mrb[0].mxu0
        %9062 = vdwg.mxu0
        %v9063 = vadd.f32 %v8974, %v9058
        %vm9064 = vcmask 156672
        %9065 = vst.msk [vmem:[#allocation18] sm:$0x3] %vm9064, %v9063
        %v9066 = vld [vmem:[#allocation17] sm:$0x3]
        %v9067 = vld [vmem:[%s493] sm:$0xff]
        %v9068 = vld [vmem:[%s493 + $0x8] sm:$0xff]
        %v9069 = vld [vmem:[%s493 + $0x10] sm:$0xff]
        %v9070 = vld [vmem:[%s493 + $0x18] sm:$0xff]
        %v9071 = vld [vmem:[%s493 + $0x20] sm:$0x33]
        %v9072 = vld [vmem:[%s493 + $0x28] sm:$0x33]
        %v9079 = vunpack.c.l.b16 %v9067
        %v9080 = vunpack.c.h.b16 %v9067
        %v9081 = vunpack.c.l.b16 %v9068
        %v9082 = vunpack.c.h.b16 %v9068
        %v9083 = vunpack.c.l.b16 %v9069
        %v9084 = vunpack.c.h.b16 %v9069
        %v9085 = vunpack.c.l.b16 %v9070
        %v9086 = vunpack.c.h.b16 %v9070
        %v9087 = vunpack.c.l.b16 %v9071
        %v9088 = vunpack.c.h.b16 %v9071
        %v9089 = vunpack.c.l.b16 %v9072
        %v9090 = vunpack.c.h.b16 %v9072
        %v9091 = vpack.c.b16 %v9083, %v9079
        %v9092 = vpack.c.b16 %v9084, %v9080
        %v9093 = vpack.c.b16 %v9085, %v9081
        %v9094 = vpack.c.b16 %v9086, %v9082
        %v9095 = vpack.c.b16 %v9087, %v9087
        %v9096 = vpack.c.b16 %v9088, %v9088
        %v9097 = vpack.c.b16 %v9089, %v9089
        %v9098 = vpack.c.b16 %v9090, %v9090
        %9107 = vmatprep.subr.bf16.mxu0 %v9092
        %9108 = vmatpush1.bf16.xpose.msra.mxu0 %v9091
        %9109 = vmatprep.subr.bf16.mxu0 %v9096
        %9110 = vmatpush1.bf16.xpose.msra.mxu0 %v9095
        %9111 = vmatprep.subr.bf16.mxu0 0
        %9112 = vmatpush1.bf16.xpose.msra.mxu0 0
        %9113 = vmatprep.subr.bf16.mxu0 0
        %9114 = vmatpush1.bf16.xpose.msra.mxu0 0
        %9115 = vmatprep.subr.bf16.mxu0 0
        %9116 = vmatpush1.bf16.xpose.msra.mxu0 0
        %9117 = vmatprep.subr.bf16.mxu0 0
        %9118 = vmatpush1.bf16.xpose.msra.mxu0 0
        %9119 = vmatprep.subr.bf16.mxu0 0
        %9120 = vmatpush1.bf16.xpose.msra.mxu0 0
        %9121 = vmatprep.subr.bf16.mxu0 0
        %9122 = vmatpush1.bf16.xpose.msra.mxu0 0
        %9123 = vmatprep.subr.bf16.mxu0 0
        %9124 = vmatpush1.bf16.xpose.msra.mxu0 0
        %9125 = vmatprep.subr.bf16.mxu0 0
        %9126 = vmatpush1.bf16.xpose.msra.mxu0 0
        %9127 = vmatprep.subr.bf16.mxu0 0
        %9128 = vmatpush1.bf16.xpose.msra.mxu0 0
        %9129 = vmatprep.subr.bf16.mxu0 0
        %9130 = vmatpush1.bf16.xpose.msra.mxu0 0
        %9131 = vmatprep.subr.bf16.mxu0 0
        %9132 = vmatpush1.bf16.xpose.msra.mxu0 0
        %9133 = vmatprep.subr.bf16.mxu0 0
        %9134 = vmatpush1.bf16.xpose.msra.mxu0 0
        %9135 = vmatprep.subr.bf16.mxu0 0
        %9136 = vmatpush1.bf16.xpose.msra.mxu0 0
        %9137 = vmatprep.subr.bf16.mxu0 0
        %9138 = vmatpush1.bf16.xpose.msra.mxu0 0
        %9139 = vmatprep.mubr.bf16.mxu0 %v8971
        %9140 = vmatmul.mubr.bf16.gmra.mrb[0].mxu0 %v8970
        %v9141 = vpop.f32.mrb[0].mxu0
        %v9142 = vadd.f32 0.0, %v9141
        %v9143 = vpop.f32.mrb[0].mxu0
        %v9144 = vpop.f32.mrb[0].mxu0
        %v9145 = vpop.f32.mrb[0].mxu0
        %9146 = vdwg.mxu0
        %9147 = vmatprep.subr.bf16.mxu0 %v9094
        %9148 = vmatpush1.bf16.xpose.msra.mxu0 %v9093
        %9149 = vmatprep.subr.bf16.mxu0 %v9098
        %9150 = vmatpush1.bf16.xpose.msra.mxu0 %v9097
        %9151 = vmatprep.subr.bf16.mxu0 0
        %9152 = vmatpush1.bf16.xpose.msra.mxu0 0
        %9153 = vmatprep.subr.bf16.mxu0 0
        %9154 = vmatpush1.bf16.xpose.msra.mxu0 0
        %9155 = vmatprep.subr.bf16.mxu0 0
        %9156 = vmatpush1.bf16.xpose.msra.mxu0 0
        %9157 = vmatprep.subr.bf16.mxu0 0
        %9158 = vmatpush1.bf16.xpose.msra.mxu0 0
        %9159 = vmatprep.subr.bf16.mxu0 0
        %9160 = vmatpush1.bf16.xpose.msra.mxu0 0
        %9161 = vmatprep.subr.bf16.mxu0 0
        %9162 = vmatpush1.bf16.xpose.msra.mxu0 0
        %9163 = vmatprep.subr.bf16.mxu0 0
        %9164 = vmatpush1.bf16.xpose.msra.mxu0 0
        %9165 = vmatprep.subr.bf16.mxu0 0
        %9166 = vmatpush1.bf16.xpose.msra.mxu0 0
        %9167 = vmatprep.subr.bf16.mxu0 0
        %9168 = vmatpush1.bf16.xpose.msra.mxu0 0
        %9169 = vmatprep.subr.bf16.mxu0 0
        %9170 = vmatpush1.bf16.xpose.msra.mxu0 0
        %9171 = vmatprep.subr.bf16.mxu0 0
        %9172 = vmatpush1.bf16.xpose.msra.mxu0 0
        %9173 = vmatprep.subr.bf16.mxu0 0
        %9174 = vmatpush1.bf16.xpose.msra.mxu0 0
        %9175 = vmatprep.subr.bf16.mxu0 0
        %9176 = vmatpush1.bf16.xpose.msra.mxu0 0
        %9177 = vmatprep.subr.bf16.mxu0 0
        %9178 = vmatpush1.bf16.xpose.msra.mxu0 0
        %9179 = vmatprep.mubr.bf16.mxu0 %v8973
        %9180 = vmatmul.mubr.bf16.gmra.mrb[0].mxu0 %v8972
        %v9181 = vpop.f32.mrb[0].mxu0
        %v9182 = vadd.f32 %v9142, %v9181
        %v9183 = vpop.f32.mrb[0].mxu0
        %v9184 = vpop.f32.mrb[0].mxu0
        %v9185 = vpop.f32.mrb[0].mxu0
        %9186 = vdwg.mxu0
        %v9187 = vadd.f32 %v9066, %v9182
        %9188 = vst.msk [vmem:[#allocation17] sm:$0x3] %vm9064, %v9187
        // Predicated region
        $region97: #{net_forward.1} parent=59 // pred_check
          %p9189 = pneg %p269
        $region98: #{net_forward.1} parent=59 // pred_check_branch
          %9191 = sbr.rel (%p9189) target = $region100
        $region99: #{net_forward.1} parent=59 // pred_region
          %s9193 = ssub.s32 32, 32
          %9194 = vsyncadd [#allocation6], %s9193
          %s9196 = sshll.u32 [#allocation17], 4
          %s9197 = int_to_ptr.vmem [resolvable:$true] %s9196
          %9199 = dma.vmem_to_hbm [thread:$0]  %s9197, 32, %s10, [#allocation6]
        $region100: #{net_forward.1} parent=59 // pred_fallthru
          _
        // Predicated region
        $region101: #{net_forward.1} parent=59 // pred_check
          %p9200 = pneg %p290
        $region102: #{net_forward.1} parent=59 // pred_check_branch
          %9202 = sbr.rel (%p9200) target = $region104
        $region103: #{net_forward.1} parent=59 // pred_region
          %s9204 = ssub.s32 32, 32
          %9205 = vsyncadd [#allocation19], %s9204
          %s9207 = sshll.u32 [#allocation18], 4
          %s9208 = int_to_ptr.vmem [resolvable:$true] %s9207
          %9210 = dma.vmem_to_hbm [thread:$0]  %s9208, 32, %s11, [#allocation19]
        $region104: #{net_forward.1} parent=59 // pred_fallthru
          _
        // Predicated region
        $region105: #{net_forward.1} parent=59 // pred_check
          %p9211 = pneg %p269
        $region106: #{net_forward.1} parent=59 // pred_check_branch
          %9213 = sbr.rel (%p9211) target = $region108
        $region107: #{net_forward.1} parent=59 // pred_region
          %9214 = dma.done [#allocation6], 32
        $region108: #{net_forward.1} parent=59 // pred_fallthru
          _
        // Predicated region
        $region109: #{net_forward.1} parent=59 // pred_check
          %p9215 = pneg %p290
        $region110: #{net_forward.1} parent=59 // pred_check_branch
          %9217 = sbr.rel (%p9215) target = $region112
        $region111: #{net_forward.1} parent=59 // pred_region
          %9218 = dma.done [#allocation19], 32
        $region112: #{net_forward.1} parent=59 // pred_fallthru
          _
      $region60: #{net_forward.1} parent=5 // pred_fallthru
        _
      %p9219 = scmp.le.s32.totalorder 2, %s26
      // Predicated region
      $region113: #{net_forward.1} parent=5 // pred_check
        %p9220 = pneg %p9219
      $region114: #{net_forward.1} parent=5 // pred_check_branch
        %9222 = sbr.rel (%p9220) target = $region116
      $region115: #{net_forward.1} parent=5 // pred_region
        %s9223 = ssub.s32 %s26, 2
      $region116: #{net_forward.1} parent=5 // pred_fallthru
        _
    $region6: #{net_forward.1} parent=1 // loop_footer
      %s30 = sadd.s32 1, %s26
    $region7: #{net_forward.1} parent=1 // loop_footer_branch
      %25 = sbr.rel target = $region3
    $region8: #{net_forward.1} parent=1 // loop_exit
      _
    %9224 = vsyncpa [#allocation5], 1
    %s9225 = scalar_lea.sflag [#allocation5], 1
    %9226 = vsyncpa %s9225, 1
    %9227 = vsyncpa [#allocation8], 1
    %9228 = vsyncpa [#allocation11], 1
    %s9229 = scalar_lea.sflag [#allocation11], 1
    %9230 = vsyncpa %s9229, 1
    %9231 = vsyncpa [#allocation14], 1
    %9232 = vsyncpa [#allocation6], 1
    %s9233 = scalar_lea.sflag [#allocation6], 1
    %9234 = vsyncpa %s9233, 1
    %9235 = vsyncpa [#allocation19], 1

</llo_original>
